<compile_context>
chip_gen: v6e
topology: v6e:2x2x1
jax: 0.10.0
libtpu: 0.0.40
codegen_flags: <defaults>
</compile_context>

<pallas_src>
import functools

import jax
import jax.numpy as jnp
from jax import lax
from jax.experimental import pallas as pl
from jax.experimental.pallas import tpu as pltpu

EPS = 1e-5  # torch.nn.BatchNorm1d default


def _bn_relu(y, gamma, beta):
    """Training-mode BatchNorm (biased batch variance, clamped >= 0) + ReLU over axis 0."""
    mean = jnp.mean(y, axis=0, keepdims=True)
    var = jnp.maximum(jnp.mean(y * y, axis=0, keepdims=True) - mean * mean, 0.0)
    a = gamma * lax.rsqrt(var + EPS)
    return jnp.maximum(y * a + (beta - mean * a), 0.0)


def _accum_stats(y, sum_ref, sumsq_ref):
    """Accumulate per-channel sum / sum-of-squares into (8, C) sublane partials."""
    # (rows, C) -> (rows//8, 8, C): leading-dim split only, layout-free for rows % 8 == 0.
    r = y.reshape(-1, 8, y.shape[-1])
    sum_ref[...] += jnp.sum(r, axis=0)
    sumsq_ref[...] += jnp.sum(r * r, axis=0)


def _stats_to_scale_shift(sum_ref, sumsq_ref, gamma_ref, beta_ref, inv_n):
    """Collapse the 8 sublane partials into BN scale/shift (fp32, variance clamped >= 0)."""
    mean = jnp.sum(sum_ref[...], axis=0, keepdims=True) * inv_n
    ex2 = jnp.sum(sumsq_ref[...], axis=0, keepdims=True) * inv_n
    var = jnp.maximum(ex2 - mean * mean, 0.0)
    a = gamma_ref[...] * lax.rsqrt(var + EPS)
    c = beta_ref[...] - mean * a
    return a, c


def tnet_kernel(B, tile_n, n_rows,
                x_ref,
                w1, b1, g1, be1,
                w2, b2, g2, be2,
                w3, b3, g3, be3,
                w4, b4, g4, be4,
                w5, b5, g5, be5,
                w6, b6,
                out_ref,
                s1m, s1v, s2m, s2v, s3m, s3v, mx):
    p = pl.program_id(0)          # pass axis (0: L1 stats, 1: L2 stats, 2: L3 stats + max)
    t = pl.program_id(1)          # point-tile axis
    n_tiles = pl.num_programs(1)
    inv_n = 1.0 / n_rows

    @pl.when((p == 0) & (t == 0))
    def _init():
        for s in (s1m, s1v, s2m, s2v, s3m, s3v):
            s[...] = jnp.zeros_like(s)
        mx[...] = jnp.full(mx.shape, -jnp.inf, jnp.float32)

    # This tile's points, channels on the lane axis.  bf16 operands -> MXU, fp32 accumulation.
    cin_pad = x_ref.shape[-1]
    xr = x_ref[...].reshape(B * tile_n, cin_pad)                       # (B*tn, Cpad) bf16
    y1 = jnp.dot(xr, w1[...], preferred_element_type=jnp.float32) + b1[...]

    @pl.when(p == 0)
    def _pass0():                                                      # layer-1 BN stats
        _accum_stats(y1, s1m, s1v)

    @pl.when(p == 1)
    def _pass1():                                                      # layer-2 BN stats
        a1, c1 = _stats_to_scale_shift(s1m, s1v, g1, be1, inv_n)
        h1 = jnp.maximum(y1 * a1 + c1, 0.0)
        y2 = jnp.dot(h1.astype(jnp.bfloat16), w2[...],
                     preferred_element_type=jnp.float32) + b2[...]
        _accum_stats(y2, s2m, s2v)

    @pl.when(p == 2)
    def _pass2():                                  # layer-3 BN stats + per-batch running max
        a1, c1 = _stats_to_scale_shift(s1m, s1v, g1, be1, inv_n)
        h1 = jnp.maximum(y1 * a1 + c1, 0.0)
        y2 = jnp.dot(h1.astype(jnp.bfloat16), w2[...],
                     preferred_element_type=jnp.float32) + b2[...]
        a2, c2 = _stats_to_scale_shift(s2m, s2v, g2, be2, inv_n)
        h2 = jnp.maximum(y2 * a2 + c2, 0.0)
        y3 = jnp.dot(h2.astype(jnp.bfloat16), w3[...],
                     preferred_element_type=jnp.float32) + b3[...]     # (B*tn, 1024) fp32
        _accum_stats(y3, s3m, s3v)
        # vectorized per-batch running max: leading-dim split + one maximum + one full store
        mx[...] = jnp.maximum(mx[...], y3.reshape(B, tile_n, -1).max(axis=1))

    @pl.when((p == 2) & (t == n_tiles - 1))
    def _finalize():
        # MaxPool1d then BN+ReLU (exact swap since a3 = gamma*rsqrt(var+eps) > 0, ReLU monotone)
        a3, c3 = _stats_to_scale_shift(s3m, s3v, g3, be3, inv_n)
        h = jnp.maximum(mx[...] * a3 + c3, 0.0)                        # (B, 1024) fp32

        def fc_bn_relu(hh, w, b, g, be):                               # BN over the batch axis
            y = jnp.dot(hh.astype(jnp.bfloat16), w[...],
                        preferred_element_type=jnp.float32) + b[...]
            return _bn_relu(y, g[...], be[...])

        h = fc_bn_relu(h, w4, b4, g4, be4)
        h = fc_bn_relu(h, w5, b5, g5, be5)
        # lane-dense 128-padded output slab; identity add + slice happen in the wrapper
        out_ref[...] = jnp.dot(h.astype(jnp.bfloat16), w6[...],
                               preferred_element_type=jnp.float32) + b6[...]


def _round_up(x, m):
    return (x + m - 1) // m * m


def _auto_tile_n(B, N, max_rows=2048):
    """Pick tile_n so M = B*tile_n is as large as the VMEM-safe row cap allows (pass-2 live
    intermediates are ~5 KB/row; 2048 rows stays comfortably inside v7x's 64 MiB VMEM),
    preferring M a multiple of 256 and >= 512 to fill the 256-wide v6e/v7x MXU."""
    cands = [t for t in range(8, N + 1, 8) if N % t == 0 and B * t <= max_rows]
    if not cands:
        return N
    pref = [t for t in cands if (B * t) % 256 == 0 and B * t >= 512]
    return max(pref) if pref else max(cands)


def transformation_network(x, params, output_dim, *, tile_n=None):
    """x: (B, N, Cin) float32.  Returns (B, output_dim, output_dim) float32."""
    B, N, cin = x.shape
    cin_pad = params[0].shape[0]
    dd = output_dim * output_dim
    dd_pad = params[-1].shape[1]

    if tile_n is None:
        tile_n = _auto_tile_n(B, N)
    assert N % tile_n == 0 and tile_n % 8 == 0, (N, tile_n)
    n_tiles = N // tile_n
    rows = B * tile_n

    xp = jnp.pad(x, ((0, 0), (0, 0), (0, cin_pad - cin))).astype(jnp.bfloat16)

    kernel = functools.partial(tnet_kernel, B, tile_n, B * N)
    # weights / BN params stay VMEM-resident: constant index_map -> fetched once
    param_specs = [pl.BlockSpec(prm.shape, lambda p, t: (0, 0)) for prm in params]

    # VMEM-driven limit: resident params + double-buffered x tile/output + stat/max scratch +
    # pass-2 fp32 live intermediates (with temporaries), kept v7x-safe (<= 48 MiB).
    param_bytes = sum(int(prm.size) * prm.dtype.itemsize for prm in params)
    tile_bytes = rows * cin_pad * 2
    out_bytes = B * dd_pad * 4
    scratch_bytes = (2 * 8 * (64 + 128 + 1024) + B * 1024) * 4
    inter_bytes = 3 * rows * (64 + 128 + 1024) * 4
    est = 2 * param_bytes + 2 * tile_bytes + 2 * out_bytes + scratch_bytes + inter_bytes
    vmem_limit = int(min(48 << 20, max(16 << 20, 2 * est)))

    out = pl.pallas_call(
        kernel,
        out_shape=jax.ShapeDtypeStruct((B, dd_pad), jnp.float32),
        grid=(3, n_tiles),
        in_specs=[pl.BlockSpec((B, tile_n, cin_pad), lambda p, t: (0, t, 0))] + param_specs,
        out_specs=pl.BlockSpec((B, dd_pad), lambda p, t: (0, 0)),
        scratch_shapes=[
            pltpu.VMEM((8, 64), jnp.float32), pltpu.VMEM((8, 64), jnp.float32),
            pltpu.VMEM((8, 128), jnp.float32), pltpu.VMEM((8, 128), jnp.float32),
            pltpu.VMEM((8, 1024), jnp.float32), pltpu.VMEM((8, 1024), jnp.float32),
            pltpu.VMEM((B, 1024), jnp.float32),
        ],
        compiler_params=pltpu.CompilerParams(
            # Both axes must stay "arbitrary": BN stats / running max are carried in scratch.
            dimension_semantics=("arbitrary", "arbitrary"),
            vmem_limit_bytes=vmem_limit,
        ),
    )(xp, *params)

    eye = jnp.eye(output_dim, dtype=jnp.float32)
    return out[:, :dd].reshape(B, output_dim, output_dim) + eye[None]


def init_params(key, input_dim, output_dim):
    """Kernel-ready parameters: weights pre-transposed to (in, out), point-path weights bf16,
    first-layer input dim zero-padded to >= 8, final layer padded to a 128-wide slab."""
    cin_pad = max(8, _round_up(input_dim, 8))
    dd = output_dim * output_dim
    dd_pad = _round_up(dd, 128)
    layer_dims = [(input_dim, 64), (64, 128), (128, 1024), (1024, 512), (512, 256)]
    keys = jax.random.split(key, 12)
    params = []
    ki = 0
    for li, (ci, co) in enumerate(layer_dims):
        w = jax.random.normal(keys[ki], (co, ci), jnp.float32) / jnp.sqrt(ci); ki += 1
        b = 0.01 * jax.random.normal(keys[ki], (1, co), jnp.float32); ki += 1
        wt = w.T
        if li == 0:
            wt = jnp.pad(wt, ((0, cin_pad - ci), (0, 0)))   # zero rows for padded channels
        gamma = jnp.ones((1, co), jnp.float32)               # BatchNorm init (gamma > 0)
        beta = jnp.zeros((1, co), jnp.float32)
        params += [wt.astype(jnp.bfloat16), b, gamma, beta]
    w6 = jax.random.normal(keys[ki], (dd, 256), jnp.float32) / jnp.sqrt(256.0); ki += 1
    b6 = 0.01 * jax.random.normal(keys[ki], (1, dd), jnp.float32); ki += 1
    w6t = jnp.pad(w6.T, ((0, 0), (0, dd_pad - dd)))           # (256, dd_pad) lane-dense
    b6p = jnp.pad(b6, ((0, 0), (0, dd_pad - dd)))
    params += [w6t.astype(jnp.bfloat16), b6p]
    return params


def reference_forward(x, params, output_dim):
    """Pure-JAX reference with PyTorch op order (BN+ReLU before the max-pool) and the same
    dtype policy as the kernel (bf16 matmul operands, fp32 accumulation / BN math)."""
    B, N, cin = x.shape
    cin_pad = params[0].shape[0]
    xp = jnp.pad(x, ((0, 0), (0, 0), (0, cin_pad - cin))).astype(jnp.bfloat16)
    h = xp.reshape(B * N, cin_pad)

    for i in range(3):                                       # shared MLPs, BN over B*N rows
        w, b, g, be = params[4 * i: 4 * i + 4]
        y = jnp.dot(h.astype(jnp.bfloat16), w, preferred_element_type=jnp.float32) + b
        h = _bn_relu(y, g, be)
    h = h.reshape(B, N, -1).max(axis=1)                      # MaxPool1d(num_points)
    for i in range(3, 5):                                    # FC head, BN over batch
        w, b, g, be = params[4 * i: 4 * i + 4]
        y = jnp.dot(h.astype(jnp.bfloat16), w, preferred_element_type=jnp.float32) + b
        h = _bn_relu(y, g, be)
    w6, b6 = params[20], params[21]
    out = jnp.dot(h.astype(jnp.bfloat16), w6, preferred_element_type=jnp.float32) + b6
    dd = output_dim * output_dim
    eye = jnp.eye(output_dim, dtype=jnp.float32)
    return out[:, :dd].reshape(B, output_dim, output_dim) + eye[None]


if __name__ == "__main__":
    # PointNet's input transform: (x, y, z) points -> 3x3 transform.  Small shapes, but
    # tile_n=64 < N=128 exercises the multi-tile stat/max accumulation path, and
    # M = B*tile_n = 256 keeps the pass-2 matmul MXU-friendly.
    B, N, Cin, D = 4, 128, 3, 3
    key = jax.random.PRNGKey(0)
    kx, kp = jax.random.split(key)
    # Per-cloud scale spread keeps the FC head's batch-BN variances well above eps, so the
    # comparison below isn't dominated by 1/sqrt(eps) amplification of bf16 rounding.
    scales = jnp.linspace(0.5, 1.5, B).reshape(B, 1, 1).astype(jnp.float32)
    x = jax.random.normal(kx, (B, N, Cin), jnp.float32) * scales
    params = init_params(kp, Cin, D)

    out = transformation_network(x, params, D, tile_n=64)
    out = jax.block_until_ready(out)

    ref = reference_forward(x, params, D)
    assert out.shape == (B, D, D), out.shape
    err = float(jnp.max(jnp.abs(out - ref)))
    # Tolerance accounts for the batch-of-B BatchNorm in the FC head, which amplifies the tiny
    # (<=1e-6) kernel-vs-XLA rounding differences; a genuine logic bug produces O(0.1+) errors.
    assert err < 2e-2, f"mismatch: max abs err {err}"

    print("KERNEL_OK")
</pallas_src>

<mosaic_0001>
module attributes {stable_mosaic.version = 11 : i64} {
  func.func @tnet_kernel(%arg0: i32, %arg1: i32, %arg2: memref<4x64x8xbf16, #tpu.memory_space<vmem>>, %arg3: memref<8x64xbf16, #tpu.memory_space<vmem>>, %arg4: memref<1x64xf32, #tpu.memory_space<vmem>>, %arg5: memref<1x64xf32, #tpu.memory_space<vmem>>, %arg6: memref<1x64xf32, #tpu.memory_space<vmem>>, %arg7: memref<64x128xbf16, #tpu.memory_space<vmem>>, %arg8: memref<1x128xf32, #tpu.memory_space<vmem>>, %arg9: memref<1x128xf32, #tpu.memory_space<vmem>>, %arg10: memref<1x128xf32, #tpu.memory_space<vmem>>, %arg11: memref<128x1024xbf16, #tpu.memory_space<vmem>>, %arg12: memref<1x1024xf32, #tpu.memory_space<vmem>>, %arg13: memref<1x1024xf32, #tpu.memory_space<vmem>>, %arg14: memref<1x1024xf32, #tpu.memory_space<vmem>>, %arg15: memref<1024x512xbf16, #tpu.memory_space<vmem>>, %arg16: memref<1x512xf32, #tpu.memory_space<vmem>>, %arg17: memref<1x512xf32, #tpu.memory_space<vmem>>, %arg18: memref<1x512xf32, #tpu.memory_space<vmem>>, %arg19: memref<512x256xbf16, #tpu.memory_space<vmem>>, %arg20: memref<1x256xf32, #tpu.memory_space<vmem>>, %arg21: memref<1x256xf32, #tpu.memory_space<vmem>>, %arg22: memref<1x256xf32, #tpu.memory_space<vmem>>, %arg23: memref<256x128xbf16, #tpu.memory_space<vmem>>, %arg24: memref<1x128xf32, #tpu.memory_space<vmem>>, %arg25: memref<4x128xf32, #tpu.memory_space<vmem>>, %arg26: memref<8x64xf32, #tpu.memory_space<vmem>>, %arg27: memref<8x64xf32, #tpu.memory_space<vmem>>, %arg28: memref<8x128xf32, #tpu.memory_space<vmem>>, %arg29: memref<8x128xf32, #tpu.memory_space<vmem>>, %arg30: memref<8x1024xf32, #tpu.memory_space<vmem>>, %arg31: memref<8x1024xf32, #tpu.memory_space<vmem>>, %arg32: memref<4x1024xf32, #tpu.memory_space<vmem>>) attributes {dimension_semantics = [#tpu.dimension_semantics<arbitrary>, #tpu.dimension_semantics<arbitrary>], iteration_bounds = array<i64: 3, 2>, scalar_prefetch = 0 : i64, scratch_operands = 7 : i64, tpu.core_type = #tpu.core_type<tc>, window_params = [{transform_indices = @transform_0, window_bounds = array<i64: 4, 64, 8>}, {pipeline_mode = #tpu.pipeline_mode<synchronous>, transform_indices = @transform_1, window_bounds = array<i64: 8, 64>}, {pipeline_mode = #tpu.pipeline_mode<synchronous>, transform_indices = @transform_2, window_bounds = array<i64: 1, 64>}, {pipeline_mode = #tpu.pipeline_mode<synchronous>, transform_indices = @transform_3, window_bounds = array<i64: 1, 64>}, {pipeline_mode = #tpu.pipeline_mode<synchronous>, transform_indices = @transform_4, window_bounds = array<i64: 1, 64>}, {pipeline_mode = #tpu.pipeline_mode<synchronous>, transform_indices = @transform_5, window_bounds = array<i64: 64, 128>}, {pipeline_mode = #tpu.pipeline_mode<synchronous>, transform_indices = @transform_6, window_bounds = array<i64: 1, 128>}, {pipeline_mode = #tpu.pipeline_mode<synchronous>, transform_indices = @transform_7, window_bounds = array<i64: 1, 128>}, {pipeline_mode = #tpu.pipeline_mode<synchronous>, transform_indices = @transform_8, window_bounds = array<i64: 1, 128>}, {pipeline_mode = #tpu.pipeline_mode<synchronous>, transform_indices = @transform_9, window_bounds = array<i64: 128, 1024>}, {pipeline_mode = #tpu.pipeline_mode<synchronous>, transform_indices = @transform_10, window_bounds = array<i64: 1, 1024>}, {pipeline_mode = #tpu.pipeline_mode<synchronous>, transform_indices = @transform_11, window_bounds = array<i64: 1, 1024>}, {pipeline_mode = #tpu.pipeline_mode<synchronous>, transform_indices = @transform_12, window_bounds = array<i64: 1, 1024>}, {pipeline_mode = #tpu.pipeline_mode<synchronous>, transform_indices = @transform_13, window_bounds = array<i64: 1024, 512>}, {pipeline_mode = #tpu.pipeline_mode<synchronous>, transform_indices = @transform_14, window_bounds = array<i64: 1, 512>}, {pipeline_mode = #tpu.pipeline_mode<synchronous>, transform_indices = @transform_15, window_bounds = array<i64: 1, 512>}, {pipeline_mode = #tpu.pipeline_mode<synchronous>, transform_indices = @transform_16, window_bounds = array<i64: 1, 512>}, {pipeline_mode = #tpu.pipeline_mode<synchronous>, transform_indices = @transform_17, window_bounds = array<i64: 512, 256>}, {pipeline_mode = #tpu.pipeline_mode<synchronous>, transform_indices = @transform_18, window_bounds = array<i64: 1, 256>}, {pipeline_mode = #tpu.pipeline_mode<synchronous>, transform_indices = @transform_19, window_bounds = array<i64: 1, 256>}, {pipeline_mode = #tpu.pipeline_mode<synchronous>, transform_indices = @transform_20, window_bounds = array<i64: 1, 256>}, {pipeline_mode = #tpu.pipeline_mode<synchronous>, transform_indices = @transform_21, window_bounds = array<i64: 256, 128>}, {pipeline_mode = #tpu.pipeline_mode<synchronous>, transform_indices = @transform_22, window_bounds = array<i64: 1, 128>}, {pipeline_mode = #tpu.pipeline_mode<synchronous>, transform_indices = @transform_23, window_bounds = array<i64: 4, 128>}]} {
    %c0_i32 = arith.constant 0 : i32
    %0 = arith.cmpi eq, %arg0, %c0_i32 : i32
    %c0_i32_0 = arith.constant 0 : i32
    %1 = arith.cmpi eq, %arg1, %c0_i32_0 : i32
    %2 = arith.andi %0, %1 : i1
    %3 = arith.extui %2 : i1 to i32
    %c0_i32_1 = arith.constant 0 : i32
    %4 = arith.cmpi ne, %3, %c0_i32_1 : i32
    scf.if %4 {
      %cst_15 = arith.constant 0.000000e+00 : f32
      %26 = vector.broadcast %cst_15 : f32 to vector<8x64xf32>
      %c0_16 = arith.constant 0 : index
      %c0_17 = arith.constant 0 : index
      %27 = vector.load %arg26[%c0_16, %c0_17] : memref<8x64xf32, #tpu.memory_space<vmem>>, vector<8x64xf32>
      tpu.vector_store %arg26[%c0_16, %c0_17], %26 {strides = array<i32>} : memref<8x64xf32, #tpu.memory_space<vmem>>, vector<8x64xf32>,
      %cst_18 = arith.constant 0.000000e+00 : f32
      %28 = vector.broadcast %cst_18 : f32 to vector<8x64xf32>
      %c0_19 = arith.constant 0 : index
      %c0_20 = arith.constant 0 : index
      %29 = vector.load %arg27[%c0_19, %c0_20] : memref<8x64xf32, #tpu.memory_space<vmem>>, vector<8x64xf32>
      tpu.vector_store %arg27[%c0_19, %c0_20], %28 {strides = array<i32>} : memref<8x64xf32, #tpu.memory_space<vmem>>, vector<8x64xf32>,
      %cst_21 = arith.constant 0.000000e+00 : f32
      %30 = vector.broadcast %cst_21 : f32 to vector<8x128xf32>
      %c0_22 = arith.constant 0 : index
      %c0_23 = arith.constant 0 : index
      %31 = vector.load %arg28[%c0_22, %c0_23] : memref<8x128xf32, #tpu.memory_space<vmem>>, vector<8x128xf32>
      tpu.vector_store %arg28[%c0_22, %c0_23], %30 {strides = array<i32>} : memref<8x128xf32, #tpu.memory_space<vmem>>, vector<8x128xf32>,
      %cst_24 = arith.constant 0.000000e+00 : f32
      %32 = vector.broadcast %cst_24 : f32 to vector<8x128xf32>
      %c0_25 = arith.constant 0 : index
      %c0_26 = arith.constant 0 : index
      %33 = vector.load %arg29[%c0_25, %c0_26] : memref<8x128xf32, #tpu.memory_space<vmem>>, vector<8x128xf32>
      tpu.vector_store %arg29[%c0_25, %c0_26], %32 {strides = array<i32>} : memref<8x128xf32, #tpu.memory_space<vmem>>, vector<8x128xf32>,
      %cst_27 = arith.constant 0.000000e+00 : f32
      %34 = vector.broadcast %cst_27 : f32 to vector<8x1024xf32>
      %c0_28 = arith.constant 0 : index
      %c0_29 = arith.constant 0 : index
      %35 = vector.load %arg30[%c0_28, %c0_29] : memref<8x1024xf32, #tpu.memory_space<vmem>>, vector<8x1024xf32>
      tpu.vector_store %arg30[%c0_28, %c0_29], %34 {strides = array<i32>} : memref<8x1024xf32, #tpu.memory_space<vmem>>, vector<8x1024xf32>,
      %cst_30 = arith.constant 0.000000e+00 : f32
      %36 = vector.broadcast %cst_30 : f32 to vector<8x1024xf32>
      %c0_31 = arith.constant 0 : index
      %c0_32 = arith.constant 0 : index
      %37 = vector.load %arg31[%c0_31, %c0_32] : memref<8x1024xf32, #tpu.memory_space<vmem>>, vector<8x1024xf32>
      tpu.vector_store %arg31[%c0_31, %c0_32], %36 {strides = array<i32>} : memref<8x1024xf32, #tpu.memory_space<vmem>>, vector<8x1024xf32>,
      %cst_33 = arith.constant 0xFF800000 : f32
      %38 = vector.broadcast %cst_33 : f32 to vector<4x1024xf32>
      %c0_34 = arith.constant 0 : index
      %c0_35 = arith.constant 0 : index
      %39 = vector.load %arg32[%c0_34, %c0_35] : memref<4x1024xf32, #tpu.memory_space<vmem>>, vector<4x1024xf32>
      tpu.vector_store %arg32[%c0_34, %c0_35], %38 {strides = array<i32>} : memref<4x1024xf32, #tpu.memory_space<vmem>>, vector<4x1024xf32>,
    } else {
    }
    %c0 = arith.constant 0 : index
    %c0_2 = arith.constant 0 : index
    %c0_3 = arith.constant 0 : index
    %5 = vector.load %arg2[%c0, %c0_2, %c0_3] : memref<4x64x8xbf16, #tpu.memory_space<vmem>>, vector<4x64x8xbf16>
    %6 = vector.shape_cast %5 : vector<4x64x8xbf16> to vector<256x8xbf16>
    %c0_4 = arith.constant 0 : index
    %c0_5 = arith.constant 0 : index
    %7 = vector.load %arg3[%c0_4, %c0_5] : memref<8x64xbf16, #tpu.memory_space<vmem>>, vector<8x64xbf16>
    %cst = arith.constant dense<0.000000e+00> : vector<256x64xf32>
    %8 = tpu.matmul %6, %7, %cst {dimension_numbers = #tpu.dot_dimension_numbers<[1], [0], [0], [1], [0, 0, 1, 1], [], []>} : vector<256x8xbf16>, vector<8x64xbf16>, vector<256x64xf32> -> vector<256x64xf32>
    %c0_6 = arith.constant 0 : index
    %c0_7 = arith.constant 0 : index
    %9 = vector.load %arg4[%c0_6, %c0_7] : memref<1x64xf32, #tpu.memory_space<vmem>>, vector<1x64xf32>
    %10 = vector.broadcast %9 : vector<1x64xf32> to vector<256x64xf32>
    %11 = arith.addf %8, %10 : vector<256x64xf32>
    %c0_i32_8 = arith.constant 0 : i32
    %12 = arith.cmpi eq, %arg0, %c0_i32_8 : i32
    %13 = arith.extui %12 : i1 to i32
    %c0_i32_9 = arith.constant 0 : i32
    %14 = arith.cmpi ne, %13, %c0_i32_9 : i32
    scf.if %14 {
      %26 = vector.shape_cast %11 : vector<256x64xf32> to vector<32x8x64xf32>
      %c0_15 = arith.constant 0 : index
      %c0_16 = arith.constant 0 : index
      %27 = vector.load %arg26[%c0_15, %c0_16] : memref<8x64xf32, #tpu.memory_space<vmem>>, vector<8x64xf32>
      %cst_17 = arith.constant dense<0.000000e+00> : vector<8x64xf32>
      %28 = vector.multi_reduction <add>, %26, %cst_17 [0] : vector<32x8x64xf32> to vector<8x64xf32>
      %29 = arith.addf %27, %28 : vector<8x64xf32>
      %c0_18 = arith.constant 0 : index
      %c0_19 = arith.constant 0 : index
      %30 = vector.load %arg26[%c0_18, %c0_19] : memref<8x64xf32, #tpu.memory_space<vmem>>, vector<8x64xf32>
      tpu.vector_store %arg26[%c0_18, %c0_19], %29 {strides = array<i32>} : memref<8x64xf32, #tpu.memory_space<vmem>>, vector<8x64xf32>,
      %c0_20 = arith.constant 0 : index
      %c0_21 = arith.constant 0 : index
      %31 = vector.load %arg27[%c0_20, %c0_21] : memref<8x64xf32, #tpu.memory_space<vmem>>, vector<8x64xf32>
      %32 = arith.mulf %26, %26 : vector<32x8x64xf32>
      %cst_22 = arith.constant dense<0.000000e+00> : vector<8x64xf32>
      %33 = vector.multi_reduction <add>, %32, %cst_22 [0] : vector<32x8x64xf32> to vector<8x64xf32>
      %34 = arith.addf %31, %33 : vector<8x64xf32>
      %c0_23 = arith.constant 0 : index
      %c0_24 = arith.constant 0 : index
      %35 = vector.load %arg27[%c0_23, %c0_24] : memref<8x64xf32, #tpu.memory_space<vmem>>, vector<8x64xf32>
      tpu.vector_store %arg27[%c0_23, %c0_24], %34 {strides = array<i32>} : memref<8x64xf32, #tpu.memory_space<vmem>>, vector<8x64xf32>,
    } else {
    }
    %c1_i32 = arith.constant 1 : i32
    %15 = arith.cmpi eq, %arg0, %c1_i32 : i32
    %16 = arith.extui %15 : i1 to i32
    %c0_i32_10 = arith.constant 0 : i32
    %17 = arith.cmpi ne, %16, %c0_i32_10 : i32
    scf.if %17 {
      %c0_15 = arith.constant 0 : index
      %c0_16 = arith.constant 0 : index
      %26 = vector.load %arg26[%c0_15, %c0_16] : memref<8x64xf32, #tpu.memory_space<vmem>>, vector<8x64xf32>
      %cst_17 = arith.constant dense<0.000000e+00> : vector<64xf32>
      %27 = vector.multi_reduction <add>, %26, %cst_17 [0] : vector<8x64xf32> to vector<64xf32>
      %28 = vector.shape_cast %27 : vector<64xf32> to vector<1x64xf32>
      %cst_18 = arith.constant 0.001953125 : f32
      %29 = vector.broadcast %cst_18 : f32 to vector<1x64xf32>
      %30 = arith.mulf %28, %29 : vector<1x64xf32>
      %c0_19 = arith.constant 0 : index
      %c0_20 = arith.constant 0 : index
      %31 = vector.load %arg27[%c0_19, %c0_20] : memref<8x64xf32, #tpu.memory_space<vmem>>, vector<8x64xf32>
      %cst_21 = arith.constant dense<0.000000e+00> : vector<64xf32>
      %32 = vector.multi_reduction <add>, %31, %cst_21 [0] : vector<8x64xf32> to vector<64xf32>
      %33 = vector.shape_cast %32 : vector<64xf32> to vector<1x64xf32>
      %cst_22 = arith.constant 0.001953125 : f32
      %34 = vector.broadcast %cst_22 : f32 to vector<1x64xf32>
      %35 = arith.mulf %33, %34 : vector<1x64xf32>
      %36 = arith.mulf %30, %30 : vector<1x64xf32>
      %37 = arith.subf %35, %36 : vector<1x64xf32>
      %cst_23 = arith.constant 0.000000e+00 : f32
      %38 = vector.broadcast %cst_23 : f32 to vector<1x64xf32>
      %39 = arith.maximumf %37, %38 : vector<1x64xf32>
      %c0_24 = arith.constant 0 : index
      %c0_25 = arith.constant 0 : index
      %40 = vector.load %arg5[%c0_24, %c0_25] : memref<1x64xf32, #tpu.memory_space<vmem>>, vector<1x64xf32>
      %cst_26 = arith.constant 9.99999974E-6 : f32
      %41 = vector.broadcast %cst_26 : f32 to vector<1x64xf32>
      %42 = arith.addf %39, %41 : vector<1x64xf32>
      %43 = math.rsqrt %42 : vector<1x64xf32>
      %44 = arith.mulf %40, %43 : vector<1x64xf32>
      %c0_27 = arith.constant 0 : index
      %c0_28 = arith.constant 0 : index
      %45 = vector.load %arg6[%c0_27, %c0_28] : memref<1x64xf32, #tpu.memory_space<vmem>>, vector<1x64xf32>
      %46 = arith.mulf %30, %44 : vector<1x64xf32>
      %47 = arith.subf %45, %46 : vector<1x64xf32>
      %48 = vector.broadcast %44 : vector<1x64xf32> to vector<256x64xf32>
      %49 = arith.mulf %11, %48 : vector<256x64xf32>
      %50 = vector.broadcast %47 : vector<1x64xf32> to vector<256x64xf32>
      %51 = arith.addf %49, %50 : vector<256x64xf32>
      %cst_29 = arith.constant 0.000000e+00 : f32
      %52 = vector.broadcast %cst_29 : f32 to vector<256x64xf32>
      %53 = arith.maximumf %51, %52 : vector<256x64xf32>
      %54 = arith.truncf %53 : vector<256x64xf32> to vector<256x64xbf16>
      %c0_30 = arith.constant 0 : index
      %c0_31 = arith.constant 0 : index
      %55 = vector.load %arg7[%c0_30, %c0_31] : memref<64x128xbf16, #tpu.memory_space<vmem>>, vector<64x128xbf16>
      %cst_32 = arith.constant dense<0.000000e+00> : vector<256x128xf32>
      %56 = tpu.matmul %54, %55, %cst_32 {dimension_numbers = #tpu.dot_dimension_numbers<[1], [0], [0], [1], [0, 0, 1, 1], [], []>} : vector<256x64xbf16>, vector<64x128xbf16>, vector<256x128xf32> -> vector<256x128xf32>
      %c0_33 = arith.constant 0 : index
      %c0_34 = arith.constant 0 : index
      %57 = vector.load %arg8[%c0_33, %c0_34] : memref<1x128xf32, #tpu.memory_space<vmem>>, vector<1x128xf32>
      %58 = vector.broadcast %57 : vector<1x128xf32> to vector<256x128xf32>
      %59 = arith.addf %56, %58 : vector<256x128xf32>
      %60 = vector.shape_cast %59 : vector<256x128xf32> to vector<32x8x128xf32>
      %c0_35 = arith.constant 0 : index
      %c0_36 = arith.constant 0 : index
      %61 = vector.load %arg28[%c0_35, %c0_36] : memref<8x128xf32, #tpu.memory_space<vmem>>, vector<8x128xf32>
      %cst_37 = arith.constant dense<0.000000e+00> : vector<8x128xf32>
      %62 = vector.multi_reduction <add>, %60, %cst_37 [0] : vector<32x8x128xf32> to vector<8x128xf32>
      %63 = arith.addf %61, %62 : vector<8x128xf32>
      %c0_38 = arith.constant 0 : index
      %c0_39 = arith.constant 0 : index
      %64 = vector.load %arg28[%c0_38, %c0_39] : memref<8x128xf32, #tpu.memory_space<vmem>>, vector<8x128xf32>
      tpu.vector_store %arg28[%c0_38, %c0_39], %63 {strides = array<i32>} : memref<8x128xf32, #tpu.memory_space<vmem>>, vector<8x128xf32>,
      %c0_40 = arith.constant 0 : index
      %c0_41 = arith.constant 0 : index
      %65 = vector.load %arg29[%c0_40, %c0_41] : memref<8x128xf32, #tpu.memory_space<vmem>>, vector<8x128xf32>
      %66 = arith.mulf %60, %60 : vector<32x8x128xf32>
      %cst_42 = arith.constant dense<0.000000e+00> : vector<8x128xf32>
      %67 = vector.multi_reduction <add>, %66, %cst_42 [0] : vector<32x8x128xf32> to vector<8x128xf32>
      %68 = arith.addf %65, %67 : vector<8x128xf32>
      %c0_43 = arith.constant 0 : index
      %c0_44 = arith.constant 0 : index
      %69 = vector.load %arg29[%c0_43, %c0_44] : memref<8x128xf32, #tpu.memory_space<vmem>>, vector<8x128xf32>
      tpu.vector_store %arg29[%c0_43, %c0_44], %68 {strides = array<i32>} : memref<8x128xf32, #tpu.memory_space<vmem>>, vector<8x128xf32>,
    } else {
    }
    %c2_i32 = arith.constant 2 : i32
    %18 = arith.cmpi eq, %arg0, %c2_i32 : i32
    %19 = arith.extui %18 : i1 to i32
    %c0_i32_11 = arith.constant 0 : i32
    %20 = arith.cmpi ne, %19, %c0_i32_11 : i32
    scf.if %20 {
      %c0_15 = arith.constant 0 : index
      %c0_16 = arith.constant 0 : index
      %26 = vector.load %arg26[%c0_15, %c0_16] : memref<8x64xf32, #tpu.memory_space<vmem>>, vector<8x64xf32>
      %cst_17 = arith.constant dense<0.000000e+00> : vector<64xf32>
      %27 = vector.multi_reduction <add>, %26, %cst_17 [0] : vector<8x64xf32> to vector<64xf32>
      %28 = vector.shape_cast %27 : vector<64xf32> to vector<1x64xf32>
      %cst_18 = arith.constant 0.001953125 : f32
      %29 = vector.broadcast %cst_18 : f32 to vector<1x64xf32>
      %30 = arith.mulf %28, %29 : vector<1x64xf32>
      %c0_19 = arith.constant 0 : index
      %c0_20 = arith.constant 0 : index
      %31 = vector.load %arg27[%c0_19, %c0_20] : memref<8x64xf32, #tpu.memory_space<vmem>>, vector<8x64xf32>
      %cst_21 = arith.constant dense<0.000000e+00> : vector<64xf32>
      %32 = vector.multi_reduction <add>, %31, %cst_21 [0] : vector<8x64xf32> to vector<64xf32>
      %33 = vector.shape_cast %32 : vector<64xf32> to vector<1x64xf32>
      %cst_22 = arith.constant 0.001953125 : f32
      %34 = vector.broadcast %cst_22 : f32 to vector<1x64xf32>
      %35 = arith.mulf %33, %34 : vector<1x64xf32>
      %36 = arith.mulf %30, %30 : vector<1x64xf32>
      %37 = arith.subf %35, %36 : vector<1x64xf32>
      %cst_23 = arith.constant 0.000000e+00 : f32
      %38 = vector.broadcast %cst_23 : f32 to vector<1x64xf32>
      %39 = arith.maximumf %37, %38 : vector<1x64xf32>
      %c0_24 = arith.constant 0 : index
      %c0_25 = arith.constant 0 : index
      %40 = vector.load %arg5[%c0_24, %c0_25] : memref<1x64xf32, #tpu.memory_space<vmem>>, vector<1x64xf32>
      %cst_26 = arith.constant 9.99999974E-6 : f32
      %41 = vector.broadcast %cst_26 : f32 to vector<1x64xf32>
      %42 = arith.addf %39, %41 : vector<1x64xf32>
      %43 = math.rsqrt %42 : vector<1x64xf32>
      %44 = arith.mulf %40, %43 : vector<1x64xf32>
      %c0_27 = arith.constant 0 : index
      %c0_28 = arith.constant 0 : index
      %45 = vector.load %arg6[%c0_27, %c0_28] : memref<1x64xf32, #tpu.memory_space<vmem>>, vector<1x64xf32>
      %46 = arith.mulf %30, %44 : vector<1x64xf32>
      %47 = arith.subf %45, %46 : vector<1x64xf32>
      %48 = vector.broadcast %44 : vector<1x64xf32> to vector<256x64xf32>
      %49 = arith.mulf %11, %48 : vector<256x64xf32>
      %50 = vector.broadcast %47 : vector<1x64xf32> to vector<256x64xf32>
      %51 = arith.addf %49, %50 : vector<256x64xf32>
      %cst_29 = arith.constant 0.000000e+00 : f32
      %52 = vector.broadcast %cst_29 : f32 to vector<256x64xf32>
      %53 = arith.maximumf %51, %52 : vector<256x64xf32>
      %54 = arith.truncf %53 : vector<256x64xf32> to vector<256x64xbf16>
      %c0_30 = arith.constant 0 : index
      %c0_31 = arith.constant 0 : index
      %55 = vector.load %arg7[%c0_30, %c0_31] : memref<64x128xbf16, #tpu.memory_space<vmem>>, vector<64x128xbf16>
      %cst_32 = arith.constant dense<0.000000e+00> : vector<256x128xf32>
      %56 = tpu.matmul %54, %55, %cst_32 {dimension_numbers = #tpu.dot_dimension_numbers<[1], [0], [0], [1], [0, 0, 1, 1], [], []>} : vector<256x64xbf16>, vector<64x128xbf16>, vector<256x128xf32> -> vector<256x128xf32>
      %c0_33 = arith.constant 0 : index
      %c0_34 = arith.constant 0 : index
      %57 = vector.load %arg8[%c0_33, %c0_34] : memref<1x128xf32, #tpu.memory_space<vmem>>, vector<1x128xf32>
      %58 = vector.broadcast %57 : vector<1x128xf32> to vector<256x128xf32>
      %59 = arith.addf %56, %58 : vector<256x128xf32>
      %c0_35 = arith.constant 0 : index
      %c0_36 = arith.constant 0 : index
      %60 = vector.load %arg28[%c0_35, %c0_36] : memref<8x128xf32, #tpu.memory_space<vmem>>, vector<8x128xf32>
      %cst_37 = arith.constant dense<0.000000e+00> : vector<128xf32>
      %61 = vector.multi_reduction <add>, %60, %cst_37 [0] : vector<8x128xf32> to vector<128xf32>
      %62 = vector.shape_cast %61 : vector<128xf32> to vector<1x128xf32>
      %cst_38 = arith.constant 0.001953125 : f32
      %63 = vector.broadcast %cst_38 : f32 to vector<1x128xf32>
      %64 = arith.mulf %62, %63 : vector<1x128xf32>
      %c0_39 = arith.constant 0 : index
      %c0_40 = arith.constant 0 : index
      %65 = vector.load %arg29[%c0_39, %c0_40] : memref<8x128xf32, #tpu.memory_space<vmem>>, vector<8x128xf32>
      %cst_41 = arith.constant dense<0.000000e+00> : vector<128xf32>
      %66 = vector.multi_reduction <add>, %65, %cst_41 [0] : vector<8x128xf32> to vector<128xf32>
      %67 = vector.shape_cast %66 : vector<128xf32> to vector<1x128xf32>
      %cst_42 = arith.constant 0.001953125 : f32
      %68 = vector.broadcast %cst_42 : f32 to vector<1x128xf32>
      %69 = arith.mulf %67, %68 : vector<1x128xf32>
      %70 = arith.mulf %64, %64 : vector<1x128xf32>
      %71 = arith.subf %69, %70 : vector<1x128xf32>
      %cst_43 = arith.constant 0.000000e+00 : f32
      %72 = vector.broadcast %cst_43 : f32 to vector<1x128xf32>
      %73 = arith.maximumf %71, %72 : vector<1x128xf32>
      %c0_44 = arith.constant 0 : index
      %c0_45 = arith.constant 0 : index
      %74 = vector.load %arg9[%c0_44, %c0_45] : memref<1x128xf32, #tpu.memory_space<vmem>>, vector<1x128xf32>
      %cst_46 = arith.constant 9.99999974E-6 : f32
      %75 = vector.broadcast %cst_46 : f32 to vector<1x128xf32>
      %76 = arith.addf %73, %75 : vector<1x128xf32>
      %77 = math.rsqrt %76 : vector<1x128xf32>
      %78 = arith.mulf %74, %77 : vector<1x128xf32>
      %c0_47 = arith.constant 0 : index
      %c0_48 = arith.constant 0 : index
      %79 = vector.load %arg10[%c0_47, %c0_48] : memref<1x128xf32, #tpu.memory_space<vmem>>, vector<1x128xf32>
      %80 = arith.mulf %64, %78 : vector<1x128xf32>
      %81 = arith.subf %79, %80 : vector<1x128xf32>
      %82 = vector.broadcast %78 : vector<1x128xf32> to vector<256x128xf32>
      %83 = arith.mulf %59, %82 : vector<256x128xf32>
      %84 = vector.broadcast %81 : vector<1x128xf32> to vector<256x128xf32>
      %85 = arith.addf %83, %84 : vector<256x128xf32>
      %cst_49 = arith.constant 0.000000e+00 : f32
      %86 = vector.broadcast %cst_49 : f32 to vector<256x128xf32>
      %87 = arith.maximumf %85, %86 : vector<256x128xf32>
      %88 = arith.truncf %87 : vector<256x128xf32> to vector<256x128xbf16>
      %c0_50 = arith.constant 0 : index
      %c0_51 = arith.constant 0 : index
      %89 = vector.load %arg11[%c0_50, %c0_51] : memref<128x1024xbf16, #tpu.memory_space<vmem>>, vector<128x1024xbf16>
      %cst_52 = arith.constant dense<0.000000e+00> : vector<256x1024xf32>
      %90 = tpu.matmul %88, %89, %cst_52 {dimension_numbers = #tpu.dot_dimension_numbers<[1], [0], [0], [1], [0, 0, 1, 1], [], []>} : vector<256x128xbf16>, vector<128x1024xbf16>, vector<256x1024xf32> -> vector<256x1024xf32>
      %c0_53 = arith.constant 0 : index
      %c0_54 = arith.constant 0 : index
      %91 = vector.load %arg12[%c0_53, %c0_54] : memref<1x1024xf32, #tpu.memory_space<vmem>>, vector<1x1024xf32>
      %92 = vector.broadcast %91 : vector<1x1024xf32> to vector<256x1024xf32>
      %93 = arith.addf %90, %92 : vector<256x1024xf32>
      %94 = vector.shape_cast %93 : vector<256x1024xf32> to vector<32x8x1024xf32>
      %c0_55 = arith.constant 0 : index
      %c0_56 = arith.constant 0 : index
      %95 = vector.load %arg30[%c0_55, %c0_56] : memref<8x1024xf32, #tpu.memory_space<vmem>>, vector<8x1024xf32>
      %cst_57 = arith.constant dense<0.000000e+00> : vector<8x1024xf32>
      %96 = vector.multi_reduction <add>, %94, %cst_57 [0] : vector<32x8x1024xf32> to vector<8x1024xf32>
      %97 = arith.addf %95, %96 : vector<8x1024xf32>
      %c0_58 = arith.constant 0 : index
      %c0_59 = arith.constant 0 : index
      %98 = vector.load %arg30[%c0_58, %c0_59] : memref<8x1024xf32, #tpu.memory_space<vmem>>, vector<8x1024xf32>
      tpu.vector_store %arg30[%c0_58, %c0_59], %97 {strides = array<i32>} : memref<8x1024xf32, #tpu.memory_space<vmem>>, vector<8x1024xf32>,
      %c0_60 = arith.constant 0 : index
      %c0_61 = arith.constant 0 : index
      %99 = vector.load %arg31[%c0_60, %c0_61] : memref<8x1024xf32, #tpu.memory_space<vmem>>, vector<8x1024xf32>
      %100 = arith.mulf %94, %94 : vector<32x8x1024xf32>
      %cst_62 = arith.constant dense<0.000000e+00> : vector<8x1024xf32>
      %101 = vector.multi_reduction <add>, %100, %cst_62 [0] : vector<32x8x1024xf32> to vector<8x1024xf32>
      %102 = arith.addf %99, %101 : vector<8x1024xf32>
      %c0_63 = arith.constant 0 : index
      %c0_64 = arith.constant 0 : index
      %103 = vector.load %arg31[%c0_63, %c0_64] : memref<8x1024xf32, #tpu.memory_space<vmem>>, vector<8x1024xf32>
      tpu.vector_store %arg31[%c0_63, %c0_64], %102 {strides = array<i32>} : memref<8x1024xf32, #tpu.memory_space<vmem>>, vector<8x1024xf32>,
      %c0_65 = arith.constant 0 : index
      %c0_66 = arith.constant 0 : index
      %104 = vector.load %arg32[%c0_65, %c0_66] : memref<4x1024xf32, #tpu.memory_space<vmem>>, vector<4x1024xf32>
      %105 = vector.shape_cast %93 : vector<256x1024xf32> to vector<4x64x1024xf32>
      %cst_67 = arith.constant dense<0xFF800000> : vector<4x1024xf32>
      %106 = vector.multi_reduction <maximumf>, %105, %cst_67 [1] : vector<4x64x1024xf32> to vector<4x1024xf32>
      %107 = arith.maximumf %104, %106 : vector<4x1024xf32>
      %c0_68 = arith.constant 0 : index
      %c0_69 = arith.constant 0 : index
      %108 = vector.load %arg32[%c0_68, %c0_69] : memref<4x1024xf32, #tpu.memory_space<vmem>>, vector<4x1024xf32>
      tpu.vector_store %arg32[%c0_68, %c0_69], %107 {strides = array<i32>} : memref<4x1024xf32, #tpu.memory_space<vmem>>, vector<4x1024xf32>,
    } else {
    }
    %c2_i32_12 = arith.constant 2 : i32
    %21 = arith.cmpi eq, %arg0, %c2_i32_12 : i32
    %c1_i32_13 = arith.constant 1 : i32
    %22 = arith.cmpi eq, %arg1, %c1_i32_13 : i32
    %23 = arith.andi %21, %22 : i1
    %24 = arith.extui %23 : i1 to i32
    %c0_i32_14 = arith.constant 0 : i32
    %25 = arith.cmpi ne, %24, %c0_i32_14 : i32
    scf.if %25 {
      %c0_15 = arith.constant 0 : index
      %c0_16 = arith.constant 0 : index
      %26 = vector.load %arg30[%c0_15, %c0_16] : memref<8x1024xf32, #tpu.memory_space<vmem>>, vector<8x1024xf32>
      %cst_17 = arith.constant dense<0.000000e+00> : vector<1024xf32>
      %27 = vector.multi_reduction <add>, %26, %cst_17 [0] : vector<8x1024xf32> to vector<1024xf32>
      %28 = vector.shape_cast %27 : vector<1024xf32> to vector<1x1024xf32>
      %cst_18 = arith.constant 0.001953125 : f32
      %29 = vector.broadcast %cst_18 : f32 to vector<1x1024xf32>
      %30 = arith.mulf %28, %29 : vector<1x1024xf32>
      %c0_19 = arith.constant 0 : index
      %c0_20 = arith.constant 0 : index
      %31 = vector.load %arg31[%c0_19, %c0_20] : memref<8x1024xf32, #tpu.memory_space<vmem>>, vector<8x1024xf32>
      %cst_21 = arith.constant dense<0.000000e+00> : vector<1024xf32>
      %32 = vector.multi_reduction <add>, %31, %cst_21 [0] : vector<8x1024xf32> to vector<1024xf32>
      %33 = vector.shape_cast %32 : vector<1024xf32> to vector<1x1024xf32>
      %cst_22 = arith.constant 0.001953125 : f32
      %34 = vector.broadcast %cst_22 : f32 to vector<1x1024xf32>
      %35 = arith.mulf %33, %34 : vector<1x1024xf32>
      %36 = arith.mulf %30, %30 : vector<1x1024xf32>
      %37 = arith.subf %35, %36 : vector<1x1024xf32>
      %cst_23 = arith.constant 0.000000e+00 : f32
      %38 = vector.broadcast %cst_23 : f32 to vector<1x1024xf32>
      %39 = arith.maximumf %37, %38 : vector<1x1024xf32>
      %c0_24 = arith.constant 0 : index
      %c0_25 = arith.constant 0 : index
      %40 = vector.load %arg13[%c0_24, %c0_25] : memref<1x1024xf32, #tpu.memory_space<vmem>>, vector<1x1024xf32>
      %cst_26 = arith.constant 9.99999974E-6 : f32
      %41 = vector.broadcast %cst_26 : f32 to vector<1x1024xf32>
      %42 = arith.addf %39, %41 : vector<1x1024xf32>
      %43 = math.rsqrt %42 : vector<1x1024xf32>
      %44 = arith.mulf %40, %43 : vector<1x1024xf32>
      %c0_27 = arith.constant 0 : index
      %c0_28 = arith.constant 0 : index
      %45 = vector.load %arg14[%c0_27, %c0_28] : memref<1x1024xf32, #tpu.memory_space<vmem>>, vector<1x1024xf32>
      %46 = arith.mulf %30, %44 : vector<1x1024xf32>
      %47 = arith.subf %45, %46 : vector<1x1024xf32>
      %c0_29 = arith.constant 0 : index
      %c0_30 = arith.constant 0 : index
      %48 = vector.load %arg32[%c0_29, %c0_30] : memref<4x1024xf32, #tpu.memory_space<vmem>>, vector<4x1024xf32>
      %49 = vector.broadcast %44 : vector<1x1024xf32> to vector<4x1024xf32>
      %50 = arith.mulf %48, %49 : vector<4x1024xf32>
      %51 = vector.broadcast %47 : vector<1x1024xf32> to vector<4x1024xf32>
      %52 = arith.addf %50, %51 : vector<4x1024xf32>
      %cst_31 = arith.constant 0.000000e+00 : f32
      %53 = vector.broadcast %cst_31 : f32 to vector<4x1024xf32>
      %54 = arith.maximumf %52, %53 : vector<4x1024xf32>
      %55 = arith.truncf %54 : vector<4x1024xf32> to vector<4x1024xbf16>
      %c0_32 = arith.constant 0 : index
      %c0_33 = arith.constant 0 : index
      %56 = vector.load %arg15[%c0_32, %c0_33] : memref<1024x512xbf16, #tpu.memory_space<vmem>>, vector<1024x512xbf16>
      %cst_34 = arith.constant dense<0.000000e+00> : vector<4x512xf32>
      %57 = tpu.matmul %55, %56, %cst_34 {dimension_numbers = #tpu.dot_dimension_numbers<[1], [0], [0], [1], [0, 0, 1, 1], [], []>} : vector<4x1024xbf16>, vector<1024x512xbf16>, vector<4x512xf32> -> vector<4x512xf32>
      %c0_35 = arith.constant 0 : index
      %c0_36 = arith.constant 0 : index
      %58 = vector.load %arg16[%c0_35, %c0_36] : memref<1x512xf32, #tpu.memory_space<vmem>>, vector<1x512xf32>
      %59 = vector.broadcast %58 : vector<1x512xf32> to vector<4x512xf32>
      %60 = arith.addf %57, %59 : vector<4x512xf32>
      %c0_37 = arith.constant 0 : index
      %c0_38 = arith.constant 0 : index
      %61 = vector.load %arg17[%c0_37, %c0_38] : memref<1x512xf32, #tpu.memory_space<vmem>>, vector<1x512xf32>
      %c0_39 = arith.constant 0 : index
      %c0_40 = arith.constant 0 : index
      %62 = vector.load %arg18[%c0_39, %c0_40] : memref<1x512xf32, #tpu.memory_space<vmem>>, vector<1x512xf32>
      %cst_41 = arith.constant dense<0.000000e+00> : vector<512xf32>
      %63 = vector.multi_reduction <add>, %60, %cst_41 [0] : vector<4x512xf32> to vector<512xf32>
      %64 = vector.shape_cast %63 : vector<512xf32> to vector<1x512xf32>
      %cst_42 = arith.constant 4.000000e+00 : f32
      %65 = vector.broadcast %cst_42 : f32 to vector<1x512xf32>
      %66 = arith.divf %64, %65 : vector<1x512xf32>
      %67 = arith.mulf %60, %60 : vector<4x512xf32>
      %cst_43 = arith.constant dense<0.000000e+00> : vector<512xf32>
      %68 = vector.multi_reduction <add>, %67, %cst_43 [0] : vector<4x512xf32> to vector<512xf32>
      %69 = vector.shape_cast %68 : vector<512xf32> to vector<1x512xf32>
      %cst_44 = arith.constant 4.000000e+00 : f32
      %70 = vector.broadcast %cst_44 : f32 to vector<1x512xf32>
      %71 = arith.divf %69, %70 : vector<1x512xf32>
      %72 = arith.mulf %66, %66 : vector<1x512xf32>
      %73 = arith.subf %71, %72 : vector<1x512xf32>
      %cst_45 = arith.constant 0.000000e+00 : f32
      %74 = vector.broadcast %cst_45 : f32 to vector<1x512xf32>
      %75 = arith.maximumf %73, %74 : vector<1x512xf32>
      %cst_46 = arith.constant 9.99999974E-6 : f32
      %76 = vector.broadcast %cst_46 : f32 to vector<1x512xf32>
      %77 = arith.addf %75, %76 : vector<1x512xf32>
      %78 = math.rsqrt %77 : vector<1x512xf32>
      %79 = arith.mulf %61, %78 : vector<1x512xf32>
      %80 = vector.broadcast %79 : vector<1x512xf32> to vector<4x512xf32>
      %81 = arith.mulf %60, %80 : vector<4x512xf32>
      %82 = arith.mulf %66, %79 : vector<1x512xf32>
      %83 = arith.subf %62, %82 : vector<1x512xf32>
      %84 = vector.broadcast %83 : vector<1x512xf32> to vector<4x512xf32>
      %85 = arith.addf %81, %84 : vector<4x512xf32>
      %cst_47 = arith.constant 0.000000e+00 : f32
      %86 = vector.broadcast %cst_47 : f32 to vector<4x512xf32>
      %87 = arith.maximumf %85, %86 : vector<4x512xf32>
      %88 = arith.truncf %87 : vector<4x512xf32> to vector<4x512xbf16>
      %c0_48 = arith.constant 0 : index
      %c0_49 = arith.constant 0 : index
      %89 = vector.load %arg19[%c0_48, %c0_49] : memref<512x256xbf16, #tpu.memory_space<vmem>>, vector<512x256xbf16>
      %cst_50 = arith.constant dense<0.000000e+00> : vector<4x256xf32>
      %90 = tpu.matmul %88, %89, %cst_50 {dimension_numbers = #tpu.dot_dimension_numbers<[1], [0], [0], [1], [0, 0, 1, 1], [], []>} : vector<4x512xbf16>, vector<512x256xbf16>, vector<4x256xf32> -> vector<4x256xf32>
      %c0_51 = arith.constant 0 : index
      %c0_52 = arith.constant 0 : index
      %91 = vector.load %arg20[%c0_51, %c0_52] : memref<1x256xf32, #tpu.memory_space<vmem>>, vector<1x256xf32>
      %92 = vector.broadcast %91 : vector<1x256xf32> to vector<4x256xf32>
      %93 = arith.addf %90, %92 : vector<4x256xf32>
      %c0_53 = arith.constant 0 : index
      %c0_54 = arith.constant 0 : index
      %94 = vector.load %arg21[%c0_53, %c0_54] : memref<1x256xf32, #tpu.memory_space<vmem>>, vector<1x256xf32>
      %c0_55 = arith.constant 0 : index
      %c0_56 = arith.constant 0 : index
      %95 = vector.load %arg22[%c0_55, %c0_56] : memref<1x256xf32, #tpu.memory_space<vmem>>, vector<1x256xf32>
      %cst_57 = arith.constant dense<0.000000e+00> : vector<256xf32>
      %96 = vector.multi_reduction <add>, %93, %cst_57 [0] : vector<4x256xf32> to vector<256xf32>
      %97 = vector.shape_cast %96 : vector<256xf32> to vector<1x256xf32>
      %cst_58 = arith.constant 4.000000e+00 : f32
      %98 = vector.broadcast %cst_58 : f32 to vector<1x256xf32>
      %99 = arith.divf %97, %98 : vector<1x256xf32>
      %100 = arith.mulf %93, %93 : vector<4x256xf32>
      %cst_59 = arith.constant dense<0.000000e+00> : vector<256xf32>
      %101 = vector.multi_reduction <add>, %100, %cst_59 [0] : vector<4x256xf32> to vector<256xf32>
      %102 = vector.shape_cast %101 : vector<256xf32> to vector<1x256xf32>
      %cst_60 = arith.constant 4.000000e+00 : f32
      %103 = vector.broadcast %cst_60 : f32 to vector<1x256xf32>
      %104 = arith.divf %102, %103 : vector<1x256xf32>
      %105 = arith.mulf %99, %99 : vector<1x256xf32>
      %106 = arith.subf %104, %105 : vector<1x256xf32>
      %cst_61 = arith.constant 0.000000e+00 : f32
      %107 = vector.broadcast %cst_61 : f32 to vector<1x256xf32>
      %108 = arith.maximumf %106, %107 : vector<1x256xf32>
      %cst_62 = arith.constant 9.99999974E-6 : f32
      %109 = vector.broadcast %cst_62 : f32 to vector<1x256xf32>
      %110 = arith.addf %108, %109 : vector<1x256xf32>
      %111 = math.rsqrt %110 : vector<1x256xf32>
      %112 = arith.mulf %94, %111 : vector<1x256xf32>
      %113 = vector.broadcast %112 : vector<1x256xf32> to vector<4x256xf32>
      %114 = arith.mulf %93, %113 : vector<4x256xf32>
      %115 = arith.mulf %99, %112 : vector<1x256xf32>
      %116 = arith.subf %95, %115 : vector<1x256xf32>
      %117 = vector.broadcast %116 : vector<1x256xf32> to vector<4x256xf32>
      %118 = arith.addf %114, %117 : vector<4x256xf32>
      %cst_63 = arith.constant 0.000000e+00 : f32
      %119 = vector.broadcast %cst_63 : f32 to vector<4x256xf32>
      %120 = arith.maximumf %118, %119 : vector<4x256xf32>
      %121 = arith.truncf %120 : vector<4x256xf32> to vector<4x256xbf16>
      %c0_64 = arith.constant 0 : index
      %c0_65 = arith.constant 0 : index
      %122 = vector.load %arg23[%c0_64, %c0_65] : memref<256x128xbf16, #tpu.memory_space<vmem>>, vector<256x128xbf16>
      %cst_66 = arith.constant dense<0.000000e+00> : vector<4x128xf32>
      %123 = tpu.matmul %121, %122, %cst_66 {dimension_numbers = #tpu.dot_dimension_numbers<[1], [0], [0], [1], [0, 0, 1, 1], [], []>} : vector<4x256xbf16>, vector<256x128xbf16>, vector<4x128xf32> -> vector<4x128xf32>
      %c0_67 = arith.constant 0 : index
      %c0_68 = arith.constant 0 : index
      %124 = vector.load %arg24[%c0_67, %c0_68] : memref<1x128xf32, #tpu.memory_space<vmem>>, vector<1x128xf32>
      %125 = vector.broadcast %124 : vector<1x128xf32> to vector<4x128xf32>
      %126 = arith.addf %123, %125 : vector<4x128xf32>
      %c0_69 = arith.constant 0 : index
      %c0_70 = arith.constant 0 : index
      %127 = vector.load %arg25[%c0_69, %c0_70] : memref<4x128xf32, #tpu.memory_space<vmem>>, vector<4x128xf32>
      tpu.vector_store %arg25[%c0_69, %c0_70], %126 {strides = array<i32>} : memref<4x128xf32, #tpu.memory_space<vmem>>, vector<4x128xf32>,
    } else {
    }
    return
  }
  func.func @transform_0(%arg0: i32, %arg1: i32) -> (i32, i32, i32) {
    %c0_i32 = arith.constant 0 : i32
    %c0_i32_0 = arith.constant 0 : i32
    %c0_i32_1 = arith.constant 0 : i32
    return %c0_i32, %arg1, %c0_i32_0 : i32, i32, i32
  }
  func.func @transform_1(%arg0: i32, %arg1: i32) -> (i32, i32) {
    %c0_i32 = arith.constant 0 : i32
    %c0_i32_0 = arith.constant 0 : i32
    %c0_i32_1 = arith.constant 0 : i32
    return %c0_i32, %c0_i32_0 : i32, i32
  }
  func.func @transform_2(%arg0: i32, %arg1: i32) -> (i32, i32) {
    %c0_i32 = arith.constant 0 : i32
    %c0_i32_0 = arith.constant 0 : i32
    %c0_i32_1 = arith.constant 0 : i32
    return %c0_i32, %c0_i32_0 : i32, i32
  }
  func.func @transform_3(%arg0: i32, %arg1: i32) -> (i32, i32) {
    %c0_i32 = arith.constant 0 : i32
    %c0_i32_0 = arith.constant 0 : i32
    %c0_i32_1 = arith.constant 0 : i32
    return %c0_i32, %c0_i32_0 : i32, i32
  }
  func.func @transform_4(%arg0: i32, %arg1: i32) -> (i32, i32) {
    %c0_i32 = arith.constant 0 : i32
    %c0_i32_0 = arith.constant 0 : i32
    %c0_i32_1 = arith.constant 0 : i32
    return %c0_i32, %c0_i32_0 : i32, i32
  }
  func.func @transform_5(%arg0: i32, %arg1: i32) -> (i32, i32) {
    %c0_i32 = arith.constant 0 : i32
    %c0_i32_0 = arith.constant 0 : i32
    %c0_i32_1 = arith.constant 0 : i32
    return %c0_i32, %c0_i32_0 : i32, i32
  }
  func.func @transform_6(%arg0: i32, %arg1: i32) -> (i32, i32) {
    %c0_i32 = arith.constant 0 : i32
    %c0_i32_0 = arith.constant 0 : i32
    %c0_i32_1 = arith.constant 0 : i32
    return %c0_i32, %c0_i32_0 : i32, i32
  }
  func.func @transform_7(%arg0: i32, %arg1: i32) -> (i32, i32) {
    %c0_i32 = arith.constant 0 : i32
    %c0_i32_0 = arith.constant 0 : i32
    %c0_i32_1 = arith.constant 0 : i32
    return %c0_i32, %c0_i32_0 : i32, i32
  }
  func.func @transform_8(%arg0: i32, %arg1: i32) -> (i32, i32) {
    %c0_i32 = arith.constant 0 : i32
    %c0_i32_0 = arith.constant 0 : i32
    %c0_i32_1 = arith.constant 0 : i32
    return %c0_i32, %c0_i32_0 : i32, i32
  }
  func.func @transform_9(%arg0: i32, %arg1: i32) -> (i32, i32) {
    %c0_i32 = arith.constant 0 : i32
    %c0_i32_0 = arith.constant 0 : i32
    %c0_i32_1 = arith.constant 0 : i32
    return %c0_i32, %c0_i32_0 : i32, i32
  }
  func.func @transform_10(%arg0: i32, %arg1: i32) -> (i32, i32) {
    %c0_i32 = arith.constant 0 : i32
    %c0_i32_0 = arith.constant 0 : i32
    %c0_i32_1 = arith.constant 0 : i32
    return %c0_i32, %c0_i32_0 : i32, i32
  }
  func.func @transform_11(%arg0: i32, %arg1: i32) -> (i32, i32) {
    %c0_i32 = arith.constant 0 : i32
    %c0_i32_0 = arith.constant 0 : i32
    %c0_i32_1 = arith.constant 0 : i32
    return %c0_i32, %c0_i32_0 : i32, i32
  }
  func.func @transform_12(%arg0: i32, %arg1: i32) -> (i32, i32) {
    %c0_i32 = arith.constant 0 : i32
    %c0_i32_0 = arith.constant 0 : i32
    %c0_i32_1 = arith.constant 0 : i32
    return %c0_i32, %c0_i32_0 : i32, i32
  }
  func.func @transform_13(%arg0: i32, %arg1: i32) -> (i32, i32) {
    %c0_i32 = arith.constant 0 : i32
    %c0_i32_0 = arith.constant 0 : i32
    %c0_i32_1 = arith.constant 0 : i32
    return %c0_i32, %c0_i32_0 : i32, i32
  }
  func.func @transform_14(%arg0: i32, %arg1: i32) -> (i32, i32) {
    %c0_i32 = arith.constant 0 : i32
    %c0_i32_0 = arith.constant 0 : i32
    %c0_i32_1 = arith.constant 0 : i32
    return %c0_i32, %c0_i32_0 : i32, i32
  }
  func.func @transform_15(%arg0: i32, %arg1: i32) -> (i32, i32) {
    %c0_i32 = arith.constant 0 : i32
    %c0_i32_0 = arith.constant 0 : i32
    %c0_i32_1 = arith.constant 0 : i32
    return %c0_i32, %c0_i32_0 : i32, i32
  }
  func.func @transform_16(%arg0: i32, %arg1: i32) -> (i32, i32) {
    %c0_i32 = arith.constant 0 : i32
    %c0_i32_0 = arith.constant 0 : i32
    %c0_i32_1 = arith.constant 0 : i32
    return %c0_i32, %c0_i32_0 : i32, i32
  }
  func.func @transform_17(%arg0: i32, %arg1: i32) -> (i32, i32) {
    %c0_i32 = arith.constant 0 : i32
    %c0_i32_0 = arith.constant 0 : i32
    %c0_i32_1 = arith.constant 0 : i32
    return %c0_i32, %c0_i32_0 : i32, i32
  }
  func.func @transform_18(%arg0: i32, %arg1: i32) -> (i32, i32) {
    %c0_i32 = arith.constant 0 : i32
    %c0_i32_0 = arith.constant 0 : i32
    %c0_i32_1 = arith.constant 0 : i32
    return %c0_i32, %c0_i32_0 : i32, i32
  }
  func.func @transform_19(%arg0: i32, %arg1: i32) -> (i32, i32) {
    %c0_i32 = arith.constant 0 : i32
    %c0_i32_0 = arith.constant 0 : i32
    %c0_i32_1 = arith.constant 0 : i32
    return %c0_i32, %c0_i32_0 : i32, i32
  }
  func.func @transform_20(%arg0: i32, %arg1: i32) -> (i32, i32) {
    %c0_i32 = arith.constant 0 : i32
    %c0_i32_0 = arith.constant 0 : i32
    %c0_i32_1 = arith.constant 0 : i32
    return %c0_i32, %c0_i32_0 : i32, i32
  }
  func.func @transform_21(%arg0: i32, %arg1: i32) -> (i32, i32) {
    %c0_i32 = arith.constant 0 : i32
    %c0_i32_0 = arith.constant 0 : i32
    %c0_i32_1 = arith.constant 0 : i32
    return %c0_i32, %c0_i32_0 : i32, i32
  }
  func.func @transform_22(%arg0: i32, %arg1: i32) -> (i32, i32) {
    %c0_i32 = arith.constant 0 : i32
    %c0_i32_0 = arith.constant 0 : i32
    %c0_i32_1 = arith.constant 0 : i32
    return %c0_i32, %c0_i32_0 : i32, i32
  }
  func.func @transform_23(%arg0: i32, %arg1: i32) -> (i32, i32) {
    %c0_i32 = arith.constant 0 : i32
    %c0_i32_0 = arith.constant 0 : i32
    %c0_i32_1 = arith.constant 0 : i32
    return %c0_i32, %c0_i32_0 : i32, i32
  }
}

</mosaic_0001>

<llo_original>
// kernel: tpu_custom_call.1
$region0: #{tpu_custom_call.1}
  #allocation0 [shape = 'u32[]', space=smem, size = 0x4, offset = 0x4, fixed_abs, tag = 'smem constant byte address 0x4 - core index']
  #allocation1 [shape = 'u32[144,128]{1,0:T(1,128)}', space=vmem, size = 0x12000, scoped, tag = 'internal scratch']
  #allocation2 [shape = 'f32[8,64]{1,0:T(8,128)}', space=vmem, size = 0x1000, scoped, tag = 'scratch operand']
  #allocation3 [shape = 'f32[8,64]{1,0:T(8,128)}', space=vmem, size = 0x1000, scoped, tag = 'scratch operand']
  #allocation4 [shape = 'f32[8,128]{1,0:T(8,128)}', space=vmem, size = 0x1000, scoped, tag = 'scratch operand']
  #allocation5 [shape = 'f32[8,128]{1,0:T(8,128)}', space=vmem, size = 0x1000, scoped, tag = 'scratch operand']
  #allocation6 [shape = 'f32[8,1024]{1,0:T(8,128)}', space=vmem, size = 0x8000, scoped, tag = 'scratch operand']
  #allocation7 [shape = 'f32[8,1024]{1,0:T(8,128)}', space=vmem, size = 0x8000, scoped, tag = 'scratch operand']
  #allocation8 [shape = 'f32[4,1024]{1,0:T(4,128)}', space=vmem, size = 0x4000, scoped, tag = 'scratch operand']
  %s0 = inlined_call_operand.vmem [shape: bf16[4,128,8], index: 0, kind: input, shape index: {}]
  %s1 = inlined_call_operand.vmem [shape: bf16[8,64], index: 1, kind: input, shape index: {}]
  %s2 = inlined_call_operand.vmem [shape: f32[1,64], index: 2, kind: input, shape index: {}]
  %s3 = inlined_call_operand.vmem [shape: f32[1,64], index: 3, kind: input, shape index: {}]
  %s4 = inlined_call_operand.vmem [shape: f32[1,64], index: 4, kind: input, shape index: {}]
  %s5 = inlined_call_operand.vmem [shape: bf16[64,128], index: 5, kind: input, shape index: {}]
  %s6 = inlined_call_operand.vmem [shape: f32[1,128], index: 6, kind: input, shape index: {}]
  %s7 = inlined_call_operand.vmem [shape: f32[1,128], index: 7, kind: input, shape index: {}]
  %s8 = inlined_call_operand.vmem [shape: f32[1,128], index: 8, kind: input, shape index: {}]
  %s9 = inlined_call_operand.hbm [shape: bf16[128,1024], index: 9, kind: input, shape index: {}]
  %s10 = inlined_call_operand.vmem [shape: f32[1,1024], index: 10, kind: input, shape index: {}]
  %s11 = inlined_call_operand.vmem [shape: f32[1,1024], index: 11, kind: input, shape index: {}]
  %s12 = inlined_call_operand.vmem [shape: f32[1,1024], index: 12, kind: input, shape index: {}]
  %s13 = inlined_call_operand.hbm [shape: bf16[1024,512], index: 13, kind: input, shape index: {}]
  %s14 = inlined_call_operand.vmem [shape: f32[1,512], index: 14, kind: input, shape index: {}]
  %s15 = inlined_call_operand.vmem [shape: f32[1,512], index: 15, kind: input, shape index: {}]
  %s16 = inlined_call_operand.vmem [shape: f32[1,512], index: 16, kind: input, shape index: {}]
  %s17 = inlined_call_operand.hbm [shape: bf16[512,256], index: 17, kind: input, shape index: {}]
  %s18 = inlined_call_operand.vmem [shape: f32[1,256], index: 18, kind: input, shape index: {}]
  %s19 = inlined_call_operand.vmem [shape: f32[1,256], index: 19, kind: input, shape index: {}]
  %s20 = inlined_call_operand.vmem [shape: f32[1,256], index: 20, kind: input, shape index: {}]
  %s21 = inlined_call_operand.vmem [shape: bf16[256,128], index: 21, kind: input, shape index: {}]
  %s22 = inlined_call_operand.vmem [shape: f32[1,128], index: 22, kind: input, shape index: {}]
  %s23 = inlined_call_operand.hbm [shape: f32[4,128], index: 23, kind: output, shape index: {}]
  %s24 = sld [smem:[#allocation0]]
  $region198: #{tpu_custom_call.1} parent=0
    _
  %s26 = ssub.s32 1, %s24
  %s27 = scalar_select 0, %s26, %s24
  $region1: #{tpu_custom_call.1} parent=0
    #allocation9 [shape = 'u8[131072]{0}', space=vmem, size = 0x20000, scoped, tag = 'input window, operand 0']
    #allocation10 [shape = 'u8[262144]{0}', space=vmem, size = 0x40000, scoped, tag = 'input window, operand 9, single buffered']
    #allocation11 [shape = 's32[2]{0}', space=sflag, size = 0x8, scoped, tag = 'scoped memory for tpu_custom_call.1']
    #allocation12 [shape = 's32[2]{0}', space=sflag, size = 0x8, scoped, tag = 'scoped memory for tpu_custom_call.1']
    #allocation13 [shape = 'u8[1048576]{0}', space=vmem, size = 0x100000, scoped, tag = 'input window, operand 13, single buffered']
    #allocation14 [shape = 's32[1]{0}', space=sflag, size = 0x4, scoped, tag = 'scoped memory for tpu_custom_call.1']
    #allocation15 [shape = 'u8[262144]{0}', space=vmem, size = 0x40000, scoped, tag = 'input window, operand 17, single buffered']
    #allocation16 [shape = 'u8[2048]{0}', space=vmem, size = 0x800, scoped, tag = 'output window, operand 0, single buffered']
    %28 = vsyncpa [#allocation11], 0
    %29 = vsyncpa [#allocation14], 0
    %30 = vsyncpa [#allocation12], 0
    loop: start=0, step=1, limit=8
    $region2: #{tpu_custom_call.1} parent=1 // loop_pre_header
      _
    $region3: #{tpu_custom_call.1} parent=1 // loop_header
      %s32 = sphi 0, %s36
      %p33 = scmp.ge.s32.totalorder %s32, 8
      %s39 = sphi 0, %s51
      %s40 = sphi 0, %s47
      %s41 = sphi 0, %s39
      %s42 = sphi 0, %s40
      %s43 = sphi 0, %s41
      %s44 = sphi 0, %s42
      %s54 = sphi 0, %s56
      %s57 = sphi 0, %s54
      %s58 = sphi 0, %s57
      %s74 = sphi 0, %s58
      %s78 = sphi 0, %s78
      %s80 = sphi 0, %s78
      %s81 = sphi 0, %s80
      %s95 = sphi 0, %s81
      %s99 = sphi 0, %s99
      %s101 = sphi 0, %s99
      %s102 = sphi 0, %s101
      %s116 = sphi 0, %s102
      %s120 = sphi 0, %s120
      %s122 = sphi 0, %s120
      %s123 = sphi 0, %s122
      %s137 = sphi 0, %s123
      %s141 = sphi 0, %s141
      %s143 = sphi 0, %s141
      %s144 = sphi 0, %s143
      %s158 = sphi 0, %s144
      %s162 = sphi 0, %s162
      %s164 = sphi 0, %s162
      %s165 = sphi 0, %s164
      %s179 = sphi 0, %s165
      %s183 = sphi 0, %s183
      %s185 = sphi 0, %s183
      %s186 = sphi 0, %s185
      %s200 = sphi 0, %s186
      %s204 = sphi 0, %s204
      %s206 = sphi 0, %s204
      %s207 = sphi 0, %s206
      %s221 = sphi 0, %s207
      %s225 = sphi 0, %s225
      %s227 = sphi 0, %s225
      %s228 = sphi 0, %s227
      %s242 = sphi 0, %s228
      %s246 = sphi 0, %s246
      %s248 = sphi 0, %s246
      %s249 = sphi 0, %s248
      %s263 = sphi 0, %s249
      %s267 = sphi 0, %s267
      %s269 = sphi 0, %s267
      %s270 = sphi 0, %s269
      %s284 = sphi 0, %s270
      %s288 = sphi 0, %s288
      %s290 = sphi 0, %s288
      %s291 = sphi 0, %s290
      %s305 = sphi 0, %s291
      %s309 = sphi 0, %s309
      %s311 = sphi 0, %s309
      %s312 = sphi 0, %s311
      %s326 = sphi 0, %s312
      %s330 = sphi 0, %s330
      %s332 = sphi 0, %s330
      %s333 = sphi 0, %s332
      %s347 = sphi 0, %s333
      %s351 = sphi 0, %s351
      %s353 = sphi 0, %s351
      %s354 = sphi 0, %s353
      %s368 = sphi 0, %s354
      %s372 = sphi 0, %s372
      %s374 = sphi 0, %s372
      %s375 = sphi 0, %s374
      %s389 = sphi 0, %s375
      %s393 = sphi 0, %s393
      %s395 = sphi 0, %s393
      %s396 = sphi 0, %s395
      %s410 = sphi 0, %s396
      %s414 = sphi 0, %s414
      %s416 = sphi 0, %s414
      %s417 = sphi 0, %s416
      %s431 = sphi 0, %s417
      %s435 = sphi 0, %s435
      %s437 = sphi 0, %s435
      %s438 = sphi 0, %s437
      %s452 = sphi 0, %s438
      %s456 = sphi 0, %s456
      %s458 = sphi 0, %s456
      %s459 = sphi 0, %s458
      %s473 = sphi 0, %s459
      %s477 = sphi 0, %s477
      %s479 = sphi 0, %s477
      %s480 = sphi 0, %s479
      %s494 = sphi 0, %s480
      %s498 = sphi 0, %s498
      %s500 = sphi 0, %s498
      %s501 = sphi 0, %s500
      %s515 = sphi 0, %s501
      %s519 = sphi 0, %s519
      %s521 = sphi 0, %s519
      %s522 = sphi 0, %s521
      %s536 = sphi 0, %s522
      %s540 = sphi 0, %s540
      %s542 = sphi 0, %s540
      %s543 = sphi 0, %s542
      %s557 = sphi 0, %s543
    $region4: #{tpu_custom_call.1} parent=1 // loop_header_branch
      %35 = sbr.rel (%p33) target = $region8
    $region5: #{tpu_custom_call.1} parent=1 // loop_body
      %s37 = ssub.s32 %s32, 1
      %s38 = ssub.s32 %s32, 2
      %s45 = sadd.s32 1, %s40
      %p46 = scmp.ge.s32.totalorder %s45, 2
      %s47 = scalar_select %p46, 0, %s45
      %s48 = sadd.s32 1, %s39
      %s49 = scalar_select %p46, %s48, %s39
      %p50 = scmp.ge.s32.totalorder %s49, 3
      %s51 = scalar_select %p50, 0, %s49
      %s52 = ssub.s32 %s40, %s47
      %p53 = scmp.eq.s32.totalorder %s52, 0
      %s55 = sadd.s32 %s54, 1
      %s56 = scalar_select %p53, %s54, %s55
      %p59 = pneg %p53
      %p60 = scmp.eq.s32.totalorder %s32, 5
      %p61 = por %p59, %p60
      %p62 = scmp.ne.s32.totalorder %s54, %s57
      %p63 = scmp.eq.s32.totalorder %s32, 0
      %p64 = por %p62, %p63
      %p65 = scmp.ne.s32.totalorder %s54, %s57
      %p66 = scmp.eq.s32.totalorder %s37, 5
      %p67 = por %p65, %p66
      %p68 = scmp.ne.s32.totalorder %s57, %s58
      %p69 = scmp.eq.s32.totalorder %s37, 0
      %p70 = por %p68, %p69
      %p71 = scmp.ne.s32.totalorder %s57, %s58
      %p72 = scmp.eq.s32.totalorder %s38, 5
      %p73 = por %p71, %p72
      %p75 = scmp.ne.s32.totalorder %s58, %s74
      %p76 = scmp.eq.s32.totalorder %s38, 0
      %p77 = por %p75, %p76
      %s79 = sadd.s32 %s78, 1
      %p82 = scmp.eq.s32.totalorder %s32, 5
      %p83 = scmp.ne.s32.totalorder %s78, %s80
      %p84 = scmp.eq.s32.totalorder %s32, 0
      %p85 = por %p83, %p84
      %p86 = scmp.ne.s32.totalorder %s78, %s80
      %p87 = scmp.eq.s32.totalorder %s37, 5
      %p88 = por %p86, %p87
      %p89 = scmp.ne.s32.totalorder %s80, %s81
      %p90 = scmp.eq.s32.totalorder %s37, 0
      %p91 = por %p89, %p90
      %p92 = scmp.ne.s32.totalorder %s80, %s81
      %p93 = scmp.eq.s32.totalorder %s38, 5
      %p94 = por %p92, %p93
      %p96 = scmp.ne.s32.totalorder %s81, %s95
      %p97 = scmp.eq.s32.totalorder %s38, 0
      %p98 = por %p96, %p97
      %s100 = sadd.s32 %s99, 1
      %p103 = scmp.eq.s32.totalorder %s32, 5
      %p104 = scmp.ne.s32.totalorder %s99, %s101
      %p105 = scmp.eq.s32.totalorder %s32, 0
      %p106 = por %p104, %p105
      %p107 = scmp.ne.s32.totalorder %s99, %s101
      %p108 = scmp.eq.s32.totalorder %s37, 5
      %p109 = por %p107, %p108
      %p110 = scmp.ne.s32.totalorder %s101, %s102
      %p111 = scmp.eq.s32.totalorder %s37, 0
      %p112 = por %p110, %p111
      %p113 = scmp.ne.s32.totalorder %s101, %s102
      %p114 = scmp.eq.s32.totalorder %s38, 5
      %p115 = por %p113, %p114
      %p117 = scmp.ne.s32.totalorder %s102, %s116
      %p118 = scmp.eq.s32.totalorder %s38, 0
      %p119 = por %p117, %p118
      %s121 = sadd.s32 %s120, 1
      %p124 = scmp.eq.s32.totalorder %s32, 5
      %p125 = scmp.ne.s32.totalorder %s120, %s122
      %p126 = scmp.eq.s32.totalorder %s32, 0
      %p127 = por %p125, %p126
      %p128 = scmp.ne.s32.totalorder %s120, %s122
      %p129 = scmp.eq.s32.totalorder %s37, 5
      %p130 = por %p128, %p129
      %p131 = scmp.ne.s32.totalorder %s122, %s123
      %p132 = scmp.eq.s32.totalorder %s37, 0
      %p133 = por %p131, %p132
      %p134 = scmp.ne.s32.totalorder %s122, %s123
      %p135 = scmp.eq.s32.totalorder %s38, 5
      %p136 = por %p134, %p135
      %p138 = scmp.ne.s32.totalorder %s123, %s137
      %p139 = scmp.eq.s32.totalorder %s38, 0
      %p140 = por %p138, %p139
      %s142 = sadd.s32 %s141, 1
      %p145 = scmp.eq.s32.totalorder %s32, 5
      %p146 = scmp.ne.s32.totalorder %s141, %s143
      %p147 = scmp.eq.s32.totalorder %s32, 0
      %p148 = por %p146, %p147
      %p149 = scmp.ne.s32.totalorder %s141, %s143
      %p150 = scmp.eq.s32.totalorder %s37, 5
      %p151 = por %p149, %p150
      %p152 = scmp.ne.s32.totalorder %s143, %s144
      %p153 = scmp.eq.s32.totalorder %s37, 0
      %p154 = por %p152, %p153
      %p155 = scmp.ne.s32.totalorder %s143, %s144
      %p156 = scmp.eq.s32.totalorder %s38, 5
      %p157 = por %p155, %p156
      %p159 = scmp.ne.s32.totalorder %s144, %s158
      %p160 = scmp.eq.s32.totalorder %s38, 0
      %p161 = por %p159, %p160
      %s163 = sadd.s32 %s162, 1
      %p166 = scmp.eq.s32.totalorder %s32, 5
      %p167 = scmp.ne.s32.totalorder %s162, %s164
      %p168 = scmp.eq.s32.totalorder %s32, 0
      %p169 = por %p167, %p168
      %p170 = scmp.ne.s32.totalorder %s162, %s164
      %p171 = scmp.eq.s32.totalorder %s37, 5
      %p172 = por %p170, %p171
      %p173 = scmp.ne.s32.totalorder %s164, %s165
      %p174 = scmp.eq.s32.totalorder %s37, 0
      %p175 = por %p173, %p174
      %p176 = scmp.ne.s32.totalorder %s164, %s165
      %p177 = scmp.eq.s32.totalorder %s38, 5
      %p178 = por %p176, %p177
      %p180 = scmp.ne.s32.totalorder %s165, %s179
      %p181 = scmp.eq.s32.totalorder %s38, 0
      %p182 = por %p180, %p181
      %s184 = sadd.s32 %s183, 1
      %p187 = scmp.eq.s32.totalorder %s32, 5
      %p188 = scmp.ne.s32.totalorder %s183, %s185
      %p189 = scmp.eq.s32.totalorder %s32, 0
      %p190 = por %p188, %p189
      %p191 = scmp.ne.s32.totalorder %s183, %s185
      %p192 = scmp.eq.s32.totalorder %s37, 5
      %p193 = por %p191, %p192
      %p194 = scmp.ne.s32.totalorder %s185, %s186
      %p195 = scmp.eq.s32.totalorder %s37, 0
      %p196 = por %p194, %p195
      %p197 = scmp.ne.s32.totalorder %s185, %s186
      %p198 = scmp.eq.s32.totalorder %s38, 5
      %p199 = por %p197, %p198
      %p201 = scmp.ne.s32.totalorder %s186, %s200
      %p202 = scmp.eq.s32.totalorder %s38, 0
      %p203 = por %p201, %p202
      %s205 = sadd.s32 %s204, 1
      %p208 = scmp.eq.s32.totalorder %s32, 5
      %p209 = scmp.ne.s32.totalorder %s204, %s206
      %p210 = scmp.eq.s32.totalorder %s32, 0
      %p211 = por %p209, %p210
      %p212 = scmp.ne.s32.totalorder %s204, %s206
      %p213 = scmp.eq.s32.totalorder %s37, 5
      %p214 = por %p212, %p213
      %p215 = scmp.ne.s32.totalorder %s206, %s207
      %p216 = scmp.eq.s32.totalorder %s37, 0
      %p217 = por %p215, %p216
      %p218 = scmp.ne.s32.totalorder %s206, %s207
      %p219 = scmp.eq.s32.totalorder %s38, 5
      %p220 = por %p218, %p219
      %p222 = scmp.ne.s32.totalorder %s207, %s221
      %p223 = scmp.eq.s32.totalorder %s38, 0
      %p224 = por %p222, %p223
      %s226 = sadd.s32 %s225, 1
      %p229 = scmp.eq.s32.totalorder %s32, 5
      %p230 = scmp.ne.s32.totalorder %s225, %s227
      %p231 = scmp.eq.s32.totalorder %s32, 0
      %p232 = por %p230, %p231
      %p233 = scmp.ne.s32.totalorder %s225, %s227
      %p234 = scmp.eq.s32.totalorder %s37, 5
      %p235 = por %p233, %p234
      %p236 = scmp.ne.s32.totalorder %s227, %s228
      %p237 = scmp.eq.s32.totalorder %s37, 0
      %p238 = por %p236, %p237
      %p239 = scmp.ne.s32.totalorder %s227, %s228
      %p240 = scmp.eq.s32.totalorder %s38, 5
      %p241 = por %p239, %p240
      %p243 = scmp.ne.s32.totalorder %s228, %s242
      %p244 = scmp.eq.s32.totalorder %s38, 0
      %p245 = por %p243, %p244
      %s247 = sadd.s32 %s246, 1
      %p250 = scmp.eq.s32.totalorder %s32, 5
      %p251 = scmp.ne.s32.totalorder %s246, %s248
      %p252 = scmp.eq.s32.totalorder %s32, 0
      %p253 = por %p251, %p252
      %p254 = scmp.ne.s32.totalorder %s246, %s248
      %p255 = scmp.eq.s32.totalorder %s37, 5
      %p256 = por %p254, %p255
      %p257 = scmp.ne.s32.totalorder %s248, %s249
      %p258 = scmp.eq.s32.totalorder %s37, 0
      %p259 = por %p257, %p258
      %p260 = scmp.ne.s32.totalorder %s248, %s249
      %p261 = scmp.eq.s32.totalorder %s38, 5
      %p262 = por %p260, %p261
      %p264 = scmp.ne.s32.totalorder %s249, %s263
      %p265 = scmp.eq.s32.totalorder %s38, 0
      %p266 = por %p264, %p265
      %s268 = sadd.s32 %s267, 1
      %p271 = scmp.eq.s32.totalorder %s32, 5
      %p272 = scmp.ne.s32.totalorder %s267, %s269
      %p273 = scmp.eq.s32.totalorder %s32, 0
      %p274 = por %p272, %p273
      %p275 = scmp.ne.s32.totalorder %s267, %s269
      %p276 = scmp.eq.s32.totalorder %s37, 5
      %p277 = por %p275, %p276
      %p278 = scmp.ne.s32.totalorder %s269, %s270
      %p279 = scmp.eq.s32.totalorder %s37, 0
      %p280 = por %p278, %p279
      %p281 = scmp.ne.s32.totalorder %s269, %s270
      %p282 = scmp.eq.s32.totalorder %s38, 5
      %p283 = por %p281, %p282
      %p285 = scmp.ne.s32.totalorder %s270, %s284
      %p286 = scmp.eq.s32.totalorder %s38, 0
      %p287 = por %p285, %p286
      %s289 = sadd.s32 %s288, 1
      %p292 = scmp.eq.s32.totalorder %s32, 5
      %p293 = scmp.ne.s32.totalorder %s288, %s290
      %p294 = scmp.eq.s32.totalorder %s32, 0
      %p295 = por %p293, %p294
      %p296 = scmp.ne.s32.totalorder %s288, %s290
      %p297 = scmp.eq.s32.totalorder %s37, 5
      %p298 = por %p296, %p297
      %p299 = scmp.ne.s32.totalorder %s290, %s291
      %p300 = scmp.eq.s32.totalorder %s37, 0
      %p301 = por %p299, %p300
      %p302 = scmp.ne.s32.totalorder %s290, %s291
      %p303 = scmp.eq.s32.totalorder %s38, 5
      %p304 = por %p302, %p303
      %p306 = scmp.ne.s32.totalorder %s291, %s305
      %p307 = scmp.eq.s32.totalorder %s38, 0
      %p308 = por %p306, %p307
      %s310 = sadd.s32 %s309, 1
      %p313 = scmp.eq.s32.totalorder %s32, 5
      %p314 = scmp.ne.s32.totalorder %s309, %s311
      %p315 = scmp.eq.s32.totalorder %s32, 0
      %p316 = por %p314, %p315
      %p317 = scmp.ne.s32.totalorder %s309, %s311
      %p318 = scmp.eq.s32.totalorder %s37, 5
      %p319 = por %p317, %p318
      %p320 = scmp.ne.s32.totalorder %s311, %s312
      %p321 = scmp.eq.s32.totalorder %s37, 0
      %p322 = por %p320, %p321
      %p323 = scmp.ne.s32.totalorder %s311, %s312
      %p324 = scmp.eq.s32.totalorder %s38, 5
      %p325 = por %p323, %p324
      %p327 = scmp.ne.s32.totalorder %s312, %s326
      %p328 = scmp.eq.s32.totalorder %s38, 0
      %p329 = por %p327, %p328
      %s331 = sadd.s32 %s330, 1
      %p334 = scmp.eq.s32.totalorder %s32, 5
      %p335 = scmp.ne.s32.totalorder %s330, %s332
      %p336 = scmp.eq.s32.totalorder %s32, 0
      %p337 = por %p335, %p336
      %p338 = scmp.ne.s32.totalorder %s330, %s332
      %p339 = scmp.eq.s32.totalorder %s37, 5
      %p340 = por %p338, %p339
      %p341 = scmp.ne.s32.totalorder %s332, %s333
      %p342 = scmp.eq.s32.totalorder %s37, 0
      %p343 = por %p341, %p342
      %p344 = scmp.ne.s32.totalorder %s332, %s333
      %p345 = scmp.eq.s32.totalorder %s38, 5
      %p346 = por %p344, %p345
      %p348 = scmp.ne.s32.totalorder %s333, %s347
      %p349 = scmp.eq.s32.totalorder %s38, 0
      %p350 = por %p348, %p349
      %s352 = sadd.s32 %s351, 1
      %p355 = scmp.eq.s32.totalorder %s32, 5
      %p356 = scmp.ne.s32.totalorder %s351, %s353
      %p357 = scmp.eq.s32.totalorder %s32, 0
      %p358 = por %p356, %p357
      %p359 = scmp.ne.s32.totalorder %s351, %s353
      %p360 = scmp.eq.s32.totalorder %s37, 5
      %p361 = por %p359, %p360
      %p362 = scmp.ne.s32.totalorder %s353, %s354
      %p363 = scmp.eq.s32.totalorder %s37, 0
      %p364 = por %p362, %p363
      %p365 = scmp.ne.s32.totalorder %s353, %s354
      %p366 = scmp.eq.s32.totalorder %s38, 5
      %p367 = por %p365, %p366
      %p369 = scmp.ne.s32.totalorder %s354, %s368
      %p370 = scmp.eq.s32.totalorder %s38, 0
      %p371 = por %p369, %p370
      %s373 = sadd.s32 %s372, 1
      %p376 = scmp.eq.s32.totalorder %s32, 5
      %p377 = scmp.ne.s32.totalorder %s372, %s374
      %p378 = scmp.eq.s32.totalorder %s32, 0
      %p379 = por %p377, %p378
      %p380 = scmp.ne.s32.totalorder %s372, %s374
      %p381 = scmp.eq.s32.totalorder %s37, 5
      %p382 = por %p380, %p381
      %p383 = scmp.ne.s32.totalorder %s374, %s375
      %p384 = scmp.eq.s32.totalorder %s37, 0
      %p385 = por %p383, %p384
      %p386 = scmp.ne.s32.totalorder %s374, %s375
      %p387 = scmp.eq.s32.totalorder %s38, 5
      %p388 = por %p386, %p387
      %p390 = scmp.ne.s32.totalorder %s375, %s389
      %p391 = scmp.eq.s32.totalorder %s38, 0
      %p392 = por %p390, %p391
      %s394 = sadd.s32 %s393, 1
      %p397 = scmp.eq.s32.totalorder %s32, 5
      %p398 = scmp.ne.s32.totalorder %s393, %s395
      %p399 = scmp.eq.s32.totalorder %s32, 0
      %p400 = por %p398, %p399
      %p401 = scmp.ne.s32.totalorder %s393, %s395
      %p402 = scmp.eq.s32.totalorder %s37, 5
      %p403 = por %p401, %p402
      %p404 = scmp.ne.s32.totalorder %s395, %s396
      %p405 = scmp.eq.s32.totalorder %s37, 0
      %p406 = por %p404, %p405
      %p407 = scmp.ne.s32.totalorder %s395, %s396
      %p408 = scmp.eq.s32.totalorder %s38, 5
      %p409 = por %p407, %p408
      %p411 = scmp.ne.s32.totalorder %s396, %s410
      %p412 = scmp.eq.s32.totalorder %s38, 0
      %p413 = por %p411, %p412
      %s415 = sadd.s32 %s414, 1
      %p418 = scmp.eq.s32.totalorder %s32, 5
      %p419 = scmp.ne.s32.totalorder %s414, %s416
      %p420 = scmp.eq.s32.totalorder %s32, 0
      %p421 = por %p419, %p420
      %p422 = scmp.ne.s32.totalorder %s414, %s416
      %p423 = scmp.eq.s32.totalorder %s37, 5
      %p424 = por %p422, %p423
      %p425 = scmp.ne.s32.totalorder %s416, %s417
      %p426 = scmp.eq.s32.totalorder %s37, 0
      %p427 = por %p425, %p426
      %p428 = scmp.ne.s32.totalorder %s416, %s417
      %p429 = scmp.eq.s32.totalorder %s38, 5
      %p430 = por %p428, %p429
      %p432 = scmp.ne.s32.totalorder %s417, %s431
      %p433 = scmp.eq.s32.totalorder %s38, 0
      %p434 = por %p432, %p433
      %s436 = sadd.s32 %s435, 1
      %p439 = scmp.eq.s32.totalorder %s32, 5
      %p440 = scmp.ne.s32.totalorder %s435, %s437
      %p441 = scmp.eq.s32.totalorder %s32, 0
      %p442 = por %p440, %p441
      %p443 = scmp.ne.s32.totalorder %s435, %s437
      %p444 = scmp.eq.s32.totalorder %s37, 5
      %p445 = por %p443, %p444
      %p446 = scmp.ne.s32.totalorder %s437, %s438
      %p447 = scmp.eq.s32.totalorder %s37, 0
      %p448 = por %p446, %p447
      %p449 = scmp.ne.s32.totalorder %s437, %s438
      %p450 = scmp.eq.s32.totalorder %s38, 5
      %p451 = por %p449, %p450
      %p453 = scmp.ne.s32.totalorder %s438, %s452
      %p454 = scmp.eq.s32.totalorder %s38, 0
      %p455 = por %p453, %p454
      %s457 = sadd.s32 %s456, 1
      %p460 = scmp.eq.s32.totalorder %s32, 5
      %p461 = scmp.ne.s32.totalorder %s456, %s458
      %p462 = scmp.eq.s32.totalorder %s32, 0
      %p463 = por %p461, %p462
      %p464 = scmp.ne.s32.totalorder %s456, %s458
      %p465 = scmp.eq.s32.totalorder %s37, 5
      %p466 = por %p464, %p465
      %p467 = scmp.ne.s32.totalorder %s458, %s459
      %p468 = scmp.eq.s32.totalorder %s37, 0
      %p469 = por %p467, %p468
      %p470 = scmp.ne.s32.totalorder %s458, %s459
      %p471 = scmp.eq.s32.totalorder %s38, 5
      %p472 = por %p470, %p471
      %p474 = scmp.ne.s32.totalorder %s459, %s473
      %p475 = scmp.eq.s32.totalorder %s38, 0
      %p476 = por %p474, %p475
      %s478 = sadd.s32 %s477, 1
      %p481 = scmp.eq.s32.totalorder %s32, 5
      %p482 = scmp.ne.s32.totalorder %s477, %s479
      %p483 = scmp.eq.s32.totalorder %s32, 0
      %p484 = por %p482, %p483
      %p485 = scmp.ne.s32.totalorder %s477, %s479
      %p486 = scmp.eq.s32.totalorder %s37, 5
      %p487 = por %p485, %p486
      %p488 = scmp.ne.s32.totalorder %s479, %s480
      %p489 = scmp.eq.s32.totalorder %s37, 0
      %p490 = por %p488, %p489
      %p491 = scmp.ne.s32.totalorder %s479, %s480
      %p492 = scmp.eq.s32.totalorder %s38, 5
      %p493 = por %p491, %p492
      %p495 = scmp.ne.s32.totalorder %s480, %s494
      %p496 = scmp.eq.s32.totalorder %s38, 0
      %p497 = por %p495, %p496
      %s499 = sadd.s32 %s498, 1
      %p502 = scmp.eq.s32.totalorder %s32, 5
      %p503 = scmp.ne.s32.totalorder %s498, %s500
      %p504 = scmp.eq.s32.totalorder %s32, 0
      %p505 = por %p503, %p504
      %p506 = scmp.ne.s32.totalorder %s498, %s500
      %p507 = scmp.eq.s32.totalorder %s37, 5
      %p508 = por %p506, %p507
      %p509 = scmp.ne.s32.totalorder %s500, %s501
      %p510 = scmp.eq.s32.totalorder %s37, 0
      %p511 = por %p509, %p510
      %p512 = scmp.ne.s32.totalorder %s500, %s501
      %p513 = scmp.eq.s32.totalorder %s38, 5
      %p514 = por %p512, %p513
      %p516 = scmp.ne.s32.totalorder %s501, %s515
      %p517 = scmp.eq.s32.totalorder %s38, 0
      %p518 = por %p516, %p517
      %s520 = sadd.s32 %s519, 1
      %p523 = scmp.eq.s32.totalorder %s32, 5
      %p524 = scmp.ne.s32.totalorder %s519, %s521
      %p525 = scmp.eq.s32.totalorder %s32, 0
      %p526 = por %p524, %p525
      %p527 = scmp.ne.s32.totalorder %s519, %s521
      %p528 = scmp.eq.s32.totalorder %s37, 5
      %p529 = por %p527, %p528
      %p530 = scmp.ne.s32.totalorder %s521, %s522
      %p531 = scmp.eq.s32.totalorder %s37, 0
      %p532 = por %p530, %p531
      %p533 = scmp.ne.s32.totalorder %s521, %s522
      %p534 = scmp.eq.s32.totalorder %s38, 5
      %p535 = por %p533, %p534
      %p537 = scmp.ne.s32.totalorder %s522, %s536
      %p538 = scmp.eq.s32.totalorder %s38, 0
      %p539 = por %p537, %p538
      %s541 = sadd.s32 %s540, 1
      %p544 = scmp.eq.s32.totalorder %s32, 5
      %p545 = scmp.ne.s32.totalorder %s540, %s542
      %p546 = scmp.eq.s32.totalorder %s32, 0
      %p547 = por %p545, %p546
      %p548 = scmp.ne.s32.totalorder %s540, %s542
      %p549 = scmp.eq.s32.totalorder %s37, 5
      %p550 = por %p548, %p549
      %p551 = scmp.ne.s32.totalorder %s542, %s543
      %p552 = scmp.eq.s32.totalorder %s37, 0
      %p553 = por %p551, %p552
      %p554 = scmp.ne.s32.totalorder %s542, %s543
      %p555 = scmp.eq.s32.totalorder %s38, 5
      %p556 = por %p554, %p555
      %p558 = scmp.ne.s32.totalorder %s543, %s557
      %p559 = scmp.eq.s32.totalorder %s38, 0
      %p560 = por %p558, %p559
      %p561 = scmp.le.s32.totalorder 1, %s32
      %p562 = scmp.lt.s32.totalorder %s32, 7
      %p563 = pnand %p561, %p562
      %p564 = pneg %p563
      // Predicated region
      $region9: #{tpu_custom_call.1} parent=5 // pred_check
        _
      $region10: #{tpu_custom_call.1} parent=5 // pred_check_branch
        %566 = sbr.rel (%p563) target = $region12
      $region11: #{tpu_custom_call.1} parent=5 // pred_region
        %s567 = ssub.s32 %s32, 1
        // Predicated region
        $region13: #{tpu_custom_call.1} parent=11 // pred_check
          %p568 = pneg %p91
        $region14: #{tpu_custom_call.1} parent=11 // pred_check_branch
          %570 = sbr.rel (%p568) target = $region16
        $region15: #{tpu_custom_call.1} parent=11 // pred_region
          _
        $region16: #{tpu_custom_call.1} parent=11 // pred_fallthru
          _
        // Predicated region
        $region17: #{tpu_custom_call.1} parent=11 // pred_check
          %p571 = pneg %p112
        $region18: #{tpu_custom_call.1} parent=11 // pred_check_branch
          %573 = sbr.rel (%p571) target = $region20
        $region19: #{tpu_custom_call.1} parent=11 // pred_region
          _
        $region20: #{tpu_custom_call.1} parent=11 // pred_fallthru
          _
        // Predicated region
        $region21: #{tpu_custom_call.1} parent=11 // pred_check
          %p574 = pneg %p133
        $region22: #{tpu_custom_call.1} parent=11 // pred_check_branch
          %576 = sbr.rel (%p574) target = $region24
        $region23: #{tpu_custom_call.1} parent=11 // pred_region
          _
        $region24: #{tpu_custom_call.1} parent=11 // pred_fallthru
          _
        // Predicated region
        $region25: #{tpu_custom_call.1} parent=11 // pred_check
          %p577 = pneg %p154
        $region26: #{tpu_custom_call.1} parent=11 // pred_check_branch
          %579 = sbr.rel (%p577) target = $region28
        $region27: #{tpu_custom_call.1} parent=11 // pred_region
          _
        $region28: #{tpu_custom_call.1} parent=11 // pred_fallthru
          _
        // Predicated region
        $region29: #{tpu_custom_call.1} parent=11 // pred_check
          %p580 = pneg %p175
        $region30: #{tpu_custom_call.1} parent=11 // pred_check_branch
          %582 = sbr.rel (%p580) target = $region32
        $region31: #{tpu_custom_call.1} parent=11 // pred_region
          _
        $region32: #{tpu_custom_call.1} parent=11 // pred_fallthru
          _
        // Predicated region
        $region33: #{tpu_custom_call.1} parent=11 // pred_check
          %p583 = pneg %p196
        $region34: #{tpu_custom_call.1} parent=11 // pred_check_branch
          %585 = sbr.rel (%p583) target = $region36
        $region35: #{tpu_custom_call.1} parent=11 // pred_region
          _
        $region36: #{tpu_custom_call.1} parent=11 // pred_fallthru
          _
        // Predicated region
        $region37: #{tpu_custom_call.1} parent=11 // pred_check
          %p586 = pneg %p217
        $region38: #{tpu_custom_call.1} parent=11 // pred_check_branch
          %588 = sbr.rel (%p586) target = $region40
        $region39: #{tpu_custom_call.1} parent=11 // pred_region
          _
        $region40: #{tpu_custom_call.1} parent=11 // pred_fallthru
          _
        // Predicated region
        $region41: #{tpu_custom_call.1} parent=11 // pred_check
          %p589 = pneg %p238
        $region42: #{tpu_custom_call.1} parent=11 // pred_check_branch
          %591 = sbr.rel (%p589) target = $region44
        $region43: #{tpu_custom_call.1} parent=11 // pred_region
          _
        $region44: #{tpu_custom_call.1} parent=11 // pred_fallthru
          _
        // Predicated region
        $region45: #{tpu_custom_call.1} parent=11 // pred_check
          %p592 = pneg %p259
        $region46: #{tpu_custom_call.1} parent=11 // pred_check_branch
          %594 = sbr.rel (%p592) target = $region48
        $region47: #{tpu_custom_call.1} parent=11 // pred_region
          %s596 = ssub.s32 8192, 8192
          %597 = vsyncadd [#allocation11], %s596
          %s598 = sshll.u32 [#allocation10], 4
          %s599 = int_to_ptr.vmem [resolvable:$true] %s598
          %604 = dma.hbm_to_vmem [thread:$0]  %s9, 8192, %s599, [#allocation11], 512, 512, 32
        $region48: #{tpu_custom_call.1} parent=11 // pred_fallthru
          _
        // Predicated region
        $region49: #{tpu_custom_call.1} parent=11 // pred_check
          %p605 = pneg %p280
        $region50: #{tpu_custom_call.1} parent=11 // pred_check_branch
          %607 = sbr.rel (%p605) target = $region52
        $region51: #{tpu_custom_call.1} parent=11 // pred_region
          _
        $region52: #{tpu_custom_call.1} parent=11 // pred_fallthru
          _
        // Predicated region
        $region53: #{tpu_custom_call.1} parent=11 // pred_check
          %p608 = pneg %p301
        $region54: #{tpu_custom_call.1} parent=11 // pred_check_branch
          %610 = sbr.rel (%p608) target = $region56
        $region55: #{tpu_custom_call.1} parent=11 // pred_region
          _
        $region56: #{tpu_custom_call.1} parent=11 // pred_fallthru
          _
        // Predicated region
        $region57: #{tpu_custom_call.1} parent=11 // pred_check
          %p611 = pneg %p322
        $region58: #{tpu_custom_call.1} parent=11 // pred_check_branch
          %613 = sbr.rel (%p611) target = $region60
        $region59: #{tpu_custom_call.1} parent=11 // pred_region
          _
        $region60: #{tpu_custom_call.1} parent=11 // pred_fallthru
          _
        // Predicated region
        $region61: #{tpu_custom_call.1} parent=11 // pred_check
          %p614 = pneg %p343
        $region62: #{tpu_custom_call.1} parent=11 // pred_check_branch
          %616 = sbr.rel (%p614) target = $region64
        $region63: #{tpu_custom_call.1} parent=11 // pred_region
          %s618 = ssub.s32 32768, 32768
          %619 = vsyncadd [#allocation14], %s618
          %s620 = sshll.u32 [#allocation13], 4
          %s621 = int_to_ptr.vmem [resolvable:$true] %s620
          %626 = dma.hbm_to_vmem [thread:$0]  %s13, 32768, %s621, [#allocation14], 256, 256, 16
        $region64: #{tpu_custom_call.1} parent=11 // pred_fallthru
          _
        // Predicated region
        $region65: #{tpu_custom_call.1} parent=11 // pred_check
          %p627 = pneg %p364
        $region66: #{tpu_custom_call.1} parent=11 // pred_check_branch
          %629 = sbr.rel (%p627) target = $region68
        $region67: #{tpu_custom_call.1} parent=11 // pred_region
          _
        $region68: #{tpu_custom_call.1} parent=11 // pred_fallthru
          _
        // Predicated region
        $region69: #{tpu_custom_call.1} parent=11 // pred_check
          %p630 = pneg %p385
        $region70: #{tpu_custom_call.1} parent=11 // pred_check_branch
          %632 = sbr.rel (%p630) target = $region72
        $region71: #{tpu_custom_call.1} parent=11 // pred_region
          _
        $region72: #{tpu_custom_call.1} parent=11 // pred_fallthru
          _
        // Predicated region
        $region73: #{tpu_custom_call.1} parent=11 // pred_check
          %p633 = pneg %p406
        $region74: #{tpu_custom_call.1} parent=11 // pred_check_branch
          %635 = sbr.rel (%p633) target = $region76
        $region75: #{tpu_custom_call.1} parent=11 // pred_region
          _
        $region76: #{tpu_custom_call.1} parent=11 // pred_fallthru
          _
        // Predicated region
        $region77: #{tpu_custom_call.1} parent=11 // pred_check
          %p636 = pneg %p427
        $region78: #{tpu_custom_call.1} parent=11 // pred_check_branch
          %638 = sbr.rel (%p636) target = $region80
        $region79: #{tpu_custom_call.1} parent=11 // pred_region
          %s640 = ssub.s32 8192, 8192
          %641 = vsyncadd [#allocation14], %s640
          %s642 = sshll.u32 [#allocation15], 4
          %s643 = int_to_ptr.vmem [resolvable:$true] %s642
          %648 = dma.hbm_to_vmem [thread:$0]  %s17, 8192, %s643, [#allocation14], 128, 128, 8
        $region80: #{tpu_custom_call.1} parent=11 // pred_fallthru
          _
        // Predicated region
        $region81: #{tpu_custom_call.1} parent=11 // pred_check
          %p649 = pneg %p448
        $region82: #{tpu_custom_call.1} parent=11 // pred_check_branch
          %651 = sbr.rel (%p649) target = $region84
        $region83: #{tpu_custom_call.1} parent=11 // pred_region
          _
        $region84: #{tpu_custom_call.1} parent=11 // pred_fallthru
          _
        // Predicated region
        $region85: #{tpu_custom_call.1} parent=11 // pred_check
          %p652 = pneg %p469
        $region86: #{tpu_custom_call.1} parent=11 // pred_check_branch
          %654 = sbr.rel (%p652) target = $region88
        $region87: #{tpu_custom_call.1} parent=11 // pred_region
          _
        $region88: #{tpu_custom_call.1} parent=11 // pred_fallthru
          _
        // Predicated region
        $region89: #{tpu_custom_call.1} parent=11 // pred_check
          %p655 = pneg %p490
        $region90: #{tpu_custom_call.1} parent=11 // pred_check_branch
          %657 = sbr.rel (%p655) target = $region92
        $region91: #{tpu_custom_call.1} parent=11 // pred_region
          _
        $region92: #{tpu_custom_call.1} parent=11 // pred_fallthru
          _
        // Predicated region
        $region93: #{tpu_custom_call.1} parent=11 // pred_check
          %p658 = pneg %p511
        $region94: #{tpu_custom_call.1} parent=11 // pred_check_branch
          %660 = sbr.rel (%p658) target = $region96
        $region95: #{tpu_custom_call.1} parent=11 // pred_region
          _
        $region96: #{tpu_custom_call.1} parent=11 // pred_fallthru
          _
        // Predicated region
        $region97: #{tpu_custom_call.1} parent=11 // pred_check
          %p661 = pneg %p532
        $region98: #{tpu_custom_call.1} parent=11 // pred_check_branch
          %663 = sbr.rel (%p661) target = $region100
        $region99: #{tpu_custom_call.1} parent=11 // pred_region
          _
        $region100: #{tpu_custom_call.1} parent=11 // pred_fallthru
          _
      $region12: #{tpu_custom_call.1} parent=5 // pred_fallthru
        _
      %p664 = scmp.lt.s32.totalorder %s32, 6
      // Predicated region
      $region101: #{tpu_custom_call.1} parent=5 // pred_check
        %p665 = pneg %p664
      $region102: #{tpu_custom_call.1} parent=5 // pred_check_branch
        %667 = sbr.rel (%p665) target = $region104
      $region103: #{tpu_custom_call.1} parent=5 // pred_region
        // Predicated region
        $region105: #{tpu_custom_call.1} parent=103 // pred_check
          %p668 = pneg %p64
        $region106: #{tpu_custom_call.1} parent=103 // pred_check_branch
          %670 = sbr.rel (%p668) target = $region108
        $region107: #{tpu_custom_call.1} parent=103 // pred_region
          %s671 = sand.u32 %s54, 1
          %s672 = sand.u32 %s54, 1
          %s673 = smul.addr %s672, 128
          %s674 = scalar_lea.vmem [#allocation9], %s673
          %s675 = smul.u32 8, %s40
          %s676 = smul.addr %s675, 4
          %s677 = scalar_lea.vmem %s0, %s676
          // Predicated region
          $region109: #{tpu_custom_call.1} parent=107 // pred_check
            _
          $region110: #{tpu_custom_call.1} parent=107 // pred_check_branch
            %679 = sbr.rel (0) target = $region112
          $region111: #{tpu_custom_call.1} parent=107 // pred_region
            // Predicated region
            $region113: #{tpu_custom_call.1} parent=111 // pred_check
              _
            $region114: #{tpu_custom_call.1} parent=111 // pred_check_branch
              %681 = sbr.rel target = $region116
            $region115: #{tpu_custom_call.1} parent=111 // pred_region
              // Predicated region
              $region128: #{tpu_custom_call.1} parent=115 // pred_check
                _
              $region129: #{tpu_custom_call.1} parent=115 // pred_check_branch
                %759 = sbr.rel (0) target = $region131
              $region130: #{tpu_custom_call.1} parent=115 // pred_region
                loop: start=0, step=1, limit=1
                $region132: #{tpu_custom_call.1} parent=130 // loop_pre_header
                  _
                $region133: #{tpu_custom_call.1} parent=130 // loop_header
                  %s761 = sphi 0, %s765
                  %p762 = scmp.ge.s32.totalorder %s761, 1
                  %s766 = sphi %s677, %s677
                  %s767 = sphi %s674, %s674
                $region134: #{tpu_custom_call.1} parent=130 // loop_header_branch
                  %764 = sbr.rel (%p762) target = $region138
                $region135: #{tpu_custom_call.1} parent=130 // loop_body
                  _
                $region136: #{tpu_custom_call.1} parent=130 // loop_footer
                  %s765 = sadd.s32 1, %s761
                $region137: #{tpu_custom_call.1} parent=130 // loop_footer_branch
                  %760 = sbr.rel target = $region133
                $region138: #{tpu_custom_call.1} parent=130 // loop_exit
                  _
                %s769 = ssub.s32 16, 1
                loop: start=0, step=1, limit=1
                $region139: #{tpu_custom_call.1} parent=130 // loop_pre_header
                  _
                $region140: #{tpu_custom_call.1} parent=130 // loop_header
                  %s771 = sphi 0, %s775
                  %p772 = scmp.ge.s32.totalorder %s771, 1
                  %s776 = sphi %s677, %s677
                  %s777 = sphi %s674, %s674
                $region141: #{tpu_custom_call.1} parent=130 // loop_header_branch
                  %774 = sbr.rel (%p772) target = $region145
                $region142: #{tpu_custom_call.1} parent=130 // loop_body
                  %v778 = vld [vmem:[%s776] sm:%s769]
                  %779 = vst [vmem:[%s777] sm:%s769] %v778
                  %v780 = vld [vmem:[%s776 + $0x4] sm:%s769]
                  %781 = vst [vmem:[%s777 + $0x4] sm:%s769] %v780
                  %v782 = vld [vmem:[%s776 + $0x8] sm:%s769]
                  %783 = vst [vmem:[%s777 + $0x8] sm:%s769] %v782
                  %v784 = vld [vmem:[%s776 + $0xc] sm:%s769]
                  %785 = vst [vmem:[%s777 + $0xc] sm:%s769] %v784
                  %v786 = vld [vmem:[%s776 + $0x10] sm:%s769]
                  %787 = vst [vmem:[%s777 + $0x10] sm:%s769] %v786
                  %v788 = vld [vmem:[%s776 + $0x14] sm:%s769]
                  %789 = vst [vmem:[%s777 + $0x14] sm:%s769] %v788
                  %v790 = vld [vmem:[%s776 + $0x18] sm:%s769]
                  %791 = vst [vmem:[%s777 + $0x18] sm:%s769] %v790
                  %v792 = vld [vmem:[%s776 + $0x1c] sm:%s769]
                  %793 = vst [vmem:[%s777 + $0x1c] sm:%s769] %v792
                  %v794 = vld [vmem:[%s776 + $0x40] sm:%s769]
                  %795 = vst [vmem:[%s777 + $0x20] sm:%s769] %v794
                  %v796 = vld [vmem:[%s776 + $0x44] sm:%s769]
                  %797 = vst [vmem:[%s777 + $0x24] sm:%s769] %v796
                  %v798 = vld [vmem:[%s776 + $0x48] sm:%s769]
                  %799 = vst [vmem:[%s777 + $0x28] sm:%s769] %v798
                  %v800 = vld [vmem:[%s776 + $0x4c] sm:%s769]
                  %801 = vst [vmem:[%s777 + $0x2c] sm:%s769] %v800
                  %v802 = vld [vmem:[%s776 + $0x50] sm:%s769]
                  %803 = vst [vmem:[%s777 + $0x30] sm:%s769] %v802
                  %v804 = vld [vmem:[%s776 + $0x54] sm:%s769]
                  %805 = vst [vmem:[%s777 + $0x34] sm:%s769] %v804
                  %v806 = vld [vmem:[%s776 + $0x58] sm:%s769]
                  %807 = vst [vmem:[%s777 + $0x38] sm:%s769] %v806
                  %v808 = vld [vmem:[%s776 + $0x5c] sm:%s769]
                  %809 = vst [vmem:[%s777 + $0x3c] sm:%s769] %v808
                  %v810 = vld [vmem:[%s776 + $0x80] sm:%s769]
                  %811 = vst [vmem:[%s777 + $0x40] sm:%s769] %v810
                  %v812 = vld [vmem:[%s776 + $0x84] sm:%s769]
                  %813 = vst [vmem:[%s777 + $0x44] sm:%s769] %v812
                  %v814 = vld [vmem:[%s776 + $0x88] sm:%s769]
                  %815 = vst [vmem:[%s777 + $0x48] sm:%s769] %v814
                  %v816 = vld [vmem:[%s776 + $0x8c] sm:%s769]
                  %817 = vst [vmem:[%s777 + $0x4c] sm:%s769] %v816
                  %v818 = vld [vmem:[%s776 + $0x90] sm:%s769]
                  %819 = vst [vmem:[%s777 + $0x50] sm:%s769] %v818
                  %v820 = vld [vmem:[%s776 + $0x94] sm:%s769]
                  %821 = vst [vmem:[%s777 + $0x54] sm:%s769] %v820
                  %v822 = vld [vmem:[%s776 + $0x98] sm:%s769]
                  %823 = vst [vmem:[%s777 + $0x58] sm:%s769] %v822
                  %v824 = vld [vmem:[%s776 + $0x9c] sm:%s769]
                  %825 = vst [vmem:[%s777 + $0x5c] sm:%s769] %v824
                  %v826 = vld [vmem:[%s776 + $0xc0] sm:%s769]
                  %827 = vst [vmem:[%s777 + $0x60] sm:%s769] %v826
                  %v828 = vld [vmem:[%s776 + $0xc4] sm:%s769]
                  %829 = vst [vmem:[%s777 + $0x64] sm:%s769] %v828
                  %v830 = vld [vmem:[%s776 + $0xc8] sm:%s769]
                  %831 = vst [vmem:[%s777 + $0x68] sm:%s769] %v830
                  %v832 = vld [vmem:[%s776 + $0xcc] sm:%s769]
                  %833 = vst [vmem:[%s777 + $0x6c] sm:%s769] %v832
                  %v834 = vld [vmem:[%s776 + $0xd0] sm:%s769]
                  %835 = vst [vmem:[%s777 + $0x70] sm:%s769] %v834
                  %v836 = vld [vmem:[%s776 + $0xd4] sm:%s769]
                  %837 = vst [vmem:[%s777 + $0x74] sm:%s769] %v836
                  %v838 = vld [vmem:[%s776 + $0xd8] sm:%s769]
                  %839 = vst [vmem:[%s777 + $0x78] sm:%s769] %v838
                  %v840 = vld [vmem:[%s776 + $0xdc] sm:%s769]
                  %841 = vst [vmem:[%s777 + $0x7c] sm:%s769] %v840
                $region143: #{tpu_custom_call.1} parent=130 // loop_footer
                  %s775 = sadd.s32 1, %s771
                $region144: #{tpu_custom_call.1} parent=130 // loop_footer_branch
                  %770 = sbr.rel target = $region140
                $region145: #{tpu_custom_call.1} parent=130 // loop_exit
                  _
              $region131: #{tpu_custom_call.1} parent=115 // pred_fallthru
                _
            $region116: #{tpu_custom_call.1} parent=111 // pred_fallthru
              _
            // Predicated region
            $region117: #{tpu_custom_call.1} parent=111 // pred_check
              _
            $region118: #{tpu_custom_call.1} parent=111 // pred_check_branch
              %683 = sbr.rel (0) target = $region120
            $region119: #{tpu_custom_call.1} parent=111 // pred_region
              %s685 = ssub.s32 16, 1
              loop: start=0, step=1, limit=1
              $region121: #{tpu_custom_call.1} parent=119 // loop_pre_header
                _
              $region122: #{tpu_custom_call.1} parent=119 // loop_header
                %s687 = sphi 0, %s691
                %p688 = scmp.ge.s32.totalorder %s687, 1
                %s692 = sphi %s677, %s677
                %s693 = sphi %s674, %s674
              $region123: #{tpu_custom_call.1} parent=119 // loop_header_branch
                %690 = sbr.rel (%p688) target = $region127
              $region124: #{tpu_custom_call.1} parent=119 // loop_body
                %v694 = vld [vmem:[%s692] sm:%s685]
                %695 = vst [vmem:[%s693] sm:%s685] %v694
                %v696 = vld [vmem:[%s692 + $0x4] sm:%s685]
                %697 = vst [vmem:[%s693 + $0x4] sm:%s685] %v696
                %v698 = vld [vmem:[%s692 + $0x8] sm:%s685]
                %699 = vst [vmem:[%s693 + $0x8] sm:%s685] %v698
                %v700 = vld [vmem:[%s692 + $0xc] sm:%s685]
                %701 = vst [vmem:[%s693 + $0xc] sm:%s685] %v700
                %v702 = vld [vmem:[%s692 + $0x10] sm:%s685]
                %703 = vst [vmem:[%s693 + $0x10] sm:%s685] %v702
                %v704 = vld [vmem:[%s692 + $0x14] sm:%s685]
                %705 = vst [vmem:[%s693 + $0x14] sm:%s685] %v704
                %v706 = vld [vmem:[%s692 + $0x18] sm:%s685]
                %707 = vst [vmem:[%s693 + $0x18] sm:%s685] %v706
                %v708 = vld [vmem:[%s692 + $0x1c] sm:%s685]
                %709 = vst [vmem:[%s693 + $0x1c] sm:%s685] %v708
                %v710 = vld [vmem:[%s692 + $0x40] sm:%s685]
                %711 = vst [vmem:[%s693 + $0x20] sm:%s685] %v710
                %v712 = vld [vmem:[%s692 + $0x44] sm:%s685]
                %713 = vst [vmem:[%s693 + $0x24] sm:%s685] %v712
                %v714 = vld [vmem:[%s692 + $0x48] sm:%s685]
                %715 = vst [vmem:[%s693 + $0x28] sm:%s685] %v714
                %v716 = vld [vmem:[%s692 + $0x4c] sm:%s685]
                %717 = vst [vmem:[%s693 + $0x2c] sm:%s685] %v716
                %v718 = vld [vmem:[%s692 + $0x50] sm:%s685]
                %719 = vst [vmem:[%s693 + $0x30] sm:%s685] %v718
                %v720 = vld [vmem:[%s692 + $0x54] sm:%s685]
                %721 = vst [vmem:[%s693 + $0x34] sm:%s685] %v720
                %v722 = vld [vmem:[%s692 + $0x58] sm:%s685]
                %723 = vst [vmem:[%s693 + $0x38] sm:%s685] %v722
                %v724 = vld [vmem:[%s692 + $0x5c] sm:%s685]
                %725 = vst [vmem:[%s693 + $0x3c] sm:%s685] %v724
                %v726 = vld [vmem:[%s692 + $0x80] sm:%s685]
                %727 = vst [vmem:[%s693 + $0x40] sm:%s685] %v726
                %v728 = vld [vmem:[%s692 + $0x84] sm:%s685]
                %729 = vst [vmem:[%s693 + $0x44] sm:%s685] %v728
                %v730 = vld [vmem:[%s692 + $0x88] sm:%s685]
                %731 = vst [vmem:[%s693 + $0x48] sm:%s685] %v730
                %v732 = vld [vmem:[%s692 + $0x8c] sm:%s685]
                %733 = vst [vmem:[%s693 + $0x4c] sm:%s685] %v732
                %v734 = vld [vmem:[%s692 + $0x90] sm:%s685]
                %735 = vst [vmem:[%s693 + $0x50] sm:%s685] %v734
                %v736 = vld [vmem:[%s692 + $0x94] sm:%s685]
                %737 = vst [vmem:[%s693 + $0x54] sm:%s685] %v736
                %v738 = vld [vmem:[%s692 + $0x98] sm:%s685]
                %739 = vst [vmem:[%s693 + $0x58] sm:%s685] %v738
                %v740 = vld [vmem:[%s692 + $0x9c] sm:%s685]
                %741 = vst [vmem:[%s693 + $0x5c] sm:%s685] %v740
                %v742 = vld [vmem:[%s692 + $0xc0] sm:%s685]
                %743 = vst [vmem:[%s693 + $0x60] sm:%s685] %v742
                %v744 = vld [vmem:[%s692 + $0xc4] sm:%s685]
                %745 = vst [vmem:[%s693 + $0x64] sm:%s685] %v744
                %v746 = vld [vmem:[%s692 + $0xc8] sm:%s685]
                %747 = vst [vmem:[%s693 + $0x68] sm:%s685] %v746
                %v748 = vld [vmem:[%s692 + $0xcc] sm:%s685]
                %749 = vst [vmem:[%s693 + $0x6c] sm:%s685] %v748
                %v750 = vld [vmem:[%s692 + $0xd0] sm:%s685]
                %751 = vst [vmem:[%s693 + $0x70] sm:%s685] %v750
                %v752 = vld [vmem:[%s692 + $0xd4] sm:%s685]
                %753 = vst [vmem:[%s693 + $0x74] sm:%s685] %v752
                %v754 = vld [vmem:[%s692 + $0xd8] sm:%s685]
                %755 = vst [vmem:[%s693 + $0x78] sm:%s685] %v754
                %v756 = vld [vmem:[%s692 + $0xdc] sm:%s685]
                %757 = vst [vmem:[%s693 + $0x7c] sm:%s685] %v756
              $region125: #{tpu_custom_call.1} parent=119 // loop_footer
                %s691 = sadd.s32 1, %s687
              $region126: #{tpu_custom_call.1} parent=119 // loop_footer_branch
                %686 = sbr.rel target = $region122
              $region127: #{tpu_custom_call.1} parent=119 // loop_exit
                _
            $region120: #{tpu_custom_call.1} parent=111 // pred_fallthru
              _
          $region112: #{tpu_custom_call.1} parent=107 // pred_fallthru
            _
          %842 = vnop
        $region108: #{tpu_custom_call.1} parent=103 // pred_fallthru
          _
      $region104: #{tpu_custom_call.1} parent=5 // pred_fallthru
        _
      %p843 = scmp.le.s32.totalorder 1, %s32
      %p844 = scmp.lt.s32.totalorder %s32, 7
      %p845 = pnand %p843, %p844
      %p846 = pneg %p845
      // Predicated region
      $region146: #{tpu_custom_call.1} parent=5 // pred_check
        _
      $region147: #{tpu_custom_call.1} parent=5 // pred_check_branch
        %848 = sbr.rel (%p845) target = $region149
      $region148: #{tpu_custom_call.1} parent=5 // pred_region
        %s849 = ssub.s32 %s32, 1
        %s850 = sand.u32 %s57, 1
        %s851 = sand.u32 %s57, 1
        %s852 = smul.addr %s851, 128
        %s853 = scalar_lea.vmem [#allocation9], %s852
        // Predicated region
        $region150: #{tpu_custom_call.1} parent=148 // pred_check
          %p854 = pneg %p70
        $region151: #{tpu_custom_call.1} parent=148 // pred_check_branch
          %856 = sbr.rel (%p854) target = $region153
        $region152: #{tpu_custom_call.1} parent=148 // pred_region
          _
        $region153: #{tpu_custom_call.1} parent=148 // pred_fallthru
          _
        // Predicated region
        $region154: #{tpu_custom_call.1} parent=148 // pred_check
          %p857 = pneg %p259
        $region155: #{tpu_custom_call.1} parent=148 // pred_check_branch
          %859 = sbr.rel (%p857) target = $region157
        $region156: #{tpu_custom_call.1} parent=148 // pred_region
          %860 = dma.done [#allocation11], 8192
        $region157: #{tpu_custom_call.1} parent=148 // pred_fallthru
          _
        // Predicated region
        $region158: #{tpu_custom_call.1} parent=148 // pred_check
          %p861 = pneg %p343
        $region159: #{tpu_custom_call.1} parent=148 // pred_check_branch
          %863 = sbr.rel (%p861) target = $region161
        $region160: #{tpu_custom_call.1} parent=148 // pred_region
          %864 = dma.done [#allocation14], 32768
        $region161: #{tpu_custom_call.1} parent=148 // pred_fallthru
          _
        // Predicated region
        $region162: #{tpu_custom_call.1} parent=148 // pred_check
          %p865 = pneg %p427
        $region163: #{tpu_custom_call.1} parent=148 // pred_check_branch
          %867 = sbr.rel (%p865) target = $region165
        $region164: #{tpu_custom_call.1} parent=148 // pred_region
          %868 = dma.done [#allocation14], 8192
        $region165: #{tpu_custom_call.1} parent=148 // pred_fallthru
          _
        %s869 = sand.u32 %s57, 1
        %s870 = sand.u32 %s57, 1
        %s871 = smul.addr %s870, 128
        %s872 = scalar_lea.vmem [#allocation9], %s871
        %p873 = pneg %p70
        %p874 = pneg %p67
        %p875 = pneg %p91
        %p876 = pneg %p88
        %p877 = pneg %p112
        %p878 = pneg %p109
        %p879 = pneg %p133
        %p880 = pneg %p130
        %p881 = pneg %p154
        %p882 = pneg %p151
        %p883 = pneg %p175
        %p884 = pneg %p172
        %p885 = pneg %p196
        %p886 = pneg %p193
        %p887 = pneg %p217
        %p888 = pneg %p214
        %p889 = pneg %p238
        %p890 = pneg %p235
        %p891 = pneg %p259
        %p892 = pneg %p256
        %p893 = pneg %p280
        %p894 = pneg %p277
        %p895 = pneg %p301
        %p896 = pneg %p298
        %p897 = pneg %p322
        %p898 = pneg %p319
        %p899 = pneg %p343
        %p900 = pneg %p340
        %p901 = pneg %p364
        %p902 = pneg %p361
        %p903 = pneg %p385
        %p904 = pneg %p382
        %p905 = pneg %p406
        %p906 = pneg %p403
        %p907 = pneg %p427
        %p908 = pneg %p424
        %p909 = pneg %p448
        %p910 = pneg %p445
        %p911 = pneg %p469
        %p912 = pneg %p466
        %p913 = pneg %p490
        %p914 = pneg %p487
        %p915 = pneg %p511
        %p916 = pneg %p508
        %p917 = pneg %p532
        %p918 = pneg %p529
        %p919 = pneg %p553
        %p920 = pneg %p550
        %s921 = smul.u32 8, %s42
        %p923 = scmp.eq.s32.totalorder %s41, 0
        %p924 = scmp.eq.s32.totalorder %s42, 0
        %p925 = pnand %p923, %p924
        %p926 = pneg %p925
        // Predicated region
        $region166: #{tpu_custom_call.1} parent=148 // pred_check
          _
        $region167: #{tpu_custom_call.1} parent=148 // pred_check_branch
          %928 = sbr.rel (%p925) target = $region169
        $region168: #{tpu_custom_call.1} parent=148 // pred_region
          %vm929 = vcmask 523264
          %930 = vst.msk [vmem:[#allocation2] sm:$0xff] %vm929, 0.0
          %931 = vst.msk [vmem:[#allocation3] sm:$0xff] %vm929, 0.0
          %932 = vst [vmem:[#allocation4] sm:$0xff] 0.0
          %933 = vst [vmem:[#allocation5] sm:$0xff] 0.0
          %934 = vst [vmem:[#allocation6] sm:$0xff] 0.0
          %935 = vst [vmem:[#allocation6 + $0x8] sm:$0xff] 0.0
          %936 = vst [vmem:[#allocation6 + $0x10] sm:$0xff] 0.0
          %937 = vst [vmem:[#allocation6 + $0x18] sm:$0xff] 0.0
          %938 = vst [vmem:[#allocation6 + $0x20] sm:$0xff] 0.0
          %939 = vst [vmem:[#allocation6 + $0x28] sm:$0xff] 0.0
          %940 = vst [vmem:[#allocation6 + $0x30] sm:$0xff] 0.0
          %941 = vst [vmem:[#allocation6 + $0x38] sm:$0xff] 0.0
          %942 = vst [vmem:[#allocation7] sm:$0xff] 0.0
          %943 = vst [vmem:[#allocation7 + $0x8] sm:$0xff] 0.0
          %944 = vst [vmem:[#allocation7 + $0x10] sm:$0xff] 0.0
          %945 = vst [vmem:[#allocation7 + $0x18] sm:$0xff] 0.0
          %946 = vst [vmem:[#allocation7 + $0x20] sm:$0xff] 0.0
          %947 = vst [vmem:[#allocation7 + $0x28] sm:$0xff] 0.0
          %948 = vst [vmem:[#allocation7 + $0x30] sm:$0xff] 0.0
          %949 = vst [vmem:[#allocation7 + $0x38] sm:$0xff] 0.0
          %950 = vst [vmem:[#allocation8] sm:$0xff] -inf
          %951 = vst [vmem:[#allocation8 + $0x8] sm:$0xff] -inf
          %952 = vst [vmem:[#allocation8 + $0x10] sm:$0xff] -inf
          %953 = vst [vmem:[#allocation8 + $0x18] sm:$0xff] -inf
        $region169: #{tpu_custom_call.1} parent=148 // pred_fallthru
          _
        %v954 = vld [vmem:[%s853] sm:$0xf]
        %v955 = vld [vmem:[%s853 + $0x4] sm:$0xf]
        %v956 = vld [vmem:[%s853 + $0x8] sm:$0xf]
        %v957 = vld [vmem:[%s853 + $0xc] sm:$0xf]
        %v958 = vld [vmem:[%s853 + $0x10] sm:$0xf]
        %v959 = vld [vmem:[%s853 + $0x14] sm:$0xf]
        %v960 = vld [vmem:[%s853 + $0x18] sm:$0xf]
        %v961 = vld [vmem:[%s853 + $0x1c] sm:$0xf]
        %v962 = vld [vmem:[%s853 + $0x20] sm:$0xf]
        %v963 = vld [vmem:[%s853 + $0x24] sm:$0xf]
        %v964 = vld [vmem:[%s853 + $0x28] sm:$0xf]
        %v965 = vld [vmem:[%s853 + $0x2c] sm:$0xf]
        %v966 = vld [vmem:[%s853 + $0x30] sm:$0xf]
        %v967 = vld [vmem:[%s853 + $0x34] sm:$0xf]
        %v968 = vld [vmem:[%s853 + $0x38] sm:$0xf]
        %v969 = vld [vmem:[%s853 + $0x3c] sm:$0xf]
        %v970 = vld [vmem:[%s853 + $0x40] sm:$0xf]
        %v971 = vld [vmem:[%s853 + $0x44] sm:$0xf]
        %v972 = vld [vmem:[%s853 + $0x48] sm:$0xf]
        %v973 = vld [vmem:[%s853 + $0x4c] sm:$0xf]
        %v974 = vld [vmem:[%s853 + $0x50] sm:$0xf]
        %v975 = vld [vmem:[%s853 + $0x54] sm:$0xf]
        %v976 = vld [vmem:[%s853 + $0x58] sm:$0xf]
        %v977 = vld [vmem:[%s853 + $0x5c] sm:$0xf]
        %v978 = vld [vmem:[%s853 + $0x60] sm:$0xf]
        %v979 = vld [vmem:[%s853 + $0x64] sm:$0xf]
        %v980 = vld [vmem:[%s853 + $0x68] sm:$0xf]
        %v981 = vld [vmem:[%s853 + $0x6c] sm:$0xf]
        %v982 = vld [vmem:[%s853 + $0x70] sm:$0xf]
        %v983 = vld [vmem:[%s853 + $0x74] sm:$0xf]
        %v984 = vld [vmem:[%s853 + $0x78] sm:$0xf]
        %v985 = vld [vmem:[%s853 + $0x7c] sm:$0xf]
        %v986 = vld [vmem:[%s1] sm:$0xf]
        %v987 = vld [vmem:[%s2] sm:$0x1]
        %v989 = vlaneseq
        %v990 = vshrl.u32 %v989, 7
        %v991 = vsub.s32 0, %v990
        %v992 = vrot.slane %v987, %v991
        %v1026 = vunpack.c.l.b16 %v954
        %v1027 = vunpack.c.l.b16 %v955
        %v1028 = vunpack.c.l.b16 %v956
        %v1029 = vunpack.c.l.b16 %v957
        %v1030 = vunpack.c.l.b16 %v958
        %v1031 = vunpack.c.l.b16 %v959
        %v1032 = vunpack.c.l.b16 %v960
        %v1033 = vunpack.c.l.b16 %v961
        %v1034 = vunpack.c.l.b16 %v962
        %v1035 = vunpack.c.l.b16 %v963
        %v1036 = vunpack.c.l.b16 %v964
        %v1037 = vunpack.c.l.b16 %v965
        %v1038 = vunpack.c.l.b16 %v966
        %v1039 = vunpack.c.l.b16 %v967
        %v1040 = vunpack.c.l.b16 %v968
        %v1041 = vunpack.c.l.b16 %v969
        %v1042 = vunpack.c.l.b16 %v970
        %v1043 = vunpack.c.l.b16 %v971
        %v1044 = vunpack.c.l.b16 %v972
        %v1045 = vunpack.c.l.b16 %v973
        %v1046 = vunpack.c.l.b16 %v974
        %v1047 = vunpack.c.l.b16 %v975
        %v1048 = vunpack.c.l.b16 %v976
        %v1049 = vunpack.c.l.b16 %v977
        %v1050 = vunpack.c.l.b16 %v978
        %v1051 = vunpack.c.l.b16 %v979
        %v1052 = vunpack.c.l.b16 %v980
        %v1053 = vunpack.c.l.b16 %v981
        %v1054 = vunpack.c.l.b16 %v982
        %v1055 = vunpack.c.l.b16 %v983
        %v1056 = vunpack.c.l.b16 %v984
        %v1057 = vunpack.c.l.b16 %v985
        %v1058 = vpack.c.b16 %v1027, %v1026
        %v1059 = vpack.c.b16 %v1029, %v1028
        %v1060 = vpack.c.b16 %v1031, %v1030
        %v1061 = vpack.c.b16 %v1033, %v1032
        %v1062 = vpack.c.b16 %v1035, %v1034
        %v1063 = vpack.c.b16 %v1037, %v1036
        %v1064 = vpack.c.b16 %v1039, %v1038
        %v1065 = vpack.c.b16 %v1041, %v1040
        %v1066 = vpack.c.b16 %v1043, %v1042
        %v1067 = vpack.c.b16 %v1045, %v1044
        %v1068 = vpack.c.b16 %v1047, %v1046
        %v1069 = vpack.c.b16 %v1049, %v1048
        %v1070 = vpack.c.b16 %v1051, %v1050
        %v1071 = vpack.c.b16 %v1053, %v1052
        %v1072 = vpack.c.b16 %v1055, %v1054
        %v1073 = vpack.c.b16 %v1057, %v1056
        %vm1074 = vcmask 64512
        %v1076 = vsel %vm1074, %v1058, 0
        %v1079 = vsel %vm1074, %v1059, 0
        %v1082 = vsel %vm1074, %v1060, 0
        %v1085 = vsel %vm1074, %v1061, 0
        %v1088 = vsel %vm1074, %v1062, 0
        %v1091 = vsel %vm1074, %v1063, 0
        %v1094 = vsel %vm1074, %v1064, 0
        %v1097 = vsel %vm1074, %v1065, 0
        %v1100 = vsel %vm1074, %v1066, 0
        %v1103 = vsel %vm1074, %v1067, 0
        %v1106 = vsel %vm1074, %v1068, 0
        %v1109 = vsel %vm1074, %v1069, 0
        %v1112 = vsel %vm1074, %v1070, 0
        %v1115 = vsel %vm1074, %v1071, 0
        %v1118 = vsel %vm1074, %v1072, 0
        %v1121 = vsel %vm1074, %v1073, 0
        %vm1123 = vcmask 1043456
        %v1125 = vsel %vm1123, %v986, 0
        %1127 = vmatprep.subr.bf16.mxu0 0
        %1128 = vmatpush1.bf16.msra.mxu0 0
        %1129 = vmatprep.subr.bf16.mxu0 0
        %1130 = vmatpush1.bf16.msra.mxu0 0
        %1131 = vmatprep.subr.bf16.mxu0 0
        %1132 = vmatpush1.bf16.msra.mxu0 0
        %1133 = vmatprep.subr.bf16.mxu0 0
        %1134 = vmatpush1.bf16.msra.mxu0 0
        %1135 = vmatprep.subr.bf16.mxu0 0
        %1136 = vmatpush1.bf16.msra.mxu0 0
        %1137 = vmatprep.subr.bf16.mxu0 0
        %1138 = vmatpush1.bf16.msra.mxu0 0
        %1139 = vmatprep.subr.bf16.mxu0 0
        %1140 = vmatpush1.bf16.msra.mxu0 0
        %1141 = vmatprep.subr.bf16.mxu0 0
        %1142 = vmatpush1.bf16.msra.mxu0 %v1125
        %1143 = vmatprep.subr.bf16.mxu0 0
        %1144 = vmatpush2.bf16.msra.mxu0 0
        %1145 = vmatprep.subr.bf16.mxu0 0
        %1146 = vmatpush2.bf16.msra.mxu0 0
        %1147 = vmatprep.subr.bf16.mxu0 0
        %1148 = vmatpush2.bf16.msra.mxu0 0
        %1149 = vmatprep.subr.bf16.mxu0 0
        %1150 = vmatpush2.bf16.msra.mxu0 0
        %1151 = vmatprep.subr.bf16.mxu0 0
        %1152 = vmatpush2.bf16.msra.mxu0 0
        %1153 = vmatprep.subr.bf16.mxu0 0
        %1154 = vmatpush2.bf16.msra.mxu0 0
        %1155 = vmatprep.subr.bf16.mxu0 0
        %1156 = vmatpush2.bf16.msra.mxu0 0
        %1157 = vmatprep.subr.bf16.mxu0 0
        %1158 = vmatpush2.bf16.msra.mxu0 0
        %1159 = vmatprep.mubr.bf16.mxu0 0
        %1160 = vmatmul.mubr.bf16.gmra.mxu0 %v1076
        %v1161 = vpop.f32.mrf.mxu0
        %v1162 = vadd.f32 %v992, %v1161
        %v1163 = vpop.f32.mrf.mxu0
        %v1164 = vpop.f32.mrf.mxu0
        %v1165 = vadd.f32 %v992, %v1164
        %v1166 = vpop.f32.mrf.mxu0
        %1167 = vmatprep.mubr.bf16.mxu0 0
        %1168 = vmatmul.mubr.bf16.gmra.mxu0 %v1079
        %v1169 = vpop.f32.mrf.mxu0
        %v1170 = vadd.f32 %v992, %v1169
        %v1171 = vpop.f32.mrf.mxu0
        %v1172 = vpop.f32.mrf.mxu0
        %v1173 = vadd.f32 %v992, %v1172
        %v1174 = vpop.f32.mrf.mxu0
        %1175 = vmatprep.mubr.bf16.mxu0 0
        %1176 = vmatmul.mubr.bf16.gmra.mxu0 %v1082
        %v1177 = vpop.f32.mrf.mxu0
        %v1178 = vadd.f32 %v992, %v1177
        %v1179 = vpop.f32.mrf.mxu0
        %v1180 = vpop.f32.mrf.mxu0
        %v1181 = vadd.f32 %v992, %v1180
        %v1182 = vpop.f32.mrf.mxu0
        %1183 = vmatprep.mubr.bf16.mxu0 0
        %1184 = vmatmul.mubr.bf16.gmra.mxu0 %v1085
        %v1185 = vpop.f32.mrf.mxu0
        %v1186 = vadd.f32 %v992, %v1185
        %v1187 = vpop.f32.mrf.mxu0
        %v1188 = vpop.f32.mrf.mxu0
        %v1189 = vadd.f32 %v992, %v1188
        %v1190 = vpop.f32.mrf.mxu0
        %1191 = vmatprep.mubr.bf16.mxu0 0
        %1192 = vmatmul.mubr.bf16.gmra.mxu0 %v1088
        %v1193 = vpop.f32.mrf.mxu0
        %v1194 = vadd.f32 %v992, %v1193
        %v1195 = vpop.f32.mrf.mxu0
        %v1196 = vpop.f32.mrf.mxu0
        %v1197 = vadd.f32 %v992, %v1196
        %v1198 = vpop.f32.mrf.mxu0
        %1199 = vmatprep.mubr.bf16.mxu0 0
        %1200 = vmatmul.mubr.bf16.gmra.mxu0 %v1091
        %v1201 = vpop.f32.mrf.mxu0
        %v1202 = vadd.f32 %v992, %v1201
        %v1203 = vpop.f32.mrf.mxu0
        %v1204 = vpop.f32.mrf.mxu0
        %v1205 = vadd.f32 %v992, %v1204
        %v1206 = vpop.f32.mrf.mxu0
        %1207 = vmatprep.mubr.bf16.mxu0 0
        %1208 = vmatmul.mubr.bf16.gmra.mxu0 %v1094
        %v1209 = vpop.f32.mrf.mxu0
        %v1210 = vadd.f32 %v992, %v1209
        %v1211 = vpop.f32.mrf.mxu0
        %v1212 = vpop.f32.mrf.mxu0
        %v1213 = vadd.f32 %v992, %v1212
        %v1214 = vpop.f32.mrf.mxu0
        %1215 = vmatprep.mubr.bf16.mxu0 0
        %1216 = vmatmul.mubr.bf16.gmra.mxu0 %v1097
        %v1217 = vpop.f32.mrf.mxu0
        %v1218 = vadd.f32 %v992, %v1217
        %v1219 = vpop.f32.mrf.mxu0
        %v1220 = vpop.f32.mrf.mxu0
        %v1221 = vadd.f32 %v992, %v1220
        %v1222 = vpop.f32.mrf.mxu0
        %1223 = vmatprep.mubr.bf16.mxu0 0
        %1224 = vmatmul.mubr.bf16.gmra.mxu0 %v1100
        %v1225 = vpop.f32.mrf.mxu0
        %v1226 = vadd.f32 %v992, %v1225
        %v1227 = vpop.f32.mrf.mxu0
        %v1228 = vpop.f32.mrf.mxu0
        %v1229 = vadd.f32 %v992, %v1228
        %v1230 = vpop.f32.mrf.mxu0
        %1231 = vmatprep.mubr.bf16.mxu0 0
        %1232 = vmatmul.mubr.bf16.gmra.mxu0 %v1103
        %v1233 = vpop.f32.mrf.mxu0
        %v1234 = vadd.f32 %v992, %v1233
        %v1235 = vpop.f32.mrf.mxu0
        %v1236 = vpop.f32.mrf.mxu0
        %v1237 = vadd.f32 %v992, %v1236
        %v1238 = vpop.f32.mrf.mxu0
        %1239 = vmatprep.mubr.bf16.mxu0 0
        %1240 = vmatmul.mubr.bf16.gmra.mxu0 %v1106
        %v1241 = vpop.f32.mrf.mxu0
        %v1242 = vadd.f32 %v992, %v1241
        %v1243 = vpop.f32.mrf.mxu0
        %v1244 = vpop.f32.mrf.mxu0
        %v1245 = vadd.f32 %v992, %v1244
        %v1246 = vpop.f32.mrf.mxu0
        %1247 = vmatprep.mubr.bf16.mxu0 0
        %1248 = vmatmul.mubr.bf16.gmra.mxu0 %v1109
        %v1249 = vpop.f32.mrf.mxu0
        %v1250 = vadd.f32 %v992, %v1249
        %v1251 = vpop.f32.mrf.mxu0
        %v1252 = vpop.f32.mrf.mxu0
        %v1253 = vadd.f32 %v992, %v1252
        %v1254 = vpop.f32.mrf.mxu0
        %1255 = vmatprep.mubr.bf16.mxu0 0
        %1256 = vmatmul.mubr.bf16.gmra.mxu0 %v1112
        %v1257 = vpop.f32.mrf.mxu0
        %v1258 = vadd.f32 %v992, %v1257
        %v1259 = vpop.f32.mrf.mxu0
        %v1260 = vpop.f32.mrf.mxu0
        %v1261 = vadd.f32 %v992, %v1260
        %v1262 = vpop.f32.mrf.mxu0
        %1263 = vmatprep.mubr.bf16.mxu0 0
        %1264 = vmatmul.mubr.bf16.gmra.mxu0 %v1115
        %v1265 = vpop.f32.mrf.mxu0
        %v1266 = vadd.f32 %v992, %v1265
        %v1267 = vpop.f32.mrf.mxu0
        %v1268 = vpop.f32.mrf.mxu0
        %v1269 = vadd.f32 %v992, %v1268
        %v1270 = vpop.f32.mrf.mxu0
        %1271 = vmatprep.mubr.bf16.mxu0 0
        %1272 = vmatmul.mubr.bf16.gmra.mxu0 %v1118
        %v1273 = vpop.f32.mrf.mxu0
        %v1274 = vadd.f32 %v992, %v1273
        %v1275 = vpop.f32.mrf.mxu0
        %v1276 = vpop.f32.mrf.mxu0
        %v1277 = vadd.f32 %v992, %v1276
        %v1278 = vpop.f32.mrf.mxu0
        %1279 = vmatprep.mubr.bf16.mxu0 0
        %1280 = vmatmul.mubr.bf16.gmra.mxu0 %v1121
        %v1281 = vpop.f32.mrf.mxu0
        %v1282 = vadd.f32 %v992, %v1281
        %v1283 = vpop.f32.mrf.mxu0
        %v1284 = vpop.f32.mrf.mxu0
        %v1285 = vadd.f32 %v992, %v1284
        %v1286 = vpop.f32.mrf.mxu0
        %1287 = vdwg.mxu0
        // Predicated region
        $region170: #{tpu_custom_call.1} parent=148 // pred_check
          %p1288 = pneg %p923
        $region171: #{tpu_custom_call.1} parent=148 // pred_check_branch
          %1290 = sbr.rel (%p1288) target = $region173
        $region172: #{tpu_custom_call.1} parent=148 // pred_region
          %v1291 = vld [vmem:[#allocation2] sm:$0xff]
          %vm1292 = vcmask 523264
          %v1293 = vsel %vm1292, %v1162, 0.0
          %v1294 = vsel %vm1292, %v1165, 0.0
          %v1295 = vadd.f32 %v1293, %v1294
          %v1296 = vsel %vm1292, %v1170, 0.0
          %v1297 = vadd.f32 %v1295, %v1296
          %v1298 = vsel %vm1292, %v1173, 0.0
          %v1299 = vadd.f32 %v1297, %v1298
          %v1300 = vsel %vm1292, %v1178, 0.0
          %v1301 = vadd.f32 %v1299, %v1300
          %v1302 = vsel %vm1292, %v1181, 0.0
          %v1303 = vadd.f32 %v1301, %v1302
          %v1304 = vsel %vm1292, %v1186, 0.0
          %v1305 = vadd.f32 %v1303, %v1304
          %v1306 = vsel %vm1292, %v1189, 0.0
          %v1307 = vadd.f32 %v1305, %v1306
          %v1308 = vsel %vm1292, %v1194, 0.0
          %v1309 = vadd.f32 %v1307, %v1308
          %v1310 = vsel %vm1292, %v1197, 0.0
          %v1311 = vadd.f32 %v1309, %v1310
          %v1312 = vsel %vm1292, %v1202, 0.0
          %v1313 = vadd.f32 %v1311, %v1312
          %v1314 = vsel %vm1292, %v1205, 0.0
          %v1315 = vadd.f32 %v1313, %v1314
          %v1316 = vsel %vm1292, %v1210, 0.0
          %v1317 = vadd.f32 %v1315, %v1316
          %v1318 = vsel %vm1292, %v1213, 0.0
          %v1319 = vadd.f32 %v1317, %v1318
          %v1320 = vsel %vm1292, %v1218, 0.0
          %v1321 = vadd.f32 %v1319, %v1320
          %v1322 = vsel %vm1292, %v1221, 0.0
          %v1323 = vadd.f32 %v1321, %v1322
          %v1324 = vsel %vm1292, %v1226, 0.0
          %v1325 = vadd.f32 %v1323, %v1324
          %v1326 = vsel %vm1292, %v1229, 0.0
          %v1327 = vadd.f32 %v1325, %v1326
          %v1328 = vsel %vm1292, %v1234, 0.0
          %v1329 = vadd.f32 %v1327, %v1328
          %v1330 = vsel %vm1292, %v1237, 0.0
          %v1331 = vadd.f32 %v1329, %v1330
          %v1332 = vsel %vm1292, %v1242, 0.0
          %v1333 = vadd.f32 %v1331, %v1332
          %v1334 = vsel %vm1292, %v1245, 0.0
          %v1335 = vadd.f32 %v1333, %v1334
          %v1336 = vsel %vm1292, %v1250, 0.0
          %v1337 = vadd.f32 %v1335, %v1336
          %v1338 = vsel %vm1292, %v1253, 0.0
          %v1339 = vadd.f32 %v1337, %v1338
          %v1340 = vsel %vm1292, %v1258, 0.0
          %v1341 = vadd.f32 %v1339, %v1340
          %v1342 = vsel %vm1292, %v1261, 0.0
          %v1343 = vadd.f32 %v1341, %v1342
          %v1344 = vsel %vm1292, %v1266, 0.0
          %v1345 = vadd.f32 %v1343, %v1344
          %v1346 = vsel %vm1292, %v1269, 0.0
          %v1347 = vadd.f32 %v1345, %v1346
          %v1348 = vsel %vm1292, %v1274, 0.0
          %v1349 = vadd.f32 %v1347, %v1348
          %v1350 = vsel %vm1292, %v1277, 0.0
          %v1351 = vadd.f32 %v1349, %v1350
          %v1352 = vsel %vm1292, %v1282, 0.0
          %v1353 = vadd.f32 %v1351, %v1352
          %v1354 = vsel %vm1292, %v1285, 0.0
          %v1355 = vadd.f32 %v1353, %v1354
          %v1356 = vadd.f32 %v1291, %v1355
          %1357 = vst.msk [vmem:[#allocation2] sm:$0xff] %vm1292, %v1356
          %v1358 = vld [vmem:[#allocation3] sm:$0xff]
          %v1359 = vmul.f32 %v1162, %v1162
          %v1360 = vmul.f32 %v1165, %v1165
          %v1361 = vmul.f32 %v1170, %v1170
          %v1362 = vmul.f32 %v1173, %v1173
          %v1363 = vmul.f32 %v1178, %v1178
          %v1364 = vmul.f32 %v1181, %v1181
          %v1365 = vmul.f32 %v1186, %v1186
          %v1366 = vmul.f32 %v1189, %v1189
          %v1367 = vmul.f32 %v1194, %v1194
          %v1368 = vmul.f32 %v1197, %v1197
          %v1369 = vmul.f32 %v1202, %v1202
          %v1370 = vmul.f32 %v1205, %v1205
          %v1371 = vmul.f32 %v1210, %v1210
          %v1372 = vmul.f32 %v1213, %v1213
          %v1373 = vmul.f32 %v1218, %v1218
          %v1374 = vmul.f32 %v1221, %v1221
          %v1375 = vmul.f32 %v1226, %v1226
          %v1376 = vmul.f32 %v1229, %v1229
          %v1377 = vmul.f32 %v1234, %v1234
          %v1378 = vmul.f32 %v1237, %v1237
          %v1379 = vmul.f32 %v1242, %v1242
          %v1380 = vmul.f32 %v1245, %v1245
          %v1381 = vmul.f32 %v1250, %v1250
          %v1382 = vmul.f32 %v1253, %v1253
          %v1383 = vmul.f32 %v1258, %v1258
          %v1384 = vmul.f32 %v1261, %v1261
          %v1385 = vmul.f32 %v1266, %v1266
          %v1386 = vmul.f32 %v1269, %v1269
          %v1387 = vmul.f32 %v1274, %v1274
          %v1388 = vmul.f32 %v1277, %v1277
          %v1389 = vmul.f32 %v1282, %v1282
          %v1390 = vmul.f32 %v1285, %v1285
          %v1391 = vsel %vm1292, %v1359, 0.0
          %v1392 = vsel %vm1292, %v1360, 0.0
          %v1393 = vadd.f32 %v1391, %v1392
          %v1394 = vsel %vm1292, %v1361, 0.0
          %v1395 = vadd.f32 %v1393, %v1394
          %v1396 = vsel %vm1292, %v1362, 0.0
          %v1397 = vadd.f32 %v1395, %v1396
          %v1398 = vsel %vm1292, %v1363, 0.0
          %v1399 = vadd.f32 %v1397, %v1398
          %v1400 = vsel %vm1292, %v1364, 0.0
          %v1401 = vadd.f32 %v1399, %v1400
          %v1402 = vsel %vm1292, %v1365, 0.0
          %v1403 = vadd.f32 %v1401, %v1402
          %v1404 = vsel %vm1292, %v1366, 0.0
          %v1405 = vadd.f32 %v1403, %v1404
          %v1406 = vsel %vm1292, %v1367, 0.0
          %v1407 = vadd.f32 %v1405, %v1406
          %v1408 = vsel %vm1292, %v1368, 0.0
          %v1409 = vadd.f32 %v1407, %v1408
          %v1410 = vsel %vm1292, %v1369, 0.0
          %v1411 = vadd.f32 %v1409, %v1410
          %v1412 = vsel %vm1292, %v1370, 0.0
          %v1413 = vadd.f32 %v1411, %v1412
          %v1414 = vsel %vm1292, %v1371, 0.0
          %v1415 = vadd.f32 %v1413, %v1414
          %v1416 = vsel %vm1292, %v1372, 0.0
          %v1417 = vadd.f32 %v1415, %v1416
          %v1418 = vsel %vm1292, %v1373, 0.0
          %v1419 = vadd.f32 %v1417, %v1418
          %v1420 = vsel %vm1292, %v1374, 0.0
          %v1421 = vadd.f32 %v1419, %v1420
          %v1422 = vsel %vm1292, %v1375, 0.0
          %v1423 = vadd.f32 %v1421, %v1422
          %v1424 = vsel %vm1292, %v1376, 0.0
          %v1425 = vadd.f32 %v1423, %v1424
          %v1426 = vsel %vm1292, %v1377, 0.0
          %v1427 = vadd.f32 %v1425, %v1426
          %v1428 = vsel %vm1292, %v1378, 0.0
          %v1429 = vadd.f32 %v1427, %v1428
          %v1430 = vsel %vm1292, %v1379, 0.0
          %v1431 = vadd.f32 %v1429, %v1430
          %v1432 = vsel %vm1292, %v1380, 0.0
          %v1433 = vadd.f32 %v1431, %v1432
          %v1434 = vsel %vm1292, %v1381, 0.0
          %v1435 = vadd.f32 %v1433, %v1434
          %v1436 = vsel %vm1292, %v1382, 0.0
          %v1437 = vadd.f32 %v1435, %v1436
          %v1438 = vsel %vm1292, %v1383, 0.0
          %v1439 = vadd.f32 %v1437, %v1438
          %v1440 = vsel %vm1292, %v1384, 0.0
          %v1441 = vadd.f32 %v1439, %v1440
          %v1442 = vsel %vm1292, %v1385, 0.0
          %v1443 = vadd.f32 %v1441, %v1442
          %v1444 = vsel %vm1292, %v1386, 0.0
          %v1445 = vadd.f32 %v1443, %v1444
          %v1446 = vsel %vm1292, %v1387, 0.0
          %v1447 = vadd.f32 %v1445, %v1446
          %v1448 = vsel %vm1292, %v1388, 0.0
          %v1449 = vadd.f32 %v1447, %v1448
          %v1450 = vsel %vm1292, %v1389, 0.0
          %v1451 = vadd.f32 %v1449, %v1450
          %v1452 = vsel %vm1292, %v1390, 0.0
          %v1453 = vadd.f32 %v1451, %v1452
          %v1454 = vadd.f32 %v1358, %v1453
          %1455 = vst.msk [vmem:[#allocation3] sm:$0xff] %vm1292, %v1454
        $region173: #{tpu_custom_call.1} parent=148 // pred_fallthru
          _
        %p1456 = scmp.eq.s32.totalorder %s41, 1
        // Predicated region
        $region174: #{tpu_custom_call.1} parent=148 // pred_check
          %p1457 = pneg %p1456
        $region175: #{tpu_custom_call.1} parent=148 // pred_check_branch
          %1459 = sbr.rel (%p1457) target = $region177
        $region176: #{tpu_custom_call.1} parent=148 // pred_region
          %v1460 = vld [vmem:[#allocation2] sm:$0xff]
          %vm1461 = vcmask 523264
          %v1462 = vsel %vm1461, %v1460, 0.0
          %v1463 = vrot.slane %v1462, 4
          %v1464 = vadd.f32 %v1462, %v1463
          %v1465 = vrot.slane %v1464, 2
          %v1466 = vadd.f32 %v1464, %v1465
          %v1467 = vrot.slane %v1466, 1
          %v1468 = vadd.f32 %v1466, %v1467
          %v1469 = vmul.f32 %v1468, 0.001953125
          %v1470 = vld [vmem:[#allocation3] sm:$0xff]
          %v1471 = vsel %vm1461, %v1470, 0.0
          %v1472 = vrot.slane %v1471, 4
          %v1473 = vadd.f32 %v1471, %v1472
          %v1474 = vrot.slane %v1473, 2
          %v1475 = vadd.f32 %v1473, %v1474
          %v1476 = vrot.slane %v1475, 1
          %v1477 = vadd.f32 %v1475, %v1476
          %v1478 = vmul.f32 %v1477, 0.001953125
          %v1479 = vmul.f32 %v1469, %v1469
          %v1480 = vsub.f32 %v1478, %v1479
          %v1481 = vmax.f32 %v1480, 0.0
          %v1482 = vld [vmem:[%s3] sm:$0x1]
          %v1483 = vadd.f32 %v1481, 1e-05
          %v1484 = vrsqrt.pop %v1483
          %v1485 = vmul.f32 %v1482, %v1484
          %v1486 = vld [vmem:[%s4] sm:$0x1]
          %v1487 = vmul.f32 %v1469, %v1485
          %v1488 = vsub.f32 %v1486, %v1487
          %v1490 = vlaneseq
          %v1491 = vshrl.u32 %v1490, 7
          %v1492 = vsub.s32 0, %v1491
          %v1493 = vrot.slane %v1485, %v1492
          %v1495 = vmul.f32 %v1162, %v1493
          %v1496 = vmul.f32 %v1165, %v1493
          %v1497 = vmul.f32 %v1170, %v1493
          %v1498 = vmul.f32 %v1173, %v1493
          %v1499 = vmul.f32 %v1178, %v1493
          %v1500 = vmul.f32 %v1181, %v1493
          %v1501 = vmul.f32 %v1186, %v1493
          %v1502 = vmul.f32 %v1189, %v1493
          %v1503 = vmul.f32 %v1194, %v1493
          %v1504 = vmul.f32 %v1197, %v1493
          %v1505 = vmul.f32 %v1202, %v1493
          %v1506 = vmul.f32 %v1205, %v1493
          %v1507 = vmul.f32 %v1210, %v1493
          %v1508 = vmul.f32 %v1213, %v1493
          %v1509 = vmul.f32 %v1218, %v1493
          %v1510 = vmul.f32 %v1221, %v1493
          %v1511 = vmul.f32 %v1226, %v1493
          %v1512 = vmul.f32 %v1229, %v1493
          %v1513 = vmul.f32 %v1234, %v1493
          %v1514 = vmul.f32 %v1237, %v1493
          %v1515 = vmul.f32 %v1242, %v1493
          %v1516 = vmul.f32 %v1245, %v1493
          %v1517 = vmul.f32 %v1250, %v1493
          %v1518 = vmul.f32 %v1253, %v1493
          %v1519 = vmul.f32 %v1258, %v1493
          %v1520 = vmul.f32 %v1261, %v1493
          %v1521 = vmul.f32 %v1266, %v1493
          %v1522 = vmul.f32 %v1269, %v1493
          %v1523 = vmul.f32 %v1274, %v1493
          %v1524 = vmul.f32 %v1277, %v1493
          %v1525 = vmul.f32 %v1282, %v1493
          %v1526 = vmul.f32 %v1285, %v1493
          %v1528 = vlaneseq
          %v1529 = vshrl.u32 %v1528, 7
          %v1530 = vsub.s32 0, %v1529
          %v1531 = vrot.slane %v1488, %v1530
          %v1533 = vadd.f32 %v1495, %v1531
          %v1534 = vadd.f32 %v1496, %v1531
          %v1535 = vadd.f32 %v1497, %v1531
          %v1536 = vadd.f32 %v1498, %v1531
          %v1537 = vadd.f32 %v1499, %v1531
          %v1538 = vadd.f32 %v1500, %v1531
          %v1539 = vadd.f32 %v1501, %v1531
          %v1540 = vadd.f32 %v1502, %v1531
          %v1541 = vadd.f32 %v1503, %v1531
          %v1542 = vadd.f32 %v1504, %v1531
          %v1543 = vadd.f32 %v1505, %v1531
          %v1544 = vadd.f32 %v1506, %v1531
          %v1545 = vadd.f32 %v1507, %v1531
          %v1546 = vadd.f32 %v1508, %v1531
          %v1547 = vadd.f32 %v1509, %v1531
          %v1548 = vadd.f32 %v1510, %v1531
          %v1549 = vadd.f32 %v1511, %v1531
          %v1550 = vadd.f32 %v1512, %v1531
          %v1551 = vadd.f32 %v1513, %v1531
          %v1552 = vadd.f32 %v1514, %v1531
          %v1553 = vadd.f32 %v1515, %v1531
          %v1554 = vadd.f32 %v1516, %v1531
          %v1555 = vadd.f32 %v1517, %v1531
          %v1556 = vadd.f32 %v1518, %v1531
          %v1557 = vadd.f32 %v1519, %v1531
          %v1558 = vadd.f32 %v1520, %v1531
          %v1559 = vadd.f32 %v1521, %v1531
          %v1560 = vadd.f32 %v1522, %v1531
          %v1561 = vadd.f32 %v1523, %v1531
          %v1562 = vadd.f32 %v1524, %v1531
          %v1563 = vadd.f32 %v1525, %v1531
          %v1564 = vadd.f32 %v1526, %v1531
          %v1565 = vmax.f32 %v1533, 0.0
          %v1566 = vmax.f32 %v1534, 0.0
          %v1567 = vmax.f32 %v1535, 0.0
          %v1568 = vmax.f32 %v1536, 0.0
          %v1569 = vmax.f32 %v1537, 0.0
          %v1570 = vmax.f32 %v1538, 0.0
          %v1571 = vmax.f32 %v1539, 0.0
          %v1572 = vmax.f32 %v1540, 0.0
          %v1573 = vmax.f32 %v1541, 0.0
          %v1574 = vmax.f32 %v1542, 0.0
          %v1575 = vmax.f32 %v1543, 0.0
          %v1576 = vmax.f32 %v1544, 0.0
          %v1577 = vmax.f32 %v1545, 0.0
          %v1578 = vmax.f32 %v1546, 0.0
          %v1579 = vmax.f32 %v1547, 0.0
          %v1580 = vmax.f32 %v1548, 0.0
          %v1581 = vmax.f32 %v1549, 0.0
          %v1582 = vmax.f32 %v1550, 0.0
          %v1583 = vmax.f32 %v1551, 0.0
          %v1584 = vmax.f32 %v1552, 0.0
          %v1585 = vmax.f32 %v1553, 0.0
          %v1586 = vmax.f32 %v1554, 0.0
          %v1587 = vmax.f32 %v1555, 0.0
          %v1588 = vmax.f32 %v1556, 0.0
          %v1589 = vmax.f32 %v1557, 0.0
          %v1590 = vmax.f32 %v1558, 0.0
          %v1591 = vmax.f32 %v1559, 0.0
          %v1592 = vmax.f32 %v1560, 0.0
          %v1593 = vmax.f32 %v1561, 0.0
          %v1594 = vmax.f32 %v1562, 0.0
          %v1595 = vmax.f32 %v1563, 0.0
          %v1596 = vmax.f32 %v1564, 0.0
          %v1597 = vpack.c.bf16 %v1566, %v1565
          %v1598 = vpack.c.bf16 %v1568, %v1567
          %v1599 = vpack.c.bf16 %v1570, %v1569
          %v1600 = vpack.c.bf16 %v1572, %v1571
          %v1601 = vpack.c.bf16 %v1574, %v1573
          %v1602 = vpack.c.bf16 %v1576, %v1575
          %v1603 = vpack.c.bf16 %v1578, %v1577
          %v1604 = vpack.c.bf16 %v1580, %v1579
          %v1605 = vpack.c.bf16 %v1582, %v1581
          %v1606 = vpack.c.bf16 %v1584, %v1583
          %v1607 = vpack.c.bf16 %v1586, %v1585
          %v1608 = vpack.c.bf16 %v1588, %v1587
          %v1609 = vpack.c.bf16 %v1590, %v1589
          %v1610 = vpack.c.bf16 %v1592, %v1591
          %v1611 = vpack.c.bf16 %v1594, %v1593
          %v1612 = vpack.c.bf16 %v1596, %v1595
          %v1613 = vld [vmem:[%s5] sm:$0xf]
          %v1614 = vld [vmem:[%s5 + $0x4] sm:$0xf]
          %v1615 = vld [vmem:[%s5 + $0x8] sm:$0xf]
          %v1616 = vld [vmem:[%s5 + $0xc] sm:$0xf]
          %v1617 = vld [vmem:[%s5 + $0x10] sm:$0xf]
          %v1618 = vld [vmem:[%s5 + $0x14] sm:$0xf]
          %v1619 = vld [vmem:[%s5 + $0x18] sm:$0xf]
          %v1620 = vld [vmem:[%s5 + $0x1c] sm:$0xf]
          %v1621 = vld [vmem:[%s6] sm:$0x1]
          %v1623 = vlaneseq
          %v1624 = vshrl.u32 %v1623, 7
          %v1625 = vsub.s32 0, %v1624
          %v1626 = vrot.slane %v1621, %v1625
          %v1636 = vunpack.c.l.b16 %v1613
          %v1637 = vunpack.c.l.b16 %v1614
          %v1638 = vunpack.c.l.b16 %v1615
          %v1639 = vunpack.c.l.b16 %v1616
          %v1640 = vunpack.c.l.b16 %v1617
          %v1641 = vunpack.c.l.b16 %v1618
          %v1642 = vunpack.c.l.b16 %v1619
          %v1643 = vunpack.c.l.b16 %v1620
          %v1644 = vpack.c.b16 %v1637, %v1636
          %v1645 = vpack.c.b16 %v1639, %v1638
          %v1646 = vpack.c.b16 %v1641, %v1640
          %v1647 = vpack.c.b16 %v1643, %v1642
          %v1653 = vsel %vm1461, %v1597, 0
          %v1656 = vsel %vm1461, %v1598, 0
          %v1659 = vsel %vm1461, %v1599, 0
          %v1662 = vsel %vm1461, %v1600, 0
          %v1665 = vsel %vm1461, %v1601, 0
          %v1668 = vsel %vm1461, %v1602, 0
          %v1671 = vsel %vm1461, %v1603, 0
          %v1674 = vsel %vm1461, %v1604, 0
          %v1677 = vsel %vm1461, %v1605, 0
          %v1680 = vsel %vm1461, %v1606, 0
          %v1683 = vsel %vm1461, %v1607, 0
          %v1686 = vsel %vm1461, %v1608, 0
          %v1689 = vsel %vm1461, %v1609, 0
          %v1692 = vsel %vm1461, %v1610, 0
          %v1695 = vsel %vm1461, %v1611, 0
          %v1698 = vsel %vm1461, %v1612, 0
          %1700 = vmatprep.subr.bf16.mxu0 0
          %1701 = vmatpush1.bf16.msra.mxu0 0
          %1702 = vmatprep.subr.bf16.mxu0 0
          %1703 = vmatpush1.bf16.msra.mxu0 0
          %1704 = vmatprep.subr.bf16.mxu0 0
          %1705 = vmatpush1.bf16.msra.mxu0 0
          %1706 = vmatprep.subr.bf16.mxu0 0
          %1707 = vmatpush1.bf16.msra.mxu0 0
          %1708 = vmatprep.subr.bf16.mxu0 0
          %1709 = vmatpush1.bf16.msra.mxu0 %v1647
          %1710 = vmatprep.subr.bf16.mxu0 0
          %1711 = vmatpush1.bf16.msra.mxu0 %v1646
          %1712 = vmatprep.subr.bf16.mxu0 0
          %1713 = vmatpush1.bf16.msra.mxu0 %v1645
          %1714 = vmatprep.subr.bf16.mxu0 0
          %1715 = vmatpush1.bf16.msra.mxu0 %v1644
          %1716 = vmatprep.subr.bf16.mxu0 0
          %1717 = vmatpush2.bf16.msra.mxu0 0
          %1718 = vmatprep.subr.bf16.mxu0 0
          %1719 = vmatpush2.bf16.msra.mxu0 0
          %1720 = vmatprep.subr.bf16.mxu0 0
          %1721 = vmatpush2.bf16.msra.mxu0 0
          %1722 = vmatprep.subr.bf16.mxu0 0
          %1723 = vmatpush2.bf16.msra.mxu0 0
          %1724 = vmatprep.subr.bf16.mxu0 0
          %1725 = vmatpush2.bf16.msra.mxu0 0
          %1726 = vmatprep.subr.bf16.mxu0 0
          %1727 = vmatpush2.bf16.msra.mxu0 0
          %1728 = vmatprep.subr.bf16.mxu0 0
          %1729 = vmatpush2.bf16.msra.mxu0 0
          %1730 = vmatprep.subr.bf16.mxu0 0
          %1731 = vmatpush2.bf16.msra.mxu0 0
          %1732 = vmatprep.mubr.bf16.mxu0 0
          %1733 = vmatmul.mubr.bf16.gmra.mxu0 %v1653
          %v1734 = vpop.f32.mrf.mxu0
          %v1735 = vadd.f32 %v1626, %v1734
          %v1736 = vpop.f32.mrf.mxu0
          %v1737 = vpop.f32.mrf.mxu0
          %v1738 = vadd.f32 %v1626, %v1737
          %v1739 = vpop.f32.mrf.mxu0
          %1740 = vmatprep.mubr.bf16.mxu0 0
          %1741 = vmatmul.mubr.bf16.gmra.mxu0 %v1656
          %v1742 = vpop.f32.mrf.mxu0
          %v1743 = vadd.f32 %v1626, %v1742
          %v1744 = vpop.f32.mrf.mxu0
          %v1745 = vpop.f32.mrf.mxu0
          %v1746 = vadd.f32 %v1626, %v1745
          %v1747 = vpop.f32.mrf.mxu0
          %1748 = vmatprep.mubr.bf16.mxu0 0
          %1749 = vmatmul.mubr.bf16.gmra.mxu0 %v1659
          %v1750 = vpop.f32.mrf.mxu0
          %v1751 = vadd.f32 %v1626, %v1750
          %v1752 = vpop.f32.mrf.mxu0
          %v1753 = vpop.f32.mrf.mxu0
          %v1754 = vadd.f32 %v1626, %v1753
          %v1755 = vpop.f32.mrf.mxu0
          %1756 = vmatprep.mubr.bf16.mxu0 0
          %1757 = vmatmul.mubr.bf16.gmra.mxu0 %v1662
          %v1758 = vpop.f32.mrf.mxu0
          %v1759 = vadd.f32 %v1626, %v1758
          %v1760 = vpop.f32.mrf.mxu0
          %v1761 = vpop.f32.mrf.mxu0
          %v1762 = vadd.f32 %v1626, %v1761
          %v1763 = vpop.f32.mrf.mxu0
          %1764 = vmatprep.mubr.bf16.mxu0 0
          %1765 = vmatmul.mubr.bf16.gmra.mxu0 %v1665
          %v1766 = vpop.f32.mrf.mxu0
          %v1767 = vadd.f32 %v1626, %v1766
          %v1768 = vpop.f32.mrf.mxu0
          %v1769 = vpop.f32.mrf.mxu0
          %v1770 = vadd.f32 %v1626, %v1769
          %v1771 = vpop.f32.mrf.mxu0
          %1772 = vmatprep.mubr.bf16.mxu0 0
          %1773 = vmatmul.mubr.bf16.gmra.mxu0 %v1668
          %v1774 = vpop.f32.mrf.mxu0
          %v1775 = vadd.f32 %v1626, %v1774
          %v1776 = vpop.f32.mrf.mxu0
          %v1777 = vpop.f32.mrf.mxu0
          %v1778 = vadd.f32 %v1626, %v1777
          %v1779 = vpop.f32.mrf.mxu0
          %1780 = vmatprep.mubr.bf16.mxu0 0
          %1781 = vmatmul.mubr.bf16.gmra.mxu0 %v1671
          %v1782 = vpop.f32.mrf.mxu0
          %v1783 = vadd.f32 %v1626, %v1782
          %v1784 = vpop.f32.mrf.mxu0
          %v1785 = vpop.f32.mrf.mxu0
          %v1786 = vadd.f32 %v1626, %v1785
          %v1787 = vpop.f32.mrf.mxu0
          %1788 = vmatprep.mubr.bf16.mxu0 0
          %1789 = vmatmul.mubr.bf16.gmra.mxu0 %v1674
          %v1790 = vpop.f32.mrf.mxu0
          %v1791 = vadd.f32 %v1626, %v1790
          %v1792 = vpop.f32.mrf.mxu0
          %v1793 = vpop.f32.mrf.mxu0
          %v1794 = vadd.f32 %v1626, %v1793
          %v1795 = vpop.f32.mrf.mxu0
          %1796 = vmatprep.mubr.bf16.mxu0 0
          %1797 = vmatmul.mubr.bf16.gmra.mxu0 %v1677
          %v1798 = vpop.f32.mrf.mxu0
          %v1799 = vadd.f32 %v1626, %v1798
          %v1800 = vpop.f32.mrf.mxu0
          %v1801 = vpop.f32.mrf.mxu0
          %v1802 = vadd.f32 %v1626, %v1801
          %v1803 = vpop.f32.mrf.mxu0
          %1804 = vmatprep.mubr.bf16.mxu0 0
          %1805 = vmatmul.mubr.bf16.gmra.mxu0 %v1680
          %v1806 = vpop.f32.mrf.mxu0
          %v1807 = vadd.f32 %v1626, %v1806
          %v1808 = vpop.f32.mrf.mxu0
          %v1809 = vpop.f32.mrf.mxu0
          %v1810 = vadd.f32 %v1626, %v1809
          %v1811 = vpop.f32.mrf.mxu0
          %1812 = vmatprep.mubr.bf16.mxu0 0
          %1813 = vmatmul.mubr.bf16.gmra.mxu0 %v1683
          %v1814 = vpop.f32.mrf.mxu0
          %v1815 = vadd.f32 %v1626, %v1814
          %v1816 = vpop.f32.mrf.mxu0
          %v1817 = vpop.f32.mrf.mxu0
          %v1818 = vadd.f32 %v1626, %v1817
          %v1819 = vpop.f32.mrf.mxu0
          %1820 = vmatprep.mubr.bf16.mxu0 0
          %1821 = vmatmul.mubr.bf16.gmra.mxu0 %v1686
          %v1822 = vpop.f32.mrf.mxu0
          %v1823 = vadd.f32 %v1626, %v1822
          %v1824 = vpop.f32.mrf.mxu0
          %v1825 = vpop.f32.mrf.mxu0
          %v1826 = vadd.f32 %v1626, %v1825
          %v1827 = vpop.f32.mrf.mxu0
          %1828 = vmatprep.mubr.bf16.mxu0 0
          %1829 = vmatmul.mubr.bf16.gmra.mxu0 %v1689
          %v1830 = vpop.f32.mrf.mxu0
          %v1831 = vadd.f32 %v1626, %v1830
          %v1832 = vpop.f32.mrf.mxu0
          %v1833 = vpop.f32.mrf.mxu0
          %v1834 = vadd.f32 %v1626, %v1833
          %v1835 = vpop.f32.mrf.mxu0
          %1836 = vmatprep.mubr.bf16.mxu0 0
          %1837 = vmatmul.mubr.bf16.gmra.mxu0 %v1692
          %v1838 = vpop.f32.mrf.mxu0
          %v1839 = vadd.f32 %v1626, %v1838
          %v1840 = vpop.f32.mrf.mxu0
          %v1841 = vpop.f32.mrf.mxu0
          %v1842 = vadd.f32 %v1626, %v1841
          %v1843 = vpop.f32.mrf.mxu0
          %1844 = vmatprep.mubr.bf16.mxu0 0
          %1845 = vmatmul.mubr.bf16.gmra.mxu0 %v1695
          %v1846 = vpop.f32.mrf.mxu0
          %v1847 = vadd.f32 %v1626, %v1846
          %v1848 = vpop.f32.mrf.mxu0
          %v1849 = vpop.f32.mrf.mxu0
          %v1850 = vadd.f32 %v1626, %v1849
          %v1851 = vpop.f32.mrf.mxu0
          %1852 = vmatprep.mubr.bf16.mxu0 0
          %1853 = vmatmul.mubr.bf16.gmra.mxu0 %v1698
          %v1854 = vpop.f32.mrf.mxu0
          %v1855 = vadd.f32 %v1626, %v1854
          %v1856 = vpop.f32.mrf.mxu0
          %v1857 = vpop.f32.mrf.mxu0
          %v1858 = vadd.f32 %v1626, %v1857
          %v1859 = vpop.f32.mrf.mxu0
          %1860 = vdwg.mxu0
          %v1861 = vld [vmem:[#allocation4] sm:$0xff]
          %v1862 = vadd.f32 %v1735, %v1738
          %v1863 = vadd.f32 %v1862, %v1743
          %v1864 = vadd.f32 %v1863, %v1746
          %v1865 = vadd.f32 %v1864, %v1751
          %v1866 = vadd.f32 %v1865, %v1754
          %v1867 = vadd.f32 %v1866, %v1759
          %v1868 = vadd.f32 %v1867, %v1762
          %v1869 = vadd.f32 %v1868, %v1767
          %v1870 = vadd.f32 %v1869, %v1770
          %v1871 = vadd.f32 %v1870, %v1775
          %v1872 = vadd.f32 %v1871, %v1778
          %v1873 = vadd.f32 %v1872, %v1783
          %v1874 = vadd.f32 %v1873, %v1786
          %v1875 = vadd.f32 %v1874, %v1791
          %v1876 = vadd.f32 %v1875, %v1794
          %v1877 = vadd.f32 %v1876, %v1799
          %v1878 = vadd.f32 %v1877, %v1802
          %v1879 = vadd.f32 %v1878, %v1807
          %v1880 = vadd.f32 %v1879, %v1810
          %v1881 = vadd.f32 %v1880, %v1815
          %v1882 = vadd.f32 %v1881, %v1818
          %v1883 = vadd.f32 %v1882, %v1823
          %v1884 = vadd.f32 %v1883, %v1826
          %v1885 = vadd.f32 %v1884, %v1831
          %v1886 = vadd.f32 %v1885, %v1834
          %v1887 = vadd.f32 %v1886, %v1839
          %v1888 = vadd.f32 %v1887, %v1842
          %v1889 = vadd.f32 %v1888, %v1847
          %v1890 = vadd.f32 %v1889, %v1850
          %v1891 = vadd.f32 %v1890, %v1855
          %v1892 = vadd.f32 %v1891, %v1858
          %v1893 = vadd.f32 %v1861, %v1892
          %1894 = vst [vmem:[#allocation4] sm:$0xff] %v1893
          %v1895 = vld [vmem:[#allocation5] sm:$0xff]
          %v1896 = vmul.f32 %v1735, %v1735
          %v1897 = vmul.f32 %v1738, %v1738
          %v1898 = vmul.f32 %v1743, %v1743
          %v1899 = vmul.f32 %v1746, %v1746
          %v1900 = vmul.f32 %v1751, %v1751
          %v1901 = vmul.f32 %v1754, %v1754
          %v1902 = vmul.f32 %v1759, %v1759
          %v1903 = vmul.f32 %v1762, %v1762
          %v1904 = vmul.f32 %v1767, %v1767
          %v1905 = vmul.f32 %v1770, %v1770
          %v1906 = vmul.f32 %v1775, %v1775
          %v1907 = vmul.f32 %v1778, %v1778
          %v1908 = vmul.f32 %v1783, %v1783
          %v1909 = vmul.f32 %v1786, %v1786
          %v1910 = vmul.f32 %v1791, %v1791
          %v1911 = vmul.f32 %v1794, %v1794
          %v1912 = vmul.f32 %v1799, %v1799
          %v1913 = vmul.f32 %v1802, %v1802
          %v1914 = vmul.f32 %v1807, %v1807
          %v1915 = vmul.f32 %v1810, %v1810
          %v1916 = vmul.f32 %v1815, %v1815
          %v1917 = vmul.f32 %v1818, %v1818
          %v1918 = vmul.f32 %v1823, %v1823
          %v1919 = vmul.f32 %v1826, %v1826
          %v1920 = vmul.f32 %v1831, %v1831
          %v1921 = vmul.f32 %v1834, %v1834
          %v1922 = vmul.f32 %v1839, %v1839
          %v1923 = vmul.f32 %v1842, %v1842
          %v1924 = vmul.f32 %v1847, %v1847
          %v1925 = vmul.f32 %v1850, %v1850
          %v1926 = vmul.f32 %v1855, %v1855
          %v1927 = vmul.f32 %v1858, %v1858
          %v1928 = vadd.f32 %v1896, %v1897
          %v1929 = vadd.f32 %v1928, %v1898
          %v1930 = vadd.f32 %v1929, %v1899
          %v1931 = vadd.f32 %v1930, %v1900
          %v1932 = vadd.f32 %v1931, %v1901
          %v1933 = vadd.f32 %v1932, %v1902
          %v1934 = vadd.f32 %v1933, %v1903
          %v1935 = vadd.f32 %v1934, %v1904
          %v1936 = vadd.f32 %v1935, %v1905
          %v1937 = vadd.f32 %v1936, %v1906
          %v1938 = vadd.f32 %v1937, %v1907
          %v1939 = vadd.f32 %v1938, %v1908
          %v1940 = vadd.f32 %v1939, %v1909
          %v1941 = vadd.f32 %v1940, %v1910
          %v1942 = vadd.f32 %v1941, %v1911
          %v1943 = vadd.f32 %v1942, %v1912
          %v1944 = vadd.f32 %v1943, %v1913
          %v1945 = vadd.f32 %v1944, %v1914
          %v1946 = vadd.f32 %v1945, %v1915
          %v1947 = vadd.f32 %v1946, %v1916
          %v1948 = vadd.f32 %v1947, %v1917
          %v1949 = vadd.f32 %v1948, %v1918
          %v1950 = vadd.f32 %v1949, %v1919
          %v1951 = vadd.f32 %v1950, %v1920
          %v1952 = vadd.f32 %v1951, %v1921
          %v1953 = vadd.f32 %v1952, %v1922
          %v1954 = vadd.f32 %v1953, %v1923
          %v1955 = vadd.f32 %v1954, %v1924
          %v1956 = vadd.f32 %v1955, %v1925
          %v1957 = vadd.f32 %v1956, %v1926
          %v1958 = vadd.f32 %v1957, %v1927
          %v1959 = vadd.f32 %v1895, %v1958
          %1960 = vst [vmem:[#allocation5] sm:$0xff] %v1959
        $region177: #{tpu_custom_call.1} parent=148 // pred_fallthru
          _
        %p1961 = scmp.eq.s32.totalorder %s41, 2
        // Predicated region
        $region178: #{tpu_custom_call.1} parent=148 // pred_check
          %p1962 = pneg %p1961
        $region179: #{tpu_custom_call.1} parent=148 // pred_check_branch
          %1964 = sbr.rel (%p1962) target = $region181
        $region180: #{tpu_custom_call.1} parent=148 // pred_region
          %v1965 = vld [vmem:[#allocation2] sm:$0xff]
          %vm1966 = vcmask 523264
          %v1967 = vsel %vm1966, %v1965, 0.0
          %v1968 = vrot.slane %v1967, 4
          %v1969 = vadd.f32 %v1967, %v1968
          %v1970 = vrot.slane %v1969, 2
          %v1971 = vadd.f32 %v1969, %v1970
          %v1972 = vrot.slane %v1971, 1
          %v1973 = vadd.f32 %v1971, %v1972
          %v1974 = vmul.f32 %v1973, 0.001953125
          %v1975 = vld [vmem:[#allocation3] sm:$0xff]
          %v1976 = vsel %vm1966, %v1975, 0.0
          %v1977 = vrot.slane %v1976, 4
          %v1978 = vadd.f32 %v1976, %v1977
          %v1979 = vrot.slane %v1978, 2
          %v1980 = vadd.f32 %v1978, %v1979
          %v1981 = vrot.slane %v1980, 1
          %v1982 = vadd.f32 %v1980, %v1981
          %v1983 = vmul.f32 %v1982, 0.001953125
          %v1984 = vmul.f32 %v1974, %v1974
          %v1985 = vsub.f32 %v1983, %v1984
          %v1986 = vmax.f32 %v1985, 0.0
          %v1987 = vld [vmem:[%s3] sm:$0x1]
          %v1988 = vadd.f32 %v1986, 1e-05
          %v1989 = vrsqrt.pop %v1988
          %v1990 = vmul.f32 %v1987, %v1989
          %v1991 = vld [vmem:[%s4] sm:$0x1]
          %v1992 = vmul.f32 %v1974, %v1990
          %v1993 = vsub.f32 %v1991, %v1992
          %v1995 = vlaneseq
          %v1996 = vshrl.u32 %v1995, 7
          %v1997 = vsub.s32 0, %v1996
          %v1998 = vrot.slane %v1990, %v1997
          %v2000 = vmul.f32 %v1162, %v1998
          %v2001 = vmul.f32 %v1165, %v1998
          %v2002 = vmul.f32 %v1170, %v1998
          %v2003 = vmul.f32 %v1173, %v1998
          %v2004 = vmul.f32 %v1178, %v1998
          %v2005 = vmul.f32 %v1181, %v1998
          %v2006 = vmul.f32 %v1186, %v1998
          %v2007 = vmul.f32 %v1189, %v1998
          %v2008 = vmul.f32 %v1194, %v1998
          %v2009 = vmul.f32 %v1197, %v1998
          %v2010 = vmul.f32 %v1202, %v1998
          %v2011 = vmul.f32 %v1205, %v1998
          %v2012 = vmul.f32 %v1210, %v1998
          %v2013 = vmul.f32 %v1213, %v1998
          %v2014 = vmul.f32 %v1218, %v1998
          %v2015 = vmul.f32 %v1221, %v1998
          %v2016 = vmul.f32 %v1226, %v1998
          %v2017 = vmul.f32 %v1229, %v1998
          %v2018 = vmul.f32 %v1234, %v1998
          %v2019 = vmul.f32 %v1237, %v1998
          %v2020 = vmul.f32 %v1242, %v1998
          %v2021 = vmul.f32 %v1245, %v1998
          %v2022 = vmul.f32 %v1250, %v1998
          %v2023 = vmul.f32 %v1253, %v1998
          %v2024 = vmul.f32 %v1258, %v1998
          %v2025 = vmul.f32 %v1261, %v1998
          %v2026 = vmul.f32 %v1266, %v1998
          %v2027 = vmul.f32 %v1269, %v1998
          %v2028 = vmul.f32 %v1274, %v1998
          %v2029 = vmul.f32 %v1277, %v1998
          %v2030 = vmul.f32 %v1282, %v1998
          %v2031 = vmul.f32 %v1285, %v1998
          %v2033 = vlaneseq
          %v2034 = vshrl.u32 %v2033, 7
          %v2035 = vsub.s32 0, %v2034
          %v2036 = vrot.slane %v1993, %v2035
          %v2038 = vadd.f32 %v2000, %v2036
          %v2039 = vadd.f32 %v2001, %v2036
          %v2040 = vadd.f32 %v2002, %v2036
          %v2041 = vadd.f32 %v2003, %v2036
          %v2042 = vadd.f32 %v2004, %v2036
          %v2043 = vadd.f32 %v2005, %v2036
          %v2044 = vadd.f32 %v2006, %v2036
          %v2045 = vadd.f32 %v2007, %v2036
          %v2046 = vadd.f32 %v2008, %v2036
          %v2047 = vadd.f32 %v2009, %v2036
          %v2048 = vadd.f32 %v2010, %v2036
          %v2049 = vadd.f32 %v2011, %v2036
          %v2050 = vadd.f32 %v2012, %v2036
          %v2051 = vadd.f32 %v2013, %v2036
          %v2052 = vadd.f32 %v2014, %v2036
          %v2053 = vadd.f32 %v2015, %v2036
          %v2054 = vadd.f32 %v2016, %v2036
          %v2055 = vadd.f32 %v2017, %v2036
          %v2056 = vadd.f32 %v2018, %v2036
          %v2057 = vadd.f32 %v2019, %v2036
          %v2058 = vadd.f32 %v2020, %v2036
          %v2059 = vadd.f32 %v2021, %v2036
          %v2060 = vadd.f32 %v2022, %v2036
          %v2061 = vadd.f32 %v2023, %v2036
          %v2062 = vadd.f32 %v2024, %v2036
          %v2063 = vadd.f32 %v2025, %v2036
          %v2064 = vadd.f32 %v2026, %v2036
          %v2065 = vadd.f32 %v2027, %v2036
          %v2066 = vadd.f32 %v2028, %v2036
          %v2067 = vadd.f32 %v2029, %v2036
          %v2068 = vadd.f32 %v2030, %v2036
          %v2069 = vadd.f32 %v2031, %v2036
          %v2070 = vmax.f32 %v2038, 0.0
          %v2071 = vmax.f32 %v2039, 0.0
          %v2072 = vmax.f32 %v2040, 0.0
          %v2073 = vmax.f32 %v2041, 0.0
          %v2074 = vmax.f32 %v2042, 0.0
          %v2075 = vmax.f32 %v2043, 0.0
          %v2076 = vmax.f32 %v2044, 0.0
          %v2077 = vmax.f32 %v2045, 0.0
          %v2078 = vmax.f32 %v2046, 0.0
          %v2079 = vmax.f32 %v2047, 0.0
          %v2080 = vmax.f32 %v2048, 0.0
          %v2081 = vmax.f32 %v2049, 0.0
          %v2082 = vmax.f32 %v2050, 0.0
          %v2083 = vmax.f32 %v2051, 0.0
          %v2084 = vmax.f32 %v2052, 0.0
          %v2085 = vmax.f32 %v2053, 0.0
          %v2086 = vmax.f32 %v2054, 0.0
          %v2087 = vmax.f32 %v2055, 0.0
          %v2088 = vmax.f32 %v2056, 0.0
          %v2089 = vmax.f32 %v2057, 0.0
          %v2090 = vmax.f32 %v2058, 0.0
          %v2091 = vmax.f32 %v2059, 0.0
          %v2092 = vmax.f32 %v2060, 0.0
          %v2093 = vmax.f32 %v2061, 0.0
          %v2094 = vmax.f32 %v2062, 0.0
          %v2095 = vmax.f32 %v2063, 0.0
          %v2096 = vmax.f32 %v2064, 0.0
          %v2097 = vmax.f32 %v2065, 0.0
          %v2098 = vmax.f32 %v2066, 0.0
          %v2099 = vmax.f32 %v2067, 0.0
          %v2100 = vmax.f32 %v2068, 0.0
          %v2101 = vmax.f32 %v2069, 0.0
          %v2102 = vpack.c.bf16 %v2071, %v2070
          %v2103 = vpack.c.bf16 %v2073, %v2072
          %v2104 = vpack.c.bf16 %v2075, %v2074
          %v2105 = vpack.c.bf16 %v2077, %v2076
          %v2106 = vpack.c.bf16 %v2079, %v2078
          %v2107 = vpack.c.bf16 %v2081, %v2080
          %v2108 = vpack.c.bf16 %v2083, %v2082
          %v2109 = vpack.c.bf16 %v2085, %v2084
          %v2110 = vpack.c.bf16 %v2087, %v2086
          %v2111 = vpack.c.bf16 %v2089, %v2088
          %v2112 = vpack.c.bf16 %v2091, %v2090
          %v2113 = vpack.c.bf16 %v2093, %v2092
          %v2114 = vpack.c.bf16 %v2095, %v2094
          %v2115 = vpack.c.bf16 %v2097, %v2096
          %v2116 = vpack.c.bf16 %v2099, %v2098
          %v2117 = vpack.c.bf16 %v2101, %v2100
          %v2118 = vld [vmem:[%s5] sm:$0xf]
          %v2119 = vld [vmem:[%s5 + $0x4] sm:$0xf]
          %v2120 = vld [vmem:[%s5 + $0x8] sm:$0xf]
          %v2121 = vld [vmem:[%s5 + $0xc] sm:$0xf]
          %v2122 = vld [vmem:[%s5 + $0x10] sm:$0xf]
          %v2123 = vld [vmem:[%s5 + $0x14] sm:$0xf]
          %v2124 = vld [vmem:[%s5 + $0x18] sm:$0xf]
          %v2125 = vld [vmem:[%s5 + $0x1c] sm:$0xf]
          %v2126 = vld [vmem:[%s6] sm:$0x1]
          %v2128 = vlaneseq
          %v2129 = vshrl.u32 %v2128, 7
          %v2130 = vsub.s32 0, %v2129
          %v2131 = vrot.slane %v2126, %v2130
          %v2141 = vunpack.c.l.b16 %v2118
          %v2142 = vunpack.c.l.b16 %v2119
          %v2143 = vunpack.c.l.b16 %v2120
          %v2144 = vunpack.c.l.b16 %v2121
          %v2145 = vunpack.c.l.b16 %v2122
          %v2146 = vunpack.c.l.b16 %v2123
          %v2147 = vunpack.c.l.b16 %v2124
          %v2148 = vunpack.c.l.b16 %v2125
          %v2149 = vpack.c.b16 %v2142, %v2141
          %v2150 = vpack.c.b16 %v2144, %v2143
          %v2151 = vpack.c.b16 %v2146, %v2145
          %v2152 = vpack.c.b16 %v2148, %v2147
          %v2158 = vsel %vm1966, %v2102, 0
          %v2161 = vsel %vm1966, %v2103, 0
          %v2164 = vsel %vm1966, %v2104, 0
          %v2167 = vsel %vm1966, %v2105, 0
          %v2170 = vsel %vm1966, %v2106, 0
          %v2173 = vsel %vm1966, %v2107, 0
          %v2176 = vsel %vm1966, %v2108, 0
          %v2179 = vsel %vm1966, %v2109, 0
          %v2182 = vsel %vm1966, %v2110, 0
          %v2185 = vsel %vm1966, %v2111, 0
          %v2188 = vsel %vm1966, %v2112, 0
          %v2191 = vsel %vm1966, %v2113, 0
          %v2194 = vsel %vm1966, %v2114, 0
          %v2197 = vsel %vm1966, %v2115, 0
          %v2200 = vsel %vm1966, %v2116, 0
          %v2203 = vsel %vm1966, %v2117, 0
          %2205 = vmatprep.subr.bf16.mxu0 0
          %2206 = vmatpush1.bf16.msra.mxu0 0
          %2207 = vmatprep.subr.bf16.mxu0 0
          %2208 = vmatpush1.bf16.msra.mxu0 0
          %2209 = vmatprep.subr.bf16.mxu0 0
          %2210 = vmatpush1.bf16.msra.mxu0 0
          %2211 = vmatprep.subr.bf16.mxu0 0
          %2212 = vmatpush1.bf16.msra.mxu0 0
          %2213 = vmatprep.subr.bf16.mxu0 0
          %2214 = vmatpush1.bf16.msra.mxu0 %v2152
          %2215 = vmatprep.subr.bf16.mxu0 0
          %2216 = vmatpush1.bf16.msra.mxu0 %v2151
          %2217 = vmatprep.subr.bf16.mxu0 0
          %2218 = vmatpush1.bf16.msra.mxu0 %v2150
          %2219 = vmatprep.subr.bf16.mxu0 0
          %2220 = vmatpush1.bf16.msra.mxu0 %v2149
          %2221 = vmatprep.subr.bf16.mxu0 0
          %2222 = vmatpush2.bf16.msra.mxu0 0
          %2223 = vmatprep.subr.bf16.mxu0 0
          %2224 = vmatpush2.bf16.msra.mxu0 0
          %2225 = vmatprep.subr.bf16.mxu0 0
          %2226 = vmatpush2.bf16.msra.mxu0 0
          %2227 = vmatprep.subr.bf16.mxu0 0
          %2228 = vmatpush2.bf16.msra.mxu0 0
          %2229 = vmatprep.subr.bf16.mxu0 0
          %2230 = vmatpush2.bf16.msra.mxu0 0
          %2231 = vmatprep.subr.bf16.mxu0 0
          %2232 = vmatpush2.bf16.msra.mxu0 0
          %2233 = vmatprep.subr.bf16.mxu0 0
          %2234 = vmatpush2.bf16.msra.mxu0 0
          %2235 = vmatprep.subr.bf16.mxu0 0
          %2236 = vmatpush2.bf16.msra.mxu0 0
          %2237 = vmatprep.mubr.bf16.mxu0 0
          %2238 = vmatmul.mubr.bf16.gmra.mxu0 %v2158
          %v2239 = vpop.f32.mrf.mxu0
          %v2240 = vadd.f32 %v2131, %v2239
          %v2241 = vpop.f32.mrf.mxu0
          %v2242 = vpop.f32.mrf.mxu0
          %v2243 = vadd.f32 %v2131, %v2242
          %v2244 = vpop.f32.mrf.mxu0
          %2245 = vmatprep.mubr.bf16.mxu0 0
          %2246 = vmatmul.mubr.bf16.gmra.mxu0 %v2161
          %v2247 = vpop.f32.mrf.mxu0
          %v2248 = vadd.f32 %v2131, %v2247
          %v2249 = vpop.f32.mrf.mxu0
          %v2250 = vpop.f32.mrf.mxu0
          %v2251 = vadd.f32 %v2131, %v2250
          %v2252 = vpop.f32.mrf.mxu0
          %2253 = vmatprep.mubr.bf16.mxu0 0
          %2254 = vmatmul.mubr.bf16.gmra.mxu0 %v2164
          %v2255 = vpop.f32.mrf.mxu0
          %v2256 = vadd.f32 %v2131, %v2255
          %v2257 = vpop.f32.mrf.mxu0
          %v2258 = vpop.f32.mrf.mxu0
          %v2259 = vadd.f32 %v2131, %v2258
          %v2260 = vpop.f32.mrf.mxu0
          %2261 = vmatprep.mubr.bf16.mxu0 0
          %2262 = vmatmul.mubr.bf16.gmra.mxu0 %v2167
          %v2263 = vpop.f32.mrf.mxu0
          %v2264 = vadd.f32 %v2131, %v2263
          %v2265 = vpop.f32.mrf.mxu0
          %v2266 = vpop.f32.mrf.mxu0
          %v2267 = vadd.f32 %v2131, %v2266
          %v2268 = vpop.f32.mrf.mxu0
          %2269 = vmatprep.mubr.bf16.mxu0 0
          %2270 = vmatmul.mubr.bf16.gmra.mxu0 %v2170
          %v2271 = vpop.f32.mrf.mxu0
          %v2272 = vadd.f32 %v2131, %v2271
          %v2273 = vpop.f32.mrf.mxu0
          %v2274 = vpop.f32.mrf.mxu0
          %v2275 = vadd.f32 %v2131, %v2274
          %v2276 = vpop.f32.mrf.mxu0
          %2277 = vmatprep.mubr.bf16.mxu0 0
          %2278 = vmatmul.mubr.bf16.gmra.mxu0 %v2173
          %v2279 = vpop.f32.mrf.mxu0
          %v2280 = vadd.f32 %v2131, %v2279
          %v2281 = vpop.f32.mrf.mxu0
          %v2282 = vpop.f32.mrf.mxu0
          %v2283 = vadd.f32 %v2131, %v2282
          %v2284 = vpop.f32.mrf.mxu0
          %2285 = vmatprep.mubr.bf16.mxu0 0
          %2286 = vmatmul.mubr.bf16.gmra.mxu0 %v2176
          %v2287 = vpop.f32.mrf.mxu0
          %v2288 = vadd.f32 %v2131, %v2287
          %v2289 = vpop.f32.mrf.mxu0
          %v2290 = vpop.f32.mrf.mxu0
          %v2291 = vadd.f32 %v2131, %v2290
          %v2292 = vpop.f32.mrf.mxu0
          %2293 = vmatprep.mubr.bf16.mxu0 0
          %2294 = vmatmul.mubr.bf16.gmra.mxu0 %v2179
          %v2295 = vpop.f32.mrf.mxu0
          %v2296 = vadd.f32 %v2131, %v2295
          %v2297 = vpop.f32.mrf.mxu0
          %v2298 = vpop.f32.mrf.mxu0
          %v2299 = vadd.f32 %v2131, %v2298
          %v2300 = vpop.f32.mrf.mxu0
          %2301 = vmatprep.mubr.bf16.mxu0 0
          %2302 = vmatmul.mubr.bf16.gmra.mxu0 %v2182
          %v2303 = vpop.f32.mrf.mxu0
          %v2304 = vadd.f32 %v2131, %v2303
          %v2305 = vpop.f32.mrf.mxu0
          %v2306 = vpop.f32.mrf.mxu0
          %v2307 = vadd.f32 %v2131, %v2306
          %v2308 = vpop.f32.mrf.mxu0
          %2309 = vmatprep.mubr.bf16.mxu0 0
          %2310 = vmatmul.mubr.bf16.gmra.mxu0 %v2185
          %v2311 = vpop.f32.mrf.mxu0
          %v2312 = vadd.f32 %v2131, %v2311
          %v2313 = vpop.f32.mrf.mxu0
          %v2314 = vpop.f32.mrf.mxu0
          %v2315 = vadd.f32 %v2131, %v2314
          %v2316 = vpop.f32.mrf.mxu0
          %2317 = vmatprep.mubr.bf16.mxu0 0
          %2318 = vmatmul.mubr.bf16.gmra.mxu0 %v2188
          %v2319 = vpop.f32.mrf.mxu0
          %v2320 = vadd.f32 %v2131, %v2319
          %v2321 = vpop.f32.mrf.mxu0
          %v2322 = vpop.f32.mrf.mxu0
          %v2323 = vadd.f32 %v2131, %v2322
          %v2324 = vpop.f32.mrf.mxu0
          %2325 = vmatprep.mubr.bf16.mxu0 0
          %2326 = vmatmul.mubr.bf16.gmra.mxu0 %v2191
          %v2327 = vpop.f32.mrf.mxu0
          %v2328 = vadd.f32 %v2131, %v2327
          %v2329 = vpop.f32.mrf.mxu0
          %v2330 = vpop.f32.mrf.mxu0
          %v2331 = vadd.f32 %v2131, %v2330
          %v2332 = vpop.f32.mrf.mxu0
          %2333 = vmatprep.mubr.bf16.mxu0 0
          %2334 = vmatmul.mubr.bf16.gmra.mxu0 %v2194
          %v2335 = vpop.f32.mrf.mxu0
          %v2336 = vadd.f32 %v2131, %v2335
          %v2337 = vpop.f32.mrf.mxu0
          %v2338 = vpop.f32.mrf.mxu0
          %v2339 = vadd.f32 %v2131, %v2338
          %v2340 = vpop.f32.mrf.mxu0
          %2341 = vmatprep.mubr.bf16.mxu0 0
          %2342 = vmatmul.mubr.bf16.gmra.mxu0 %v2197
          %v2343 = vpop.f32.mrf.mxu0
          %v2344 = vadd.f32 %v2131, %v2343
          %v2345 = vpop.f32.mrf.mxu0
          %v2346 = vpop.f32.mrf.mxu0
          %v2347 = vadd.f32 %v2131, %v2346
          %v2348 = vpop.f32.mrf.mxu0
          %2349 = vmatprep.mubr.bf16.mxu0 0
          %2350 = vmatmul.mubr.bf16.gmra.mxu0 %v2200
          %v2351 = vpop.f32.mrf.mxu0
          %v2352 = vadd.f32 %v2131, %v2351
          %v2353 = vpop.f32.mrf.mxu0
          %v2354 = vpop.f32.mrf.mxu0
          %v2355 = vadd.f32 %v2131, %v2354
          %v2356 = vpop.f32.mrf.mxu0
          %2357 = vmatprep.mubr.bf16.mxu0 0
          %2358 = vmatmul.mubr.bf16.gmra.mxu0 %v2203
          %v2359 = vpop.f32.mrf.mxu0
          %v2360 = vadd.f32 %v2131, %v2359
          %v2361 = vpop.f32.mrf.mxu0
          %v2362 = vpop.f32.mrf.mxu0
          %v2363 = vadd.f32 %v2131, %v2362
          %v2364 = vpop.f32.mrf.mxu0
          %2365 = vdwg.mxu0
          %v2366 = vld [vmem:[#allocation4] sm:$0xff]
          %v2367 = vrot.slane %v2366, 4
          %v2368 = vadd.f32 %v2366, %v2367
          %v2369 = vrot.slane %v2368, 2
          %v2370 = vadd.f32 %v2368, %v2369
          %v2371 = vrot.slane %v2370, 1
          %v2372 = vadd.f32 %v2370, %v2371
          %v2373 = vmul.f32 %v2372, 0.001953125
          %v2374 = vld [vmem:[#allocation5] sm:$0xff]
          %v2375 = vrot.slane %v2374, 4
          %v2376 = vadd.f32 %v2374, %v2375
          %v2377 = vrot.slane %v2376, 2
          %v2378 = vadd.f32 %v2376, %v2377
          %v2379 = vrot.slane %v2378, 1
          %v2380 = vadd.f32 %v2378, %v2379
          %v2381 = vmul.f32 %v2380, 0.001953125
          %v2382 = vmul.f32 %v2373, %v2373
          %v2383 = vsub.f32 %v2381, %v2382
          %v2384 = vmax.f32 %v2383, 0.0
          %v2385 = vld [vmem:[%s7] sm:$0x1]
          %v2386 = vadd.f32 %v2384, 1e-05
          %v2387 = vrsqrt.pop %v2386
          %v2388 = vmul.f32 %v2385, %v2387
          %v2389 = vld [vmem:[%s8] sm:$0x1]
          %v2390 = vmul.f32 %v2373, %v2388
          %v2391 = vsub.f32 %v2389, %v2390
          %v2393 = vlaneseq
          %v2394 = vshrl.u32 %v2393, 7
          %v2395 = vsub.s32 0, %v2394
          %v2396 = vrot.slane %v2388, %v2395
          %v2398 = vmul.f32 %v2240, %v2396
          %v2399 = vmul.f32 %v2243, %v2396
          %v2400 = vmul.f32 %v2248, %v2396
          %v2401 = vmul.f32 %v2251, %v2396
          %v2402 = vmul.f32 %v2256, %v2396
          %v2403 = vmul.f32 %v2259, %v2396
          %v2404 = vmul.f32 %v2264, %v2396
          %v2405 = vmul.f32 %v2267, %v2396
          %v2406 = vmul.f32 %v2272, %v2396
          %v2407 = vmul.f32 %v2275, %v2396
          %v2408 = vmul.f32 %v2280, %v2396
          %v2409 = vmul.f32 %v2283, %v2396
          %v2410 = vmul.f32 %v2288, %v2396
          %v2411 = vmul.f32 %v2291, %v2396
          %v2412 = vmul.f32 %v2296, %v2396
          %v2413 = vmul.f32 %v2299, %v2396
          %v2414 = vmul.f32 %v2304, %v2396
          %v2415 = vmul.f32 %v2307, %v2396
          %v2416 = vmul.f32 %v2312, %v2396
          %v2417 = vmul.f32 %v2315, %v2396
          %v2418 = vmul.f32 %v2320, %v2396
          %v2419 = vmul.f32 %v2323, %v2396
          %v2420 = vmul.f32 %v2328, %v2396
          %v2421 = vmul.f32 %v2331, %v2396
          %v2422 = vmul.f32 %v2336, %v2396
          %v2423 = vmul.f32 %v2339, %v2396
          %v2424 = vmul.f32 %v2344, %v2396
          %v2425 = vmul.f32 %v2347, %v2396
          %v2426 = vmul.f32 %v2352, %v2396
          %v2427 = vmul.f32 %v2355, %v2396
          %v2428 = vmul.f32 %v2360, %v2396
          %v2429 = vmul.f32 %v2363, %v2396
          %v2431 = vlaneseq
          %v2432 = vshrl.u32 %v2431, 7
          %v2433 = vsub.s32 0, %v2432
          %v2434 = vrot.slane %v2391, %v2433
          %v2436 = vadd.f32 %v2398, %v2434
          %v2437 = vadd.f32 %v2399, %v2434
          %v2438 = vadd.f32 %v2400, %v2434
          %v2439 = vadd.f32 %v2401, %v2434
          %v2440 = vadd.f32 %v2402, %v2434
          %v2441 = vadd.f32 %v2403, %v2434
          %v2442 = vadd.f32 %v2404, %v2434
          %v2443 = vadd.f32 %v2405, %v2434
          %v2444 = vadd.f32 %v2406, %v2434
          %v2445 = vadd.f32 %v2407, %v2434
          %v2446 = vadd.f32 %v2408, %v2434
          %v2447 = vadd.f32 %v2409, %v2434
          %v2448 = vadd.f32 %v2410, %v2434
          %v2449 = vadd.f32 %v2411, %v2434
          %v2450 = vadd.f32 %v2412, %v2434
          %v2451 = vadd.f32 %v2413, %v2434
          %v2452 = vadd.f32 %v2414, %v2434
          %v2453 = vadd.f32 %v2415, %v2434
          %v2454 = vadd.f32 %v2416, %v2434
          %v2455 = vadd.f32 %v2417, %v2434
          %v2456 = vadd.f32 %v2418, %v2434
          %v2457 = vadd.f32 %v2419, %v2434
          %v2458 = vadd.f32 %v2420, %v2434
          %v2459 = vadd.f32 %v2421, %v2434
          %v2460 = vadd.f32 %v2422, %v2434
          %v2461 = vadd.f32 %v2423, %v2434
          %v2462 = vadd.f32 %v2424, %v2434
          %v2463 = vadd.f32 %v2425, %v2434
          %v2464 = vadd.f32 %v2426, %v2434
          %v2465 = vadd.f32 %v2427, %v2434
          %v2466 = vadd.f32 %v2428, %v2434
          %v2467 = vadd.f32 %v2429, %v2434
          %v2468 = vmax.f32 %v2436, 0.0
          %v2469 = vmax.f32 %v2437, 0.0
          %v2470 = vmax.f32 %v2438, 0.0
          %v2471 = vmax.f32 %v2439, 0.0
          %v2472 = vmax.f32 %v2440, 0.0
          %v2473 = vmax.f32 %v2441, 0.0
          %v2474 = vmax.f32 %v2442, 0.0
          %v2475 = vmax.f32 %v2443, 0.0
          %v2476 = vmax.f32 %v2444, 0.0
          %v2477 = vmax.f32 %v2445, 0.0
          %v2478 = vmax.f32 %v2446, 0.0
          %v2479 = vmax.f32 %v2447, 0.0
          %v2480 = vmax.f32 %v2448, 0.0
          %v2481 = vmax.f32 %v2449, 0.0
          %v2482 = vmax.f32 %v2450, 0.0
          %v2483 = vmax.f32 %v2451, 0.0
          %v2484 = vmax.f32 %v2452, 0.0
          %v2485 = vmax.f32 %v2453, 0.0
          %v2486 = vmax.f32 %v2454, 0.0
          %v2487 = vmax.f32 %v2455, 0.0
          %v2488 = vmax.f32 %v2456, 0.0
          %v2489 = vmax.f32 %v2457, 0.0
          %v2490 = vmax.f32 %v2458, 0.0
          %v2491 = vmax.f32 %v2459, 0.0
          %v2492 = vmax.f32 %v2460, 0.0
          %v2493 = vmax.f32 %v2461, 0.0
          %v2494 = vmax.f32 %v2462, 0.0
          %v2495 = vmax.f32 %v2463, 0.0
          %v2496 = vmax.f32 %v2464, 0.0
          %v2497 = vmax.f32 %v2465, 0.0
          %v2498 = vmax.f32 %v2466, 0.0
          %v2499 = vmax.f32 %v2467, 0.0
          %v2500 = vpack.c.bf16 %v2469, %v2468
          %v2501 = vpack.c.bf16 %v2471, %v2470
          %v2502 = vpack.c.bf16 %v2473, %v2472
          %v2503 = vpack.c.bf16 %v2475, %v2474
          %v2504 = vpack.c.bf16 %v2477, %v2476
          %v2505 = vpack.c.bf16 %v2479, %v2478
          %v2506 = vpack.c.bf16 %v2481, %v2480
          %v2507 = vpack.c.bf16 %v2483, %v2482
          %v2508 = vpack.c.bf16 %v2485, %v2484
          %v2509 = vpack.c.bf16 %v2487, %v2486
          %v2510 = vpack.c.bf16 %v2489, %v2488
          %v2511 = vpack.c.bf16 %v2491, %v2490
          %v2512 = vpack.c.bf16 %v2493, %v2492
          %v2513 = vpack.c.bf16 %v2495, %v2494
          %v2514 = vpack.c.bf16 %v2497, %v2496
          %v2515 = vpack.c.bf16 %v2499, %v2498
          %v2516 = vld [vmem:[#allocation10] sm:$0xff]
          %v2517 = vld [vmem:[#allocation10 + $0x8] sm:$0xff]
          %v2518 = vld [vmem:[#allocation10 + $0x10] sm:$0xff]
          %v2519 = vld [vmem:[#allocation10 + $0x18] sm:$0xff]
          %v2520 = vld [vmem:[#allocation10 + $0x20] sm:$0xff]
          %v2521 = vld [vmem:[#allocation10 + $0x28] sm:$0xff]
          %v2522 = vld [vmem:[#allocation10 + $0x30] sm:$0xff]
          %v2523 = vld [vmem:[#allocation10 + $0x38] sm:$0xff]
          %v2524 = vld [vmem:[#allocation10 + $0x40] sm:$0xff]
          %v2525 = vld [vmem:[#allocation10 + $0x48] sm:$0xff]
          %v2526 = vld [vmem:[#allocation10 + $0x50] sm:$0xff]
          %v2527 = vld [vmem:[#allocation10 + $0x58] sm:$0xff]
          %v2528 = vld [vmem:[#allocation10 + $0x60] sm:$0xff]
          %v2529 = vld [vmem:[#allocation10 + $0x68] sm:$0xff]
          %v2530 = vld [vmem:[#allocation10 + $0x70] sm:$0xff]
          %v2531 = vld [vmem:[#allocation10 + $0x78] sm:$0xff]
          %v2532 = vld [vmem:[#allocation10 + $0x80] sm:$0xff]
          %v2533 = vld [vmem:[#allocation10 + $0x88] sm:$0xff]
          %v2534 = vld [vmem:[#allocation10 + $0x90] sm:$0xff]
          %v2535 = vld [vmem:[#allocation10 + $0x98] sm:$0xff]
          %v2536 = vld [vmem:[#allocation10 + $0xa0] sm:$0xff]
          %v2537 = vld [vmem:[#allocation10 + $0xa8] sm:$0xff]
          %v2538 = vld [vmem:[#allocation10 + $0xb0] sm:$0xff]
          %v2539 = vld [vmem:[#allocation10 + $0xb8] sm:$0xff]
          %v2540 = vld [vmem:[#allocation10 + $0xc0] sm:$0xff]
          %v2541 = vld [vmem:[#allocation10 + $0xc8] sm:$0xff]
          %v2542 = vld [vmem:[#allocation10 + $0xd0] sm:$0xff]
          %v2543 = vld [vmem:[#allocation10 + $0xd8] sm:$0xff]
          %v2544 = vld [vmem:[#allocation10 + $0xe0] sm:$0xff]
          %v2545 = vld [vmem:[#allocation10 + $0xe8] sm:$0xff]
          %v2546 = vld [vmem:[#allocation10 + $0xf0] sm:$0xff]
          %v2547 = vld [vmem:[#allocation10 + $0xf8] sm:$0xff]
          %v2548 = vld [vmem:[#allocation10 + $0x100] sm:$0xff]
          %v2549 = vld [vmem:[#allocation10 + $0x108] sm:$0xff]
          %v2550 = vld [vmem:[#allocation10 + $0x110] sm:$0xff]
          %v2551 = vld [vmem:[#allocation10 + $0x118] sm:$0xff]
          %v2552 = vld [vmem:[#allocation10 + $0x120] sm:$0xff]
          %v2553 = vld [vmem:[#allocation10 + $0x128] sm:$0xff]
          %v2554 = vld [vmem:[#allocation10 + $0x130] sm:$0xff]
          %v2555 = vld [vmem:[#allocation10 + $0x138] sm:$0xff]
          %v2556 = vld [vmem:[#allocation10 + $0x140] sm:$0xff]
          %v2557 = vld [vmem:[#allocation10 + $0x148] sm:$0xff]
          %v2558 = vld [vmem:[#allocation10 + $0x150] sm:$0xff]
          %v2559 = vld [vmem:[#allocation10 + $0x158] sm:$0xff]
          %v2560 = vld [vmem:[#allocation10 + $0x160] sm:$0xff]
          %v2561 = vld [vmem:[#allocation10 + $0x168] sm:$0xff]
          %v2562 = vld [vmem:[#allocation10 + $0x170] sm:$0xff]
          %v2563 = vld [vmem:[#allocation10 + $0x178] sm:$0xff]
          %v2564 = vld [vmem:[#allocation10 + $0x180] sm:$0xff]
          %v2565 = vld [vmem:[#allocation10 + $0x188] sm:$0xff]
          %v2566 = vld [vmem:[#allocation10 + $0x190] sm:$0xff]
          %v2567 = vld [vmem:[#allocation10 + $0x198] sm:$0xff]
          %v2568 = vld [vmem:[#allocation10 + $0x1a0] sm:$0xff]
          %v2569 = vld [vmem:[#allocation10 + $0x1a8] sm:$0xff]
          %v2570 = vld [vmem:[#allocation10 + $0x1b0] sm:$0xff]
          %v2571 = vld [vmem:[#allocation10 + $0x1b8] sm:$0xff]
          %v2572 = vld [vmem:[#allocation10 + $0x1c0] sm:$0xff]
          %v2573 = vld [vmem:[#allocation10 + $0x1c8] sm:$0xff]
          %v2574 = vld [vmem:[#allocation10 + $0x1d0] sm:$0xff]
          %v2575 = vld [vmem:[#allocation10 + $0x1d8] sm:$0xff]
          %v2576 = vld [vmem:[#allocation10 + $0x1e0] sm:$0xff]
          %v2577 = vld [vmem:[#allocation10 + $0x1e8] sm:$0xff]
          %v2578 = vld [vmem:[#allocation10 + $0x1f0] sm:$0xff]
          %v2579 = vld [vmem:[#allocation10 + $0x1f8] sm:$0xff]
          %v2580 = vld [vmem:[%s10] sm:$0xff]
          %v2582 = vlaneseq
          %v2583 = vshrl.u32 %v2582, 7
          %v2584 = vsub.s32 0, %v2583
          %v2585 = vrot.slane %v2580, %v2584
          %v2586 = vlaneseq
          %v2587 = vshrl.u32 %v2586, 7
          %v2588 = vsub.s32 1, %v2587
          %v2589 = vrot.slane %v2580, %v2588
          %v2590 = vlaneseq
          %v2591 = vshrl.u32 %v2590, 7
          %v2592 = vsub.s32 2, %v2591
          %v2593 = vrot.slane %v2580, %v2592
          %v2594 = vlaneseq
          %v2595 = vshrl.u32 %v2594, 7
          %v2596 = vsub.s32 3, %v2595
          %v2597 = vrot.slane %v2580, %v2596
          %v2598 = vlaneseq
          %v2599 = vshrl.u32 %v2598, 7
          %v2600 = vsub.s32 4, %v2599
          %v2601 = vrot.slane %v2580, %v2600
          %v2602 = vlaneseq
          %v2603 = vshrl.u32 %v2602, 7
          %v2604 = vsub.s32 5, %v2603
          %v2605 = vrot.slane %v2580, %v2604
          %v2606 = vlaneseq
          %v2607 = vshrl.u32 %v2606, 7
          %v2608 = vsub.s32 6, %v2607
          %v2609 = vrot.slane %v2580, %v2608
          %v2610 = vlaneseq
          %v2611 = vshrl.u32 %v2610, 7
          %v2612 = vsub.s32 7, %v2611
          %v2613 = vrot.slane %v2580, %v2612
          %v2686 = vunpack.c.l.b16 %v2516
          %v2687 = vunpack.c.h.b16 %v2516
          %v2688 = vunpack.c.l.b16 %v2517
          %v2689 = vunpack.c.h.b16 %v2517
          %v2690 = vunpack.c.l.b16 %v2518
          %v2691 = vunpack.c.h.b16 %v2518
          %v2692 = vunpack.c.l.b16 %v2519
          %v2693 = vunpack.c.h.b16 %v2519
          %v2694 = vunpack.c.l.b16 %v2520
          %v2695 = vunpack.c.h.b16 %v2520
          %v2696 = vunpack.c.l.b16 %v2521
          %v2697 = vunpack.c.h.b16 %v2521
          %v2698 = vunpack.c.l.b16 %v2522
          %v2699 = vunpack.c.h.b16 %v2522
          %v2700 = vunpack.c.l.b16 %v2523
          %v2701 = vunpack.c.h.b16 %v2523
          %v2702 = vunpack.c.l.b16 %v2524
          %v2703 = vunpack.c.h.b16 %v2524
          %v2704 = vunpack.c.l.b16 %v2525
          %v2705 = vunpack.c.h.b16 %v2525
          %v2706 = vunpack.c.l.b16 %v2526
          %v2707 = vunpack.c.h.b16 %v2526
          %v2708 = vunpack.c.l.b16 %v2527
          %v2709 = vunpack.c.h.b16 %v2527
          %v2710 = vunpack.c.l.b16 %v2528
          %v2711 = vunpack.c.h.b16 %v2528
          %v2712 = vunpack.c.l.b16 %v2529
          %v2713 = vunpack.c.h.b16 %v2529
          %v2714 = vunpack.c.l.b16 %v2530
          %v2715 = vunpack.c.h.b16 %v2530
          %v2716 = vunpack.c.l.b16 %v2531
          %v2717 = vunpack.c.h.b16 %v2531
          %v2718 = vunpack.c.l.b16 %v2532
          %v2719 = vunpack.c.h.b16 %v2532
          %v2720 = vunpack.c.l.b16 %v2533
          %v2721 = vunpack.c.h.b16 %v2533
          %v2722 = vunpack.c.l.b16 %v2534
          %v2723 = vunpack.c.h.b16 %v2534
          %v2724 = vunpack.c.l.b16 %v2535
          %v2725 = vunpack.c.h.b16 %v2535
          %v2726 = vunpack.c.l.b16 %v2536
          %v2727 = vunpack.c.h.b16 %v2536
          %v2728 = vunpack.c.l.b16 %v2537
          %v2729 = vunpack.c.h.b16 %v2537
          %v2730 = vunpack.c.l.b16 %v2538
          %v2731 = vunpack.c.h.b16 %v2538
          %v2732 = vunpack.c.l.b16 %v2539
          %v2733 = vunpack.c.h.b16 %v2539
          %v2734 = vunpack.c.l.b16 %v2540
          %v2735 = vunpack.c.h.b16 %v2540
          %v2736 = vunpack.c.l.b16 %v2541
          %v2737 = vunpack.c.h.b16 %v2541
          %v2738 = vunpack.c.l.b16 %v2542
          %v2739 = vunpack.c.h.b16 %v2542
          %v2740 = vunpack.c.l.b16 %v2543
          %v2741 = vunpack.c.h.b16 %v2543
          %v2742 = vunpack.c.l.b16 %v2544
          %v2743 = vunpack.c.h.b16 %v2544
          %v2744 = vunpack.c.l.b16 %v2545
          %v2745 = vunpack.c.h.b16 %v2545
          %v2746 = vunpack.c.l.b16 %v2546
          %v2747 = vunpack.c.h.b16 %v2546
          %v2748 = vunpack.c.l.b16 %v2547
          %v2749 = vunpack.c.h.b16 %v2547
          %v2750 = vunpack.c.l.b16 %v2548
          %v2751 = vunpack.c.h.b16 %v2548
          %v2752 = vunpack.c.l.b16 %v2549
          %v2753 = vunpack.c.h.b16 %v2549
          %v2754 = vunpack.c.l.b16 %v2550
          %v2755 = vunpack.c.h.b16 %v2550
          %v2756 = vunpack.c.l.b16 %v2551
          %v2757 = vunpack.c.h.b16 %v2551
          %v2758 = vunpack.c.l.b16 %v2552
          %v2759 = vunpack.c.h.b16 %v2552
          %v2760 = vunpack.c.l.b16 %v2553
          %v2761 = vunpack.c.h.b16 %v2553
          %v2762 = vunpack.c.l.b16 %v2554
          %v2763 = vunpack.c.h.b16 %v2554
          %v2764 = vunpack.c.l.b16 %v2555
          %v2765 = vunpack.c.h.b16 %v2555
          %v2766 = vunpack.c.l.b16 %v2556
          %v2767 = vunpack.c.h.b16 %v2556
          %v2768 = vunpack.c.l.b16 %v2557
          %v2769 = vunpack.c.h.b16 %v2557
          %v2770 = vunpack.c.l.b16 %v2558
          %v2771 = vunpack.c.h.b16 %v2558
          %v2772 = vunpack.c.l.b16 %v2559
          %v2773 = vunpack.c.h.b16 %v2559
          %v2774 = vunpack.c.l.b16 %v2560
          %v2775 = vunpack.c.h.b16 %v2560
          %v2776 = vunpack.c.l.b16 %v2561
          %v2777 = vunpack.c.h.b16 %v2561
          %v2778 = vunpack.c.l.b16 %v2562
          %v2779 = vunpack.c.h.b16 %v2562
          %v2780 = vunpack.c.l.b16 %v2563
          %v2781 = vunpack.c.h.b16 %v2563
          %v2782 = vunpack.c.l.b16 %v2564
          %v2783 = vunpack.c.h.b16 %v2564
          %v2784 = vunpack.c.l.b16 %v2565
          %v2785 = vunpack.c.h.b16 %v2565
          %v2786 = vunpack.c.l.b16 %v2566
          %v2787 = vunpack.c.h.b16 %v2566
          %v2788 = vunpack.c.l.b16 %v2567
          %v2789 = vunpack.c.h.b16 %v2567
          %v2790 = vunpack.c.l.b16 %v2568
          %v2791 = vunpack.c.h.b16 %v2568
          %v2792 = vunpack.c.l.b16 %v2569
          %v2793 = vunpack.c.h.b16 %v2569
          %v2794 = vunpack.c.l.b16 %v2570
          %v2795 = vunpack.c.h.b16 %v2570
          %v2796 = vunpack.c.l.b16 %v2571
          %v2797 = vunpack.c.h.b16 %v2571
          %v2798 = vunpack.c.l.b16 %v2572
          %v2799 = vunpack.c.h.b16 %v2572
          %v2800 = vunpack.c.l.b16 %v2573
          %v2801 = vunpack.c.h.b16 %v2573
          %v2802 = vunpack.c.l.b16 %v2574
          %v2803 = vunpack.c.h.b16 %v2574
          %v2804 = vunpack.c.l.b16 %v2575
          %v2805 = vunpack.c.h.b16 %v2575
          %v2806 = vunpack.c.l.b16 %v2576
          %v2807 = vunpack.c.h.b16 %v2576
          %v2808 = vunpack.c.l.b16 %v2577
          %v2809 = vunpack.c.h.b16 %v2577
          %v2810 = vunpack.c.l.b16 %v2578
          %v2811 = vunpack.c.h.b16 %v2578
          %v2812 = vunpack.c.l.b16 %v2579
          %v2813 = vunpack.c.h.b16 %v2579
          %v2814 = vpack.c.b16 %v2694, %v2686
          %v2815 = vpack.c.b16 %v2695, %v2687
          %v2816 = vpack.c.b16 %v2696, %v2688
          %v2817 = vpack.c.b16 %v2697, %v2689
          %v2818 = vpack.c.b16 %v2698, %v2690
          %v2819 = vpack.c.b16 %v2699, %v2691
          %v2820 = vpack.c.b16 %v2700, %v2692
          %v2821 = vpack.c.b16 %v2701, %v2693
          %v2822 = vpack.c.b16 %v2710, %v2702
          %v2823 = vpack.c.b16 %v2711, %v2703
          %v2824 = vpack.c.b16 %v2712, %v2704
          %v2825 = vpack.c.b16 %v2713, %v2705
          %v2826 = vpack.c.b16 %v2714, %v2706
          %v2827 = vpack.c.b16 %v2715, %v2707
          %v2828 = vpack.c.b16 %v2716, %v2708
          %v2829 = vpack.c.b16 %v2717, %v2709
          %v2830 = vpack.c.b16 %v2726, %v2718
          %v2831 = vpack.c.b16 %v2727, %v2719
          %v2832 = vpack.c.b16 %v2728, %v2720
          %v2833 = vpack.c.b16 %v2729, %v2721
          %v2834 = vpack.c.b16 %v2730, %v2722
          %v2835 = vpack.c.b16 %v2731, %v2723
          %v2836 = vpack.c.b16 %v2732, %v2724
          %v2837 = vpack.c.b16 %v2733, %v2725
          %v2838 = vpack.c.b16 %v2742, %v2734
          %v2839 = vpack.c.b16 %v2743, %v2735
          %v2840 = vpack.c.b16 %v2744, %v2736
          %v2841 = vpack.c.b16 %v2745, %v2737
          %v2842 = vpack.c.b16 %v2746, %v2738
          %v2843 = vpack.c.b16 %v2747, %v2739
          %v2844 = vpack.c.b16 %v2748, %v2740
          %v2845 = vpack.c.b16 %v2749, %v2741
          %v2846 = vpack.c.b16 %v2758, %v2750
          %v2847 = vpack.c.b16 %v2759, %v2751
          %v2848 = vpack.c.b16 %v2760, %v2752
          %v2849 = vpack.c.b16 %v2761, %v2753
          %v2850 = vpack.c.b16 %v2762, %v2754
          %v2851 = vpack.c.b16 %v2763, %v2755
          %v2852 = vpack.c.b16 %v2764, %v2756
          %v2853 = vpack.c.b16 %v2765, %v2757
          %v2854 = vpack.c.b16 %v2774, %v2766
          %v2855 = vpack.c.b16 %v2775, %v2767
          %v2856 = vpack.c.b16 %v2776, %v2768
          %v2857 = vpack.c.b16 %v2777, %v2769
          %v2858 = vpack.c.b16 %v2778, %v2770
          %v2859 = vpack.c.b16 %v2779, %v2771
          %v2860 = vpack.c.b16 %v2780, %v2772
          %v2861 = vpack.c.b16 %v2781, %v2773
          %v2862 = vpack.c.b16 %v2790, %v2782
          %v2863 = vpack.c.b16 %v2791, %v2783
          %v2864 = vpack.c.b16 %v2792, %v2784
          %v2865 = vpack.c.b16 %v2793, %v2785
          %v2866 = vpack.c.b16 %v2794, %v2786
          %v2867 = vpack.c.b16 %v2795, %v2787
          %v2868 = vpack.c.b16 %v2796, %v2788
          %v2869 = vpack.c.b16 %v2797, %v2789
          %v2870 = vpack.c.b16 %v2806, %v2798
          %v2871 = vpack.c.b16 %v2807, %v2799
          %v2872 = vpack.c.b16 %v2808, %v2800
          %v2873 = vpack.c.b16 %v2809, %v2801
          %v2874 = vpack.c.b16 %v2810, %v2802
          %v2875 = vpack.c.b16 %v2811, %v2803
          %v2876 = vpack.c.b16 %v2812, %v2804
          %v2877 = vpack.c.b16 %v2813, %v2805
          %2942 = vmatprep.subr.bf16.mxu0 %v2871
          %2943 = vmatpush1.bf16.msra.mxu0 %v2870
          %2944 = vmatprep.subr.bf16.mxu0 %v2863
          %2945 = vmatpush1.bf16.msra.mxu0 %v2862
          %2946 = vmatprep.subr.bf16.mxu0 %v2855
          %2947 = vmatpush1.bf16.msra.mxu0 %v2854
          %2948 = vmatprep.subr.bf16.mxu0 %v2847
          %2949 = vmatpush1.bf16.msra.mxu0 %v2846
          %2950 = vmatprep.subr.bf16.mxu0 %v2839
          %2951 = vmatpush1.bf16.msra.mxu0 %v2838
          %2952 = vmatprep.subr.bf16.mxu0 %v2831
          %2953 = vmatpush1.bf16.msra.mxu0 %v2830
          %2954 = vmatprep.subr.bf16.mxu0 %v2823
          %2955 = vmatpush1.bf16.msra.mxu0 %v2822
          %2956 = vmatprep.subr.bf16.mxu0 %v2815
          %2957 = vmatpush1.bf16.msra.mxu0 %v2814
          %2958 = vmatprep.subr.bf16.mxu0 0
          %2959 = vmatpush2.bf16.msra.mxu0 0
          %2960 = vmatprep.subr.bf16.mxu0 0
          %2961 = vmatpush2.bf16.msra.mxu0 0
          %2962 = vmatprep.subr.bf16.mxu0 0
          %2963 = vmatpush2.bf16.msra.mxu0 0
          %2964 = vmatprep.subr.bf16.mxu0 0
          %2965 = vmatpush2.bf16.msra.mxu0 0
          %2966 = vmatprep.subr.bf16.mxu0 0
          %2967 = vmatpush2.bf16.msra.mxu0 0
          %2968 = vmatprep.subr.bf16.mxu0 0
          %2969 = vmatpush2.bf16.msra.mxu0 0
          %2970 = vmatprep.subr.bf16.mxu0 0
          %2971 = vmatpush2.bf16.msra.mxu0 0
          %2972 = vmatprep.subr.bf16.mxu0 0
          %2973 = vmatpush2.bf16.msra.mxu0 0
          %2974 = vmatprep.mubr.bf16.mxu0 0
          %2975 = vmatmul.mubr.bf16.gmra.mxu0 %v2500
          %v2976 = vpop.f32.mrf.mxu0
          %v2977 = vadd.f32 %v2585, %v2976
          %v2978 = vpop.f32.mrf.mxu0
          %v2979 = vadd.f32 %v2589, %v2978
          %v2980 = vpop.f32.mrf.mxu0
          %v2981 = vadd.f32 %v2585, %v2980
          %v2982 = vpop.f32.mrf.mxu0
          %v2983 = vadd.f32 %v2589, %v2982
          %2984 = vmatprep.mubr.bf16.mxu0 0
          %2985 = vmatmul.mubr.bf16.gmra.mxu0 %v2501
          %v2986 = vpop.f32.mrf.mxu0
          %v2987 = vadd.f32 %v2585, %v2986
          %v2988 = vpop.f32.mrf.mxu0
          %v2989 = vadd.f32 %v2589, %v2988
          %v2990 = vpop.f32.mrf.mxu0
          %v2991 = vadd.f32 %v2585, %v2990
          %v2992 = vpop.f32.mrf.mxu0
          %v2993 = vadd.f32 %v2589, %v2992
          %2994 = vmatprep.mubr.bf16.mxu0 0
          %2995 = vmatmul.mubr.bf16.gmra.mxu0 %v2502
          %v2996 = vpop.f32.mrf.mxu0
          %v2997 = vadd.f32 %v2585, %v2996
          %v2998 = vpop.f32.mrf.mxu0
          %v2999 = vadd.f32 %v2589, %v2998
          %v3000 = vpop.f32.mrf.mxu0
          %v3001 = vadd.f32 %v2585, %v3000
          %v3002 = vpop.f32.mrf.mxu0
          %v3003 = vadd.f32 %v2589, %v3002
          %3004 = vmatprep.mubr.bf16.mxu0 0
          %3005 = vmatmul.mubr.bf16.gmra.mxu0 %v2503
          %v3006 = vpop.f32.mrf.mxu0
          %v3007 = vadd.f32 %v2585, %v3006
          %v3008 = vpop.f32.mrf.mxu0
          %v3009 = vadd.f32 %v2589, %v3008
          %v3010 = vpop.f32.mrf.mxu0
          %v3011 = vadd.f32 %v2585, %v3010
          %v3012 = vpop.f32.mrf.mxu0
          %v3013 = vadd.f32 %v2589, %v3012
          %3014 = vmatprep.mubr.bf16.mxu0 0
          %3015 = vmatmul.mubr.bf16.gmra.mxu0 %v2504
          %v3016 = vpop.f32.mrf.mxu0
          %v3017 = vadd.f32 %v2585, %v3016
          %v3018 = vpop.f32.mrf.mxu0
          %v3019 = vadd.f32 %v2589, %v3018
          %v3020 = vpop.f32.mrf.mxu0
          %v3021 = vadd.f32 %v2585, %v3020
          %v3022 = vpop.f32.mrf.mxu0
          %v3023 = vadd.f32 %v2589, %v3022
          %3024 = vmatprep.mubr.bf16.mxu0 0
          %3025 = vmatmul.mubr.bf16.gmra.mxu0 %v2505
          %v3026 = vpop.f32.mrf.mxu0
          %v3027 = vadd.f32 %v2585, %v3026
          %v3028 = vpop.f32.mrf.mxu0
          %v3029 = vadd.f32 %v2589, %v3028
          %v3030 = vpop.f32.mrf.mxu0
          %v3031 = vadd.f32 %v2585, %v3030
          %v3032 = vpop.f32.mrf.mxu0
          %v3033 = vadd.f32 %v2589, %v3032
          %3034 = vmatprep.mubr.bf16.mxu0 0
          %3035 = vmatmul.mubr.bf16.gmra.mxu0 %v2506
          %v3036 = vpop.f32.mrf.mxu0
          %v3037 = vadd.f32 %v2585, %v3036
          %v3038 = vpop.f32.mrf.mxu0
          %v3039 = vadd.f32 %v2589, %v3038
          %v3040 = vpop.f32.mrf.mxu0
          %v3041 = vadd.f32 %v2585, %v3040
          %v3042 = vpop.f32.mrf.mxu0
          %v3043 = vadd.f32 %v2589, %v3042
          %3044 = vmatprep.mubr.bf16.mxu0 0
          %3045 = vmatmul.mubr.bf16.gmra.mxu0 %v2507
          %v3046 = vpop.f32.mrf.mxu0
          %v3047 = vadd.f32 %v2585, %v3046
          %v3048 = vpop.f32.mrf.mxu0
          %v3049 = vadd.f32 %v2589, %v3048
          %v3050 = vpop.f32.mrf.mxu0
          %v3051 = vadd.f32 %v2585, %v3050
          %v3052 = vpop.f32.mrf.mxu0
          %v3053 = vadd.f32 %v2589, %v3052
          %3054 = vmatprep.mubr.bf16.mxu0 0
          %3055 = vmatmul.mubr.bf16.gmra.mxu0 %v2508
          %v3056 = vpop.f32.mrf.mxu0
          %v3057 = vadd.f32 %v2585, %v3056
          %v3058 = vpop.f32.mrf.mxu0
          %v3059 = vadd.f32 %v2589, %v3058
          %v3060 = vpop.f32.mrf.mxu0
          %v3061 = vadd.f32 %v2585, %v3060
          %v3062 = vpop.f32.mrf.mxu0
          %v3063 = vadd.f32 %v2589, %v3062
          %3064 = vmatprep.mubr.bf16.mxu0 0
          %3065 = vmatmul.mubr.bf16.gmra.mxu0 %v2509
          %v3066 = vpop.f32.mrf.mxu0
          %v3067 = vadd.f32 %v2585, %v3066
          %v3068 = vpop.f32.mrf.mxu0
          %v3069 = vadd.f32 %v2589, %v3068
          %v3070 = vpop.f32.mrf.mxu0
          %v3071 = vadd.f32 %v2585, %v3070
          %v3072 = vpop.f32.mrf.mxu0
          %v3073 = vadd.f32 %v2589, %v3072
          %3074 = vmatprep.mubr.bf16.mxu0 0
          %3075 = vmatmul.mubr.bf16.gmra.mxu0 %v2510
          %v3076 = vpop.f32.mrf.mxu0
          %v3077 = vadd.f32 %v2585, %v3076
          %v3078 = vpop.f32.mrf.mxu0
          %v3079 = vadd.f32 %v2589, %v3078
          %v3080 = vpop.f32.mrf.mxu0
          %v3081 = vadd.f32 %v2585, %v3080
          %v3082 = vpop.f32.mrf.mxu0
          %v3083 = vadd.f32 %v2589, %v3082
          %3084 = vmatprep.mubr.bf16.mxu0 0
          %3085 = vmatmul.mubr.bf16.gmra.mxu0 %v2511
          %v3086 = vpop.f32.mrf.mxu0
          %v3087 = vadd.f32 %v2585, %v3086
          %v3088 = vpop.f32.mrf.mxu0
          %v3089 = vadd.f32 %v2589, %v3088
          %v3090 = vpop.f32.mrf.mxu0
          %v3091 = vadd.f32 %v2585, %v3090
          %v3092 = vpop.f32.mrf.mxu0
          %v3093 = vadd.f32 %v2589, %v3092
          %3094 = vmatprep.mubr.bf16.mxu0 0
          %3095 = vmatmul.mubr.bf16.gmra.mxu0 %v2512
          %v3096 = vpop.f32.mrf.mxu0
          %v3097 = vadd.f32 %v2585, %v3096
          %v3098 = vpop.f32.mrf.mxu0
          %v3099 = vadd.f32 %v2589, %v3098
          %v3100 = vpop.f32.mrf.mxu0
          %v3101 = vadd.f32 %v2585, %v3100
          %v3102 = vpop.f32.mrf.mxu0
          %v3103 = vadd.f32 %v2589, %v3102
          %3104 = vmatprep.mubr.bf16.mxu0 0
          %3105 = vmatmul.mubr.bf16.gmra.mxu0 %v2513
          %v3106 = vpop.f32.mrf.mxu0
          %v3107 = vadd.f32 %v2585, %v3106
          %v3108 = vpop.f32.mrf.mxu0
          %v3109 = vadd.f32 %v2589, %v3108
          %v3110 = vpop.f32.mrf.mxu0
          %v3111 = vadd.f32 %v2585, %v3110
          %v3112 = vpop.f32.mrf.mxu0
          %v3113 = vadd.f32 %v2589, %v3112
          %3114 = vmatprep.mubr.bf16.mxu0 0
          %3115 = vmatmul.mubr.bf16.gmra.mxu0 %v2514
          %v3116 = vpop.f32.mrf.mxu0
          %v3117 = vadd.f32 %v2585, %v3116
          %v3118 = vpop.f32.mrf.mxu0
          %v3119 = vadd.f32 %v2589, %v3118
          %v3120 = vpop.f32.mrf.mxu0
          %v3121 = vadd.f32 %v2585, %v3120
          %v3122 = vpop.f32.mrf.mxu0
          %v3123 = vadd.f32 %v2589, %v3122
          %3124 = vmatprep.mubr.bf16.mxu0 0
          %3125 = vmatmul.mubr.bf16.gmra.mxu0 %v2515
          %v3126 = vpop.f32.mrf.mxu0
          %v3127 = vadd.f32 %v2585, %v3126
          %v3128 = vpop.f32.mrf.mxu0
          %v3129 = vadd.f32 %v2589, %v3128
          %v3130 = vpop.f32.mrf.mxu0
          %v3131 = vadd.f32 %v2585, %v3130
          %v3132 = vpop.f32.mrf.mxu0
          %v3133 = vadd.f32 %v2589, %v3132
          %3134 = vdwg.mxu0
          %3135 = vmatprep.subr.bf16.mxu0 %v2873
          %3136 = vmatpush1.bf16.msra.mxu0 %v2872
          %3137 = vmatprep.subr.bf16.mxu0 %v2865
          %3138 = vmatpush1.bf16.msra.mxu0 %v2864
          %3139 = vmatprep.subr.bf16.mxu0 %v2857
          %3140 = vmatpush1.bf16.msra.mxu0 %v2856
          %3141 = vmatprep.subr.bf16.mxu0 %v2849
          %3142 = vmatpush1.bf16.msra.mxu0 %v2848
          %3143 = vmatprep.subr.bf16.mxu0 %v2841
          %3144 = vmatpush1.bf16.msra.mxu0 %v2840
          %3145 = vmatprep.subr.bf16.mxu0 %v2833
          %3146 = vmatpush1.bf16.msra.mxu0 %v2832
          %3147 = vmatprep.subr.bf16.mxu0 %v2825
          %3148 = vmatpush1.bf16.msra.mxu0 %v2824
          %3149 = vmatprep.subr.bf16.mxu0 %v2817
          %3150 = vmatpush1.bf16.msra.mxu0 %v2816
          %3151 = vmatprep.subr.bf16.mxu0 0
          %3152 = vmatpush2.bf16.msra.mxu0 0
          %3153 = vmatprep.subr.bf16.mxu0 0
          %3154 = vmatpush2.bf16.msra.mxu0 0
          %3155 = vmatprep.subr.bf16.mxu0 0
          %3156 = vmatpush2.bf16.msra.mxu0 0
          %3157 = vmatprep.subr.bf16.mxu0 0
          %3158 = vmatpush2.bf16.msra.mxu0 0
          %3159 = vmatprep.subr.bf16.mxu0 0
          %3160 = vmatpush2.bf16.msra.mxu0 0
          %3161 = vmatprep.subr.bf16.mxu0 0
          %3162 = vmatpush2.bf16.msra.mxu0 0
          %3163 = vmatprep.subr.bf16.mxu0 0
          %3164 = vmatpush2.bf16.msra.mxu0 0
          %3165 = vmatprep.subr.bf16.mxu0 0
          %3166 = vmatpush2.bf16.msra.mxu0 0
          %3167 = vmatprep.mubr.bf16.mxu0 0
          %3168 = vmatmul.mubr.bf16.gmra.mxu0 %v2500
          %v3169 = vpop.f32.mrf.mxu0
          %v3170 = vadd.f32 %v2593, %v3169
          %v3171 = vpop.f32.mrf.mxu0
          %v3172 = vadd.f32 %v2597, %v3171
          %v3173 = vpop.f32.mrf.mxu0
          %v3174 = vadd.f32 %v2593, %v3173
          %v3175 = vpop.f32.mrf.mxu0
          %v3176 = vadd.f32 %v2597, %v3175
          %3177 = vmatprep.mubr.bf16.mxu0 0
          %3178 = vmatmul.mubr.bf16.gmra.mxu0 %v2501
          %v3179 = vpop.f32.mrf.mxu0
          %v3180 = vadd.f32 %v2593, %v3179
          %v3181 = vpop.f32.mrf.mxu0
          %v3182 = vadd.f32 %v2597, %v3181
          %v3183 = vpop.f32.mrf.mxu0
          %v3184 = vadd.f32 %v2593, %v3183
          %v3185 = vpop.f32.mrf.mxu0
          %v3186 = vadd.f32 %v2597, %v3185
          %3187 = vmatprep.mubr.bf16.mxu0 0
          %3188 = vmatmul.mubr.bf16.gmra.mxu0 %v2502
          %v3189 = vpop.f32.mrf.mxu0
          %v3190 = vadd.f32 %v2593, %v3189
          %v3191 = vpop.f32.mrf.mxu0
          %v3192 = vadd.f32 %v2597, %v3191
          %v3193 = vpop.f32.mrf.mxu0
          %v3194 = vadd.f32 %v2593, %v3193
          %v3195 = vpop.f32.mrf.mxu0
          %v3196 = vadd.f32 %v2597, %v3195
          %3197 = vmatprep.mubr.bf16.mxu0 0
          %3198 = vmatmul.mubr.bf16.gmra.mxu0 %v2503
          %v3199 = vpop.f32.mrf.mxu0
          %v3200 = vadd.f32 %v2593, %v3199
          %v3201 = vpop.f32.mrf.mxu0
          %v3202 = vadd.f32 %v2597, %v3201
          %v3203 = vpop.f32.mrf.mxu0
          %v3204 = vadd.f32 %v2593, %v3203
          %v3205 = vpop.f32.mrf.mxu0
          %v3206 = vadd.f32 %v2597, %v3205
          %3207 = vmatprep.mubr.bf16.mxu0 0
          %3208 = vmatmul.mubr.bf16.gmra.mxu0 %v2504
          %v3209 = vpop.f32.mrf.mxu0
          %v3210 = vadd.f32 %v2593, %v3209
          %v3211 = vpop.f32.mrf.mxu0
          %v3212 = vadd.f32 %v2597, %v3211
          %v3213 = vpop.f32.mrf.mxu0
          %v3214 = vadd.f32 %v2593, %v3213
          %v3215 = vpop.f32.mrf.mxu0
          %v3216 = vadd.f32 %v2597, %v3215
          %3217 = vmatprep.mubr.bf16.mxu0 0
          %3218 = vmatmul.mubr.bf16.gmra.mxu0 %v2505
          %v3219 = vpop.f32.mrf.mxu0
          %v3220 = vadd.f32 %v2593, %v3219
          %v3221 = vpop.f32.mrf.mxu0
          %v3222 = vadd.f32 %v2597, %v3221
          %v3223 = vpop.f32.mrf.mxu0
          %v3224 = vadd.f32 %v2593, %v3223
          %v3225 = vpop.f32.mrf.mxu0
          %v3226 = vadd.f32 %v2597, %v3225
          %3227 = vmatprep.mubr.bf16.mxu0 0
          %3228 = vmatmul.mubr.bf16.gmra.mxu0 %v2506
          %v3229 = vpop.f32.mrf.mxu0
          %v3230 = vadd.f32 %v2593, %v3229
          %v3231 = vpop.f32.mrf.mxu0
          %v3232 = vadd.f32 %v2597, %v3231
          %v3233 = vpop.f32.mrf.mxu0
          %v3234 = vadd.f32 %v2593, %v3233
          %v3235 = vpop.f32.mrf.mxu0
          %v3236 = vadd.f32 %v2597, %v3235
          %3237 = vmatprep.mubr.bf16.mxu0 0
          %3238 = vmatmul.mubr.bf16.gmra.mxu0 %v2507
          %v3239 = vpop.f32.mrf.mxu0
          %v3240 = vadd.f32 %v2593, %v3239
          %v3241 = vpop.f32.mrf.mxu0
          %v3242 = vadd.f32 %v2597, %v3241
          %v3243 = vpop.f32.mrf.mxu0
          %v3244 = vadd.f32 %v2593, %v3243
          %v3245 = vpop.f32.mrf.mxu0
          %v3246 = vadd.f32 %v2597, %v3245
          %3247 = vmatprep.mubr.bf16.mxu0 0
          %3248 = vmatmul.mubr.bf16.gmra.mxu0 %v2508
          %v3249 = vpop.f32.mrf.mxu0
          %v3250 = vadd.f32 %v2593, %v3249
          %v3251 = vpop.f32.mrf.mxu0
          %v3252 = vadd.f32 %v2597, %v3251
          %v3253 = vpop.f32.mrf.mxu0
          %v3254 = vadd.f32 %v2593, %v3253
          %v3255 = vpop.f32.mrf.mxu0
          %v3256 = vadd.f32 %v2597, %v3255
          %3257 = vmatprep.mubr.bf16.mxu0 0
          %3258 = vmatmul.mubr.bf16.gmra.mxu0 %v2509
          %v3259 = vpop.f32.mrf.mxu0
          %v3260 = vadd.f32 %v2593, %v3259
          %v3261 = vpop.f32.mrf.mxu0
          %v3262 = vadd.f32 %v2597, %v3261
          %v3263 = vpop.f32.mrf.mxu0
          %v3264 = vadd.f32 %v2593, %v3263
          %v3265 = vpop.f32.mrf.mxu0
          %v3266 = vadd.f32 %v2597, %v3265
          %3267 = vmatprep.mubr.bf16.mxu0 0
          %3268 = vmatmul.mubr.bf16.gmra.mxu0 %v2510
          %v3269 = vpop.f32.mrf.mxu0
          %v3270 = vadd.f32 %v2593, %v3269
          %v3271 = vpop.f32.mrf.mxu0
          %v3272 = vadd.f32 %v2597, %v3271
          %v3273 = vpop.f32.mrf.mxu0
          %v3274 = vadd.f32 %v2593, %v3273
          %v3275 = vpop.f32.mrf.mxu0
          %v3276 = vadd.f32 %v2597, %v3275
          %3277 = vmatprep.mubr.bf16.mxu0 0
          %3278 = vmatmul.mubr.bf16.gmra.mxu0 %v2511
          %v3279 = vpop.f32.mrf.mxu0
          %v3280 = vadd.f32 %v2593, %v3279
          %v3281 = vpop.f32.mrf.mxu0
          %v3282 = vadd.f32 %v2597, %v3281
          %v3283 = vpop.f32.mrf.mxu0
          %v3284 = vadd.f32 %v2593, %v3283
          %v3285 = vpop.f32.mrf.mxu0
          %v3286 = vadd.f32 %v2597, %v3285
          %3287 = vmatprep.mubr.bf16.mxu0 0
          %3288 = vmatmul.mubr.bf16.gmra.mxu0 %v2512
          %v3289 = vpop.f32.mrf.mxu0
          %v3290 = vadd.f32 %v2593, %v3289
          %v3291 = vpop.f32.mrf.mxu0
          %v3292 = vadd.f32 %v2597, %v3291
          %v3293 = vpop.f32.mrf.mxu0
          %v3294 = vadd.f32 %v2593, %v3293
          %v3295 = vpop.f32.mrf.mxu0
          %v3296 = vadd.f32 %v2597, %v3295
          %3297 = vmatprep.mubr.bf16.mxu0 0
          %3298 = vmatmul.mubr.bf16.gmra.mxu0 %v2513
          %v3299 = vpop.f32.mrf.mxu0
          %v3300 = vadd.f32 %v2593, %v3299
          %v3301 = vpop.f32.mrf.mxu0
          %v3302 = vadd.f32 %v2597, %v3301
          %v3303 = vpop.f32.mrf.mxu0
          %v3304 = vadd.f32 %v2593, %v3303
          %v3305 = vpop.f32.mrf.mxu0
          %v3306 = vadd.f32 %v2597, %v3305
          %3307 = vmatprep.mubr.bf16.mxu0 0
          %3308 = vmatmul.mubr.bf16.gmra.mxu0 %v2514
          %v3309 = vpop.f32.mrf.mxu0
          %v3310 = vadd.f32 %v2593, %v3309
          %v3311 = vpop.f32.mrf.mxu0
          %v3312 = vadd.f32 %v2597, %v3311
          %v3313 = vpop.f32.mrf.mxu0
          %v3314 = vadd.f32 %v2593, %v3313
          %v3315 = vpop.f32.mrf.mxu0
          %v3316 = vadd.f32 %v2597, %v3315
          %3317 = vmatprep.mubr.bf16.mxu0 0
          %3318 = vmatmul.mubr.bf16.gmra.mxu0 %v2515
          %v3319 = vpop.f32.mrf.mxu0
          %v3320 = vadd.f32 %v2593, %v3319
          %v3321 = vpop.f32.mrf.mxu0
          %v3322 = vadd.f32 %v2597, %v3321
          %v3323 = vpop.f32.mrf.mxu0
          %v3324 = vadd.f32 %v2593, %v3323
          %v3325 = vpop.f32.mrf.mxu0
          %v3326 = vadd.f32 %v2597, %v3325
          %3327 = vdwg.mxu0
          %3328 = vmatprep.subr.bf16.mxu0 %v2875
          %3329 = vmatpush1.bf16.msra.mxu0 %v2874
          %3330 = vmatprep.subr.bf16.mxu0 %v2867
          %3331 = vmatpush1.bf16.msra.mxu0 %v2866
          %3332 = vmatprep.subr.bf16.mxu0 %v2859
          %3333 = vmatpush1.bf16.msra.mxu0 %v2858
          %3334 = vmatprep.subr.bf16.mxu0 %v2851
          %3335 = vmatpush1.bf16.msra.mxu0 %v2850
          %3336 = vmatprep.subr.bf16.mxu0 %v2843
          %3337 = vmatpush1.bf16.msra.mxu0 %v2842
          %3338 = vmatprep.subr.bf16.mxu0 %v2835
          %3339 = vmatpush1.bf16.msra.mxu0 %v2834
          %3340 = vmatprep.subr.bf16.mxu0 %v2827
          %3341 = vmatpush1.bf16.msra.mxu0 %v2826
          %3342 = vmatprep.subr.bf16.mxu0 %v2819
          %3343 = vmatpush1.bf16.msra.mxu0 %v2818
          %3344 = vmatprep.subr.bf16.mxu0 0
          %3345 = vmatpush2.bf16.msra.mxu0 0
          %3346 = vmatprep.subr.bf16.mxu0 0
          %3347 = vmatpush2.bf16.msra.mxu0 0
          %3348 = vmatprep.subr.bf16.mxu0 0
          %3349 = vmatpush2.bf16.msra.mxu0 0
          %3350 = vmatprep.subr.bf16.mxu0 0
          %3351 = vmatpush2.bf16.msra.mxu0 0
          %3352 = vmatprep.subr.bf16.mxu0 0
          %3353 = vmatpush2.bf16.msra.mxu0 0
          %3354 = vmatprep.subr.bf16.mxu0 0
          %3355 = vmatpush2.bf16.msra.mxu0 0
          %3356 = vmatprep.subr.bf16.mxu0 0
          %3357 = vmatpush2.bf16.msra.mxu0 0
          %3358 = vmatprep.subr.bf16.mxu0 0
          %3359 = vmatpush2.bf16.msra.mxu0 0
          %3360 = vmatprep.mubr.bf16.mxu0 0
          %3361 = vmatmul.mubr.bf16.gmra.mxu0 %v2500
          %v3362 = vpop.f32.mrf.mxu0
          %v3363 = vadd.f32 %v2601, %v3362
          %v3364 = vpop.f32.mrf.mxu0
          %v3365 = vadd.f32 %v2605, %v3364
          %v3366 = vpop.f32.mrf.mxu0
          %v3367 = vadd.f32 %v2601, %v3366
          %v3368 = vpop.f32.mrf.mxu0
          %v3369 = vadd.f32 %v2605, %v3368
          %3370 = vmatprep.mubr.bf16.mxu0 0
          %3371 = vmatmul.mubr.bf16.gmra.mxu0 %v2501
          %v3372 = vpop.f32.mrf.mxu0
          %v3373 = vadd.f32 %v2601, %v3372
          %v3374 = vpop.f32.mrf.mxu0
          %v3375 = vadd.f32 %v2605, %v3374
          %v3376 = vpop.f32.mrf.mxu0
          %v3377 = vadd.f32 %v2601, %v3376
          %v3378 = vpop.f32.mrf.mxu0
          %v3379 = vadd.f32 %v2605, %v3378
          %3380 = vmatprep.mubr.bf16.mxu0 0
          %3381 = vmatmul.mubr.bf16.gmra.mxu0 %v2502
          %v3382 = vpop.f32.mrf.mxu0
          %v3383 = vadd.f32 %v2601, %v3382
          %v3384 = vpop.f32.mrf.mxu0
          %v3385 = vadd.f32 %v2605, %v3384
          %v3386 = vpop.f32.mrf.mxu0
          %v3387 = vadd.f32 %v2601, %v3386
          %v3388 = vpop.f32.mrf.mxu0
          %v3389 = vadd.f32 %v2605, %v3388
          %3390 = vmatprep.mubr.bf16.mxu0 0
          %3391 = vmatmul.mubr.bf16.gmra.mxu0 %v2503
          %v3392 = vpop.f32.mrf.mxu0
          %v3393 = vadd.f32 %v2601, %v3392
          %v3394 = vpop.f32.mrf.mxu0
          %v3395 = vadd.f32 %v2605, %v3394
          %v3396 = vpop.f32.mrf.mxu0
          %v3397 = vadd.f32 %v2601, %v3396
          %v3398 = vpop.f32.mrf.mxu0
          %v3399 = vadd.f32 %v2605, %v3398
          %3400 = vmatprep.mubr.bf16.mxu0 0
          %3401 = vmatmul.mubr.bf16.gmra.mxu0 %v2504
          %v3402 = vpop.f32.mrf.mxu0
          %v3403 = vadd.f32 %v2601, %v3402
          %v3404 = vpop.f32.mrf.mxu0
          %v3405 = vadd.f32 %v2605, %v3404
          %v3406 = vpop.f32.mrf.mxu0
          %v3407 = vadd.f32 %v2601, %v3406
          %v3408 = vpop.f32.mrf.mxu0
          %v3409 = vadd.f32 %v2605, %v3408
          %3410 = vmatprep.mubr.bf16.mxu0 0
          %3411 = vmatmul.mubr.bf16.gmra.mxu0 %v2505
          %v3412 = vpop.f32.mrf.mxu0
          %v3413 = vadd.f32 %v2601, %v3412
          %v3414 = vpop.f32.mrf.mxu0
          %v3415 = vadd.f32 %v2605, %v3414
          %v3416 = vpop.f32.mrf.mxu0
          %v3417 = vadd.f32 %v2601, %v3416
          %v3418 = vpop.f32.mrf.mxu0
          %v3419 = vadd.f32 %v2605, %v3418
          %3420 = vmatprep.mubr.bf16.mxu0 0
          %3421 = vmatmul.mubr.bf16.gmra.mxu0 %v2506
          %v3422 = vpop.f32.mrf.mxu0
          %v3423 = vadd.f32 %v2601, %v3422
          %v3424 = vpop.f32.mrf.mxu0
          %v3425 = vadd.f32 %v2605, %v3424
          %v3426 = vpop.f32.mrf.mxu0
          %v3427 = vadd.f32 %v2601, %v3426
          %v3428 = vpop.f32.mrf.mxu0
          %v3429 = vadd.f32 %v2605, %v3428
          %3430 = vmatprep.mubr.bf16.mxu0 0
          %3431 = vmatmul.mubr.bf16.gmra.mxu0 %v2507
          %v3432 = vpop.f32.mrf.mxu0
          %v3433 = vadd.f32 %v2601, %v3432
          %v3434 = vpop.f32.mrf.mxu0
          %v3435 = vadd.f32 %v2605, %v3434
          %v3436 = vpop.f32.mrf.mxu0
          %v3437 = vadd.f32 %v2601, %v3436
          %v3438 = vpop.f32.mrf.mxu0
          %v3439 = vadd.f32 %v2605, %v3438
          %3440 = vmatprep.mubr.bf16.mxu0 0
          %3441 = vmatmul.mubr.bf16.gmra.mxu0 %v2508
          %v3442 = vpop.f32.mrf.mxu0
          %v3443 = vadd.f32 %v2601, %v3442
          %v3444 = vpop.f32.mrf.mxu0
          %v3445 = vadd.f32 %v2605, %v3444
          %v3446 = vpop.f32.mrf.mxu0
          %v3447 = vadd.f32 %v2601, %v3446
          %v3448 = vpop.f32.mrf.mxu0
          %v3449 = vadd.f32 %v2605, %v3448
          %3450 = vmatprep.mubr.bf16.mxu0 0
          %3451 = vmatmul.mubr.bf16.gmra.mxu0 %v2509
          %v3452 = vpop.f32.mrf.mxu0
          %v3453 = vadd.f32 %v2601, %v3452
          %v3454 = vpop.f32.mrf.mxu0
          %v3455 = vadd.f32 %v2605, %v3454
          %v3456 = vpop.f32.mrf.mxu0
          %v3457 = vadd.f32 %v2601, %v3456
          %v3458 = vpop.f32.mrf.mxu0
          %v3459 = vadd.f32 %v2605, %v3458
          %3460 = vmatprep.mubr.bf16.mxu0 0
          %3461 = vmatmul.mubr.bf16.gmra.mxu0 %v2510
          %v3462 = vpop.f32.mrf.mxu0
          %v3463 = vadd.f32 %v2601, %v3462
          %v3464 = vpop.f32.mrf.mxu0
          %v3465 = vadd.f32 %v2605, %v3464
          %v3466 = vpop.f32.mrf.mxu0
          %v3467 = vadd.f32 %v2601, %v3466
          %v3468 = vpop.f32.mrf.mxu0
          %v3469 = vadd.f32 %v2605, %v3468
          %3470 = vmatprep.mubr.bf16.mxu0 0
          %3471 = vmatmul.mubr.bf16.gmra.mxu0 %v2511
          %v3472 = vpop.f32.mrf.mxu0
          %v3473 = vadd.f32 %v2601, %v3472
          %v3474 = vpop.f32.mrf.mxu0
          %v3475 = vadd.f32 %v2605, %v3474
          %v3476 = vpop.f32.mrf.mxu0
          %v3477 = vadd.f32 %v2601, %v3476
          %v3478 = vpop.f32.mrf.mxu0
          %v3479 = vadd.f32 %v2605, %v3478
          %3480 = vmatprep.mubr.bf16.mxu0 0
          %3481 = vmatmul.mubr.bf16.gmra.mxu0 %v2512
          %v3482 = vpop.f32.mrf.mxu0
          %v3483 = vadd.f32 %v2601, %v3482
          %v3484 = vpop.f32.mrf.mxu0
          %v3485 = vadd.f32 %v2605, %v3484
          %v3486 = vpop.f32.mrf.mxu0
          %v3487 = vadd.f32 %v2601, %v3486
          %v3488 = vpop.f32.mrf.mxu0
          %v3489 = vadd.f32 %v2605, %v3488
          %3490 = vmatprep.mubr.bf16.mxu0 0
          %3491 = vmatmul.mubr.bf16.gmra.mxu0 %v2513
          %v3492 = vpop.f32.mrf.mxu0
          %v3493 = vadd.f32 %v2601, %v3492
          %v3494 = vpop.f32.mrf.mxu0
          %v3495 = vadd.f32 %v2605, %v3494
          %v3496 = vpop.f32.mrf.mxu0
          %v3497 = vadd.f32 %v2601, %v3496
          %v3498 = vpop.f32.mrf.mxu0
          %v3499 = vadd.f32 %v2605, %v3498
          %3500 = vmatprep.mubr.bf16.mxu0 0
          %3501 = vmatmul.mubr.bf16.gmra.mxu0 %v2514
          %v3502 = vpop.f32.mrf.mxu0
          %v3503 = vadd.f32 %v2601, %v3502
          %v3504 = vpop.f32.mrf.mxu0
          %v3505 = vadd.f32 %v2605, %v3504
          %v3506 = vpop.f32.mrf.mxu0
          %v3507 = vadd.f32 %v2601, %v3506
          %v3508 = vpop.f32.mrf.mxu0
          %v3509 = vadd.f32 %v2605, %v3508
          %3510 = vmatprep.mubr.bf16.mxu0 0
          %3511 = vmatmul.mubr.bf16.gmra.mxu0 %v2515
          %v3512 = vpop.f32.mrf.mxu0
          %v3513 = vadd.f32 %v2601, %v3512
          %v3514 = vpop.f32.mrf.mxu0
          %v3515 = vadd.f32 %v2605, %v3514
          %v3516 = vpop.f32.mrf.mxu0
          %v3517 = vadd.f32 %v2601, %v3516
          %v3518 = vpop.f32.mrf.mxu0
          %v3519 = vadd.f32 %v2605, %v3518
          %3520 = vdwg.mxu0
          %3521 = vmatprep.subr.bf16.mxu0 %v2877
          %3522 = vmatpush1.bf16.msra.mxu0 %v2876
          %3523 = vmatprep.subr.bf16.mxu0 %v2869
          %3524 = vmatpush1.bf16.msra.mxu0 %v2868
          %3525 = vmatprep.subr.bf16.mxu0 %v2861
          %3526 = vmatpush1.bf16.msra.mxu0 %v2860
          %3527 = vmatprep.subr.bf16.mxu0 %v2853
          %3528 = vmatpush1.bf16.msra.mxu0 %v2852
          %3529 = vmatprep.subr.bf16.mxu0 %v2845
          %3530 = vmatpush1.bf16.msra.mxu0 %v2844
          %3531 = vmatprep.subr.bf16.mxu0 %v2837
          %3532 = vmatpush1.bf16.msra.mxu0 %v2836
          %3533 = vmatprep.subr.bf16.mxu0 %v2829
          %3534 = vmatpush1.bf16.msra.mxu0 %v2828
          %3535 = vmatprep.subr.bf16.mxu0 %v2821
          %3536 = vmatpush1.bf16.msra.mxu0 %v2820
          %3537 = vmatprep.subr.bf16.mxu0 0
          %3538 = vmatpush2.bf16.msra.mxu0 0
          %3539 = vmatprep.subr.bf16.mxu0 0
          %3540 = vmatpush2.bf16.msra.mxu0 0
          %3541 = vmatprep.subr.bf16.mxu0 0
          %3542 = vmatpush2.bf16.msra.mxu0 0
          %3543 = vmatprep.subr.bf16.mxu0 0
          %3544 = vmatpush2.bf16.msra.mxu0 0
          %3545 = vmatprep.subr.bf16.mxu0 0
          %3546 = vmatpush2.bf16.msra.mxu0 0
          %3547 = vmatprep.subr.bf16.mxu0 0
          %3548 = vmatpush2.bf16.msra.mxu0 0
          %3549 = vmatprep.subr.bf16.mxu0 0
          %3550 = vmatpush2.bf16.msra.mxu0 0
          %3551 = vmatprep.subr.bf16.mxu0 0
          %3552 = vmatpush2.bf16.msra.mxu0 0
          %3553 = vmatprep.mubr.bf16.mxu0 0
          %3554 = vmatmul.mubr.bf16.gmra.mxu0 %v2500
          %v3555 = vpop.f32.mrf.mxu0
          %v3556 = vadd.f32 %v2609, %v3555
          %v3557 = vpop.f32.mrf.mxu0
          %v3558 = vadd.f32 %v2613, %v3557
          %v3559 = vpop.f32.mrf.mxu0
          %v3560 = vadd.f32 %v2609, %v3559
          %v3561 = vpop.f32.mrf.mxu0
          %v3562 = vadd.f32 %v2613, %v3561
          %3563 = vmatprep.mubr.bf16.mxu0 0
          %3564 = vmatmul.mubr.bf16.gmra.mxu0 %v2501
          %v3565 = vpop.f32.mrf.mxu0
          %v3566 = vadd.f32 %v2609, %v3565
          %v3567 = vpop.f32.mrf.mxu0
          %v3568 = vadd.f32 %v2613, %v3567
          %v3569 = vpop.f32.mrf.mxu0
          %v3570 = vadd.f32 %v2609, %v3569
          %v3571 = vpop.f32.mrf.mxu0
          %v3572 = vadd.f32 %v2613, %v3571
          %3573 = vmatprep.mubr.bf16.mxu0 0
          %3574 = vmatmul.mubr.bf16.gmra.mxu0 %v2502
          %v3575 = vpop.f32.mrf.mxu0
          %v3576 = vadd.f32 %v2609, %v3575
          %v3577 = vpop.f32.mrf.mxu0
          %v3578 = vadd.f32 %v2613, %v3577
          %v3579 = vpop.f32.mrf.mxu0
          %v3580 = vadd.f32 %v2609, %v3579
          %v3581 = vpop.f32.mrf.mxu0
          %v3582 = vadd.f32 %v2613, %v3581
          %3583 = vmatprep.mubr.bf16.mxu0 0
          %3584 = vmatmul.mubr.bf16.gmra.mxu0 %v2503
          %v3585 = vpop.f32.mrf.mxu0
          %v3586 = vadd.f32 %v2609, %v3585
          %v3587 = vpop.f32.mrf.mxu0
          %v3588 = vadd.f32 %v2613, %v3587
          %v3589 = vpop.f32.mrf.mxu0
          %v3590 = vadd.f32 %v2609, %v3589
          %v3591 = vpop.f32.mrf.mxu0
          %v3592 = vadd.f32 %v2613, %v3591
          %3593 = vmatprep.mubr.bf16.mxu0 0
          %3594 = vmatmul.mubr.bf16.gmra.mxu0 %v2504
          %v3595 = vpop.f32.mrf.mxu0
          %v3596 = vadd.f32 %v2609, %v3595
          %v3597 = vpop.f32.mrf.mxu0
          %v3598 = vadd.f32 %v2613, %v3597
          %v3599 = vpop.f32.mrf.mxu0
          %v3600 = vadd.f32 %v2609, %v3599
          %v3601 = vpop.f32.mrf.mxu0
          %v3602 = vadd.f32 %v2613, %v3601
          %3603 = vmatprep.mubr.bf16.mxu0 0
          %3604 = vmatmul.mubr.bf16.gmra.mxu0 %v2505
          %v3605 = vpop.f32.mrf.mxu0
          %v3606 = vadd.f32 %v2609, %v3605
          %v3607 = vpop.f32.mrf.mxu0
          %v3608 = vadd.f32 %v2613, %v3607
          %v3609 = vpop.f32.mrf.mxu0
          %v3610 = vadd.f32 %v2609, %v3609
          %v3611 = vpop.f32.mrf.mxu0
          %v3612 = vadd.f32 %v2613, %v3611
          %3613 = vmatprep.mubr.bf16.mxu0 0
          %3614 = vmatmul.mubr.bf16.gmra.mxu0 %v2506
          %v3615 = vpop.f32.mrf.mxu0
          %v3616 = vadd.f32 %v2609, %v3615
          %v3617 = vpop.f32.mrf.mxu0
          %v3618 = vadd.f32 %v2613, %v3617
          %v3619 = vpop.f32.mrf.mxu0
          %v3620 = vadd.f32 %v2609, %v3619
          %v3621 = vpop.f32.mrf.mxu0
          %v3622 = vadd.f32 %v2613, %v3621
          %3623 = vmatprep.mubr.bf16.mxu0 0
          %3624 = vmatmul.mubr.bf16.gmra.mxu0 %v2507
          %v3625 = vpop.f32.mrf.mxu0
          %v3626 = vadd.f32 %v2609, %v3625
          %v3627 = vpop.f32.mrf.mxu0
          %v3628 = vadd.f32 %v2613, %v3627
          %v3629 = vpop.f32.mrf.mxu0
          %v3630 = vadd.f32 %v2609, %v3629
          %v3631 = vpop.f32.mrf.mxu0
          %v3632 = vadd.f32 %v2613, %v3631
          %3633 = vmatprep.mubr.bf16.mxu0 0
          %3634 = vmatmul.mubr.bf16.gmra.mxu0 %v2508
          %v3635 = vpop.f32.mrf.mxu0
          %v3636 = vadd.f32 %v2609, %v3635
          %v3637 = vpop.f32.mrf.mxu0
          %v3638 = vadd.f32 %v2613, %v3637
          %v3639 = vpop.f32.mrf.mxu0
          %v3640 = vadd.f32 %v2609, %v3639
          %v3641 = vpop.f32.mrf.mxu0
          %v3642 = vadd.f32 %v2613, %v3641
          %3643 = vmatprep.mubr.bf16.mxu0 0
          %3644 = vmatmul.mubr.bf16.gmra.mxu0 %v2509
          %v3645 = vpop.f32.mrf.mxu0
          %v3646 = vadd.f32 %v2609, %v3645
          %v3647 = vpop.f32.mrf.mxu0
          %v3648 = vadd.f32 %v2613, %v3647
          %v3649 = vpop.f32.mrf.mxu0
          %v3650 = vadd.f32 %v2609, %v3649
          %v3651 = vpop.f32.mrf.mxu0
          %v3652 = vadd.f32 %v2613, %v3651
          %3653 = vmatprep.mubr.bf16.mxu0 0
          %3654 = vmatmul.mubr.bf16.gmra.mxu0 %v2510
          %v3655 = vpop.f32.mrf.mxu0
          %v3656 = vadd.f32 %v2609, %v3655
          %v3657 = vpop.f32.mrf.mxu0
          %v3658 = vadd.f32 %v2613, %v3657
          %v3659 = vpop.f32.mrf.mxu0
          %v3660 = vadd.f32 %v2609, %v3659
          %v3661 = vpop.f32.mrf.mxu0
          %v3662 = vadd.f32 %v2613, %v3661
          %3663 = vmatprep.mubr.bf16.mxu0 0
          %3664 = vmatmul.mubr.bf16.gmra.mxu0 %v2511
          %v3665 = vpop.f32.mrf.mxu0
          %v3666 = vadd.f32 %v2609, %v3665
          %v3667 = vpop.f32.mrf.mxu0
          %v3668 = vadd.f32 %v2613, %v3667
          %v3669 = vpop.f32.mrf.mxu0
          %v3670 = vadd.f32 %v2609, %v3669
          %v3671 = vpop.f32.mrf.mxu0
          %v3672 = vadd.f32 %v2613, %v3671
          %3673 = vmatprep.mubr.bf16.mxu0 0
          %3674 = vmatmul.mubr.bf16.gmra.mxu0 %v2512
          %v3675 = vpop.f32.mrf.mxu0
          %v3676 = vadd.f32 %v2609, %v3675
          %v3677 = vpop.f32.mrf.mxu0
          %v3678 = vadd.f32 %v2613, %v3677
          %v3679 = vpop.f32.mrf.mxu0
          %v3680 = vadd.f32 %v2609, %v3679
          %v3681 = vpop.f32.mrf.mxu0
          %v3682 = vadd.f32 %v2613, %v3681
          %3683 = vmatprep.mubr.bf16.mxu0 0
          %3684 = vmatmul.mubr.bf16.gmra.mxu0 %v2513
          %v3685 = vpop.f32.mrf.mxu0
          %v3686 = vadd.f32 %v2609, %v3685
          %v3687 = vpop.f32.mrf.mxu0
          %v3688 = vadd.f32 %v2613, %v3687
          %v3689 = vpop.f32.mrf.mxu0
          %v3690 = vadd.f32 %v2609, %v3689
          %v3691 = vpop.f32.mrf.mxu0
          %v3692 = vadd.f32 %v2613, %v3691
          %3693 = vmatprep.mubr.bf16.mxu0 0
          %3694 = vmatmul.mubr.bf16.gmra.mxu0 %v2514
          %v3695 = vpop.f32.mrf.mxu0
          %v3696 = vadd.f32 %v2609, %v3695
          %v3697 = vpop.f32.mrf.mxu0
          %v3698 = vadd.f32 %v2613, %v3697
          %v3699 = vpop.f32.mrf.mxu0
          %v3700 = vadd.f32 %v2609, %v3699
          %v3701 = vpop.f32.mrf.mxu0
          %v3702 = vadd.f32 %v2613, %v3701
          %3703 = vmatprep.mubr.bf16.mxu0 0
          %3704 = vmatmul.mubr.bf16.gmra.mxu0 %v2515
          %v3705 = vpop.f32.mrf.mxu0
          %v3706 = vadd.f32 %v2609, %v3705
          %v3707 = vpop.f32.mrf.mxu0
          %v3708 = vadd.f32 %v2613, %v3707
          %v3709 = vpop.f32.mrf.mxu0
          %v3710 = vadd.f32 %v2609, %v3709
          %v3711 = vpop.f32.mrf.mxu0
          %v3712 = vadd.f32 %v2613, %v3711
          %3713 = vdwg.mxu0
          %v3714 = vld [vmem:[#allocation6] sm:$0xff]
          %v3715 = vld [vmem:[#allocation6 + $0x8] sm:$0xff]
          %v3716 = vld [vmem:[#allocation6 + $0x10] sm:$0xff]
          %v3717 = vld [vmem:[#allocation6 + $0x18] sm:$0xff]
          %v3718 = vld [vmem:[#allocation6 + $0x20] sm:$0xff]
          %v3719 = vld [vmem:[#allocation6 + $0x28] sm:$0xff]
          %v3720 = vld [vmem:[#allocation6 + $0x30] sm:$0xff]
          %v3721 = vld [vmem:[#allocation6 + $0x38] sm:$0xff]
          %v3722 = vadd.f32 %v2977, %v2981
          %v3723 = vadd.f32 %v3722, %v2987
          %v3724 = vadd.f32 %v3723, %v2991
          %v3725 = vadd.f32 %v3724, %v2997
          %v3726 = vadd.f32 %v3725, %v3001
          %v3727 = vadd.f32 %v3726, %v3007
          %v3728 = vadd.f32 %v3727, %v3011
          %v3729 = vadd.f32 %v3728, %v3017
          %v3730 = vadd.f32 %v3729, %v3021
          %v3731 = vadd.f32 %v3730, %v3027
          %v3732 = vadd.f32 %v3731, %v3031
          %v3733 = vadd.f32 %v3732, %v3037
          %v3734 = vadd.f32 %v3733, %v3041
          %v3735 = vadd.f32 %v3734, %v3047
          %v3736 = vadd.f32 %v3735, %v3051
          %v3737 = vadd.f32 %v3736, %v3057
          %v3738 = vadd.f32 %v3737, %v3061
          %v3739 = vadd.f32 %v3738, %v3067
          %v3740 = vadd.f32 %v3739, %v3071
          %v3741 = vadd.f32 %v3740, %v3077
          %v3742 = vadd.f32 %v3741, %v3081
          %v3743 = vadd.f32 %v3742, %v3087
          %v3744 = vadd.f32 %v3743, %v3091
          %v3745 = vadd.f32 %v3744, %v3097
          %v3746 = vadd.f32 %v3745, %v3101
          %v3747 = vadd.f32 %v3746, %v3107
          %v3748 = vadd.f32 %v3747, %v3111
          %v3749 = vadd.f32 %v3748, %v3117
          %v3750 = vadd.f32 %v3749, %v3121
          %v3751 = vadd.f32 %v3750, %v3127
          %v3752 = vadd.f32 %v3751, %v3131
          %v3753 = vadd.f32 %v2979, %v2983
          %v3754 = vadd.f32 %v3753, %v2989
          %v3755 = vadd.f32 %v3754, %v2993
          %v3756 = vadd.f32 %v3755, %v2999
          %v3757 = vadd.f32 %v3756, %v3003
          %v3758 = vadd.f32 %v3757, %v3009
          %v3759 = vadd.f32 %v3758, %v3013
          %v3760 = vadd.f32 %v3759, %v3019
          %v3761 = vadd.f32 %v3760, %v3023
          %v3762 = vadd.f32 %v3761, %v3029
          %v3763 = vadd.f32 %v3762, %v3033
          %v3764 = vadd.f32 %v3763, %v3039
          %v3765 = vadd.f32 %v3764, %v3043
          %v3766 = vadd.f32 %v3765, %v3049
          %v3767 = vadd.f32 %v3766, %v3053
          %v3768 = vadd.f32 %v3767, %v3059
          %v3769 = vadd.f32 %v3768, %v3063
          %v3770 = vadd.f32 %v3769, %v3069
          %v3771 = vadd.f32 %v3770, %v3073
          %v3772 = vadd.f32 %v3771, %v3079
          %v3773 = vadd.f32 %v3772, %v3083
          %v3774 = vadd.f32 %v3773, %v3089
          %v3775 = vadd.f32 %v3774, %v3093
          %v3776 = vadd.f32 %v3775, %v3099
          %v3777 = vadd.f32 %v3776, %v3103
          %v3778 = vadd.f32 %v3777, %v3109
          %v3779 = vadd.f32 %v3778, %v3113
          %v3780 = vadd.f32 %v3779, %v3119
          %v3781 = vadd.f32 %v3780, %v3123
          %v3782 = vadd.f32 %v3781, %v3129
          %v3783 = vadd.f32 %v3782, %v3133
          %v3784 = vadd.f32 %v3170, %v3174
          %v3785 = vadd.f32 %v3784, %v3180
          %v3786 = vadd.f32 %v3785, %v3184
          %v3787 = vadd.f32 %v3786, %v3190
          %v3788 = vadd.f32 %v3787, %v3194
          %v3789 = vadd.f32 %v3788, %v3200
          %v3790 = vadd.f32 %v3789, %v3204
          %v3791 = vadd.f32 %v3790, %v3210
          %v3792 = vadd.f32 %v3791, %v3214
          %v3793 = vadd.f32 %v3792, %v3220
          %v3794 = vadd.f32 %v3793, %v3224
          %v3795 = vadd.f32 %v3794, %v3230
          %v3796 = vadd.f32 %v3795, %v3234
          %v3797 = vadd.f32 %v3796, %v3240
          %v3798 = vadd.f32 %v3797, %v3244
          %v3799 = vadd.f32 %v3798, %v3250
          %v3800 = vadd.f32 %v3799, %v3254
          %v3801 = vadd.f32 %v3800, %v3260
          %v3802 = vadd.f32 %v3801, %v3264
          %v3803 = vadd.f32 %v3802, %v3270
          %v3804 = vadd.f32 %v3803, %v3274
          %v3805 = vadd.f32 %v3804, %v3280
          %v3806 = vadd.f32 %v3805, %v3284
          %v3807 = vadd.f32 %v3806, %v3290
          %v3808 = vadd.f32 %v3807, %v3294
          %v3809 = vadd.f32 %v3808, %v3300
          %v3810 = vadd.f32 %v3809, %v3304
          %v3811 = vadd.f32 %v3810, %v3310
          %v3812 = vadd.f32 %v3811, %v3314
          %v3813 = vadd.f32 %v3812, %v3320
          %v3814 = vadd.f32 %v3813, %v3324
          %v3815 = vadd.f32 %v3172, %v3176
          %v3816 = vadd.f32 %v3815, %v3182
          %v3817 = vadd.f32 %v3816, %v3186
          %v3818 = vadd.f32 %v3817, %v3192
          %v3819 = vadd.f32 %v3818, %v3196
          %v3820 = vadd.f32 %v3819, %v3202
          %v3821 = vadd.f32 %v3820, %v3206
          %v3822 = vadd.f32 %v3821, %v3212
          %v3823 = vadd.f32 %v3822, %v3216
          %v3824 = vadd.f32 %v3823, %v3222
          %v3825 = vadd.f32 %v3824, %v3226
          %v3826 = vadd.f32 %v3825, %v3232
          %v3827 = vadd.f32 %v3826, %v3236
          %v3828 = vadd.f32 %v3827, %v3242
          %v3829 = vadd.f32 %v3828, %v3246
          %v3830 = vadd.f32 %v3829, %v3252
          %v3831 = vadd.f32 %v3830, %v3256
          %v3832 = vadd.f32 %v3831, %v3262
          %v3833 = vadd.f32 %v3832, %v3266
          %v3834 = vadd.f32 %v3833, %v3272
          %v3835 = vadd.f32 %v3834, %v3276
          %v3836 = vadd.f32 %v3835, %v3282
          %v3837 = vadd.f32 %v3836, %v3286
          %v3838 = vadd.f32 %v3837, %v3292
          %v3839 = vadd.f32 %v3838, %v3296
          %v3840 = vadd.f32 %v3839, %v3302
          %v3841 = vadd.f32 %v3840, %v3306
          %v3842 = vadd.f32 %v3841, %v3312
          %v3843 = vadd.f32 %v3842, %v3316
          %v3844 = vadd.f32 %v3843, %v3322
          %v3845 = vadd.f32 %v3844, %v3326
          %v3846 = vadd.f32 %v3363, %v3367
          %v3847 = vadd.f32 %v3846, %v3373
          %v3848 = vadd.f32 %v3847, %v3377
          %v3849 = vadd.f32 %v3848, %v3383
          %v3850 = vadd.f32 %v3849, %v3387
          %v3851 = vadd.f32 %v3850, %v3393
          %v3852 = vadd.f32 %v3851, %v3397
          %v3853 = vadd.f32 %v3852, %v3403
          %v3854 = vadd.f32 %v3853, %v3407
          %v3855 = vadd.f32 %v3854, %v3413
          %v3856 = vadd.f32 %v3855, %v3417
          %v3857 = vadd.f32 %v3856, %v3423
          %v3858 = vadd.f32 %v3857, %v3427
          %v3859 = vadd.f32 %v3858, %v3433
          %v3860 = vadd.f32 %v3859, %v3437
          %v3861 = vadd.f32 %v3860, %v3443
          %v3862 = vadd.f32 %v3861, %v3447
          %v3863 = vadd.f32 %v3862, %v3453
          %v3864 = vadd.f32 %v3863, %v3457
          %v3865 = vadd.f32 %v3864, %v3463
          %v3866 = vadd.f32 %v3865, %v3467
          %v3867 = vadd.f32 %v3866, %v3473
          %v3868 = vadd.f32 %v3867, %v3477
          %v3869 = vadd.f32 %v3868, %v3483
          %v3870 = vadd.f32 %v3869, %v3487
          %v3871 = vadd.f32 %v3870, %v3493
          %v3872 = vadd.f32 %v3871, %v3497
          %v3873 = vadd.f32 %v3872, %v3503
          %v3874 = vadd.f32 %v3873, %v3507
          %v3875 = vadd.f32 %v3874, %v3513
          %v3876 = vadd.f32 %v3875, %v3517
          %v3877 = vadd.f32 %v3365, %v3369
          %v3878 = vadd.f32 %v3877, %v3375
          %v3879 = vadd.f32 %v3878, %v3379
          %v3880 = vadd.f32 %v3879, %v3385
          %v3881 = vadd.f32 %v3880, %v3389
          %v3882 = vadd.f32 %v3881, %v3395
          %v3883 = vadd.f32 %v3882, %v3399
          %v3884 = vadd.f32 %v3883, %v3405
          %v3885 = vadd.f32 %v3884, %v3409
          %v3886 = vadd.f32 %v3885, %v3415
          %v3887 = vadd.f32 %v3886, %v3419
          %v3888 = vadd.f32 %v3887, %v3425
          %v3889 = vadd.f32 %v3888, %v3429
          %v3890 = vadd.f32 %v3889, %v3435
          %v3891 = vadd.f32 %v3890, %v3439
          %v3892 = vadd.f32 %v3891, %v3445
          %v3893 = vadd.f32 %v3892, %v3449
          %v3894 = vadd.f32 %v3893, %v3455
          %v3895 = vadd.f32 %v3894, %v3459
          %v3896 = vadd.f32 %v3895, %v3465
          %v3897 = vadd.f32 %v3896, %v3469
          %v3898 = vadd.f32 %v3897, %v3475
          %v3899 = vadd.f32 %v3898, %v3479
          %v3900 = vadd.f32 %v3899, %v3485
          %v3901 = vadd.f32 %v3900, %v3489
          %v3902 = vadd.f32 %v3901, %v3495
          %v3903 = vadd.f32 %v3902, %v3499
          %v3904 = vadd.f32 %v3903, %v3505
          %v3905 = vadd.f32 %v3904, %v3509
          %v3906 = vadd.f32 %v3905, %v3515
          %v3907 = vadd.f32 %v3906, %v3519
          %v3908 = vadd.f32 %v3556, %v3560
          %v3909 = vadd.f32 %v3908, %v3566
          %v3910 = vadd.f32 %v3909, %v3570
          %v3911 = vadd.f32 %v3910, %v3576
          %v3912 = vadd.f32 %v3911, %v3580
          %v3913 = vadd.f32 %v3912, %v3586
          %v3914 = vadd.f32 %v3913, %v3590
          %v3915 = vadd.f32 %v3914, %v3596
          %v3916 = vadd.f32 %v3915, %v3600
          %v3917 = vadd.f32 %v3916, %v3606
          %v3918 = vadd.f32 %v3917, %v3610
          %v3919 = vadd.f32 %v3918, %v3616
          %v3920 = vadd.f32 %v3919, %v3620
          %v3921 = vadd.f32 %v3920, %v3626
          %v3922 = vadd.f32 %v3921, %v3630
          %v3923 = vadd.f32 %v3922, %v3636
          %v3924 = vadd.f32 %v3923, %v3640
          %v3925 = vadd.f32 %v3924, %v3646
          %v3926 = vadd.f32 %v3925, %v3650
          %v3927 = vadd.f32 %v3926, %v3656
          %v3928 = vadd.f32 %v3927, %v3660
          %v3929 = vadd.f32 %v3928, %v3666
          %v3930 = vadd.f32 %v3929, %v3670
          %v3931 = vadd.f32 %v3930, %v3676
          %v3932 = vadd.f32 %v3931, %v3680
          %v3933 = vadd.f32 %v3932, %v3686
          %v3934 = vadd.f32 %v3933, %v3690
          %v3935 = vadd.f32 %v3934, %v3696
          %v3936 = vadd.f32 %v3935, %v3700
          %v3937 = vadd.f32 %v3936, %v3706
          %v3938 = vadd.f32 %v3937, %v3710
          %v3939 = vadd.f32 %v3558, %v3562
          %v3940 = vadd.f32 %v3939, %v3568
          %v3941 = vadd.f32 %v3940, %v3572
          %v3942 = vadd.f32 %v3941, %v3578
          %v3943 = vadd.f32 %v3942, %v3582
          %v3944 = vadd.f32 %v3943, %v3588
          %v3945 = vadd.f32 %v3944, %v3592
          %v3946 = vadd.f32 %v3945, %v3598
          %v3947 = vadd.f32 %v3946, %v3602
          %v3948 = vadd.f32 %v3947, %v3608
          %v3949 = vadd.f32 %v3948, %v3612
          %v3950 = vadd.f32 %v3949, %v3618
          %v3951 = vadd.f32 %v3950, %v3622
          %v3952 = vadd.f32 %v3951, %v3628
          %v3953 = vadd.f32 %v3952, %v3632
          %v3954 = vadd.f32 %v3953, %v3638
          %v3955 = vadd.f32 %v3954, %v3642
          %v3956 = vadd.f32 %v3955, %v3648
          %v3957 = vadd.f32 %v3956, %v3652
          %v3958 = vadd.f32 %v3957, %v3658
          %v3959 = vadd.f32 %v3958, %v3662
          %v3960 = vadd.f32 %v3959, %v3668
          %v3961 = vadd.f32 %v3960, %v3672
          %v3962 = vadd.f32 %v3961, %v3678
          %v3963 = vadd.f32 %v3962, %v3682
          %v3964 = vadd.f32 %v3963, %v3688
          %v3965 = vadd.f32 %v3964, %v3692
          %v3966 = vadd.f32 %v3965, %v3698
          %v3967 = vadd.f32 %v3966, %v3702
          %v3968 = vadd.f32 %v3967, %v3708
          %v3969 = vadd.f32 %v3968, %v3712
          %v3970 = vadd.f32 %v3714, %v3752
          %v3971 = vadd.f32 %v3715, %v3783
          %v3972 = vadd.f32 %v3716, %v3814
          %v3973 = vadd.f32 %v3717, %v3845
          %v3974 = vadd.f32 %v3718, %v3876
          %v3975 = vadd.f32 %v3719, %v3907
          %v3976 = vadd.f32 %v3720, %v3938
          %v3977 = vadd.f32 %v3721, %v3969
          %3978 = vst [vmem:[#allocation6] sm:$0xff] %v3970
          %3979 = vst [vmem:[#allocation6 + $0x8] sm:$0xff] %v3971
          %3980 = vst [vmem:[#allocation6 + $0x10] sm:$0xff] %v3972
          %3981 = vst [vmem:[#allocation6 + $0x18] sm:$0xff] %v3973
          %3982 = vst [vmem:[#allocation6 + $0x20] sm:$0xff] %v3974
          %3983 = vst [vmem:[#allocation6 + $0x28] sm:$0xff] %v3975
          %3984 = vst [vmem:[#allocation6 + $0x30] sm:$0xff] %v3976
          %3985 = vst [vmem:[#allocation6 + $0x38] sm:$0xff] %v3977
          %v3986 = vld [vmem:[#allocation7] sm:$0xff]
          %v3987 = vld [vmem:[#allocation7 + $0x8] sm:$0xff]
          %v3988 = vld [vmem:[#allocation7 + $0x10] sm:$0xff]
          %v3989 = vld [vmem:[#allocation7 + $0x18] sm:$0xff]
          %v3990 = vld [vmem:[#allocation7 + $0x20] sm:$0xff]
          %v3991 = vld [vmem:[#allocation7 + $0x28] sm:$0xff]
          %v3992 = vld [vmem:[#allocation7 + $0x30] sm:$0xff]
          %v3993 = vld [vmem:[#allocation7 + $0x38] sm:$0xff]
          %v3994 = vmul.f32 %v2977, %v2977
          %v3995 = vmul.f32 %v2979, %v2979
          %v3996 = vmul.f32 %v3170, %v3170
          %v3997 = vmul.f32 %v3172, %v3172
          %v3998 = vmul.f32 %v3363, %v3363
          %v3999 = vmul.f32 %v3365, %v3365
          %v4000 = vmul.f32 %v3556, %v3556
          %v4001 = vmul.f32 %v3558, %v3558
          %v4002 = vmul.f32 %v2981, %v2981
          %v4003 = vmul.f32 %v2983, %v2983
          %v4004 = vmul.f32 %v3174, %v3174
          %v4005 = vmul.f32 %v3176, %v3176
          %v4006 = vmul.f32 %v3367, %v3367
          %v4007 = vmul.f32 %v3369, %v3369
          %v4008 = vmul.f32 %v3560, %v3560
          %v4009 = vmul.f32 %v3562, %v3562
          %v4010 = vmul.f32 %v2987, %v2987
          %v4011 = vmul.f32 %v2989, %v2989
          %v4012 = vmul.f32 %v3180, %v3180
          %v4013 = vmul.f32 %v3182, %v3182
          %v4014 = vmul.f32 %v3373, %v3373
          %v4015 = vmul.f32 %v3375, %v3375
          %v4016 = vmul.f32 %v3566, %v3566
          %v4017 = vmul.f32 %v3568, %v3568
          %v4018 = vmul.f32 %v2991, %v2991
          %v4019 = vmul.f32 %v2993, %v2993
          %v4020 = vmul.f32 %v3184, %v3184
          %v4021 = vmul.f32 %v3186, %v3186
          %v4022 = vmul.f32 %v3377, %v3377
          %v4023 = vmul.f32 %v3379, %v3379
          %v4024 = vmul.f32 %v3570, %v3570
          %v4025 = vmul.f32 %v3572, %v3572
          %v4026 = vmul.f32 %v2997, %v2997
          %v4027 = vmul.f32 %v2999, %v2999
          %v4028 = vmul.f32 %v3190, %v3190
          %v4029 = vmul.f32 %v3192, %v3192
          %v4030 = vmul.f32 %v3383, %v3383
          %v4031 = vmul.f32 %v3385, %v3385
          %v4032 = vmul.f32 %v3576, %v3576
          %v4033 = vmul.f32 %v3578, %v3578
          %v4034 = vmul.f32 %v3001, %v3001
          %v4035 = vmul.f32 %v3003, %v3003
          %v4036 = vmul.f32 %v3194, %v3194
          %v4037 = vmul.f32 %v3196, %v3196
          %v4038 = vmul.f32 %v3387, %v3387
          %v4039 = vmul.f32 %v3389, %v3389
          %v4040 = vmul.f32 %v3580, %v3580
          %v4041 = vmul.f32 %v3582, %v3582
          %v4042 = vmul.f32 %v3007, %v3007
          %v4043 = vmul.f32 %v3009, %v3009
          %v4044 = vmul.f32 %v3200, %v3200
          %v4045 = vmul.f32 %v3202, %v3202
          %v4046 = vmul.f32 %v3393, %v3393
          %v4047 = vmul.f32 %v3395, %v3395
          %v4048 = vmul.f32 %v3586, %v3586
          %v4049 = vmul.f32 %v3588, %v3588
          %v4050 = vmul.f32 %v3011, %v3011
          %v4051 = vmul.f32 %v3013, %v3013
          %v4052 = vmul.f32 %v3204, %v3204
          %v4053 = vmul.f32 %v3206, %v3206
          %v4054 = vmul.f32 %v3397, %v3397
          %v4055 = vmul.f32 %v3399, %v3399
          %v4056 = vmul.f32 %v3590, %v3590
          %v4057 = vmul.f32 %v3592, %v3592
          %v4058 = vmul.f32 %v3017, %v3017
          %v4059 = vmul.f32 %v3019, %v3019
          %v4060 = vmul.f32 %v3210, %v3210
          %v4061 = vmul.f32 %v3212, %v3212
          %v4062 = vmul.f32 %v3403, %v3403
          %v4063 = vmul.f32 %v3405, %v3405
          %v4064 = vmul.f32 %v3596, %v3596
          %v4065 = vmul.f32 %v3598, %v3598
          %v4066 = vmul.f32 %v3021, %v3021
          %v4067 = vmul.f32 %v3023, %v3023
          %v4068 = vmul.f32 %v3214, %v3214
          %v4069 = vmul.f32 %v3216, %v3216
          %v4070 = vmul.f32 %v3407, %v3407
          %v4071 = vmul.f32 %v3409, %v3409
          %v4072 = vmul.f32 %v3600, %v3600
          %v4073 = vmul.f32 %v3602, %v3602
          %v4074 = vmul.f32 %v3027, %v3027
          %v4075 = vmul.f32 %v3029, %v3029
          %v4076 = vmul.f32 %v3220, %v3220
          %v4077 = vmul.f32 %v3222, %v3222
          %v4078 = vmul.f32 %v3413, %v3413
          %v4079 = vmul.f32 %v3415, %v3415
          %v4080 = vmul.f32 %v3606, %v3606
          %v4081 = vmul.f32 %v3608, %v3608
          %v4082 = vmul.f32 %v3031, %v3031
          %v4083 = vmul.f32 %v3033, %v3033
          %v4084 = vmul.f32 %v3224, %v3224
          %v4085 = vmul.f32 %v3226, %v3226
          %v4086 = vmul.f32 %v3417, %v3417
          %v4087 = vmul.f32 %v3419, %v3419
          %v4088 = vmul.f32 %v3610, %v3610
          %v4089 = vmul.f32 %v3612, %v3612
          %v4090 = vmul.f32 %v3037, %v3037
          %v4091 = vmul.f32 %v3039, %v3039
          %v4092 = vmul.f32 %v3230, %v3230
          %v4093 = vmul.f32 %v3232, %v3232
          %v4094 = vmul.f32 %v3423, %v3423
          %v4095 = vmul.f32 %v3425, %v3425
          %v4096 = vmul.f32 %v3616, %v3616
          %v4097 = vmul.f32 %v3618, %v3618
          %v4098 = vmul.f32 %v3041, %v3041
          %v4099 = vmul.f32 %v3043, %v3043
          %v4100 = vmul.f32 %v3234, %v3234
          %v4101 = vmul.f32 %v3236, %v3236
          %v4102 = vmul.f32 %v3427, %v3427
          %v4103 = vmul.f32 %v3429, %v3429
          %v4104 = vmul.f32 %v3620, %v3620
          %v4105 = vmul.f32 %v3622, %v3622
          %v4106 = vmul.f32 %v3047, %v3047
          %v4107 = vmul.f32 %v3049, %v3049
          %v4108 = vmul.f32 %v3240, %v3240
          %v4109 = vmul.f32 %v3242, %v3242
          %v4110 = vmul.f32 %v3433, %v3433
          %v4111 = vmul.f32 %v3435, %v3435
          %v4112 = vmul.f32 %v3626, %v3626
          %v4113 = vmul.f32 %v3628, %v3628
          %v4114 = vmul.f32 %v3051, %v3051
          %v4115 = vmul.f32 %v3053, %v3053
          %v4116 = vmul.f32 %v3244, %v3244
          %v4117 = vmul.f32 %v3246, %v3246
          %v4118 = vmul.f32 %v3437, %v3437
          %v4119 = vmul.f32 %v3439, %v3439
          %v4120 = vmul.f32 %v3630, %v3630
          %v4121 = vmul.f32 %v3632, %v3632
          %v4122 = vmul.f32 %v3057, %v3057
          %v4123 = vmul.f32 %v3059, %v3059
          %v4124 = vmul.f32 %v3250, %v3250
          %v4125 = vmul.f32 %v3252, %v3252
          %v4126 = vmul.f32 %v3443, %v3443
          %v4127 = vmul.f32 %v3445, %v3445
          %v4128 = vmul.f32 %v3636, %v3636
          %v4129 = vmul.f32 %v3638, %v3638
          %v4130 = vmul.f32 %v3061, %v3061
          %v4131 = vmul.f32 %v3063, %v3063
          %v4132 = vmul.f32 %v3254, %v3254
          %v4133 = vmul.f32 %v3256, %v3256
          %v4134 = vmul.f32 %v3447, %v3447
          %v4135 = vmul.f32 %v3449, %v3449
          %v4136 = vmul.f32 %v3640, %v3640
          %v4137 = vmul.f32 %v3642, %v3642
          %v4138 = vmul.f32 %v3067, %v3067
          %v4139 = vmul.f32 %v3069, %v3069
          %v4140 = vmul.f32 %v3260, %v3260
          %v4141 = vmul.f32 %v3262, %v3262
          %v4142 = vmul.f32 %v3453, %v3453
          %v4143 = vmul.f32 %v3455, %v3455
          %v4144 = vmul.f32 %v3646, %v3646
          %v4145 = vmul.f32 %v3648, %v3648
          %v4146 = vmul.f32 %v3071, %v3071
          %v4147 = vmul.f32 %v3073, %v3073
          %v4148 = vmul.f32 %v3264, %v3264
          %v4149 = vmul.f32 %v3266, %v3266
          %v4150 = vmul.f32 %v3457, %v3457
          %v4151 = vmul.f32 %v3459, %v3459
          %v4152 = vmul.f32 %v3650, %v3650
          %v4153 = vmul.f32 %v3652, %v3652
          %v4154 = vmul.f32 %v3077, %v3077
          %v4155 = vmul.f32 %v3079, %v3079
          %v4156 = vmul.f32 %v3270, %v3270
          %v4157 = vmul.f32 %v3272, %v3272
          %v4158 = vmul.f32 %v3463, %v3463
          %v4159 = vmul.f32 %v3465, %v3465
          %v4160 = vmul.f32 %v3656, %v3656
          %v4161 = vmul.f32 %v3658, %v3658
          %v4162 = vmul.f32 %v3081, %v3081
          %v4163 = vmul.f32 %v3083, %v3083
          %v4164 = vmul.f32 %v3274, %v3274
          %v4165 = vmul.f32 %v3276, %v3276
          %v4166 = vmul.f32 %v3467, %v3467
          %v4167 = vmul.f32 %v3469, %v3469
          %v4168 = vmul.f32 %v3660, %v3660
          %v4169 = vmul.f32 %v3662, %v3662
          %v4170 = vmul.f32 %v3087, %v3087
          %v4171 = vmul.f32 %v3089, %v3089
          %v4172 = vmul.f32 %v3280, %v3280
          %v4173 = vmul.f32 %v3282, %v3282
          %v4174 = vmul.f32 %v3473, %v3473
          %v4175 = vmul.f32 %v3475, %v3475
          %v4176 = vmul.f32 %v3666, %v3666
          %v4177 = vmul.f32 %v3668, %v3668
          %v4178 = vmul.f32 %v3091, %v3091
          %v4179 = vmul.f32 %v3093, %v3093
          %v4180 = vmul.f32 %v3284, %v3284
          %v4181 = vmul.f32 %v3286, %v3286
          %v4182 = vmul.f32 %v3477, %v3477
          %v4183 = vmul.f32 %v3479, %v3479
          %v4184 = vmul.f32 %v3670, %v3670
          %v4185 = vmul.f32 %v3672, %v3672
          %v4186 = vmul.f32 %v3097, %v3097
          %v4187 = vmul.f32 %v3099, %v3099
          %v4188 = vmul.f32 %v3290, %v3290
          %v4189 = vmul.f32 %v3292, %v3292
          %v4190 = vmul.f32 %v3483, %v3483
          %v4191 = vmul.f32 %v3485, %v3485
          %v4192 = vmul.f32 %v3676, %v3676
          %v4193 = vmul.f32 %v3678, %v3678
          %v4194 = vmul.f32 %v3101, %v3101
          %v4195 = vmul.f32 %v3103, %v3103
          %v4196 = vmul.f32 %v3294, %v3294
          %v4197 = vmul.f32 %v3296, %v3296
          %v4198 = vmul.f32 %v3487, %v3487
          %v4199 = vmul.f32 %v3489, %v3489
          %v4200 = vmul.f32 %v3680, %v3680
          %v4201 = vmul.f32 %v3682, %v3682
          %v4202 = vmul.f32 %v3107, %v3107
          %v4203 = vmul.f32 %v3109, %v3109
          %v4204 = vmul.f32 %v3300, %v3300
          %v4205 = vmul.f32 %v3302, %v3302
          %v4206 = vmul.f32 %v3493, %v3493
          %v4207 = vmul.f32 %v3495, %v3495
          %v4208 = vmul.f32 %v3686, %v3686
          %v4209 = vmul.f32 %v3688, %v3688
          %v4210 = vmul.f32 %v3111, %v3111
          %v4211 = vmul.f32 %v3113, %v3113
          %v4212 = vmul.f32 %v3304, %v3304
          %v4213 = vmul.f32 %v3306, %v3306
          %v4214 = vmul.f32 %v3497, %v3497
          %v4215 = vmul.f32 %v3499, %v3499
          %v4216 = vmul.f32 %v3690, %v3690
          %v4217 = vmul.f32 %v3692, %v3692
          %v4218 = vmul.f32 %v3117, %v3117
          %v4219 = vmul.f32 %v3119, %v3119
          %v4220 = vmul.f32 %v3310, %v3310
          %v4221 = vmul.f32 %v3312, %v3312
          %v4222 = vmul.f32 %v3503, %v3503
          %v4223 = vmul.f32 %v3505, %v3505
          %v4224 = vmul.f32 %v3696, %v3696
          %v4225 = vmul.f32 %v3698, %v3698
          %v4226 = vmul.f32 %v3121, %v3121
          %v4227 = vmul.f32 %v3123, %v3123
          %v4228 = vmul.f32 %v3314, %v3314
          %v4229 = vmul.f32 %v3316, %v3316
          %v4230 = vmul.f32 %v3507, %v3507
          %v4231 = vmul.f32 %v3509, %v3509
          %v4232 = vmul.f32 %v3700, %v3700
          %v4233 = vmul.f32 %v3702, %v3702
          %v4234 = vmul.f32 %v3127, %v3127
          %v4235 = vmul.f32 %v3129, %v3129
          %v4236 = vmul.f32 %v3320, %v3320
          %v4237 = vmul.f32 %v3322, %v3322
          %v4238 = vmul.f32 %v3513, %v3513
          %v4239 = vmul.f32 %v3515, %v3515
          %v4240 = vmul.f32 %v3706, %v3706
          %v4241 = vmul.f32 %v3708, %v3708
          %v4242 = vmul.f32 %v3131, %v3131
          %v4243 = vmul.f32 %v3133, %v3133
          %v4244 = vmul.f32 %v3324, %v3324
          %v4245 = vmul.f32 %v3326, %v3326
          %v4246 = vmul.f32 %v3517, %v3517
          %v4247 = vmul.f32 %v3519, %v3519
          %v4248 = vmul.f32 %v3710, %v3710
          %v4249 = vmul.f32 %v3712, %v3712
          %v4250 = vadd.f32 %v3994, %v4002
          %v4251 = vadd.f32 %v4250, %v4010
          %v4252 = vadd.f32 %v4251, %v4018
          %v4253 = vadd.f32 %v4252, %v4026
          %v4254 = vadd.f32 %v4253, %v4034
          %v4255 = vadd.f32 %v4254, %v4042
          %v4256 = vadd.f32 %v4255, %v4050
          %v4257 = vadd.f32 %v4256, %v4058
          %v4258 = vadd.f32 %v4257, %v4066
          %v4259 = vadd.f32 %v4258, %v4074
          %v4260 = vadd.f32 %v4259, %v4082
          %v4261 = vadd.f32 %v4260, %v4090
          %v4262 = vadd.f32 %v4261, %v4098
          %v4263 = vadd.f32 %v4262, %v4106
          %v4264 = vadd.f32 %v4263, %v4114
          %v4265 = vadd.f32 %v4264, %v4122
          %v4266 = vadd.f32 %v4265, %v4130
          %v4267 = vadd.f32 %v4266, %v4138
          %v4268 = vadd.f32 %v4267, %v4146
          %v4269 = vadd.f32 %v4268, %v4154
          %v4270 = vadd.f32 %v4269, %v4162
          %v4271 = vadd.f32 %v4270, %v4170
          %v4272 = vadd.f32 %v4271, %v4178
          %v4273 = vadd.f32 %v4272, %v4186
          %v4274 = vadd.f32 %v4273, %v4194
          %v4275 = vadd.f32 %v4274, %v4202
          %v4276 = vadd.f32 %v4275, %v4210
          %v4277 = vadd.f32 %v4276, %v4218
          %v4278 = vadd.f32 %v4277, %v4226
          %v4279 = vadd.f32 %v4278, %v4234
          %v4280 = vadd.f32 %v4279, %v4242
          %v4281 = vadd.f32 %v3995, %v4003
          %v4282 = vadd.f32 %v4281, %v4011
          %v4283 = vadd.f32 %v4282, %v4019
          %v4284 = vadd.f32 %v4283, %v4027
          %v4285 = vadd.f32 %v4284, %v4035
          %v4286 = vadd.f32 %v4285, %v4043
          %v4287 = vadd.f32 %v4286, %v4051
          %v4288 = vadd.f32 %v4287, %v4059
          %v4289 = vadd.f32 %v4288, %v4067
          %v4290 = vadd.f32 %v4289, %v4075
          %v4291 = vadd.f32 %v4290, %v4083
          %v4292 = vadd.f32 %v4291, %v4091
          %v4293 = vadd.f32 %v4292, %v4099
          %v4294 = vadd.f32 %v4293, %v4107
          %v4295 = vadd.f32 %v4294, %v4115
          %v4296 = vadd.f32 %v4295, %v4123
          %v4297 = vadd.f32 %v4296, %v4131
          %v4298 = vadd.f32 %v4297, %v4139
          %v4299 = vadd.f32 %v4298, %v4147
          %v4300 = vadd.f32 %v4299, %v4155
          %v4301 = vadd.f32 %v4300, %v4163
          %v4302 = vadd.f32 %v4301, %v4171
          %v4303 = vadd.f32 %v4302, %v4179
          %v4304 = vadd.f32 %v4303, %v4187
          %v4305 = vadd.f32 %v4304, %v4195
          %v4306 = vadd.f32 %v4305, %v4203
          %v4307 = vadd.f32 %v4306, %v4211
          %v4308 = vadd.f32 %v4307, %v4219
          %v4309 = vadd.f32 %v4308, %v4227
          %v4310 = vadd.f32 %v4309, %v4235
          %v4311 = vadd.f32 %v4310, %v4243
          %v4312 = vadd.f32 %v3996, %v4004
          %v4313 = vadd.f32 %v4312, %v4012
          %v4314 = vadd.f32 %v4313, %v4020
          %v4315 = vadd.f32 %v4314, %v4028
          %v4316 = vadd.f32 %v4315, %v4036
          %v4317 = vadd.f32 %v4316, %v4044
          %v4318 = vadd.f32 %v4317, %v4052
          %v4319 = vadd.f32 %v4318, %v4060
          %v4320 = vadd.f32 %v4319, %v4068
          %v4321 = vadd.f32 %v4320, %v4076
          %v4322 = vadd.f32 %v4321, %v4084
          %v4323 = vadd.f32 %v4322, %v4092
          %v4324 = vadd.f32 %v4323, %v4100
          %v4325 = vadd.f32 %v4324, %v4108
          %v4326 = vadd.f32 %v4325, %v4116
          %v4327 = vadd.f32 %v4326, %v4124
          %v4328 = vadd.f32 %v4327, %v4132
          %v4329 = vadd.f32 %v4328, %v4140
          %v4330 = vadd.f32 %v4329, %v4148
          %v4331 = vadd.f32 %v4330, %v4156
          %v4332 = vadd.f32 %v4331, %v4164
          %v4333 = vadd.f32 %v4332, %v4172
          %v4334 = vadd.f32 %v4333, %v4180
          %v4335 = vadd.f32 %v4334, %v4188
          %v4336 = vadd.f32 %v4335, %v4196
          %v4337 = vadd.f32 %v4336, %v4204
          %v4338 = vadd.f32 %v4337, %v4212
          %v4339 = vadd.f32 %v4338, %v4220
          %v4340 = vadd.f32 %v4339, %v4228
          %v4341 = vadd.f32 %v4340, %v4236
          %v4342 = vadd.f32 %v4341, %v4244
          %v4343 = vadd.f32 %v3997, %v4005
          %v4344 = vadd.f32 %v4343, %v4013
          %v4345 = vadd.f32 %v4344, %v4021
          %v4346 = vadd.f32 %v4345, %v4029
          %v4347 = vadd.f32 %v4346, %v4037
          %v4348 = vadd.f32 %v4347, %v4045
          %v4349 = vadd.f32 %v4348, %v4053
          %v4350 = vadd.f32 %v4349, %v4061
          %v4351 = vadd.f32 %v4350, %v4069
          %v4352 = vadd.f32 %v4351, %v4077
          %v4353 = vadd.f32 %v4352, %v4085
          %v4354 = vadd.f32 %v4353, %v4093
          %v4355 = vadd.f32 %v4354, %v4101
          %v4356 = vadd.f32 %v4355, %v4109
          %v4357 = vadd.f32 %v4356, %v4117
          %v4358 = vadd.f32 %v4357, %v4125
          %v4359 = vadd.f32 %v4358, %v4133
          %v4360 = vadd.f32 %v4359, %v4141
          %v4361 = vadd.f32 %v4360, %v4149
          %v4362 = vadd.f32 %v4361, %v4157
          %v4363 = vadd.f32 %v4362, %v4165
          %v4364 = vadd.f32 %v4363, %v4173
          %v4365 = vadd.f32 %v4364, %v4181
          %v4366 = vadd.f32 %v4365, %v4189
          %v4367 = vadd.f32 %v4366, %v4197
          %v4368 = vadd.f32 %v4367, %v4205
          %v4369 = vadd.f32 %v4368, %v4213
          %v4370 = vadd.f32 %v4369, %v4221
          %v4371 = vadd.f32 %v4370, %v4229
          %v4372 = vadd.f32 %v4371, %v4237
          %v4373 = vadd.f32 %v4372, %v4245
          %v4374 = vadd.f32 %v3998, %v4006
          %v4375 = vadd.f32 %v4374, %v4014
          %v4376 = vadd.f32 %v4375, %v4022
          %v4377 = vadd.f32 %v4376, %v4030
          %v4378 = vadd.f32 %v4377, %v4038
          %v4379 = vadd.f32 %v4378, %v4046
          %v4380 = vadd.f32 %v4379, %v4054
          %v4381 = vadd.f32 %v4380, %v4062
          %v4382 = vadd.f32 %v4381, %v4070
          %v4383 = vadd.f32 %v4382, %v4078
          %v4384 = vadd.f32 %v4383, %v4086
          %v4385 = vadd.f32 %v4384, %v4094
          %v4386 = vadd.f32 %v4385, %v4102
          %v4387 = vadd.f32 %v4386, %v4110
          %v4388 = vadd.f32 %v4387, %v4118
          %v4389 = vadd.f32 %v4388, %v4126
          %v4390 = vadd.f32 %v4389, %v4134
          %v4391 = vadd.f32 %v4390, %v4142
          %v4392 = vadd.f32 %v4391, %v4150
          %v4393 = vadd.f32 %v4392, %v4158
          %v4394 = vadd.f32 %v4393, %v4166
          %v4395 = vadd.f32 %v4394, %v4174
          %v4396 = vadd.f32 %v4395, %v4182
          %v4397 = vadd.f32 %v4396, %v4190
          %v4398 = vadd.f32 %v4397, %v4198
          %v4399 = vadd.f32 %v4398, %v4206
          %v4400 = vadd.f32 %v4399, %v4214
          %v4401 = vadd.f32 %v4400, %v4222
          %v4402 = vadd.f32 %v4401, %v4230
          %v4403 = vadd.f32 %v4402, %v4238
          %v4404 = vadd.f32 %v4403, %v4246
          %v4405 = vadd.f32 %v3999, %v4007
          %v4406 = vadd.f32 %v4405, %v4015
          %v4407 = vadd.f32 %v4406, %v4023
          %v4408 = vadd.f32 %v4407, %v4031
          %v4409 = vadd.f32 %v4408, %v4039
          %v4410 = vadd.f32 %v4409, %v4047
          %v4411 = vadd.f32 %v4410, %v4055
          %v4412 = vadd.f32 %v4411, %v4063
          %v4413 = vadd.f32 %v4412, %v4071
          %v4414 = vadd.f32 %v4413, %v4079
          %v4415 = vadd.f32 %v4414, %v4087
          %v4416 = vadd.f32 %v4415, %v4095
          %v4417 = vadd.f32 %v4416, %v4103
          %v4418 = vadd.f32 %v4417, %v4111
          %v4419 = vadd.f32 %v4418, %v4119
          %v4420 = vadd.f32 %v4419, %v4127
          %v4421 = vadd.f32 %v4420, %v4135
          %v4422 = vadd.f32 %v4421, %v4143
          %v4423 = vadd.f32 %v4422, %v4151
          %v4424 = vadd.f32 %v4423, %v4159
          %v4425 = vadd.f32 %v4424, %v4167
          %v4426 = vadd.f32 %v4425, %v4175
          %v4427 = vadd.f32 %v4426, %v4183
          %v4428 = vadd.f32 %v4427, %v4191
          %v4429 = vadd.f32 %v4428, %v4199
          %v4430 = vadd.f32 %v4429, %v4207
          %v4431 = vadd.f32 %v4430, %v4215
          %v4432 = vadd.f32 %v4431, %v4223
          %v4433 = vadd.f32 %v4432, %v4231
          %v4434 = vadd.f32 %v4433, %v4239
          %v4435 = vadd.f32 %v4434, %v4247
          %v4436 = vadd.f32 %v4000, %v4008
          %v4437 = vadd.f32 %v4436, %v4016
          %v4438 = vadd.f32 %v4437, %v4024
          %v4439 = vadd.f32 %v4438, %v4032
          %v4440 = vadd.f32 %v4439, %v4040
          %v4441 = vadd.f32 %v4440, %v4048
          %v4442 = vadd.f32 %v4441, %v4056
          %v4443 = vadd.f32 %v4442, %v4064
          %v4444 = vadd.f32 %v4443, %v4072
          %v4445 = vadd.f32 %v4444, %v4080
          %v4446 = vadd.f32 %v4445, %v4088
          %v4447 = vadd.f32 %v4446, %v4096
          %v4448 = vadd.f32 %v4447, %v4104
          %v4449 = vadd.f32 %v4448, %v4112
          %v4450 = vadd.f32 %v4449, %v4120
          %v4451 = vadd.f32 %v4450, %v4128
          %v4452 = vadd.f32 %v4451, %v4136
          %v4453 = vadd.f32 %v4452, %v4144
          %v4454 = vadd.f32 %v4453, %v4152
          %v4455 = vadd.f32 %v4454, %v4160
          %v4456 = vadd.f32 %v4455, %v4168
          %v4457 = vadd.f32 %v4456, %v4176
          %v4458 = vadd.f32 %v4457, %v4184
          %v4459 = vadd.f32 %v4458, %v4192
          %v4460 = vadd.f32 %v4459, %v4200
          %v4461 = vadd.f32 %v4460, %v4208
          %v4462 = vadd.f32 %v4461, %v4216
          %v4463 = vadd.f32 %v4462, %v4224
          %v4464 = vadd.f32 %v4463, %v4232
          %v4465 = vadd.f32 %v4464, %v4240
          %v4466 = vadd.f32 %v4465, %v4248
          %v4467 = vadd.f32 %v4001, %v4009
          %v4468 = vadd.f32 %v4467, %v4017
          %v4469 = vadd.f32 %v4468, %v4025
          %v4470 = vadd.f32 %v4469, %v4033
          %v4471 = vadd.f32 %v4470, %v4041
          %v4472 = vadd.f32 %v4471, %v4049
          %v4473 = vadd.f32 %v4472, %v4057
          %v4474 = vadd.f32 %v4473, %v4065
          %v4475 = vadd.f32 %v4474, %v4073
          %v4476 = vadd.f32 %v4475, %v4081
          %v4477 = vadd.f32 %v4476, %v4089
          %v4478 = vadd.f32 %v4477, %v4097
          %v4479 = vadd.f32 %v4478, %v4105
          %v4480 = vadd.f32 %v4479, %v4113
          %v4481 = vadd.f32 %v4480, %v4121
          %v4482 = vadd.f32 %v4481, %v4129
          %v4483 = vadd.f32 %v4482, %v4137
          %v4484 = vadd.f32 %v4483, %v4145
          %v4485 = vadd.f32 %v4484, %v4153
          %v4486 = vadd.f32 %v4485, %v4161
          %v4487 = vadd.f32 %v4486, %v4169
          %v4488 = vadd.f32 %v4487, %v4177
          %v4489 = vadd.f32 %v4488, %v4185
          %v4490 = vadd.f32 %v4489, %v4193
          %v4491 = vadd.f32 %v4490, %v4201
          %v4492 = vadd.f32 %v4491, %v4209
          %v4493 = vadd.f32 %v4492, %v4217
          %v4494 = vadd.f32 %v4493, %v4225
          %v4495 = vadd.f32 %v4494, %v4233
          %v4496 = vadd.f32 %v4495, %v4241
          %v4497 = vadd.f32 %v4496, %v4249
          %v4498 = vadd.f32 %v3986, %v4280
          %v4499 = vadd.f32 %v3987, %v4311
          %v4500 = vadd.f32 %v3988, %v4342
          %v4501 = vadd.f32 %v3989, %v4373
          %v4502 = vadd.f32 %v3990, %v4404
          %v4503 = vadd.f32 %v3991, %v4435
          %v4504 = vadd.f32 %v3992, %v4466
          %v4505 = vadd.f32 %v3993, %v4497
          %4506 = vst [vmem:[#allocation7] sm:$0xff] %v4498
          %4507 = vst [vmem:[#allocation7 + $0x8] sm:$0xff] %v4499
          %4508 = vst [vmem:[#allocation7 + $0x10] sm:$0xff] %v4500
          %4509 = vst [vmem:[#allocation7 + $0x18] sm:$0xff] %v4501
          %4510 = vst [vmem:[#allocation7 + $0x20] sm:$0xff] %v4502
          %4511 = vst [vmem:[#allocation7 + $0x28] sm:$0xff] %v4503
          %4512 = vst [vmem:[#allocation7 + $0x30] sm:$0xff] %v4504
          %4513 = vst [vmem:[#allocation7 + $0x38] sm:$0xff] %v4505
          %v4514 = vld [vmem:[#allocation8] sm:$0xff]
          %v4515 = vld [vmem:[#allocation8 + $0x8] sm:$0xff]
          %v4516 = vld [vmem:[#allocation8 + $0x10] sm:$0xff]
          %v4517 = vld [vmem:[#allocation8 + $0x18] sm:$0xff]
          %v4518 = vmax.f32 %v2977, %v2981
          %v4519 = vmax.f32 %v4518, %v2987
          %v4520 = vmax.f32 %v4519, %v2991
          %v4521 = vmax.f32 %v4520, %v2997
          %v4522 = vmax.f32 %v4521, %v3001
          %v4523 = vmax.f32 %v4522, %v3007
          %v4524 = vmax.f32 %v4523, %v3011
          %v4525 = vrot.slane %v4524, 4
          %v4526 = vmax.f32 %v4524, %v4525
          %v4527 = vrot.slane %v4526, 2
          %v4528 = vmax.f32 %v4526, %v4527
          %v4529 = vrot.slane %v4528, 1
          %v4530 = vmax.f32 %v4528, %v4529
          %v4531 = vmax.f32 %v2979, %v2983
          %v4532 = vmax.f32 %v4531, %v2989
          %v4533 = vmax.f32 %v4532, %v2993
          %v4534 = vmax.f32 %v4533, %v2999
          %v4535 = vmax.f32 %v4534, %v3003
          %v4536 = vmax.f32 %v4535, %v3009
          %v4537 = vmax.f32 %v4536, %v3013
          %v4538 = vrot.slane %v4537, 4
          %v4539 = vmax.f32 %v4537, %v4538
          %v4540 = vrot.slane %v4539, 2
          %v4541 = vmax.f32 %v4539, %v4540
          %v4542 = vrot.slane %v4541, 1
          %v4543 = vmax.f32 %v4541, %v4542
          %v4544 = vmax.f32 %v3170, %v3174
          %v4545 = vmax.f32 %v4544, %v3180
          %v4546 = vmax.f32 %v4545, %v3184
          %v4547 = vmax.f32 %v4546, %v3190
          %v4548 = vmax.f32 %v4547, %v3194
          %v4549 = vmax.f32 %v4548, %v3200
          %v4550 = vmax.f32 %v4549, %v3204
          %v4551 = vrot.slane %v4550, 4
          %v4552 = vmax.f32 %v4550, %v4551
          %v4553 = vrot.slane %v4552, 2
          %v4554 = vmax.f32 %v4552, %v4553
          %v4555 = vrot.slane %v4554, 1
          %v4556 = vmax.f32 %v4554, %v4555
          %v4557 = vmax.f32 %v3172, %v3176
          %v4558 = vmax.f32 %v4557, %v3182
          %v4559 = vmax.f32 %v4558, %v3186
          %v4560 = vmax.f32 %v4559, %v3192
          %v4561 = vmax.f32 %v4560, %v3196
          %v4562 = vmax.f32 %v4561, %v3202
          %v4563 = vmax.f32 %v4562, %v3206
          %v4564 = vrot.slane %v4563, 4
          %v4565 = vmax.f32 %v4563, %v4564
          %v4566 = vrot.slane %v4565, 2
          %v4567 = vmax.f32 %v4565, %v4566
          %v4568 = vrot.slane %v4567, 1
          %v4569 = vmax.f32 %v4567, %v4568
          %v4570 = vmax.f32 %v3363, %v3367
          %v4571 = vmax.f32 %v4570, %v3373
          %v4572 = vmax.f32 %v4571, %v3377
          %v4573 = vmax.f32 %v4572, %v3383
          %v4574 = vmax.f32 %v4573, %v3387
          %v4575 = vmax.f32 %v4574, %v3393
          %v4576 = vmax.f32 %v4575, %v3397
          %v4577 = vrot.slane %v4576, 4
          %v4578 = vmax.f32 %v4576, %v4577
          %v4579 = vrot.slane %v4578, 2
          %v4580 = vmax.f32 %v4578, %v4579
          %v4581 = vrot.slane %v4580, 1
          %v4582 = vmax.f32 %v4580, %v4581
          %v4583 = vmax.f32 %v3365, %v3369
          %v4584 = vmax.f32 %v4583, %v3375
          %v4585 = vmax.f32 %v4584, %v3379
          %v4586 = vmax.f32 %v4585, %v3385
          %v4587 = vmax.f32 %v4586, %v3389
          %v4588 = vmax.f32 %v4587, %v3395
          %v4589 = vmax.f32 %v4588, %v3399
          %v4590 = vrot.slane %v4589, 4
          %v4591 = vmax.f32 %v4589, %v4590
          %v4592 = vrot.slane %v4591, 2
          %v4593 = vmax.f32 %v4591, %v4592
          %v4594 = vrot.slane %v4593, 1
          %v4595 = vmax.f32 %v4593, %v4594
          %v4596 = vmax.f32 %v3556, %v3560
          %v4597 = vmax.f32 %v4596, %v3566
          %v4598 = vmax.f32 %v4597, %v3570
          %v4599 = vmax.f32 %v4598, %v3576
          %v4600 = vmax.f32 %v4599, %v3580
          %v4601 = vmax.f32 %v4600, %v3586
          %v4602 = vmax.f32 %v4601, %v3590
          %v4603 = vrot.slane %v4602, 4
          %v4604 = vmax.f32 %v4602, %v4603
          %v4605 = vrot.slane %v4604, 2
          %v4606 = vmax.f32 %v4604, %v4605
          %v4607 = vrot.slane %v4606, 1
          %v4608 = vmax.f32 %v4606, %v4607
          %v4609 = vmax.f32 %v3558, %v3562
          %v4610 = vmax.f32 %v4609, %v3568
          %v4611 = vmax.f32 %v4610, %v3572
          %v4612 = vmax.f32 %v4611, %v3578
          %v4613 = vmax.f32 %v4612, %v3582
          %v4614 = vmax.f32 %v4613, %v3588
          %v4615 = vmax.f32 %v4614, %v3592
          %v4616 = vrot.slane %v4615, 4
          %v4617 = vmax.f32 %v4615, %v4616
          %v4618 = vrot.slane %v4617, 2
          %v4619 = vmax.f32 %v4617, %v4618
          %v4620 = vrot.slane %v4619, 1
          %v4621 = vmax.f32 %v4619, %v4620
          %v4622 = vmax.f32 %v3017, %v3021
          %v4623 = vmax.f32 %v4622, %v3027
          %v4624 = vmax.f32 %v4623, %v3031
          %v4625 = vmax.f32 %v4624, %v3037
          %v4626 = vmax.f32 %v4625, %v3041
          %v4627 = vmax.f32 %v4626, %v3047
          %v4628 = vmax.f32 %v4627, %v3051
          %v4629 = vrot.slane %v4628, 4
          %v4630 = vmax.f32 %v4628, %v4629
          %v4631 = vrot.slane %v4630, 2
          %v4632 = vmax.f32 %v4630, %v4631
          %v4633 = vrot.slane %v4632, 1
          %v4634 = vmax.f32 %v4632, %v4633
          %v4635 = vmax.f32 %v3019, %v3023
          %v4636 = vmax.f32 %v4635, %v3029
          %v4637 = vmax.f32 %v4636, %v3033
          %v4638 = vmax.f32 %v4637, %v3039
          %v4639 = vmax.f32 %v4638, %v3043
          %v4640 = vmax.f32 %v4639, %v3049
          %v4641 = vmax.f32 %v4640, %v3053
          %v4642 = vrot.slane %v4641, 4
          %v4643 = vmax.f32 %v4641, %v4642
          %v4644 = vrot.slane %v4643, 2
          %v4645 = vmax.f32 %v4643, %v4644
          %v4646 = vrot.slane %v4645, 1
          %v4647 = vmax.f32 %v4645, %v4646
          %v4648 = vmax.f32 %v3210, %v3214
          %v4649 = vmax.f32 %v4648, %v3220
          %v4650 = vmax.f32 %v4649, %v3224
          %v4651 = vmax.f32 %v4650, %v3230
          %v4652 = vmax.f32 %v4651, %v3234
          %v4653 = vmax.f32 %v4652, %v3240
          %v4654 = vmax.f32 %v4653, %v3244
          %v4655 = vrot.slane %v4654, 4
          %v4656 = vmax.f32 %v4654, %v4655
          %v4657 = vrot.slane %v4656, 2
          %v4658 = vmax.f32 %v4656, %v4657
          %v4659 = vrot.slane %v4658, 1
          %v4660 = vmax.f32 %v4658, %v4659
          %v4661 = vmax.f32 %v3212, %v3216
          %v4662 = vmax.f32 %v4661, %v3222
          %v4663 = vmax.f32 %v4662, %v3226
          %v4664 = vmax.f32 %v4663, %v3232
          %v4665 = vmax.f32 %v4664, %v3236
          %v4666 = vmax.f32 %v4665, %v3242
          %v4667 = vmax.f32 %v4666, %v3246
          %v4668 = vrot.slane %v4667, 4
          %v4669 = vmax.f32 %v4667, %v4668
          %v4670 = vrot.slane %v4669, 2
          %v4671 = vmax.f32 %v4669, %v4670
          %v4672 = vrot.slane %v4671, 1
          %v4673 = vmax.f32 %v4671, %v4672
          %v4674 = vmax.f32 %v3403, %v3407
          %v4675 = vmax.f32 %v4674, %v3413
          %v4676 = vmax.f32 %v4675, %v3417
          %v4677 = vmax.f32 %v4676, %v3423
          %v4678 = vmax.f32 %v4677, %v3427
          %v4679 = vmax.f32 %v4678, %v3433
          %v4680 = vmax.f32 %v4679, %v3437
          %v4681 = vrot.slane %v4680, 4
          %v4682 = vmax.f32 %v4680, %v4681
          %v4683 = vrot.slane %v4682, 2
          %v4684 = vmax.f32 %v4682, %v4683
          %v4685 = vrot.slane %v4684, 1
          %v4686 = vmax.f32 %v4684, %v4685
          %v4687 = vmax.f32 %v3405, %v3409
          %v4688 = vmax.f32 %v4687, %v3415
          %v4689 = vmax.f32 %v4688, %v3419
          %v4690 = vmax.f32 %v4689, %v3425
          %v4691 = vmax.f32 %v4690, %v3429
          %v4692 = vmax.f32 %v4691, %v3435
          %v4693 = vmax.f32 %v4692, %v3439
          %v4694 = vrot.slane %v4693, 4
          %v4695 = vmax.f32 %v4693, %v4694
          %v4696 = vrot.slane %v4695, 2
          %v4697 = vmax.f32 %v4695, %v4696
          %v4698 = vrot.slane %v4697, 1
          %v4699 = vmax.f32 %v4697, %v4698
          %v4700 = vmax.f32 %v3596, %v3600
          %v4701 = vmax.f32 %v4700, %v3606
          %v4702 = vmax.f32 %v4701, %v3610
          %v4703 = vmax.f32 %v4702, %v3616
          %v4704 = vmax.f32 %v4703, %v3620
          %v4705 = vmax.f32 %v4704, %v3626
          %v4706 = vmax.f32 %v4705, %v3630
          %v4707 = vrot.slane %v4706, 4
          %v4708 = vmax.f32 %v4706, %v4707
          %v4709 = vrot.slane %v4708, 2
          %v4710 = vmax.f32 %v4708, %v4709
          %v4711 = vrot.slane %v4710, 1
          %v4712 = vmax.f32 %v4710, %v4711
          %v4713 = vmax.f32 %v3598, %v3602
          %v4714 = vmax.f32 %v4713, %v3608
          %v4715 = vmax.f32 %v4714, %v3612
          %v4716 = vmax.f32 %v4715, %v3618
          %v4717 = vmax.f32 %v4716, %v3622
          %v4718 = vmax.f32 %v4717, %v3628
          %v4719 = vmax.f32 %v4718, %v3632
          %v4720 = vrot.slane %v4719, 4
          %v4721 = vmax.f32 %v4719, %v4720
          %v4722 = vrot.slane %v4721, 2
          %v4723 = vmax.f32 %v4721, %v4722
          %v4724 = vrot.slane %v4723, 1
          %v4725 = vmax.f32 %v4723, %v4724
          %v4726 = vmax.f32 %v3057, %v3061
          %v4727 = vmax.f32 %v4726, %v3067
          %v4728 = vmax.f32 %v4727, %v3071
          %v4729 = vmax.f32 %v4728, %v3077
          %v4730 = vmax.f32 %v4729, %v3081
          %v4731 = vmax.f32 %v4730, %v3087
          %v4732 = vmax.f32 %v4731, %v3091
          %v4733 = vrot.slane %v4732, 4
          %v4734 = vmax.f32 %v4732, %v4733
          %v4735 = vrot.slane %v4734, 2
          %v4736 = vmax.f32 %v4734, %v4735
          %v4737 = vrot.slane %v4736, 1
          %v4738 = vmax.f32 %v4736, %v4737
          %v4739 = vmax.f32 %v3059, %v3063
          %v4740 = vmax.f32 %v4739, %v3069
          %v4741 = vmax.f32 %v4740, %v3073
          %v4742 = vmax.f32 %v4741, %v3079
          %v4743 = vmax.f32 %v4742, %v3083
          %v4744 = vmax.f32 %v4743, %v3089
          %v4745 = vmax.f32 %v4744, %v3093
          %v4746 = vrot.slane %v4745, 4
          %v4747 = vmax.f32 %v4745, %v4746
          %v4748 = vrot.slane %v4747, 2
          %v4749 = vmax.f32 %v4747, %v4748
          %v4750 = vrot.slane %v4749, 1
          %v4751 = vmax.f32 %v4749, %v4750
          %v4752 = vmax.f32 %v3250, %v3254
          %v4753 = vmax.f32 %v4752, %v3260
          %v4754 = vmax.f32 %v4753, %v3264
          %v4755 = vmax.f32 %v4754, %v3270
          %v4756 = vmax.f32 %v4755, %v3274
          %v4757 = vmax.f32 %v4756, %v3280
          %v4758 = vmax.f32 %v4757, %v3284
          %v4759 = vrot.slane %v4758, 4
          %v4760 = vmax.f32 %v4758, %v4759
          %v4761 = vrot.slane %v4760, 2
          %v4762 = vmax.f32 %v4760, %v4761
          %v4763 = vrot.slane %v4762, 1
          %v4764 = vmax.f32 %v4762, %v4763
          %v4765 = vmax.f32 %v3252, %v3256
          %v4766 = vmax.f32 %v4765, %v3262
          %v4767 = vmax.f32 %v4766, %v3266
          %v4768 = vmax.f32 %v4767, %v3272
          %v4769 = vmax.f32 %v4768, %v3276
          %v4770 = vmax.f32 %v4769, %v3282
          %v4771 = vmax.f32 %v4770, %v3286
          %v4772 = vrot.slane %v4771, 4
          %v4773 = vmax.f32 %v4771, %v4772
          %v4774 = vrot.slane %v4773, 2
          %v4775 = vmax.f32 %v4773, %v4774
          %v4776 = vrot.slane %v4775, 1
          %v4777 = vmax.f32 %v4775, %v4776
          %v4778 = vmax.f32 %v3443, %v3447
          %v4779 = vmax.f32 %v4778, %v3453
          %v4780 = vmax.f32 %v4779, %v3457
          %v4781 = vmax.f32 %v4780, %v3463
          %v4782 = vmax.f32 %v4781, %v3467
          %v4783 = vmax.f32 %v4782, %v3473
          %v4784 = vmax.f32 %v4783, %v3477
          %v4785 = vrot.slane %v4784, 4
          %v4786 = vmax.f32 %v4784, %v4785
          %v4787 = vrot.slane %v4786, 2
          %v4788 = vmax.f32 %v4786, %v4787
          %v4789 = vrot.slane %v4788, 1
          %v4790 = vmax.f32 %v4788, %v4789
          %v4791 = vmax.f32 %v3445, %v3449
          %v4792 = vmax.f32 %v4791, %v3455
          %v4793 = vmax.f32 %v4792, %v3459
          %v4794 = vmax.f32 %v4793, %v3465
          %v4795 = vmax.f32 %v4794, %v3469
          %v4796 = vmax.f32 %v4795, %v3475
          %v4797 = vmax.f32 %v4796, %v3479
          %v4798 = vrot.slane %v4797, 4
          %v4799 = vmax.f32 %v4797, %v4798
          %v4800 = vrot.slane %v4799, 2
          %v4801 = vmax.f32 %v4799, %v4800
          %v4802 = vrot.slane %v4801, 1
          %v4803 = vmax.f32 %v4801, %v4802
          %v4804 = vmax.f32 %v3636, %v3640
          %v4805 = vmax.f32 %v4804, %v3646
          %v4806 = vmax.f32 %v4805, %v3650
          %v4807 = vmax.f32 %v4806, %v3656
          %v4808 = vmax.f32 %v4807, %v3660
          %v4809 = vmax.f32 %v4808, %v3666
          %v4810 = vmax.f32 %v4809, %v3670
          %v4811 = vrot.slane %v4810, 4
          %v4812 = vmax.f32 %v4810, %v4811
          %v4813 = vrot.slane %v4812, 2
          %v4814 = vmax.f32 %v4812, %v4813
          %v4815 = vrot.slane %v4814, 1
          %v4816 = vmax.f32 %v4814, %v4815
          %v4817 = vmax.f32 %v3638, %v3642
          %v4818 = vmax.f32 %v4817, %v3648
          %v4819 = vmax.f32 %v4818, %v3652
          %v4820 = vmax.f32 %v4819, %v3658
          %v4821 = vmax.f32 %v4820, %v3662
          %v4822 = vmax.f32 %v4821, %v3668
          %v4823 = vmax.f32 %v4822, %v3672
          %v4824 = vrot.slane %v4823, 4
          %v4825 = vmax.f32 %v4823, %v4824
          %v4826 = vrot.slane %v4825, 2
          %v4827 = vmax.f32 %v4825, %v4826
          %v4828 = vrot.slane %v4827, 1
          %v4829 = vmax.f32 %v4827, %v4828
          %v4830 = vmax.f32 %v3097, %v3101
          %v4831 = vmax.f32 %v4830, %v3107
          %v4832 = vmax.f32 %v4831, %v3111
          %v4833 = vmax.f32 %v4832, %v3117
          %v4834 = vmax.f32 %v4833, %v3121
          %v4835 = vmax.f32 %v4834, %v3127
          %v4836 = vmax.f32 %v4835, %v3131
          %v4837 = vrot.slane %v4836, 4
          %v4838 = vmax.f32 %v4836, %v4837
          %v4839 = vrot.slane %v4838, 2
          %v4840 = vmax.f32 %v4838, %v4839
          %v4841 = vrot.slane %v4840, 1
          %v4842 = vmax.f32 %v4840, %v4841
          %v4843 = vmax.f32 %v3099, %v3103
          %v4844 = vmax.f32 %v4843, %v3109
          %v4845 = vmax.f32 %v4844, %v3113
          %v4846 = vmax.f32 %v4845, %v3119
          %v4847 = vmax.f32 %v4846, %v3123
          %v4848 = vmax.f32 %v4847, %v3129
          %v4849 = vmax.f32 %v4848, %v3133
          %v4850 = vrot.slane %v4849, 4
          %v4851 = vmax.f32 %v4849, %v4850
          %v4852 = vrot.slane %v4851, 2
          %v4853 = vmax.f32 %v4851, %v4852
          %v4854 = vrot.slane %v4853, 1
          %v4855 = vmax.f32 %v4853, %v4854
          %v4856 = vmax.f32 %v3290, %v3294
          %v4857 = vmax.f32 %v4856, %v3300
          %v4858 = vmax.f32 %v4857, %v3304
          %v4859 = vmax.f32 %v4858, %v3310
          %v4860 = vmax.f32 %v4859, %v3314
          %v4861 = vmax.f32 %v4860, %v3320
          %v4862 = vmax.f32 %v4861, %v3324
          %v4863 = vrot.slane %v4862, 4
          %v4864 = vmax.f32 %v4862, %v4863
          %v4865 = vrot.slane %v4864, 2
          %v4866 = vmax.f32 %v4864, %v4865
          %v4867 = vrot.slane %v4866, 1
          %v4868 = vmax.f32 %v4866, %v4867
          %v4869 = vmax.f32 %v3292, %v3296
          %v4870 = vmax.f32 %v4869, %v3302
          %v4871 = vmax.f32 %v4870, %v3306
          %v4872 = vmax.f32 %v4871, %v3312
          %v4873 = vmax.f32 %v4872, %v3316
          %v4874 = vmax.f32 %v4873, %v3322
          %v4875 = vmax.f32 %v4874, %v3326
          %v4876 = vrot.slane %v4875, 4
          %v4877 = vmax.f32 %v4875, %v4876
          %v4878 = vrot.slane %v4877, 2
          %v4879 = vmax.f32 %v4877, %v4878
          %v4880 = vrot.slane %v4879, 1
          %v4881 = vmax.f32 %v4879, %v4880
          %v4882 = vmax.f32 %v3483, %v3487
          %v4883 = vmax.f32 %v4882, %v3493
          %v4884 = vmax.f32 %v4883, %v3497
          %v4885 = vmax.f32 %v4884, %v3503
          %v4886 = vmax.f32 %v4885, %v3507
          %v4887 = vmax.f32 %v4886, %v3513
          %v4888 = vmax.f32 %v4887, %v3517
          %v4889 = vrot.slane %v4888, 4
          %v4890 = vmax.f32 %v4888, %v4889
          %v4891 = vrot.slane %v4890, 2
          %v4892 = vmax.f32 %v4890, %v4891
          %v4893 = vrot.slane %v4892, 1
          %v4894 = vmax.f32 %v4892, %v4893
          %v4895 = vmax.f32 %v3485, %v3489
          %v4896 = vmax.f32 %v4895, %v3495
          %v4897 = vmax.f32 %v4896, %v3499
          %v4898 = vmax.f32 %v4897, %v3505
          %v4899 = vmax.f32 %v4898, %v3509
          %v4900 = vmax.f32 %v4899, %v3515
          %v4901 = vmax.f32 %v4900, %v3519
          %v4902 = vrot.slane %v4901, 4
          %v4903 = vmax.f32 %v4901, %v4902
          %v4904 = vrot.slane %v4903, 2
          %v4905 = vmax.f32 %v4903, %v4904
          %v4906 = vrot.slane %v4905, 1
          %v4907 = vmax.f32 %v4905, %v4906
          %v4908 = vmax.f32 %v3676, %v3680
          %v4909 = vmax.f32 %v4908, %v3686
          %v4910 = vmax.f32 %v4909, %v3690
          %v4911 = vmax.f32 %v4910, %v3696
          %v4912 = vmax.f32 %v4911, %v3700
          %v4913 = vmax.f32 %v4912, %v3706
          %v4914 = vmax.f32 %v4913, %v3710
          %v4915 = vrot.slane %v4914, 4
          %v4916 = vmax.f32 %v4914, %v4915
          %v4917 = vrot.slane %v4916, 2
          %v4918 = vmax.f32 %v4916, %v4917
          %v4919 = vrot.slane %v4918, 1
          %v4920 = vmax.f32 %v4918, %v4919
          %v4921 = vmax.f32 %v3678, %v3682
          %v4922 = vmax.f32 %v4921, %v3688
          %v4923 = vmax.f32 %v4922, %v3692
          %v4924 = vmax.f32 %v4923, %v3698
          %v4925 = vmax.f32 %v4924, %v3702
          %v4926 = vmax.f32 %v4925, %v3708
          %v4927 = vmax.f32 %v4926, %v3712
          %v4928 = vrot.slane %v4927, 4
          %v4929 = vmax.f32 %v4927, %v4928
          %v4930 = vrot.slane %v4929, 2
          %v4931 = vmax.f32 %v4929, %v4930
          %v4932 = vrot.slane %v4931, 1
          %v4933 = vmax.f32 %v4931, %v4932
          %v4966 = vcombine.low %v4530, %v4543
          %v4967 = vcombine.low %v4556, %v4569
          %v4968 = vcombine.low %v4582, %v4595
          %v4969 = vcombine.low %v4608, %v4621
          %v4970 = vcombine.low %v4634, %v4647
          %v4971 = vcombine.low %v4660, %v4673
          %v4972 = vcombine.low %v4686, %v4699
          %v4973 = vcombine.low %v4712, %v4725
          %v4974 = vcombine.low %v4738, %v4751
          %v4975 = vcombine.low %v4764, %v4777
          %v4976 = vcombine.low %v4790, %v4803
          %v4977 = vcombine.low %v4816, %v4829
          %v4978 = vcombine.low %v4842, %v4855
          %v4979 = vcombine.low %v4868, %v4881
          %v4980 = vcombine.low %v4894, %v4907
          %v4981 = vcombine.low %v4920, %v4933
          %v4982 = vrot.slane %v4970, 7
          %vm4983 = vcmask 1041409
          %v4984 = vsel %vm4983, %v4982, %v4966
          %vm4985 = vcmask 1045509
          %v4986 = vsel %vm4985, %v4982, %v4984
          %v4987 = vrot.slane %v4974, 6
          %vm4988 = vcmask 1042434
          %v4989 = vsel %vm4988, %v4987, %v4986
          %vm4990 = vcmask 1046534
          %v4991 = vsel %vm4990, %v4987, %v4989
          %v4992 = vrot.slane %v4978, 5
          %vm4993 = vcmask 1043459
          %v4994 = vsel %vm4993, %v4992, %v4991
          %vm4995 = vcmask 1047559
          %v4996 = vsel %vm4995, %v4992, %v4994
          %v4997 = vrot.slane %v4971, 7
          %v4998 = vsel %vm4983, %v4997, %v4967
          %v4999 = vsel %vm4985, %v4997, %v4998
          %v5000 = vrot.slane %v4975, 6
          %v5001 = vsel %vm4988, %v5000, %v4999
          %v5002 = vsel %vm4990, %v5000, %v5001
          %v5003 = vrot.slane %v4979, 5
          %v5004 = vsel %vm4993, %v5003, %v5002
          %v5005 = vsel %vm4995, %v5003, %v5004
          %v5006 = vrot.slane %v4972, 7
          %v5007 = vsel %vm4983, %v5006, %v4968
          %v5008 = vsel %vm4985, %v5006, %v5007
          %v5009 = vrot.slane %v4976, 6
          %v5010 = vsel %vm4988, %v5009, %v5008
          %v5011 = vsel %vm4990, %v5009, %v5010
          %v5012 = vrot.slane %v4980, 5
          %v5013 = vsel %vm4993, %v5012, %v5011
          %v5014 = vsel %vm4995, %v5012, %v5013
          %v5015 = vrot.slane %v4973, 7
          %v5016 = vsel %vm4983, %v5015, %v4969
          %v5017 = vsel %vm4985, %v5015, %v5016
          %v5018 = vrot.slane %v4977, 6
          %v5019 = vsel %vm4988, %v5018, %v5017
          %v5020 = vsel %vm4990, %v5018, %v5019
          %v5021 = vrot.slane %v4981, 5
          %v5022 = vsel %vm4993, %v5021, %v5020
          %v5023 = vsel %vm4995, %v5021, %v5022
          %v5028 = vmax.f32 %v4514, %v4996
          %v5029 = vmax.f32 %v4515, %v5005
          %v5030 = vmax.f32 %v4516, %v5014
          %v5031 = vmax.f32 %v4517, %v5023
          %5032 = vst [vmem:[#allocation8] sm:$0xff] %v5028
          %5033 = vst [vmem:[#allocation8 + $0x8] sm:$0xff] %v5029
          %5034 = vst [vmem:[#allocation8 + $0x10] sm:$0xff] %v5030
          %5035 = vst [vmem:[#allocation8 + $0x18] sm:$0xff] %v5031
        $region181: #{tpu_custom_call.1} parent=148 // pred_fallthru
          _
        %p5036 = scmp.eq.s32.totalorder %s42, 1
        %p5037 = pnand %p1961, %p5036
        %p5038 = pneg %p5037
        // Predicated region
        $region182: #{tpu_custom_call.1} parent=148 // pred_check
          _
        $region183: #{tpu_custom_call.1} parent=148 // pred_check_branch
          %5040 = sbr.rel (%p5037) target = $region185
        $region184: #{tpu_custom_call.1} parent=148 // pred_region
          %v5041 = vld [vmem:[#allocation6] sm:$0xff]
          %v5042 = vld [vmem:[#allocation6 + $0x8] sm:$0xff]
          %v5043 = vld [vmem:[#allocation6 + $0x10] sm:$0xff]
          %v5044 = vld [vmem:[#allocation6 + $0x18] sm:$0xff]
          %v5045 = vld [vmem:[#allocation6 + $0x20] sm:$0xff]
          %v5046 = vld [vmem:[#allocation6 + $0x28] sm:$0xff]
          %v5047 = vld [vmem:[#allocation6 + $0x30] sm:$0xff]
          %v5048 = vld [vmem:[#allocation6 + $0x38] sm:$0xff]
          %v5049 = vrot.slane %v5041, 4
          %v5050 = vadd.f32 %v5041, %v5049
          %v5051 = vrot.slane %v5050, 2
          %v5052 = vadd.f32 %v5050, %v5051
          %v5053 = vrot.slane %v5052, 1
          %v5054 = vadd.f32 %v5052, %v5053
          %v5055 = vrot.slane %v5042, 4
          %v5056 = vadd.f32 %v5042, %v5055
          %v5057 = vrot.slane %v5056, 2
          %v5058 = vadd.f32 %v5056, %v5057
          %v5059 = vrot.slane %v5058, 1
          %v5060 = vadd.f32 %v5058, %v5059
          %v5061 = vrot.slane %v5043, 4
          %v5062 = vadd.f32 %v5043, %v5061
          %v5063 = vrot.slane %v5062, 2
          %v5064 = vadd.f32 %v5062, %v5063
          %v5065 = vrot.slane %v5064, 1
          %v5066 = vadd.f32 %v5064, %v5065
          %v5067 = vrot.slane %v5044, 4
          %v5068 = vadd.f32 %v5044, %v5067
          %v5069 = vrot.slane %v5068, 2
          %v5070 = vadd.f32 %v5068, %v5069
          %v5071 = vrot.slane %v5070, 1
          %v5072 = vadd.f32 %v5070, %v5071
          %v5073 = vrot.slane %v5045, 4
          %v5074 = vadd.f32 %v5045, %v5073
          %v5075 = vrot.slane %v5074, 2
          %v5076 = vadd.f32 %v5074, %v5075
          %v5077 = vrot.slane %v5076, 1
          %v5078 = vadd.f32 %v5076, %v5077
          %v5079 = vrot.slane %v5046, 4
          %v5080 = vadd.f32 %v5046, %v5079
          %v5081 = vrot.slane %v5080, 2
          %v5082 = vadd.f32 %v5080, %v5081
          %v5083 = vrot.slane %v5082, 1
          %v5084 = vadd.f32 %v5082, %v5083
          %v5085 = vrot.slane %v5047, 4
          %v5086 = vadd.f32 %v5047, %v5085
          %v5087 = vrot.slane %v5086, 2
          %v5088 = vadd.f32 %v5086, %v5087
          %v5089 = vrot.slane %v5088, 1
          %v5090 = vadd.f32 %v5088, %v5089
          %v5091 = vrot.slane %v5048, 4
          %v5092 = vadd.f32 %v5048, %v5091
          %v5093 = vrot.slane %v5092, 2
          %v5094 = vadd.f32 %v5092, %v5093
          %v5095 = vrot.slane %v5094, 1
          %v5096 = vadd.f32 %v5094, %v5095
          %v5097 = vmul.f32 %v5054, 0.001953125
          %v5098 = vmul.f32 %v5060, 0.001953125
          %v5099 = vmul.f32 %v5066, 0.001953125
          %v5100 = vmul.f32 %v5072, 0.001953125
          %v5101 = vmul.f32 %v5078, 0.001953125
          %v5102 = vmul.f32 %v5084, 0.001953125
          %v5103 = vmul.f32 %v5090, 0.001953125
          %v5104 = vmul.f32 %v5096, 0.001953125
          %v5105 = vld [vmem:[#allocation7] sm:$0xff]
          %v5106 = vld [vmem:[#allocation7 + $0x8] sm:$0xff]
          %v5107 = vld [vmem:[#allocation7 + $0x10] sm:$0xff]
          %v5108 = vld [vmem:[#allocation7 + $0x18] sm:$0xff]
          %v5109 = vld [vmem:[#allocation7 + $0x20] sm:$0xff]
          %v5110 = vld [vmem:[#allocation7 + $0x28] sm:$0xff]
          %v5111 = vld [vmem:[#allocation7 + $0x30] sm:$0xff]
          %v5112 = vld [vmem:[#allocation7 + $0x38] sm:$0xff]
          %v5113 = vrot.slane %v5105, 4
          %v5114 = vadd.f32 %v5105, %v5113
          %v5115 = vrot.slane %v5114, 2
          %v5116 = vadd.f32 %v5114, %v5115
          %v5117 = vrot.slane %v5116, 1
          %v5118 = vadd.f32 %v5116, %v5117
          %v5119 = vrot.slane %v5106, 4
          %v5120 = vadd.f32 %v5106, %v5119
          %v5121 = vrot.slane %v5120, 2
          %v5122 = vadd.f32 %v5120, %v5121
          %v5123 = vrot.slane %v5122, 1
          %v5124 = vadd.f32 %v5122, %v5123
          %v5125 = vrot.slane %v5107, 4
          %v5126 = vadd.f32 %v5107, %v5125
          %v5127 = vrot.slane %v5126, 2
          %v5128 = vadd.f32 %v5126, %v5127
          %v5129 = vrot.slane %v5128, 1
          %v5130 = vadd.f32 %v5128, %v5129
          %v5131 = vrot.slane %v5108, 4
          %v5132 = vadd.f32 %v5108, %v5131
          %v5133 = vrot.slane %v5132, 2
          %v5134 = vadd.f32 %v5132, %v5133
          %v5135 = vrot.slane %v5134, 1
          %v5136 = vadd.f32 %v5134, %v5135
          %v5137 = vrot.slane %v5109, 4
          %v5138 = vadd.f32 %v5109, %v5137
          %v5139 = vrot.slane %v5138, 2
          %v5140 = vadd.f32 %v5138, %v5139
          %v5141 = vrot.slane %v5140, 1
          %v5142 = vadd.f32 %v5140, %v5141
          %v5143 = vrot.slane %v5110, 4
          %v5144 = vadd.f32 %v5110, %v5143
          %v5145 = vrot.slane %v5144, 2
          %v5146 = vadd.f32 %v5144, %v5145
          %v5147 = vrot.slane %v5146, 1
          %v5148 = vadd.f32 %v5146, %v5147
          %v5149 = vrot.slane %v5111, 4
          %v5150 = vadd.f32 %v5111, %v5149
          %v5151 = vrot.slane %v5150, 2
          %v5152 = vadd.f32 %v5150, %v5151
          %v5153 = vrot.slane %v5152, 1
          %v5154 = vadd.f32 %v5152, %v5153
          %v5155 = vrot.slane %v5112, 4
          %v5156 = vadd.f32 %v5112, %v5155
          %v5157 = vrot.slane %v5156, 2
          %v5158 = vadd.f32 %v5156, %v5157
          %v5159 = vrot.slane %v5158, 1
          %v5160 = vadd.f32 %v5158, %v5159
          %v5161 = vmul.f32 %v5118, 0.001953125
          %v5162 = vmul.f32 %v5124, 0.001953125
          %v5163 = vmul.f32 %v5130, 0.001953125
          %v5164 = vmul.f32 %v5136, 0.001953125
          %v5165 = vmul.f32 %v5142, 0.001953125
          %v5166 = vmul.f32 %v5148, 0.001953125
          %v5167 = vmul.f32 %v5154, 0.001953125
          %v5168 = vmul.f32 %v5160, 0.001953125
          %v5169 = vmul.f32 %v5097, %v5097
          %v5170 = vmul.f32 %v5098, %v5098
          %v5171 = vmul.f32 %v5099, %v5099
          %v5172 = vmul.f32 %v5100, %v5100
          %v5173 = vmul.f32 %v5101, %v5101
          %v5174 = vmul.f32 %v5102, %v5102
          %v5175 = vmul.f32 %v5103, %v5103
          %v5176 = vmul.f32 %v5104, %v5104
          %v5177 = vsub.f32 %v5161, %v5169
          %v5178 = vsub.f32 %v5162, %v5170
          %v5179 = vsub.f32 %v5163, %v5171
          %v5180 = vsub.f32 %v5164, %v5172
          %v5181 = vsub.f32 %v5165, %v5173
          %v5182 = vsub.f32 %v5166, %v5174
          %v5183 = vsub.f32 %v5167, %v5175
          %v5184 = vsub.f32 %v5168, %v5176
          %v5185 = vmax.f32 %v5177, 0.0
          %v5186 = vmax.f32 %v5178, 0.0
          %v5187 = vmax.f32 %v5179, 0.0
          %v5188 = vmax.f32 %v5180, 0.0
          %v5189 = vmax.f32 %v5181, 0.0
          %v5190 = vmax.f32 %v5182, 0.0
          %v5191 = vmax.f32 %v5183, 0.0
          %v5192 = vmax.f32 %v5184, 0.0
          %v5193 = vld [vmem:[%s11] sm:$0xff]
          %v5194 = vadd.f32 %v5185, 1e-05
          %v5195 = vadd.f32 %v5186, 1e-05
          %v5196 = vadd.f32 %v5187, 1e-05
          %v5197 = vadd.f32 %v5188, 1e-05
          %v5198 = vadd.f32 %v5189, 1e-05
          %v5199 = vadd.f32 %v5190, 1e-05
          %v5200 = vadd.f32 %v5191, 1e-05
          %v5201 = vadd.f32 %v5192, 1e-05
          %v5202 = vrsqrt.pop %v5194
          %v5203 = vrsqrt.pop %v5195
          %v5204 = vrsqrt.pop %v5196
          %v5205 = vrsqrt.pop %v5197
          %v5206 = vrsqrt.pop %v5198
          %v5207 = vrsqrt.pop %v5199
          %v5208 = vrsqrt.pop %v5200
          %v5209 = vrsqrt.pop %v5201
          %v5218 = vcombine.low %v5202, %v5203
          %v5219 = vcombine.low %v5204, %v5205
          %v5220 = vcombine.low %v5206, %v5207
          %v5221 = vcombine.low %v5208, %v5209
          %v5223 = vunpack.c.l.s4 1966171168
          %v5224 = vunpack.c.0.s8 %v5223
          %v5225 = vlaneseq
          %v5226 = vshrl.u32 %v5225, 7
          %v5227 = vsub.s32 %v5224, %v5226
          %v5228 = vrot.slane %v5218, %v5227
          %v5230 = vunpack.c.l.s4 1966171168
          %v5231 = vunpack.c.0.s8 %v5230
          %v5232 = vlaneseq
          %v5233 = vshrl.u32 %v5232, 7
          %v5234 = vsub.s32 %v5231, %v5233
          %v5235 = vrot.slane %v5219, %v5234
          %v5237 = vunpack.c.l.s4 1966171168
          %v5238 = vunpack.c.0.s8 %v5237
          %v5239 = vlaneseq
          %v5240 = vshrl.u32 %v5239, 7
          %v5241 = vsub.s32 %v5238, %v5240
          %v5242 = vrot.slane %v5220, %v5241
          %v5244 = vunpack.c.l.s4 1966171168
          %v5245 = vunpack.c.0.s8 %v5244
          %v5246 = vlaneseq
          %v5247 = vshrl.u32 %v5246, 7
          %v5248 = vsub.s32 %v5245, %v5247
          %v5249 = vrot.slane %v5221, %v5248
          %v5250 = vcombine.low %v5228, %v5235
          %v5251 = vcombine.low %v5242, %v5249
          %v5253 = vunpack.c.l.s4 1966171168
          %v5254 = vunpack.c.0.s8 %v5253
          %v5255 = vlaneseq
          %v5256 = vshrl.u32 %v5255, 7
          %v5257 = vsub.s32 %v5254, %v5256
          %v5258 = vrot.slane %v5250, %v5257
          %v5260 = vunpack.c.l.s4 1966171168
          %v5261 = vunpack.c.0.s8 %v5260
          %v5262 = vlaneseq
          %v5263 = vshrl.u32 %v5262, 7
          %v5264 = vsub.s32 %v5261, %v5263
          %v5265 = vrot.slane %v5251, %v5264
          %v5266 = vcombine.low %v5258, %v5265
          %v5268 = vmul.f32 %v5193, %v5266
          %v5269 = vld [vmem:[%s12] sm:$0xff]
          %v5271 = vlaneseq
          %v5272 = vshrl.u32 %v5271, 7
          %v5273 = vsub.s32 0, %v5272
          %v5274 = vrot.slane %v5268, %v5273
          %v5275 = vlaneseq
          %v5276 = vshrl.u32 %v5275, 7
          %v5277 = vsub.s32 1, %v5276
          %v5278 = vrot.slane %v5268, %v5277
          %v5279 = vlaneseq
          %v5280 = vshrl.u32 %v5279, 7
          %v5281 = vsub.s32 2, %v5280
          %v5282 = vrot.slane %v5268, %v5281
          %v5283 = vlaneseq
          %v5284 = vshrl.u32 %v5283, 7
          %v5285 = vsub.s32 3, %v5284
          %v5286 = vrot.slane %v5268, %v5285
          %v5287 = vlaneseq
          %v5288 = vshrl.u32 %v5287, 7
          %v5289 = vsub.s32 4, %v5288
          %v5290 = vrot.slane %v5268, %v5289
          %v5291 = vlaneseq
          %v5292 = vshrl.u32 %v5291, 7
          %v5293 = vsub.s32 5, %v5292
          %v5294 = vrot.slane %v5268, %v5293
          %v5295 = vlaneseq
          %v5296 = vshrl.u32 %v5295, 7
          %v5297 = vsub.s32 6, %v5296
          %v5298 = vrot.slane %v5268, %v5297
          %v5299 = vlaneseq
          %v5300 = vshrl.u32 %v5299, 7
          %v5301 = vsub.s32 7, %v5300
          %v5302 = vrot.slane %v5268, %v5301
          %v5311 = vmul.f32 %v5097, %v5274
          %v5312 = vmul.f32 %v5098, %v5278
          %v5313 = vmul.f32 %v5099, %v5282
          %v5314 = vmul.f32 %v5100, %v5286
          %v5315 = vmul.f32 %v5101, %v5290
          %v5316 = vmul.f32 %v5102, %v5294
          %v5317 = vmul.f32 %v5103, %v5298
          %v5318 = vmul.f32 %v5104, %v5302
          %v5327 = vcombine.low %v5311, %v5312
          %v5328 = vcombine.low %v5313, %v5314
          %v5329 = vcombine.low %v5315, %v5316
          %v5330 = vcombine.low %v5317, %v5318
          %v5332 = vunpack.c.l.s4 1966171168
          %v5333 = vunpack.c.0.s8 %v5332
          %v5334 = vlaneseq
          %v5335 = vshrl.u32 %v5334, 7
          %v5336 = vsub.s32 %v5333, %v5335
          %v5337 = vrot.slane %v5327, %v5336
          %v5339 = vunpack.c.l.s4 1966171168
          %v5340 = vunpack.c.0.s8 %v5339
          %v5341 = vlaneseq
          %v5342 = vshrl.u32 %v5341, 7
          %v5343 = vsub.s32 %v5340, %v5342
          %v5344 = vrot.slane %v5328, %v5343
          %v5346 = vunpack.c.l.s4 1966171168
          %v5347 = vunpack.c.0.s8 %v5346
          %v5348 = vlaneseq
          %v5349 = vshrl.u32 %v5348, 7
          %v5350 = vsub.s32 %v5347, %v5349
          %v5351 = vrot.slane %v5329, %v5350
          %v5353 = vunpack.c.l.s4 1966171168
          %v5354 = vunpack.c.0.s8 %v5353
          %v5355 = vlaneseq
          %v5356 = vshrl.u32 %v5355, 7
          %v5357 = vsub.s32 %v5354, %v5356
          %v5358 = vrot.slane %v5330, %v5357
          %v5359 = vcombine.low %v5337, %v5344
          %v5360 = vcombine.low %v5351, %v5358
          %v5362 = vunpack.c.l.s4 1966171168
          %v5363 = vunpack.c.0.s8 %v5362
          %v5364 = vlaneseq
          %v5365 = vshrl.u32 %v5364, 7
          %v5366 = vsub.s32 %v5363, %v5365
          %v5367 = vrot.slane %v5359, %v5366
          %v5369 = vunpack.c.l.s4 1966171168
          %v5370 = vunpack.c.0.s8 %v5369
          %v5371 = vlaneseq
          %v5372 = vshrl.u32 %v5371, 7
          %v5373 = vsub.s32 %v5370, %v5372
          %v5374 = vrot.slane %v5360, %v5373
          %v5375 = vcombine.low %v5367, %v5374
          %v5377 = vsub.f32 %v5269, %v5375
          %v5378 = vld [vmem:[#allocation8] sm:$0xff]
          %v5379 = vld [vmem:[#allocation8 + $0x8] sm:$0xff]
          %v5380 = vld [vmem:[#allocation8 + $0x10] sm:$0xff]
          %v5381 = vld [vmem:[#allocation8 + $0x18] sm:$0xff]
          %v5382 = vcombine.low %v5274, %v5278
          %v5383 = vcombine.low %v5282, %v5286
          %v5384 = vcombine.low %v5290, %v5294
          %v5385 = vcombine.low %v5298, %v5302
          %v5390 = vmul.f32 %v5378, %v5382
          %v5391 = vmul.f32 %v5379, %v5383
          %v5392 = vmul.f32 %v5380, %v5384
          %v5393 = vmul.f32 %v5381, %v5385
          %v5395 = vlaneseq
          %v5396 = vshrl.u32 %v5395, 7
          %v5397 = vsub.s32 0, %v5396
          %v5398 = vrot.slane %v5377, %v5397
          %v5399 = vlaneseq
          %v5400 = vshrl.u32 %v5399, 7
          %v5401 = vsub.s32 1, %v5400
          %v5402 = vrot.slane %v5377, %v5401
          %v5403 = vlaneseq
          %v5404 = vshrl.u32 %v5403, 7
          %v5405 = vsub.s32 2, %v5404
          %v5406 = vrot.slane %v5377, %v5405
          %v5407 = vlaneseq
          %v5408 = vshrl.u32 %v5407, 7
          %v5409 = vsub.s32 3, %v5408
          %v5410 = vrot.slane %v5377, %v5409
          %v5411 = vlaneseq
          %v5412 = vshrl.u32 %v5411, 7
          %v5413 = vsub.s32 4, %v5412
          %v5414 = vrot.slane %v5377, %v5413
          %v5415 = vlaneseq
          %v5416 = vshrl.u32 %v5415, 7
          %v5417 = vsub.s32 5, %v5416
          %v5418 = vrot.slane %v5377, %v5417
          %v5419 = vlaneseq
          %v5420 = vshrl.u32 %v5419, 7
          %v5421 = vsub.s32 6, %v5420
          %v5422 = vrot.slane %v5377, %v5421
          %v5423 = vlaneseq
          %v5424 = vshrl.u32 %v5423, 7
          %v5425 = vsub.s32 7, %v5424
          %v5426 = vrot.slane %v5377, %v5425
          %v5427 = vcombine.low %v5398, %v5402
          %v5428 = vcombine.low %v5406, %v5410
          %v5429 = vcombine.low %v5414, %v5418
          %v5430 = vcombine.low %v5422, %v5426
          %v5435 = vadd.f32 %v5390, %v5427
          %v5436 = vadd.f32 %v5391, %v5428
          %v5437 = vadd.f32 %v5392, %v5429
          %v5438 = vadd.f32 %v5393, %v5430
          %v5439 = vmax.f32 %v5435, 0.0
          %v5440 = vmax.f32 %v5436, 0.0
          %v5441 = vmax.f32 %v5437, 0.0
          %v5442 = vmax.f32 %v5438, 0.0
          %v5447 = vcombine.high %v5439, %v5439
          %v5448 = vcombine.high %v5440, %v5440
          %v5449 = vcombine.high %v5441, %v5441
          %v5450 = vcombine.high %v5442, %v5442
          %v5455 = vpack.c.bf16 %v5439, %v5439
          %v5456 = vpack.c.bf16 %v5447, %v5447
          %v5457 = vpack.c.bf16 %v5440, %v5440
          %v5458 = vpack.c.bf16 %v5448, %v5448
          %v5459 = vpack.c.bf16 %v5441, %v5441
          %v5460 = vpack.c.bf16 %v5449, %v5449
          %v5461 = vpack.c.bf16 %v5442, %v5442
          %v5462 = vpack.c.bf16 %v5450, %v5450
          %v5463 = vld [vmem:[#allocation13] sm:$0xff]
          %v5464 = vld [vmem:[#allocation13 + $0x8] sm:$0xff]
          %v5465 = vld [vmem:[#allocation13 + $0x10] sm:$0xff]
          %v5466 = vld [vmem:[#allocation13 + $0x18] sm:$0xff]
          %v5467 = vld [vmem:[#allocation13 + $0x20] sm:$0xff]
          %v5468 = vld [vmem:[#allocation13 + $0x28] sm:$0xff]
          %v5469 = vld [vmem:[#allocation13 + $0x30] sm:$0xff]
          %v5470 = vld [vmem:[#allocation13 + $0x38] sm:$0xff]
          %v5471 = vld [vmem:[#allocation13 + $0x40] sm:$0xff]
          %v5472 = vld [vmem:[#allocation13 + $0x48] sm:$0xff]
          %v5473 = vld [vmem:[#allocation13 + $0x50] sm:$0xff]
          %v5474 = vld [vmem:[#allocation13 + $0x58] sm:$0xff]
          %v5475 = vld [vmem:[#allocation13 + $0x60] sm:$0xff]
          %v5476 = vld [vmem:[#allocation13 + $0x68] sm:$0xff]
          %v5477 = vld [vmem:[#allocation13 + $0x70] sm:$0xff]
          %v5478 = vld [vmem:[#allocation13 + $0x78] sm:$0xff]
          %v5479 = vld [vmem:[#allocation13 + $0x80] sm:$0xff]
          %v5480 = vld [vmem:[#allocation13 + $0x88] sm:$0xff]
          %v5481 = vld [vmem:[#allocation13 + $0x90] sm:$0xff]
          %v5482 = vld [vmem:[#allocation13 + $0x98] sm:$0xff]
          %v5483 = vld [vmem:[#allocation13 + $0xa0] sm:$0xff]
          %v5484 = vld [vmem:[#allocation13 + $0xa8] sm:$0xff]
          %v5485 = vld [vmem:[#allocation13 + $0xb0] sm:$0xff]
          %v5486 = vld [vmem:[#allocation13 + $0xb8] sm:$0xff]
          %v5487 = vld [vmem:[#allocation13 + $0xc0] sm:$0xff]
          %v5488 = vld [vmem:[#allocation13 + $0xc8] sm:$0xff]
          %v5489 = vld [vmem:[#allocation13 + $0xd0] sm:$0xff]
          %v5490 = vld [vmem:[#allocation13 + $0xd8] sm:$0xff]
          %v5491 = vld [vmem:[#allocation13 + $0xe0] sm:$0xff]
          %v5492 = vld [vmem:[#allocation13 + $0xe8] sm:$0xff]
          %v5493 = vld [vmem:[#allocation13 + $0xf0] sm:$0xff]
          %v5494 = vld [vmem:[#allocation13 + $0xf8] sm:$0xff]
          %v5495 = vld [vmem:[#allocation13 + $0x100] sm:$0xff]
          %v5496 = vld [vmem:[#allocation13 + $0x108] sm:$0xff]
          %v5497 = vld [vmem:[#allocation13 + $0x110] sm:$0xff]
          %v5498 = vld [vmem:[#allocation13 + $0x118] sm:$0xff]
          %v5499 = vld [vmem:[#allocation13 + $0x120] sm:$0xff]
          %v5500 = vld [vmem:[#allocation13 + $0x128] sm:$0xff]
          %v5501 = vld [vmem:[#allocation13 + $0x130] sm:$0xff]
          %v5502 = vld [vmem:[#allocation13 + $0x138] sm:$0xff]
          %v5503 = vld [vmem:[#allocation13 + $0x140] sm:$0xff]
          %v5504 = vld [vmem:[#allocation13 + $0x148] sm:$0xff]
          %v5505 = vld [vmem:[#allocation13 + $0x150] sm:$0xff]
          %v5506 = vld [vmem:[#allocation13 + $0x158] sm:$0xff]
          %v5507 = vld [vmem:[#allocation13 + $0x160] sm:$0xff]
          %v5508 = vld [vmem:[#allocation13 + $0x168] sm:$0xff]
          %v5509 = vld [vmem:[#allocation13 + $0x170] sm:$0xff]
          %v5510 = vld [vmem:[#allocation13 + $0x178] sm:$0xff]
          %v5511 = vld [vmem:[#allocation13 + $0x180] sm:$0xff]
          %v5512 = vld [vmem:[#allocation13 + $0x188] sm:$0xff]
          %v5513 = vld [vmem:[#allocation13 + $0x190] sm:$0xff]
          %v5514 = vld [vmem:[#allocation13 + $0x198] sm:$0xff]
          %v5515 = vld [vmem:[#allocation13 + $0x1a0] sm:$0xff]
          %v5516 = vld [vmem:[#allocation13 + $0x1a8] sm:$0xff]
          %v5517 = vld [vmem:[#allocation13 + $0x1b0] sm:$0xff]
          %v5518 = vld [vmem:[#allocation13 + $0x1b8] sm:$0xff]
          %v5519 = vld [vmem:[#allocation13 + $0x1c0] sm:$0xff]
          %v5520 = vld [vmem:[#allocation13 + $0x1c8] sm:$0xff]
          %v5521 = vld [vmem:[#allocation13 + $0x1d0] sm:$0xff]
          %v5522 = vld [vmem:[#allocation13 + $0x1d8] sm:$0xff]
          %v5523 = vld [vmem:[#allocation13 + $0x1e0] sm:$0xff]
          %v5524 = vld [vmem:[#allocation13 + $0x1e8] sm:$0xff]
          %v5525 = vld [vmem:[#allocation13 + $0x1f0] sm:$0xff]
          %v5526 = vld [vmem:[#allocation13 + $0x1f8] sm:$0xff]
          %v5527 = vld [vmem:[#allocation13 + $0x200] sm:$0xff]
          %v5528 = vld [vmem:[#allocation13 + $0x208] sm:$0xff]
          %v5529 = vld [vmem:[#allocation13 + $0x210] sm:$0xff]
          %v5530 = vld [vmem:[#allocation13 + $0x218] sm:$0xff]
          %v5531 = vld [vmem:[#allocation13 + $0x220] sm:$0xff]
          %v5532 = vld [vmem:[#allocation13 + $0x228] sm:$0xff]
          %v5533 = vld [vmem:[#allocation13 + $0x230] sm:$0xff]
          %v5534 = vld [vmem:[#allocation13 + $0x238] sm:$0xff]
          %v5535 = vld [vmem:[#allocation13 + $0x240] sm:$0xff]
          %v5536 = vld [vmem:[#allocation13 + $0x248] sm:$0xff]
          %v5537 = vld [vmem:[#allocation13 + $0x250] sm:$0xff]
          %v5538 = vld [vmem:[#allocation13 + $0x258] sm:$0xff]
          %v5539 = vld [vmem:[#allocation13 + $0x260] sm:$0xff]
          %v5540 = vld [vmem:[#allocation13 + $0x268] sm:$0xff]
          %v5541 = vld [vmem:[#allocation13 + $0x270] sm:$0xff]
          %v5542 = vld [vmem:[#allocation13 + $0x278] sm:$0xff]
          %v5543 = vld [vmem:[#allocation13 + $0x280] sm:$0xff]
          %v5544 = vld [vmem:[#allocation13 + $0x288] sm:$0xff]
          %v5545 = vld [vmem:[#allocation13 + $0x290] sm:$0xff]
          %v5546 = vld [vmem:[#allocation13 + $0x298] sm:$0xff]
          %v5547 = vld [vmem:[#allocation13 + $0x2a0] sm:$0xff]
          %v5548 = vld [vmem:[#allocation13 + $0x2a8] sm:$0xff]
          %v5549 = vld [vmem:[#allocation13 + $0x2b0] sm:$0xff]
          %v5550 = vld [vmem:[#allocation13 + $0x2b8] sm:$0xff]
          %v5551 = vld [vmem:[#allocation13 + $0x2c0] sm:$0xff]
          %v5552 = vld [vmem:[#allocation13 + $0x2c8] sm:$0xff]
          %v5553 = vld [vmem:[#allocation13 + $0x2d0] sm:$0xff]
          %v5554 = vld [vmem:[#allocation13 + $0x2d8] sm:$0xff]
          %v5555 = vld [vmem:[#allocation13 + $0x2e0] sm:$0xff]
          %v5556 = vld [vmem:[#allocation13 + $0x2e8] sm:$0xff]
          %v5557 = vld [vmem:[#allocation13 + $0x2f0] sm:$0xff]
          %v5558 = vld [vmem:[#allocation13 + $0x2f8] sm:$0xff]
          %v5559 = vld [vmem:[#allocation13 + $0x300] sm:$0xff]
          %v5560 = vld [vmem:[#allocation13 + $0x308] sm:$0xff]
          %v5561 = vld [vmem:[#allocation13 + $0x310] sm:$0xff]
          %v5562 = vld [vmem:[#allocation13 + $0x318] sm:$0xff]
          %v5563 = vld [vmem:[#allocation13 + $0x320] sm:$0xff]
          %v5564 = vld [vmem:[#allocation13 + $0x328] sm:$0xff]
          %v5565 = vld [vmem:[#allocation13 + $0x330] sm:$0xff]
          %v5566 = vld [vmem:[#allocation13 + $0x338] sm:$0xff]
          %v5567 = vld [vmem:[#allocation13 + $0x340] sm:$0xff]
          %v5568 = vld [vmem:[#allocation13 + $0x348] sm:$0xff]
          %v5569 = vld [vmem:[#allocation13 + $0x350] sm:$0xff]
          %v5570 = vld [vmem:[#allocation13 + $0x358] sm:$0xff]
          %v5571 = vld [vmem:[#allocation13 + $0x360] sm:$0xff]
          %v5572 = vld [vmem:[#allocation13 + $0x368] sm:$0xff]
          %v5573 = vld [vmem:[#allocation13 + $0x370] sm:$0xff]
          %v5574 = vld [vmem:[#allocation13 + $0x378] sm:$0xff]
          %v5575 = vld [vmem:[#allocation13 + $0x380] sm:$0xff]
          %v5576 = vld [vmem:[#allocation13 + $0x388] sm:$0xff]
          %v5577 = vld [vmem:[#allocation13 + $0x390] sm:$0xff]
          %v5578 = vld [vmem:[#allocation13 + $0x398] sm:$0xff]
          %v5579 = vld [vmem:[#allocation13 + $0x3a0] sm:$0xff]
          %v5580 = vld [vmem:[#allocation13 + $0x3a8] sm:$0xff]
          %v5581 = vld [vmem:[#allocation13 + $0x3b0] sm:$0xff]
          %v5582 = vld [vmem:[#allocation13 + $0x3b8] sm:$0xff]
          %v5583 = vld [vmem:[#allocation13 + $0x3c0] sm:$0xff]
          %v5584 = vld [vmem:[#allocation13 + $0x3c8] sm:$0xff]
          %v5585 = vld [vmem:[#allocation13 + $0x3d0] sm:$0xff]
          %v5586 = vld [vmem:[#allocation13 + $0x3d8] sm:$0xff]
          %v5587 = vld [vmem:[#allocation13 + $0x3e0] sm:$0xff]
          %v5588 = vld [vmem:[#allocation13 + $0x3e8] sm:$0xff]
          %v5589 = vld [vmem:[#allocation13 + $0x3f0] sm:$0xff]
          %v5590 = vld [vmem:[#allocation13 + $0x3f8] sm:$0xff]
          %v5591 = vld [vmem:[#allocation13 + $0x400] sm:$0xff]
          %v5592 = vld [vmem:[#allocation13 + $0x408] sm:$0xff]
          %v5593 = vld [vmem:[#allocation13 + $0x410] sm:$0xff]
          %v5594 = vld [vmem:[#allocation13 + $0x418] sm:$0xff]
          %v5595 = vld [vmem:[#allocation13 + $0x420] sm:$0xff]
          %v5596 = vld [vmem:[#allocation13 + $0x428] sm:$0xff]
          %v5597 = vld [vmem:[#allocation13 + $0x430] sm:$0xff]
          %v5598 = vld [vmem:[#allocation13 + $0x438] sm:$0xff]
          %v5599 = vld [vmem:[#allocation13 + $0x440] sm:$0xff]
          %v5600 = vld [vmem:[#allocation13 + $0x448] sm:$0xff]
          %v5601 = vld [vmem:[#allocation13 + $0x450] sm:$0xff]
          %v5602 = vld [vmem:[#allocation13 + $0x458] sm:$0xff]
          %v5603 = vld [vmem:[#allocation13 + $0x460] sm:$0xff]
          %v5604 = vld [vmem:[#allocation13 + $0x468] sm:$0xff]
          %v5605 = vld [vmem:[#allocation13 + $0x470] sm:$0xff]
          %v5606 = vld [vmem:[#allocation13 + $0x478] sm:$0xff]
          %v5607 = vld [vmem:[#allocation13 + $0x480] sm:$0xff]
          %v5608 = vld [vmem:[#allocation13 + $0x488] sm:$0xff]
          %v5609 = vld [vmem:[#allocation13 + $0x490] sm:$0xff]
          %v5610 = vld [vmem:[#allocation13 + $0x498] sm:$0xff]
          %v5611 = vld [vmem:[#allocation13 + $0x4a0] sm:$0xff]
          %v5612 = vld [vmem:[#allocation13 + $0x4a8] sm:$0xff]
          %v5613 = vld [vmem:[#allocation13 + $0x4b0] sm:$0xff]
          %v5614 = vld [vmem:[#allocation13 + $0x4b8] sm:$0xff]
          %v5615 = vld [vmem:[#allocation13 + $0x4c0] sm:$0xff]
          %v5616 = vld [vmem:[#allocation13 + $0x4c8] sm:$0xff]
          %v5617 = vld [vmem:[#allocation13 + $0x4d0] sm:$0xff]
          %v5618 = vld [vmem:[#allocation13 + $0x4d8] sm:$0xff]
          %v5619 = vld [vmem:[#allocation13 + $0x4e0] sm:$0xff]
          %v5620 = vld [vmem:[#allocation13 + $0x4e8] sm:$0xff]
          %v5621 = vld [vmem:[#allocation13 + $0x4f0] sm:$0xff]
          %v5622 = vld [vmem:[#allocation13 + $0x4f8] sm:$0xff]
          %v5623 = vld [vmem:[#allocation13 + $0x500] sm:$0xff]
          %v5624 = vld [vmem:[#allocation13 + $0x508] sm:$0xff]
          %v5625 = vld [vmem:[#allocation13 + $0x510] sm:$0xff]
          %v5626 = vld [vmem:[#allocation13 + $0x518] sm:$0xff]
          %v5627 = vld [vmem:[#allocation13 + $0x520] sm:$0xff]
          %v5628 = vld [vmem:[#allocation13 + $0x528] sm:$0xff]
          %v5629 = vld [vmem:[#allocation13 + $0x530] sm:$0xff]
          %v5630 = vld [vmem:[#allocation13 + $0x538] sm:$0xff]
          %v5631 = vld [vmem:[#allocation13 + $0x540] sm:$0xff]
          %v5632 = vld [vmem:[#allocation13 + $0x548] sm:$0xff]
          %v5633 = vld [vmem:[#allocation13 + $0x550] sm:$0xff]
          %v5634 = vld [vmem:[#allocation13 + $0x558] sm:$0xff]
          %v5635 = vld [vmem:[#allocation13 + $0x560] sm:$0xff]
          %v5636 = vld [vmem:[#allocation13 + $0x568] sm:$0xff]
          %v5637 = vld [vmem:[#allocation13 + $0x570] sm:$0xff]
          %v5638 = vld [vmem:[#allocation13 + $0x578] sm:$0xff]
          %v5639 = vld [vmem:[#allocation13 + $0x580] sm:$0xff]
          %v5640 = vld [vmem:[#allocation13 + $0x588] sm:$0xff]
          %v5641 = vld [vmem:[#allocation13 + $0x590] sm:$0xff]
          %v5642 = vld [vmem:[#allocation13 + $0x598] sm:$0xff]
          %v5643 = vld [vmem:[#allocation13 + $0x5a0] sm:$0xff]
          %v5644 = vld [vmem:[#allocation13 + $0x5a8] sm:$0xff]
          %v5645 = vld [vmem:[#allocation13 + $0x5b0] sm:$0xff]
          %v5646 = vld [vmem:[#allocation13 + $0x5b8] sm:$0xff]
          %v5647 = vld [vmem:[#allocation13 + $0x5c0] sm:$0xff]
          %v5648 = vld [vmem:[#allocation13 + $0x5c8] sm:$0xff]
          %v5649 = vld [vmem:[#allocation13 + $0x5d0] sm:$0xff]
          %v5650 = vld [vmem:[#allocation13 + $0x5d8] sm:$0xff]
          %v5651 = vld [vmem:[#allocation13 + $0x5e0] sm:$0xff]
          %v5652 = vld [vmem:[#allocation13 + $0x5e8] sm:$0xff]
          %v5653 = vld [vmem:[#allocation13 + $0x5f0] sm:$0xff]
          %v5654 = vld [vmem:[#allocation13 + $0x5f8] sm:$0xff]
          %v5655 = vld [vmem:[#allocation13 + $0x600] sm:$0xff]
          %v5656 = vld [vmem:[#allocation13 + $0x608] sm:$0xff]
          %v5657 = vld [vmem:[#allocation13 + $0x610] sm:$0xff]
          %v5658 = vld [vmem:[#allocation13 + $0x618] sm:$0xff]
          %v5659 = vld [vmem:[#allocation13 + $0x620] sm:$0xff]
          %v5660 = vld [vmem:[#allocation13 + $0x628] sm:$0xff]
          %v5661 = vld [vmem:[#allocation13 + $0x630] sm:$0xff]
          %v5662 = vld [vmem:[#allocation13 + $0x638] sm:$0xff]
          %v5663 = vld [vmem:[#allocation13 + $0x640] sm:$0xff]
          %v5664 = vld [vmem:[#allocation13 + $0x648] sm:$0xff]
          %v5665 = vld [vmem:[#allocation13 + $0x650] sm:$0xff]
          %v5666 = vld [vmem:[#allocation13 + $0x658] sm:$0xff]
          %v5667 = vld [vmem:[#allocation13 + $0x660] sm:$0xff]
          %v5668 = vld [vmem:[#allocation13 + $0x668] sm:$0xff]
          %v5669 = vld [vmem:[#allocation13 + $0x670] sm:$0xff]
          %v5670 = vld [vmem:[#allocation13 + $0x678] sm:$0xff]
          %v5671 = vld [vmem:[#allocation13 + $0x680] sm:$0xff]
          %v5672 = vld [vmem:[#allocation13 + $0x688] sm:$0xff]
          %v5673 = vld [vmem:[#allocation13 + $0x690] sm:$0xff]
          %v5674 = vld [vmem:[#allocation13 + $0x698] sm:$0xff]
          %v5675 = vld [vmem:[#allocation13 + $0x6a0] sm:$0xff]
          %v5676 = vld [vmem:[#allocation13 + $0x6a8] sm:$0xff]
          %v5677 = vld [vmem:[#allocation13 + $0x6b0] sm:$0xff]
          %v5678 = vld [vmem:[#allocation13 + $0x6b8] sm:$0xff]
          %v5679 = vld [vmem:[#allocation13 + $0x6c0] sm:$0xff]
          %v5680 = vld [vmem:[#allocation13 + $0x6c8] sm:$0xff]
          %v5681 = vld [vmem:[#allocation13 + $0x6d0] sm:$0xff]
          %v5682 = vld [vmem:[#allocation13 + $0x6d8] sm:$0xff]
          %v5683 = vld [vmem:[#allocation13 + $0x6e0] sm:$0xff]
          %v5684 = vld [vmem:[#allocation13 + $0x6e8] sm:$0xff]
          %v5685 = vld [vmem:[#allocation13 + $0x6f0] sm:$0xff]
          %v5686 = vld [vmem:[#allocation13 + $0x6f8] sm:$0xff]
          %v5687 = vld [vmem:[#allocation13 + $0x700] sm:$0xff]
          %v5688 = vld [vmem:[#allocation13 + $0x708] sm:$0xff]
          %v5689 = vld [vmem:[#allocation13 + $0x710] sm:$0xff]
          %v5690 = vld [vmem:[#allocation13 + $0x718] sm:$0xff]
          %v5691 = vld [vmem:[#allocation13 + $0x720] sm:$0xff]
          %v5692 = vld [vmem:[#allocation13 + $0x728] sm:$0xff]
          %v5693 = vld [vmem:[#allocation13 + $0x730] sm:$0xff]
          %v5694 = vld [vmem:[#allocation13 + $0x738] sm:$0xff]
          %v5695 = vld [vmem:[#allocation13 + $0x740] sm:$0xff]
          %v5696 = vld [vmem:[#allocation13 + $0x748] sm:$0xff]
          %v5697 = vld [vmem:[#allocation13 + $0x750] sm:$0xff]
          %v5698 = vld [vmem:[#allocation13 + $0x758] sm:$0xff]
          %v5699 = vld [vmem:[#allocation13 + $0x760] sm:$0xff]
          %v5700 = vld [vmem:[#allocation13 + $0x768] sm:$0xff]
          %v5701 = vld [vmem:[#allocation13 + $0x770] sm:$0xff]
          %v5702 = vld [vmem:[#allocation13 + $0x778] sm:$0xff]
          %v5703 = vld [vmem:[#allocation13 + $0x780] sm:$0xff]
          %v5704 = vld [vmem:[#allocation13 + $0x788] sm:$0xff]
          %v5705 = vld [vmem:[#allocation13 + $0x790] sm:$0xff]
          %v5706 = vld [vmem:[#allocation13 + $0x798] sm:$0xff]
          %v5707 = vld [vmem:[#allocation13 + $0x7a0] sm:$0xff]
          %v5708 = vld [vmem:[#allocation13 + $0x7a8] sm:$0xff]
          %v5709 = vld [vmem:[#allocation13 + $0x7b0] sm:$0xff]
          %v5710 = vld [vmem:[#allocation13 + $0x7b8] sm:$0xff]
          %v5711 = vld [vmem:[#allocation13 + $0x7c0] sm:$0xff]
          %v5712 = vld [vmem:[#allocation13 + $0x7c8] sm:$0xff]
          %v5713 = vld [vmem:[#allocation13 + $0x7d0] sm:$0xff]
          %v5714 = vld [vmem:[#allocation13 + $0x7d8] sm:$0xff]
          %v5715 = vld [vmem:[#allocation13 + $0x7e0] sm:$0xff]
          %v5716 = vld [vmem:[#allocation13 + $0x7e8] sm:$0xff]
          %v5717 = vld [vmem:[#allocation13 + $0x7f0] sm:$0xff]
          %v5718 = vld [vmem:[#allocation13 + $0x7f8] sm:$0xff]
          %v5719 = vld [vmem:[%s14] sm:$0xf]
          %v5721 = vlaneseq
          %v5722 = vshrl.u32 %v5721, 7
          %v5723 = vsub.s32 0, %v5722
          %v5724 = vrot.slane %v5719, %v5723
          %v5725 = vlaneseq
          %v5726 = vshrl.u32 %v5725, 7
          %v5727 = vsub.s32 1, %v5726
          %v5728 = vrot.slane %v5719, %v5727
          %v5729 = vlaneseq
          %v5730 = vshrl.u32 %v5729, 7
          %v5731 = vsub.s32 2, %v5730
          %v5732 = vrot.slane %v5719, %v5731
          %v5733 = vlaneseq
          %v5734 = vshrl.u32 %v5733, 7
          %v5735 = vsub.s32 3, %v5734
          %v5736 = vrot.slane %v5719, %v5735
          %v5997 = vunpack.c.l.b16 %v5463
          %v5998 = vunpack.c.h.b16 %v5463
          %v5999 = vunpack.c.l.b16 %v5464
          %v6000 = vunpack.c.h.b16 %v5464
          %v6001 = vunpack.c.l.b16 %v5465
          %v6002 = vunpack.c.h.b16 %v5465
          %v6003 = vunpack.c.l.b16 %v5466
          %v6004 = vunpack.c.h.b16 %v5466
          %v6005 = vunpack.c.l.b16 %v5467
          %v6006 = vunpack.c.h.b16 %v5467
          %v6007 = vunpack.c.l.b16 %v5468
          %v6008 = vunpack.c.h.b16 %v5468
          %v6009 = vunpack.c.l.b16 %v5469
          %v6010 = vunpack.c.h.b16 %v5469
          %v6011 = vunpack.c.l.b16 %v5470
          %v6012 = vunpack.c.h.b16 %v5470
          %v6013 = vunpack.c.l.b16 %v5471
          %v6014 = vunpack.c.h.b16 %v5471
          %v6015 = vunpack.c.l.b16 %v5472
          %v6016 = vunpack.c.h.b16 %v5472
          %v6017 = vunpack.c.l.b16 %v5473
          %v6018 = vunpack.c.h.b16 %v5473
          %v6019 = vunpack.c.l.b16 %v5474
          %v6020 = vunpack.c.h.b16 %v5474
          %v6021 = vunpack.c.l.b16 %v5475
          %v6022 = vunpack.c.h.b16 %v5475
          %v6023 = vunpack.c.l.b16 %v5476
          %v6024 = vunpack.c.h.b16 %v5476
          %v6025 = vunpack.c.l.b16 %v5477
          %v6026 = vunpack.c.h.b16 %v5477
          %v6027 = vunpack.c.l.b16 %v5478
          %v6028 = vunpack.c.h.b16 %v5478
          %v6029 = vunpack.c.l.b16 %v5479
          %v6030 = vunpack.c.h.b16 %v5479
          %v6031 = vunpack.c.l.b16 %v5480
          %v6032 = vunpack.c.h.b16 %v5480
          %v6033 = vunpack.c.l.b16 %v5481
          %v6034 = vunpack.c.h.b16 %v5481
          %v6035 = vunpack.c.l.b16 %v5482
          %v6036 = vunpack.c.h.b16 %v5482
          %v6037 = vunpack.c.l.b16 %v5483
          %v6038 = vunpack.c.h.b16 %v5483
          %v6039 = vunpack.c.l.b16 %v5484
          %v6040 = vunpack.c.h.b16 %v5484
          %v6041 = vunpack.c.l.b16 %v5485
          %v6042 = vunpack.c.h.b16 %v5485
          %v6043 = vunpack.c.l.b16 %v5486
          %v6044 = vunpack.c.h.b16 %v5486
          %v6045 = vunpack.c.l.b16 %v5487
          %v6046 = vunpack.c.h.b16 %v5487
          %v6047 = vunpack.c.l.b16 %v5488
          %v6048 = vunpack.c.h.b16 %v5488
          %v6049 = vunpack.c.l.b16 %v5489
          %v6050 = vunpack.c.h.b16 %v5489
          %v6051 = vunpack.c.l.b16 %v5490
          %v6052 = vunpack.c.h.b16 %v5490
          %v6053 = vunpack.c.l.b16 %v5491
          %v6054 = vunpack.c.h.b16 %v5491
          %v6055 = vunpack.c.l.b16 %v5492
          %v6056 = vunpack.c.h.b16 %v5492
          %v6057 = vunpack.c.l.b16 %v5493
          %v6058 = vunpack.c.h.b16 %v5493
          %v6059 = vunpack.c.l.b16 %v5494
          %v6060 = vunpack.c.h.b16 %v5494
          %v6061 = vunpack.c.l.b16 %v5495
          %v6062 = vunpack.c.h.b16 %v5495
          %v6063 = vunpack.c.l.b16 %v5496
          %v6064 = vunpack.c.h.b16 %v5496
          %v6065 = vunpack.c.l.b16 %v5497
          %v6066 = vunpack.c.h.b16 %v5497
          %v6067 = vunpack.c.l.b16 %v5498
          %v6068 = vunpack.c.h.b16 %v5498
          %v6069 = vunpack.c.l.b16 %v5499
          %v6070 = vunpack.c.h.b16 %v5499
          %v6071 = vunpack.c.l.b16 %v5500
          %v6072 = vunpack.c.h.b16 %v5500
          %v6073 = vunpack.c.l.b16 %v5501
          %v6074 = vunpack.c.h.b16 %v5501
          %v6075 = vunpack.c.l.b16 %v5502
          %v6076 = vunpack.c.h.b16 %v5502
          %v6077 = vunpack.c.l.b16 %v5503
          %v6078 = vunpack.c.h.b16 %v5503
          %v6079 = vunpack.c.l.b16 %v5504
          %v6080 = vunpack.c.h.b16 %v5504
          %v6081 = vunpack.c.l.b16 %v5505
          %v6082 = vunpack.c.h.b16 %v5505
          %v6083 = vunpack.c.l.b16 %v5506
          %v6084 = vunpack.c.h.b16 %v5506
          %v6085 = vunpack.c.l.b16 %v5507
          %v6086 = vunpack.c.h.b16 %v5507
          %v6087 = vunpack.c.l.b16 %v5508
          %v6088 = vunpack.c.h.b16 %v5508
          %v6089 = vunpack.c.l.b16 %v5509
          %v6090 = vunpack.c.h.b16 %v5509
          %v6091 = vunpack.c.l.b16 %v5510
          %v6092 = vunpack.c.h.b16 %v5510
          %v6093 = vunpack.c.l.b16 %v5511
          %v6094 = vunpack.c.h.b16 %v5511
          %v6095 = vunpack.c.l.b16 %v5512
          %v6096 = vunpack.c.h.b16 %v5512
          %v6097 = vunpack.c.l.b16 %v5513
          %v6098 = vunpack.c.h.b16 %v5513
          %v6099 = vunpack.c.l.b16 %v5514
          %v6100 = vunpack.c.h.b16 %v5514
          %v6101 = vunpack.c.l.b16 %v5515
          %v6102 = vunpack.c.h.b16 %v5515
          %v6103 = vunpack.c.l.b16 %v5516
          %v6104 = vunpack.c.h.b16 %v5516
          %v6105 = vunpack.c.l.b16 %v5517
          %v6106 = vunpack.c.h.b16 %v5517
          %v6107 = vunpack.c.l.b16 %v5518
          %v6108 = vunpack.c.h.b16 %v5518
          %v6109 = vunpack.c.l.b16 %v5519
          %v6110 = vunpack.c.h.b16 %v5519
          %v6111 = vunpack.c.l.b16 %v5520
          %v6112 = vunpack.c.h.b16 %v5520
          %v6113 = vunpack.c.l.b16 %v5521
          %v6114 = vunpack.c.h.b16 %v5521
          %v6115 = vunpack.c.l.b16 %v5522
          %v6116 = vunpack.c.h.b16 %v5522
          %v6117 = vunpack.c.l.b16 %v5523
          %v6118 = vunpack.c.h.b16 %v5523
          %v6119 = vunpack.c.l.b16 %v5524
          %v6120 = vunpack.c.h.b16 %v5524
          %v6121 = vunpack.c.l.b16 %v5525
          %v6122 = vunpack.c.h.b16 %v5525
          %v6123 = vunpack.c.l.b16 %v5526
          %v6124 = vunpack.c.h.b16 %v5526
          %v6125 = vunpack.c.l.b16 %v5527
          %v6126 = vunpack.c.h.b16 %v5527
          %v6127 = vunpack.c.l.b16 %v5528
          %v6128 = vunpack.c.h.b16 %v5528
          %v6129 = vunpack.c.l.b16 %v5529
          %v6130 = vunpack.c.h.b16 %v5529
          %v6131 = vunpack.c.l.b16 %v5530
          %v6132 = vunpack.c.h.b16 %v5530
          %v6133 = vunpack.c.l.b16 %v5531
          %v6134 = vunpack.c.h.b16 %v5531
          %v6135 = vunpack.c.l.b16 %v5532
          %v6136 = vunpack.c.h.b16 %v5532
          %v6137 = vunpack.c.l.b16 %v5533
          %v6138 = vunpack.c.h.b16 %v5533
          %v6139 = vunpack.c.l.b16 %v5534
          %v6140 = vunpack.c.h.b16 %v5534
          %v6141 = vunpack.c.l.b16 %v5535
          %v6142 = vunpack.c.h.b16 %v5535
          %v6143 = vunpack.c.l.b16 %v5536
          %v6144 = vunpack.c.h.b16 %v5536
          %v6145 = vunpack.c.l.b16 %v5537
          %v6146 = vunpack.c.h.b16 %v5537
          %v6147 = vunpack.c.l.b16 %v5538
          %v6148 = vunpack.c.h.b16 %v5538
          %v6149 = vunpack.c.l.b16 %v5539
          %v6150 = vunpack.c.h.b16 %v5539
          %v6151 = vunpack.c.l.b16 %v5540
          %v6152 = vunpack.c.h.b16 %v5540
          %v6153 = vunpack.c.l.b16 %v5541
          %v6154 = vunpack.c.h.b16 %v5541
          %v6155 = vunpack.c.l.b16 %v5542
          %v6156 = vunpack.c.h.b16 %v5542
          %v6157 = vunpack.c.l.b16 %v5543
          %v6158 = vunpack.c.h.b16 %v5543
          %v6159 = vunpack.c.l.b16 %v5544
          %v6160 = vunpack.c.h.b16 %v5544
          %v6161 = vunpack.c.l.b16 %v5545
          %v6162 = vunpack.c.h.b16 %v5545
          %v6163 = vunpack.c.l.b16 %v5546
          %v6164 = vunpack.c.h.b16 %v5546
          %v6165 = vunpack.c.l.b16 %v5547
          %v6166 = vunpack.c.h.b16 %v5547
          %v6167 = vunpack.c.l.b16 %v5548
          %v6168 = vunpack.c.h.b16 %v5548
          %v6169 = vunpack.c.l.b16 %v5549
          %v6170 = vunpack.c.h.b16 %v5549
          %v6171 = vunpack.c.l.b16 %v5550
          %v6172 = vunpack.c.h.b16 %v5550
          %v6173 = vunpack.c.l.b16 %v5551
          %v6174 = vunpack.c.h.b16 %v5551
          %v6175 = vunpack.c.l.b16 %v5552
          %v6176 = vunpack.c.h.b16 %v5552
          %v6177 = vunpack.c.l.b16 %v5553
          %v6178 = vunpack.c.h.b16 %v5553
          %v6179 = vunpack.c.l.b16 %v5554
          %v6180 = vunpack.c.h.b16 %v5554
          %v6181 = vunpack.c.l.b16 %v5555
          %v6182 = vunpack.c.h.b16 %v5555
          %v6183 = vunpack.c.l.b16 %v5556
          %v6184 = vunpack.c.h.b16 %v5556
          %v6185 = vunpack.c.l.b16 %v5557
          %v6186 = vunpack.c.h.b16 %v5557
          %v6187 = vunpack.c.l.b16 %v5558
          %v6188 = vunpack.c.h.b16 %v5558
          %v6189 = vunpack.c.l.b16 %v5559
          %v6190 = vunpack.c.h.b16 %v5559
          %v6191 = vunpack.c.l.b16 %v5560
          %v6192 = vunpack.c.h.b16 %v5560
          %v6193 = vunpack.c.l.b16 %v5561
          %v6194 = vunpack.c.h.b16 %v5561
          %v6195 = vunpack.c.l.b16 %v5562
          %v6196 = vunpack.c.h.b16 %v5562
          %v6197 = vunpack.c.l.b16 %v5563
          %v6198 = vunpack.c.h.b16 %v5563
          %v6199 = vunpack.c.l.b16 %v5564
          %v6200 = vunpack.c.h.b16 %v5564
          %v6201 = vunpack.c.l.b16 %v5565
          %v6202 = vunpack.c.h.b16 %v5565
          %v6203 = vunpack.c.l.b16 %v5566
          %v6204 = vunpack.c.h.b16 %v5566
          %v6205 = vunpack.c.l.b16 %v5567
          %v6206 = vunpack.c.h.b16 %v5567
          %v6207 = vunpack.c.l.b16 %v5568
          %v6208 = vunpack.c.h.b16 %v5568
          %v6209 = vunpack.c.l.b16 %v5569
          %v6210 = vunpack.c.h.b16 %v5569
          %v6211 = vunpack.c.l.b16 %v5570
          %v6212 = vunpack.c.h.b16 %v5570
          %v6213 = vunpack.c.l.b16 %v5571
          %v6214 = vunpack.c.h.b16 %v5571
          %v6215 = vunpack.c.l.b16 %v5572
          %v6216 = vunpack.c.h.b16 %v5572
          %v6217 = vunpack.c.l.b16 %v5573
          %v6218 = vunpack.c.h.b16 %v5573
          %v6219 = vunpack.c.l.b16 %v5574
          %v6220 = vunpack.c.h.b16 %v5574
          %v6221 = vunpack.c.l.b16 %v5575
          %v6222 = vunpack.c.h.b16 %v5575
          %v6223 = vunpack.c.l.b16 %v5576
          %v6224 = vunpack.c.h.b16 %v5576
          %v6225 = vunpack.c.l.b16 %v5577
          %v6226 = vunpack.c.h.b16 %v5577
          %v6227 = vunpack.c.l.b16 %v5578
          %v6228 = vunpack.c.h.b16 %v5578
          %v6229 = vunpack.c.l.b16 %v5579
          %v6230 = vunpack.c.h.b16 %v5579
          %v6231 = vunpack.c.l.b16 %v5580
          %v6232 = vunpack.c.h.b16 %v5580
          %v6233 = vunpack.c.l.b16 %v5581
          %v6234 = vunpack.c.h.b16 %v5581
          %v6235 = vunpack.c.l.b16 %v5582
          %v6236 = vunpack.c.h.b16 %v5582
          %v6237 = vunpack.c.l.b16 %v5583
          %v6238 = vunpack.c.h.b16 %v5583
          %v6239 = vunpack.c.l.b16 %v5584
          %v6240 = vunpack.c.h.b16 %v5584
          %v6241 = vunpack.c.l.b16 %v5585
          %v6242 = vunpack.c.h.b16 %v5585
          %v6243 = vunpack.c.l.b16 %v5586
          %v6244 = vunpack.c.h.b16 %v5586
          %v6245 = vunpack.c.l.b16 %v5587
          %v6246 = vunpack.c.h.b16 %v5587
          %v6247 = vunpack.c.l.b16 %v5588
          %v6248 = vunpack.c.h.b16 %v5588
          %v6249 = vunpack.c.l.b16 %v5589
          %v6250 = vunpack.c.h.b16 %v5589
          %v6251 = vunpack.c.l.b16 %v5590
          %v6252 = vunpack.c.h.b16 %v5590
          %v6253 = vunpack.c.l.b16 %v5591
          %v6254 = vunpack.c.h.b16 %v5591
          %v6255 = vunpack.c.l.b16 %v5592
          %v6256 = vunpack.c.h.b16 %v5592
          %v6257 = vunpack.c.l.b16 %v5593
          %v6258 = vunpack.c.h.b16 %v5593
          %v6259 = vunpack.c.l.b16 %v5594
          %v6260 = vunpack.c.h.b16 %v5594
          %v6261 = vunpack.c.l.b16 %v5595
          %v6262 = vunpack.c.h.b16 %v5595
          %v6263 = vunpack.c.l.b16 %v5596
          %v6264 = vunpack.c.h.b16 %v5596
          %v6265 = vunpack.c.l.b16 %v5597
          %v6266 = vunpack.c.h.b16 %v5597
          %v6267 = vunpack.c.l.b16 %v5598
          %v6268 = vunpack.c.h.b16 %v5598
          %v6269 = vunpack.c.l.b16 %v5599
          %v6270 = vunpack.c.h.b16 %v5599
          %v6271 = vunpack.c.l.b16 %v5600
          %v6272 = vunpack.c.h.b16 %v5600
          %v6273 = vunpack.c.l.b16 %v5601
          %v6274 = vunpack.c.h.b16 %v5601
          %v6275 = vunpack.c.l.b16 %v5602
          %v6276 = vunpack.c.h.b16 %v5602
          %v6277 = vunpack.c.l.b16 %v5603
          %v6278 = vunpack.c.h.b16 %v5603
          %v6279 = vunpack.c.l.b16 %v5604
          %v6280 = vunpack.c.h.b16 %v5604
          %v6281 = vunpack.c.l.b16 %v5605
          %v6282 = vunpack.c.h.b16 %v5605
          %v6283 = vunpack.c.l.b16 %v5606
          %v6284 = vunpack.c.h.b16 %v5606
          %v6285 = vunpack.c.l.b16 %v5607
          %v6286 = vunpack.c.h.b16 %v5607
          %v6287 = vunpack.c.l.b16 %v5608
          %v6288 = vunpack.c.h.b16 %v5608
          %v6289 = vunpack.c.l.b16 %v5609
          %v6290 = vunpack.c.h.b16 %v5609
          %v6291 = vunpack.c.l.b16 %v5610
          %v6292 = vunpack.c.h.b16 %v5610
          %v6293 = vunpack.c.l.b16 %v5611
          %v6294 = vunpack.c.h.b16 %v5611
          %v6295 = vunpack.c.l.b16 %v5612
          %v6296 = vunpack.c.h.b16 %v5612
          %v6297 = vunpack.c.l.b16 %v5613
          %v6298 = vunpack.c.h.b16 %v5613
          %v6299 = vunpack.c.l.b16 %v5614
          %v6300 = vunpack.c.h.b16 %v5614
          %v6301 = vunpack.c.l.b16 %v5615
          %v6302 = vunpack.c.h.b16 %v5615
          %v6303 = vunpack.c.l.b16 %v5616
          %v6304 = vunpack.c.h.b16 %v5616
          %v6305 = vunpack.c.l.b16 %v5617
          %v6306 = vunpack.c.h.b16 %v5617
          %v6307 = vunpack.c.l.b16 %v5618
          %v6308 = vunpack.c.h.b16 %v5618
          %v6309 = vunpack.c.l.b16 %v5619
          %v6310 = vunpack.c.h.b16 %v5619
          %v6311 = vunpack.c.l.b16 %v5620
          %v6312 = vunpack.c.h.b16 %v5620
          %v6313 = vunpack.c.l.b16 %v5621
          %v6314 = vunpack.c.h.b16 %v5621
          %v6315 = vunpack.c.l.b16 %v5622
          %v6316 = vunpack.c.h.b16 %v5622
          %v6317 = vunpack.c.l.b16 %v5623
          %v6318 = vunpack.c.h.b16 %v5623
          %v6319 = vunpack.c.l.b16 %v5624
          %v6320 = vunpack.c.h.b16 %v5624
          %v6321 = vunpack.c.l.b16 %v5625
          %v6322 = vunpack.c.h.b16 %v5625
          %v6323 = vunpack.c.l.b16 %v5626
          %v6324 = vunpack.c.h.b16 %v5626
          %v6325 = vunpack.c.l.b16 %v5627
          %v6326 = vunpack.c.h.b16 %v5627
          %v6327 = vunpack.c.l.b16 %v5628
          %v6328 = vunpack.c.h.b16 %v5628
          %v6329 = vunpack.c.l.b16 %v5629
          %v6330 = vunpack.c.h.b16 %v5629
          %v6331 = vunpack.c.l.b16 %v5630
          %v6332 = vunpack.c.h.b16 %v5630
          %v6333 = vunpack.c.l.b16 %v5631
          %v6334 = vunpack.c.h.b16 %v5631
          %v6335 = vunpack.c.l.b16 %v5632
          %v6336 = vunpack.c.h.b16 %v5632
          %v6337 = vunpack.c.l.b16 %v5633
          %v6338 = vunpack.c.h.b16 %v5633
          %v6339 = vunpack.c.l.b16 %v5634
          %v6340 = vunpack.c.h.b16 %v5634
          %v6341 = vunpack.c.l.b16 %v5635
          %v6342 = vunpack.c.h.b16 %v5635
          %v6343 = vunpack.c.l.b16 %v5636
          %v6344 = vunpack.c.h.b16 %v5636
          %v6345 = vunpack.c.l.b16 %v5637
          %v6346 = vunpack.c.h.b16 %v5637
          %v6347 = vunpack.c.l.b16 %v5638
          %v6348 = vunpack.c.h.b16 %v5638
          %v6349 = vunpack.c.l.b16 %v5639
          %v6350 = vunpack.c.h.b16 %v5639
          %v6351 = vunpack.c.l.b16 %v5640
          %v6352 = vunpack.c.h.b16 %v5640
          %v6353 = vunpack.c.l.b16 %v5641
          %v6354 = vunpack.c.h.b16 %v5641
          %v6355 = vunpack.c.l.b16 %v5642
          %v6356 = vunpack.c.h.b16 %v5642
          %v6357 = vunpack.c.l.b16 %v5643
          %v6358 = vunpack.c.h.b16 %v5643
          %v6359 = vunpack.c.l.b16 %v5644
          %v6360 = vunpack.c.h.b16 %v5644
          %v6361 = vunpack.c.l.b16 %v5645
          %v6362 = vunpack.c.h.b16 %v5645
          %v6363 = vunpack.c.l.b16 %v5646
          %v6364 = vunpack.c.h.b16 %v5646
          %v6365 = vunpack.c.l.b16 %v5647
          %v6366 = vunpack.c.h.b16 %v5647
          %v6367 = vunpack.c.l.b16 %v5648
          %v6368 = vunpack.c.h.b16 %v5648
          %v6369 = vunpack.c.l.b16 %v5649
          %v6370 = vunpack.c.h.b16 %v5649
          %v6371 = vunpack.c.l.b16 %v5650
          %v6372 = vunpack.c.h.b16 %v5650
          %v6373 = vunpack.c.l.b16 %v5651
          %v6374 = vunpack.c.h.b16 %v5651
          %v6375 = vunpack.c.l.b16 %v5652
          %v6376 = vunpack.c.h.b16 %v5652
          %v6377 = vunpack.c.l.b16 %v5653
          %v6378 = vunpack.c.h.b16 %v5653
          %v6379 = vunpack.c.l.b16 %v5654
          %v6380 = vunpack.c.h.b16 %v5654
          %v6381 = vunpack.c.l.b16 %v5655
          %v6382 = vunpack.c.h.b16 %v5655
          %v6383 = vunpack.c.l.b16 %v5656
          %v6384 = vunpack.c.h.b16 %v5656
          %v6385 = vunpack.c.l.b16 %v5657
          %v6386 = vunpack.c.h.b16 %v5657
          %v6387 = vunpack.c.l.b16 %v5658
          %v6388 = vunpack.c.h.b16 %v5658
          %v6389 = vunpack.c.l.b16 %v5659
          %v6390 = vunpack.c.h.b16 %v5659
          %v6391 = vunpack.c.l.b16 %v5660
          %v6392 = vunpack.c.h.b16 %v5660
          %v6393 = vunpack.c.l.b16 %v5661
          %v6394 = vunpack.c.h.b16 %v5661
          %v6395 = vunpack.c.l.b16 %v5662
          %v6396 = vunpack.c.h.b16 %v5662
          %v6397 = vunpack.c.l.b16 %v5663
          %v6398 = vunpack.c.h.b16 %v5663
          %v6399 = vunpack.c.l.b16 %v5664
          %v6400 = vunpack.c.h.b16 %v5664
          %v6401 = vunpack.c.l.b16 %v5665
          %v6402 = vunpack.c.h.b16 %v5665
          %v6403 = vunpack.c.l.b16 %v5666
          %v6404 = vunpack.c.h.b16 %v5666
          %v6405 = vunpack.c.l.b16 %v5667
          %v6406 = vunpack.c.h.b16 %v5667
          %v6407 = vunpack.c.l.b16 %v5668
          %v6408 = vunpack.c.h.b16 %v5668
          %v6409 = vunpack.c.l.b16 %v5669
          %v6410 = vunpack.c.h.b16 %v5669
          %v6411 = vunpack.c.l.b16 %v5670
          %v6412 = vunpack.c.h.b16 %v5670
          %v6413 = vunpack.c.l.b16 %v5671
          %v6414 = vunpack.c.h.b16 %v5671
          %v6415 = vunpack.c.l.b16 %v5672
          %v6416 = vunpack.c.h.b16 %v5672
          %v6417 = vunpack.c.l.b16 %v5673
          %v6418 = vunpack.c.h.b16 %v5673
          %v6419 = vunpack.c.l.b16 %v5674
          %v6420 = vunpack.c.h.b16 %v5674
          %v6421 = vunpack.c.l.b16 %v5675
          %v6422 = vunpack.c.h.b16 %v5675
          %v6423 = vunpack.c.l.b16 %v5676
          %v6424 = vunpack.c.h.b16 %v5676
          %v6425 = vunpack.c.l.b16 %v5677
          %v6426 = vunpack.c.h.b16 %v5677
          %v6427 = vunpack.c.l.b16 %v5678
          %v6428 = vunpack.c.h.b16 %v5678
          %v6429 = vunpack.c.l.b16 %v5679
          %v6430 = vunpack.c.h.b16 %v5679
          %v6431 = vunpack.c.l.b16 %v5680
          %v6432 = vunpack.c.h.b16 %v5680
          %v6433 = vunpack.c.l.b16 %v5681
          %v6434 = vunpack.c.h.b16 %v5681
          %v6435 = vunpack.c.l.b16 %v5682
          %v6436 = vunpack.c.h.b16 %v5682
          %v6437 = vunpack.c.l.b16 %v5683
          %v6438 = vunpack.c.h.b16 %v5683
          %v6439 = vunpack.c.l.b16 %v5684
          %v6440 = vunpack.c.h.b16 %v5684
          %v6441 = vunpack.c.l.b16 %v5685
          %v6442 = vunpack.c.h.b16 %v5685
          %v6443 = vunpack.c.l.b16 %v5686
          %v6444 = vunpack.c.h.b16 %v5686
          %v6445 = vunpack.c.l.b16 %v5687
          %v6446 = vunpack.c.h.b16 %v5687
          %v6447 = vunpack.c.l.b16 %v5688
          %v6448 = vunpack.c.h.b16 %v5688
          %v6449 = vunpack.c.l.b16 %v5689
          %v6450 = vunpack.c.h.b16 %v5689
          %v6451 = vunpack.c.l.b16 %v5690
          %v6452 = vunpack.c.h.b16 %v5690
          %v6453 = vunpack.c.l.b16 %v5691
          %v6454 = vunpack.c.h.b16 %v5691
          %v6455 = vunpack.c.l.b16 %v5692
          %v6456 = vunpack.c.h.b16 %v5692
          %v6457 = vunpack.c.l.b16 %v5693
          %v6458 = vunpack.c.h.b16 %v5693
          %v6459 = vunpack.c.l.b16 %v5694
          %v6460 = vunpack.c.h.b16 %v5694
          %v6461 = vunpack.c.l.b16 %v5695
          %v6462 = vunpack.c.h.b16 %v5695
          %v6463 = vunpack.c.l.b16 %v5696
          %v6464 = vunpack.c.h.b16 %v5696
          %v6465 = vunpack.c.l.b16 %v5697
          %v6466 = vunpack.c.h.b16 %v5697
          %v6467 = vunpack.c.l.b16 %v5698
          %v6468 = vunpack.c.h.b16 %v5698
          %v6469 = vunpack.c.l.b16 %v5699
          %v6470 = vunpack.c.h.b16 %v5699
          %v6471 = vunpack.c.l.b16 %v5700
          %v6472 = vunpack.c.h.b16 %v5700
          %v6473 = vunpack.c.l.b16 %v5701
          %v6474 = vunpack.c.h.b16 %v5701
          %v6475 = vunpack.c.l.b16 %v5702
          %v6476 = vunpack.c.h.b16 %v5702
          %v6477 = vunpack.c.l.b16 %v5703
          %v6478 = vunpack.c.h.b16 %v5703
          %v6479 = vunpack.c.l.b16 %v5704
          %v6480 = vunpack.c.h.b16 %v5704
          %v6481 = vunpack.c.l.b16 %v5705
          %v6482 = vunpack.c.h.b16 %v5705
          %v6483 = vunpack.c.l.b16 %v5706
          %v6484 = vunpack.c.h.b16 %v5706
          %v6485 = vunpack.c.l.b16 %v5707
          %v6486 = vunpack.c.h.b16 %v5707
          %v6487 = vunpack.c.l.b16 %v5708
          %v6488 = vunpack.c.h.b16 %v5708
          %v6489 = vunpack.c.l.b16 %v5709
          %v6490 = vunpack.c.h.b16 %v5709
          %v6491 = vunpack.c.l.b16 %v5710
          %v6492 = vunpack.c.h.b16 %v5710
          %v6493 = vunpack.c.l.b16 %v5711
          %v6494 = vunpack.c.h.b16 %v5711
          %v6495 = vunpack.c.l.b16 %v5712
          %v6496 = vunpack.c.h.b16 %v5712
          %v6497 = vunpack.c.l.b16 %v5713
          %v6498 = vunpack.c.h.b16 %v5713
          %v6499 = vunpack.c.l.b16 %v5714
          %v6500 = vunpack.c.h.b16 %v5714
          %v6501 = vunpack.c.l.b16 %v5715
          %v6502 = vunpack.c.h.b16 %v5715
          %v6503 = vunpack.c.l.b16 %v5716
          %v6504 = vunpack.c.h.b16 %v5716
          %v6505 = vunpack.c.l.b16 %v5717
          %v6506 = vunpack.c.h.b16 %v5717
          %v6507 = vunpack.c.l.b16 %v5718
          %v6508 = vunpack.c.h.b16 %v5718
          %v6509 = vpack.c.b16 %v6001, %v5997
          %v6510 = vpack.c.b16 %v6002, %v5998
          %v6511 = vpack.c.b16 %v6003, %v5999
          %v6512 = vpack.c.b16 %v6004, %v6000
          %v6513 = vpack.c.b16 %v6009, %v6005
          %v6514 = vpack.c.b16 %v6010, %v6006
          %v6515 = vpack.c.b16 %v6011, %v6007
          %v6516 = vpack.c.b16 %v6012, %v6008
          %v6517 = vpack.c.b16 %v6017, %v6013
          %v6518 = vpack.c.b16 %v6018, %v6014
          %v6519 = vpack.c.b16 %v6019, %v6015
          %v6520 = vpack.c.b16 %v6020, %v6016
          %v6521 = vpack.c.b16 %v6025, %v6021
          %v6522 = vpack.c.b16 %v6026, %v6022
          %v6523 = vpack.c.b16 %v6027, %v6023
          %v6524 = vpack.c.b16 %v6028, %v6024
          %v6525 = vpack.c.b16 %v6033, %v6029
          %v6526 = vpack.c.b16 %v6034, %v6030
          %v6527 = vpack.c.b16 %v6035, %v6031
          %v6528 = vpack.c.b16 %v6036, %v6032
          %v6529 = vpack.c.b16 %v6041, %v6037
          %v6530 = vpack.c.b16 %v6042, %v6038
          %v6531 = vpack.c.b16 %v6043, %v6039
          %v6532 = vpack.c.b16 %v6044, %v6040
          %v6533 = vpack.c.b16 %v6049, %v6045
          %v6534 = vpack.c.b16 %v6050, %v6046
          %v6535 = vpack.c.b16 %v6051, %v6047
          %v6536 = vpack.c.b16 %v6052, %v6048
          %v6537 = vpack.c.b16 %v6057, %v6053
          %v6538 = vpack.c.b16 %v6058, %v6054
          %v6539 = vpack.c.b16 %v6059, %v6055
          %v6540 = vpack.c.b16 %v6060, %v6056
          %v6541 = vpack.c.b16 %v6065, %v6061
          %v6542 = vpack.c.b16 %v6066, %v6062
          %v6543 = vpack.c.b16 %v6067, %v6063
          %v6544 = vpack.c.b16 %v6068, %v6064
          %v6545 = vpack.c.b16 %v6073, %v6069
          %v6546 = vpack.c.b16 %v6074, %v6070
          %v6547 = vpack.c.b16 %v6075, %v6071
          %v6548 = vpack.c.b16 %v6076, %v6072
          %v6549 = vpack.c.b16 %v6081, %v6077
          %v6550 = vpack.c.b16 %v6082, %v6078
          %v6551 = vpack.c.b16 %v6083, %v6079
          %v6552 = vpack.c.b16 %v6084, %v6080
          %v6553 = vpack.c.b16 %v6089, %v6085
          %v6554 = vpack.c.b16 %v6090, %v6086
          %v6555 = vpack.c.b16 %v6091, %v6087
          %v6556 = vpack.c.b16 %v6092, %v6088
          %v6557 = vpack.c.b16 %v6097, %v6093
          %v6558 = vpack.c.b16 %v6098, %v6094
          %v6559 = vpack.c.b16 %v6099, %v6095
          %v6560 = vpack.c.b16 %v6100, %v6096
          %v6561 = vpack.c.b16 %v6105, %v6101
          %v6562 = vpack.c.b16 %v6106, %v6102
          %v6563 = vpack.c.b16 %v6107, %v6103
          %v6564 = vpack.c.b16 %v6108, %v6104
          %v6565 = vpack.c.b16 %v6113, %v6109
          %v6566 = vpack.c.b16 %v6114, %v6110
          %v6567 = vpack.c.b16 %v6115, %v6111
          %v6568 = vpack.c.b16 %v6116, %v6112
          %v6569 = vpack.c.b16 %v6121, %v6117
          %v6570 = vpack.c.b16 %v6122, %v6118
          %v6571 = vpack.c.b16 %v6123, %v6119
          %v6572 = vpack.c.b16 %v6124, %v6120
          %v6573 = vpack.c.b16 %v6129, %v6125
          %v6574 = vpack.c.b16 %v6130, %v6126
          %v6575 = vpack.c.b16 %v6131, %v6127
          %v6576 = vpack.c.b16 %v6132, %v6128
          %v6577 = vpack.c.b16 %v6137, %v6133
          %v6578 = vpack.c.b16 %v6138, %v6134
          %v6579 = vpack.c.b16 %v6139, %v6135
          %v6580 = vpack.c.b16 %v6140, %v6136
          %v6581 = vpack.c.b16 %v6145, %v6141
          %v6582 = vpack.c.b16 %v6146, %v6142
          %v6583 = vpack.c.b16 %v6147, %v6143
          %v6584 = vpack.c.b16 %v6148, %v6144
          %v6585 = vpack.c.b16 %v6153, %v6149
          %v6586 = vpack.c.b16 %v6154, %v6150
          %v6587 = vpack.c.b16 %v6155, %v6151
          %v6588 = vpack.c.b16 %v6156, %v6152
          %v6589 = vpack.c.b16 %v6161, %v6157
          %v6590 = vpack.c.b16 %v6162, %v6158
          %v6591 = vpack.c.b16 %v6163, %v6159
          %v6592 = vpack.c.b16 %v6164, %v6160
          %v6593 = vpack.c.b16 %v6169, %v6165
          %v6594 = vpack.c.b16 %v6170, %v6166
          %v6595 = vpack.c.b16 %v6171, %v6167
          %v6596 = vpack.c.b16 %v6172, %v6168
          %v6597 = vpack.c.b16 %v6177, %v6173
          %v6598 = vpack.c.b16 %v6178, %v6174
          %v6599 = vpack.c.b16 %v6179, %v6175
          %v6600 = vpack.c.b16 %v6180, %v6176
          %v6601 = vpack.c.b16 %v6185, %v6181
          %v6602 = vpack.c.b16 %v6186, %v6182
          %v6603 = vpack.c.b16 %v6187, %v6183
          %v6604 = vpack.c.b16 %v6188, %v6184
          %v6605 = vpack.c.b16 %v6193, %v6189
          %v6606 = vpack.c.b16 %v6194, %v6190
          %v6607 = vpack.c.b16 %v6195, %v6191
          %v6608 = vpack.c.b16 %v6196, %v6192
          %v6609 = vpack.c.b16 %v6201, %v6197
          %v6610 = vpack.c.b16 %v6202, %v6198
          %v6611 = vpack.c.b16 %v6203, %v6199
          %v6612 = vpack.c.b16 %v6204, %v6200
          %v6613 = vpack.c.b16 %v6209, %v6205
          %v6614 = vpack.c.b16 %v6210, %v6206
          %v6615 = vpack.c.b16 %v6211, %v6207
          %v6616 = vpack.c.b16 %v6212, %v6208
          %v6617 = vpack.c.b16 %v6217, %v6213
          %v6618 = vpack.c.b16 %v6218, %v6214
          %v6619 = vpack.c.b16 %v6219, %v6215
          %v6620 = vpack.c.b16 %v6220, %v6216
          %v6621 = vpack.c.b16 %v6225, %v6221
          %v6622 = vpack.c.b16 %v6226, %v6222
          %v6623 = vpack.c.b16 %v6227, %v6223
          %v6624 = vpack.c.b16 %v6228, %v6224
          %v6625 = vpack.c.b16 %v6233, %v6229
          %v6626 = vpack.c.b16 %v6234, %v6230
          %v6627 = vpack.c.b16 %v6235, %v6231
          %v6628 = vpack.c.b16 %v6236, %v6232
          %v6629 = vpack.c.b16 %v6241, %v6237
          %v6630 = vpack.c.b16 %v6242, %v6238
          %v6631 = vpack.c.b16 %v6243, %v6239
          %v6632 = vpack.c.b16 %v6244, %v6240
          %v6633 = vpack.c.b16 %v6249, %v6245
          %v6634 = vpack.c.b16 %v6250, %v6246
          %v6635 = vpack.c.b16 %v6251, %v6247
          %v6636 = vpack.c.b16 %v6252, %v6248
          %v6637 = vpack.c.b16 %v6257, %v6253
          %v6638 = vpack.c.b16 %v6258, %v6254
          %v6639 = vpack.c.b16 %v6259, %v6255
          %v6640 = vpack.c.b16 %v6260, %v6256
          %v6641 = vpack.c.b16 %v6265, %v6261
          %v6642 = vpack.c.b16 %v6266, %v6262
          %v6643 = vpack.c.b16 %v6267, %v6263
          %v6644 = vpack.c.b16 %v6268, %v6264
          %v6645 = vpack.c.b16 %v6273, %v6269
          %v6646 = vpack.c.b16 %v6274, %v6270
          %v6647 = vpack.c.b16 %v6275, %v6271
          %v6648 = vpack.c.b16 %v6276, %v6272
          %v6649 = vpack.c.b16 %v6281, %v6277
          %v6650 = vpack.c.b16 %v6282, %v6278
          %v6651 = vpack.c.b16 %v6283, %v6279
          %v6652 = vpack.c.b16 %v6284, %v6280
          %v6653 = vpack.c.b16 %v6289, %v6285
          %v6654 = vpack.c.b16 %v6290, %v6286
          %v6655 = vpack.c.b16 %v6291, %v6287
          %v6656 = vpack.c.b16 %v6292, %v6288
          %v6657 = vpack.c.b16 %v6297, %v6293
          %v6658 = vpack.c.b16 %v6298, %v6294
          %v6659 = vpack.c.b16 %v6299, %v6295
          %v6660 = vpack.c.b16 %v6300, %v6296
          %v6661 = vpack.c.b16 %v6305, %v6301
          %v6662 = vpack.c.b16 %v6306, %v6302
          %v6663 = vpack.c.b16 %v6307, %v6303
          %v6664 = vpack.c.b16 %v6308, %v6304
          %v6665 = vpack.c.b16 %v6313, %v6309
          %v6666 = vpack.c.b16 %v6314, %v6310
          %v6667 = vpack.c.b16 %v6315, %v6311
          %v6668 = vpack.c.b16 %v6316, %v6312
          %v6669 = vpack.c.b16 %v6321, %v6317
          %v6670 = vpack.c.b16 %v6322, %v6318
          %v6671 = vpack.c.b16 %v6323, %v6319
          %v6672 = vpack.c.b16 %v6324, %v6320
          %v6673 = vpack.c.b16 %v6329, %v6325
          %v6674 = vpack.c.b16 %v6330, %v6326
          %v6675 = vpack.c.b16 %v6331, %v6327
          %v6676 = vpack.c.b16 %v6332, %v6328
          %v6677 = vpack.c.b16 %v6337, %v6333
          %v6678 = vpack.c.b16 %v6338, %v6334
          %v6679 = vpack.c.b16 %v6339, %v6335
          %v6680 = vpack.c.b16 %v6340, %v6336
          %v6681 = vpack.c.b16 %v6345, %v6341
          %v6682 = vpack.c.b16 %v6346, %v6342
          %v6683 = vpack.c.b16 %v6347, %v6343
          %v6684 = vpack.c.b16 %v6348, %v6344
          %v6685 = vpack.c.b16 %v6353, %v6349
          %v6686 = vpack.c.b16 %v6354, %v6350
          %v6687 = vpack.c.b16 %v6355, %v6351
          %v6688 = vpack.c.b16 %v6356, %v6352
          %v6689 = vpack.c.b16 %v6361, %v6357
          %v6690 = vpack.c.b16 %v6362, %v6358
          %v6691 = vpack.c.b16 %v6363, %v6359
          %v6692 = vpack.c.b16 %v6364, %v6360
          %v6693 = vpack.c.b16 %v6369, %v6365
          %v6694 = vpack.c.b16 %v6370, %v6366
          %v6695 = vpack.c.b16 %v6371, %v6367
          %v6696 = vpack.c.b16 %v6372, %v6368
          %v6697 = vpack.c.b16 %v6377, %v6373
          %v6698 = vpack.c.b16 %v6378, %v6374
          %v6699 = vpack.c.b16 %v6379, %v6375
          %v6700 = vpack.c.b16 %v6380, %v6376
          %v6701 = vpack.c.b16 %v6385, %v6381
          %v6702 = vpack.c.b16 %v6386, %v6382
          %v6703 = vpack.c.b16 %v6387, %v6383
          %v6704 = vpack.c.b16 %v6388, %v6384
          %v6705 = vpack.c.b16 %v6393, %v6389
          %v6706 = vpack.c.b16 %v6394, %v6390
          %v6707 = vpack.c.b16 %v6395, %v6391
          %v6708 = vpack.c.b16 %v6396, %v6392
          %v6709 = vpack.c.b16 %v6401, %v6397
          %v6710 = vpack.c.b16 %v6402, %v6398
          %v6711 = vpack.c.b16 %v6403, %v6399
          %v6712 = vpack.c.b16 %v6404, %v6400
          %v6713 = vpack.c.b16 %v6409, %v6405
          %v6714 = vpack.c.b16 %v6410, %v6406
          %v6715 = vpack.c.b16 %v6411, %v6407
          %v6716 = vpack.c.b16 %v6412, %v6408
          %v6717 = vpack.c.b16 %v6417, %v6413
          %v6718 = vpack.c.b16 %v6418, %v6414
          %v6719 = vpack.c.b16 %v6419, %v6415
          %v6720 = vpack.c.b16 %v6420, %v6416
          %v6721 = vpack.c.b16 %v6425, %v6421
          %v6722 = vpack.c.b16 %v6426, %v6422
          %v6723 = vpack.c.b16 %v6427, %v6423
          %v6724 = vpack.c.b16 %v6428, %v6424
          %v6725 = vpack.c.b16 %v6433, %v6429
          %v6726 = vpack.c.b16 %v6434, %v6430
          %v6727 = vpack.c.b16 %v6435, %v6431
          %v6728 = vpack.c.b16 %v6436, %v6432
          %v6729 = vpack.c.b16 %v6441, %v6437
          %v6730 = vpack.c.b16 %v6442, %v6438
          %v6731 = vpack.c.b16 %v6443, %v6439
          %v6732 = vpack.c.b16 %v6444, %v6440
          %v6733 = vpack.c.b16 %v6449, %v6445
          %v6734 = vpack.c.b16 %v6450, %v6446
          %v6735 = vpack.c.b16 %v6451, %v6447
          %v6736 = vpack.c.b16 %v6452, %v6448
          %v6737 = vpack.c.b16 %v6457, %v6453
          %v6738 = vpack.c.b16 %v6458, %v6454
          %v6739 = vpack.c.b16 %v6459, %v6455
          %v6740 = vpack.c.b16 %v6460, %v6456
          %v6741 = vpack.c.b16 %v6465, %v6461
          %v6742 = vpack.c.b16 %v6466, %v6462
          %v6743 = vpack.c.b16 %v6467, %v6463
          %v6744 = vpack.c.b16 %v6468, %v6464
          %v6745 = vpack.c.b16 %v6473, %v6469
          %v6746 = vpack.c.b16 %v6474, %v6470
          %v6747 = vpack.c.b16 %v6475, %v6471
          %v6748 = vpack.c.b16 %v6476, %v6472
          %v6749 = vpack.c.b16 %v6481, %v6477
          %v6750 = vpack.c.b16 %v6482, %v6478
          %v6751 = vpack.c.b16 %v6483, %v6479
          %v6752 = vpack.c.b16 %v6484, %v6480
          %v6753 = vpack.c.b16 %v6489, %v6485
          %v6754 = vpack.c.b16 %v6490, %v6486
          %v6755 = vpack.c.b16 %v6491, %v6487
          %v6756 = vpack.c.b16 %v6492, %v6488
          %v6757 = vpack.c.b16 %v6497, %v6493
          %v6758 = vpack.c.b16 %v6498, %v6494
          %v6759 = vpack.c.b16 %v6499, %v6495
          %v6760 = vpack.c.b16 %v6500, %v6496
          %v6761 = vpack.c.b16 %v6505, %v6501
          %v6762 = vpack.c.b16 %v6506, %v6502
          %v6763 = vpack.c.b16 %v6507, %v6503
          %v6764 = vpack.c.b16 %v6508, %v6504
          %7021 = vmatprep.subr.bf16.mxu0 %v6538
          %7022 = vmatpush1.bf16.msra.mxu0 %v6537
          %7023 = vmatprep.subr.bf16.mxu0 %v6534
          %7024 = vmatpush1.bf16.msra.mxu0 %v6533
          %7025 = vmatprep.subr.bf16.mxu0 %v6530
          %7026 = vmatpush1.bf16.msra.mxu0 %v6529
          %7027 = vmatprep.subr.bf16.mxu0 %v6526
          %7028 = vmatpush1.bf16.msra.mxu0 %v6525
          %7029 = vmatprep.subr.bf16.mxu0 %v6522
          %7030 = vmatpush1.bf16.msra.mxu0 %v6521
          %7031 = vmatprep.subr.bf16.mxu0 %v6518
          %7032 = vmatpush1.bf16.msra.mxu0 %v6517
          %7033 = vmatprep.subr.bf16.mxu0 %v6514
          %7034 = vmatpush1.bf16.msra.mxu0 %v6513
          %7035 = vmatprep.subr.bf16.mxu0 %v6510
          %7036 = vmatpush1.bf16.msra.mxu0 %v6509
          %7037 = vmatprep.subr.bf16.mxu0 %v6570
          %7038 = vmatpush2.bf16.msra.mxu0 %v6569
          %7039 = vmatprep.subr.bf16.mxu0 %v6566
          %7040 = vmatpush2.bf16.msra.mxu0 %v6565
          %7041 = vmatprep.subr.bf16.mxu0 %v6562
          %7042 = vmatpush2.bf16.msra.mxu0 %v6561
          %7043 = vmatprep.subr.bf16.mxu0 %v6558
          %7044 = vmatpush2.bf16.msra.mxu0 %v6557
          %7045 = vmatprep.subr.bf16.mxu0 %v6554
          %7046 = vmatpush2.bf16.msra.mxu0 %v6553
          %7047 = vmatprep.subr.bf16.mxu0 %v6550
          %7048 = vmatpush2.bf16.msra.mxu0 %v6549
          %7049 = vmatprep.subr.bf16.mxu0 %v6546
          %7050 = vmatpush2.bf16.msra.mxu0 %v6545
          %7051 = vmatprep.subr.bf16.mxu0 %v6542
          %7052 = vmatpush2.bf16.msra.mxu0 %v6541
          %7053 = vmatprep.mubr.bf16.mxu0 %v5456
          %7054 = vmatmul.mubr.bf16.gmra.mxu0 %v5455
          %v7055 = vpop.f32.mrf.mxu0
          %v7056 = vadd.f32 %v5724, %v7055
          %v7057 = vpop.f32.mrf.mxu0
          %v7058 = vadd.f32 %v5728, %v7057
          %v7059 = vpop.f32.mrf.mxu0
          %v7060 = vpop.f32.mrf.mxu0
          %7061 = vdwg.mxu0
          %7062 = vmatprep.subr.bf16.mxu0 %v6602
          %7063 = vmatpush1.bf16.msra.mxu0 %v6601
          %7064 = vmatprep.subr.bf16.mxu0 %v6598
          %7065 = vmatpush1.bf16.msra.mxu0 %v6597
          %7066 = vmatprep.subr.bf16.mxu0 %v6594
          %7067 = vmatpush1.bf16.msra.mxu0 %v6593
          %7068 = vmatprep.subr.bf16.mxu0 %v6590
          %7069 = vmatpush1.bf16.msra.mxu0 %v6589
          %7070 = vmatprep.subr.bf16.mxu0 %v6586
          %7071 = vmatpush1.bf16.msra.mxu0 %v6585
          %7072 = vmatprep.subr.bf16.mxu0 %v6582
          %7073 = vmatpush1.bf16.msra.mxu0 %v6581
          %7074 = vmatprep.subr.bf16.mxu0 %v6578
          %7075 = vmatpush1.bf16.msra.mxu0 %v6577
          %7076 = vmatprep.subr.bf16.mxu0 %v6574
          %7077 = vmatpush1.bf16.msra.mxu0 %v6573
          %7078 = vmatprep.subr.bf16.mxu0 %v6634
          %7079 = vmatpush2.bf16.msra.mxu0 %v6633
          %7080 = vmatprep.subr.bf16.mxu0 %v6630
          %7081 = vmatpush2.bf16.msra.mxu0 %v6629
          %7082 = vmatprep.subr.bf16.mxu0 %v6626
          %7083 = vmatpush2.bf16.msra.mxu0 %v6625
          %7084 = vmatprep.subr.bf16.mxu0 %v6622
          %7085 = vmatpush2.bf16.msra.mxu0 %v6621
          %7086 = vmatprep.subr.bf16.mxu0 %v6618
          %7087 = vmatpush2.bf16.msra.mxu0 %v6617
          %7088 = vmatprep.subr.bf16.mxu0 %v6614
          %7089 = vmatpush2.bf16.msra.mxu0 %v6613
          %7090 = vmatprep.subr.bf16.mxu0 %v6610
          %7091 = vmatpush2.bf16.msra.mxu0 %v6609
          %7092 = vmatprep.subr.bf16.mxu0 %v6606
          %7093 = vmatpush2.bf16.msra.mxu0 %v6605
          %7094 = vmatprep.mubr.bf16.mxu0 %v5458
          %7095 = vmatmul.mubr.bf16.gmra.mxu0 %v5457
          %v7096 = vpop.f32.mrf.mxu0
          %v7097 = vadd.f32 %v7056, %v7096
          %v7098 = vpop.f32.mrf.mxu0
          %v7099 = vadd.f32 %v7058, %v7098
          %v7100 = vpop.f32.mrf.mxu0
          %v7101 = vpop.f32.mrf.mxu0
          %7102 = vdwg.mxu0
          %7103 = vmatprep.subr.bf16.mxu0 %v6666
          %7104 = vmatpush1.bf16.msra.mxu0 %v6665
          %7105 = vmatprep.subr.bf16.mxu0 %v6662
          %7106 = vmatpush1.bf16.msra.mxu0 %v6661
          %7107 = vmatprep.subr.bf16.mxu0 %v6658
          %7108 = vmatpush1.bf16.msra.mxu0 %v6657
          %7109 = vmatprep.subr.bf16.mxu0 %v6654
          %7110 = vmatpush1.bf16.msra.mxu0 %v6653
          %7111 = vmatprep.subr.bf16.mxu0 %v6650
          %7112 = vmatpush1.bf16.msra.mxu0 %v6649
          %7113 = vmatprep.subr.bf16.mxu0 %v6646
          %7114 = vmatpush1.bf16.msra.mxu0 %v6645
          %7115 = vmatprep.subr.bf16.mxu0 %v6642
          %7116 = vmatpush1.bf16.msra.mxu0 %v6641
          %7117 = vmatprep.subr.bf16.mxu0 %v6638
          %7118 = vmatpush1.bf16.msra.mxu0 %v6637
          %7119 = vmatprep.subr.bf16.mxu0 %v6698
          %7120 = vmatpush2.bf16.msra.mxu0 %v6697
          %7121 = vmatprep.subr.bf16.mxu0 %v6694
          %7122 = vmatpush2.bf16.msra.mxu0 %v6693
          %7123 = vmatprep.subr.bf16.mxu0 %v6690
          %7124 = vmatpush2.bf16.msra.mxu0 %v6689
          %7125 = vmatprep.subr.bf16.mxu0 %v6686
          %7126 = vmatpush2.bf16.msra.mxu0 %v6685
          %7127 = vmatprep.subr.bf16.mxu0 %v6682
          %7128 = vmatpush2.bf16.msra.mxu0 %v6681
          %7129 = vmatprep.subr.bf16.mxu0 %v6678
          %7130 = vmatpush2.bf16.msra.mxu0 %v6677
          %7131 = vmatprep.subr.bf16.mxu0 %v6674
          %7132 = vmatpush2.bf16.msra.mxu0 %v6673
          %7133 = vmatprep.subr.bf16.mxu0 %v6670
          %7134 = vmatpush2.bf16.msra.mxu0 %v6669
          %7135 = vmatprep.mubr.bf16.mxu0 %v5460
          %7136 = vmatmul.mubr.bf16.gmra.mxu0 %v5459
          %v7137 = vpop.f32.mrf.mxu0
          %v7138 = vadd.f32 %v7097, %v7137
          %v7139 = vpop.f32.mrf.mxu0
          %v7140 = vadd.f32 %v7099, %v7139
          %v7141 = vpop.f32.mrf.mxu0
          %v7142 = vpop.f32.mrf.mxu0
          %7143 = vdwg.mxu0
          %7144 = vmatprep.subr.bf16.mxu0 %v6730
          %7145 = vmatpush1.bf16.msra.mxu0 %v6729
          %7146 = vmatprep.subr.bf16.mxu0 %v6726
          %7147 = vmatpush1.bf16.msra.mxu0 %v6725
          %7148 = vmatprep.subr.bf16.mxu0 %v6722
          %7149 = vmatpush1.bf16.msra.mxu0 %v6721
          %7150 = vmatprep.subr.bf16.mxu0 %v6718
          %7151 = vmatpush1.bf16.msra.mxu0 %v6717
          %7152 = vmatprep.subr.bf16.mxu0 %v6714
          %7153 = vmatpush1.bf16.msra.mxu0 %v6713
          %7154 = vmatprep.subr.bf16.mxu0 %v6710
          %7155 = vmatpush1.bf16.msra.mxu0 %v6709
          %7156 = vmatprep.subr.bf16.mxu0 %v6706
          %7157 = vmatpush1.bf16.msra.mxu0 %v6705
          %7158 = vmatprep.subr.bf16.mxu0 %v6702
          %7159 = vmatpush1.bf16.msra.mxu0 %v6701
          %7160 = vmatprep.subr.bf16.mxu0 %v6762
          %7161 = vmatpush2.bf16.msra.mxu0 %v6761
          %7162 = vmatprep.subr.bf16.mxu0 %v6758
          %7163 = vmatpush2.bf16.msra.mxu0 %v6757
          %7164 = vmatprep.subr.bf16.mxu0 %v6754
          %7165 = vmatpush2.bf16.msra.mxu0 %v6753
          %7166 = vmatprep.subr.bf16.mxu0 %v6750
          %7167 = vmatpush2.bf16.msra.mxu0 %v6749
          %7168 = vmatprep.subr.bf16.mxu0 %v6746
          %7169 = vmatpush2.bf16.msra.mxu0 %v6745
          %7170 = vmatprep.subr.bf16.mxu0 %v6742
          %7171 = vmatpush2.bf16.msra.mxu0 %v6741
          %7172 = vmatprep.subr.bf16.mxu0 %v6738
          %7173 = vmatpush2.bf16.msra.mxu0 %v6737
          %7174 = vmatprep.subr.bf16.mxu0 %v6734
          %7175 = vmatpush2.bf16.msra.mxu0 %v6733
          %7176 = vmatprep.mubr.bf16.mxu0 %v5462
          %7177 = vmatmul.mubr.bf16.gmra.mxu0 %v5461
          %v7178 = vpop.f32.mrf.mxu0
          %v7179 = vadd.f32 %v7138, %v7178
          %v7180 = vpop.f32.mrf.mxu0
          %v7181 = vadd.f32 %v7140, %v7180
          %v7182 = vpop.f32.mrf.mxu0
          %v7183 = vpop.f32.mrf.mxu0
          %7184 = vdwg.mxu0
          %7185 = vmatprep.subr.bf16.mxu0 %v6540
          %7186 = vmatpush1.bf16.msra.mxu0 %v6539
          %7187 = vmatprep.subr.bf16.mxu0 %v6536
          %7188 = vmatpush1.bf16.msra.mxu0 %v6535
          %7189 = vmatprep.subr.bf16.mxu0 %v6532
          %7190 = vmatpush1.bf16.msra.mxu0 %v6531
          %7191 = vmatprep.subr.bf16.mxu0 %v6528
          %7192 = vmatpush1.bf16.msra.mxu0 %v6527
          %7193 = vmatprep.subr.bf16.mxu0 %v6524
          %7194 = vmatpush1.bf16.msra.mxu0 %v6523
          %7195 = vmatprep.subr.bf16.mxu0 %v6520
          %7196 = vmatpush1.bf16.msra.mxu0 %v6519
          %7197 = vmatprep.subr.bf16.mxu0 %v6516
          %7198 = vmatpush1.bf16.msra.mxu0 %v6515
          %7199 = vmatprep.subr.bf16.mxu0 %v6512
          %7200 = vmatpush1.bf16.msra.mxu0 %v6511
          %7201 = vmatprep.subr.bf16.mxu0 %v6572
          %7202 = vmatpush2.bf16.msra.mxu0 %v6571
          %7203 = vmatprep.subr.bf16.mxu0 %v6568
          %7204 = vmatpush2.bf16.msra.mxu0 %v6567
          %7205 = vmatprep.subr.bf16.mxu0 %v6564
          %7206 = vmatpush2.bf16.msra.mxu0 %v6563
          %7207 = vmatprep.subr.bf16.mxu0 %v6560
          %7208 = vmatpush2.bf16.msra.mxu0 %v6559
          %7209 = vmatprep.subr.bf16.mxu0 %v6556
          %7210 = vmatpush2.bf16.msra.mxu0 %v6555
          %7211 = vmatprep.subr.bf16.mxu0 %v6552
          %7212 = vmatpush2.bf16.msra.mxu0 %v6551
          %7213 = vmatprep.subr.bf16.mxu0 %v6548
          %7214 = vmatpush2.bf16.msra.mxu0 %v6547
          %7215 = vmatprep.subr.bf16.mxu0 %v6544
          %7216 = vmatpush2.bf16.msra.mxu0 %v6543
          %7217 = vmatprep.mubr.bf16.mxu0 %v5456
          %7218 = vmatmul.mubr.bf16.gmra.mxu0 %v5455
          %v7219 = vpop.f32.mrf.mxu0
          %v7220 = vadd.f32 %v5732, %v7219
          %v7221 = vpop.f32.mrf.mxu0
          %v7222 = vadd.f32 %v5736, %v7221
          %v7223 = vpop.f32.mrf.mxu0
          %v7224 = vpop.f32.mrf.mxu0
          %7225 = vdwg.mxu0
          %7226 = vmatprep.subr.bf16.mxu0 %v6604
          %7227 = vmatpush1.bf16.msra.mxu0 %v6603
          %7228 = vmatprep.subr.bf16.mxu0 %v6600
          %7229 = vmatpush1.bf16.msra.mxu0 %v6599
          %7230 = vmatprep.subr.bf16.mxu0 %v6596
          %7231 = vmatpush1.bf16.msra.mxu0 %v6595
          %7232 = vmatprep.subr.bf16.mxu0 %v6592
          %7233 = vmatpush1.bf16.msra.mxu0 %v6591
          %7234 = vmatprep.subr.bf16.mxu0 %v6588
          %7235 = vmatpush1.bf16.msra.mxu0 %v6587
          %7236 = vmatprep.subr.bf16.mxu0 %v6584
          %7237 = vmatpush1.bf16.msra.mxu0 %v6583
          %7238 = vmatprep.subr.bf16.mxu0 %v6580
          %7239 = vmatpush1.bf16.msra.mxu0 %v6579
          %7240 = vmatprep.subr.bf16.mxu0 %v6576
          %7241 = vmatpush1.bf16.msra.mxu0 %v6575
          %7242 = vmatprep.subr.bf16.mxu0 %v6636
          %7243 = vmatpush2.bf16.msra.mxu0 %v6635
          %7244 = vmatprep.subr.bf16.mxu0 %v6632
          %7245 = vmatpush2.bf16.msra.mxu0 %v6631
          %7246 = vmatprep.subr.bf16.mxu0 %v6628
          %7247 = vmatpush2.bf16.msra.mxu0 %v6627
          %7248 = vmatprep.subr.bf16.mxu0 %v6624
          %7249 = vmatpush2.bf16.msra.mxu0 %v6623
          %7250 = vmatprep.subr.bf16.mxu0 %v6620
          %7251 = vmatpush2.bf16.msra.mxu0 %v6619
          %7252 = vmatprep.subr.bf16.mxu0 %v6616
          %7253 = vmatpush2.bf16.msra.mxu0 %v6615
          %7254 = vmatprep.subr.bf16.mxu0 %v6612
          %7255 = vmatpush2.bf16.msra.mxu0 %v6611
          %7256 = vmatprep.subr.bf16.mxu0 %v6608
          %7257 = vmatpush2.bf16.msra.mxu0 %v6607
          %7258 = vmatprep.mubr.bf16.mxu0 %v5458
          %7259 = vmatmul.mubr.bf16.gmra.mxu0 %v5457
          %v7260 = vpop.f32.mrf.mxu0
          %v7261 = vadd.f32 %v7220, %v7260
          %v7262 = vpop.f32.mrf.mxu0
          %v7263 = vadd.f32 %v7222, %v7262
          %v7264 = vpop.f32.mrf.mxu0
          %v7265 = vpop.f32.mrf.mxu0
          %7266 = vdwg.mxu0
          %7267 = vmatprep.subr.bf16.mxu0 %v6668
          %7268 = vmatpush1.bf16.msra.mxu0 %v6667
          %7269 = vmatprep.subr.bf16.mxu0 %v6664
          %7270 = vmatpush1.bf16.msra.mxu0 %v6663
          %7271 = vmatprep.subr.bf16.mxu0 %v6660
          %7272 = vmatpush1.bf16.msra.mxu0 %v6659
          %7273 = vmatprep.subr.bf16.mxu0 %v6656
          %7274 = vmatpush1.bf16.msra.mxu0 %v6655
          %7275 = vmatprep.subr.bf16.mxu0 %v6652
          %7276 = vmatpush1.bf16.msra.mxu0 %v6651
          %7277 = vmatprep.subr.bf16.mxu0 %v6648
          %7278 = vmatpush1.bf16.msra.mxu0 %v6647
          %7279 = vmatprep.subr.bf16.mxu0 %v6644
          %7280 = vmatpush1.bf16.msra.mxu0 %v6643
          %7281 = vmatprep.subr.bf16.mxu0 %v6640
          %7282 = vmatpush1.bf16.msra.mxu0 %v6639
          %7283 = vmatprep.subr.bf16.mxu0 %v6700
          %7284 = vmatpush2.bf16.msra.mxu0 %v6699
          %7285 = vmatprep.subr.bf16.mxu0 %v6696
          %7286 = vmatpush2.bf16.msra.mxu0 %v6695
          %7287 = vmatprep.subr.bf16.mxu0 %v6692
          %7288 = vmatpush2.bf16.msra.mxu0 %v6691
          %7289 = vmatprep.subr.bf16.mxu0 %v6688
          %7290 = vmatpush2.bf16.msra.mxu0 %v6687
          %7291 = vmatprep.subr.bf16.mxu0 %v6684
          %7292 = vmatpush2.bf16.msra.mxu0 %v6683
          %7293 = vmatprep.subr.bf16.mxu0 %v6680
          %7294 = vmatpush2.bf16.msra.mxu0 %v6679
          %7295 = vmatprep.subr.bf16.mxu0 %v6676
          %7296 = vmatpush2.bf16.msra.mxu0 %v6675
          %7297 = vmatprep.subr.bf16.mxu0 %v6672
          %7298 = vmatpush2.bf16.msra.mxu0 %v6671
          %7299 = vmatprep.mubr.bf16.mxu0 %v5460
          %7300 = vmatmul.mubr.bf16.gmra.mxu0 %v5459
          %v7301 = vpop.f32.mrf.mxu0
          %v7302 = vadd.f32 %v7261, %v7301
          %v7303 = vpop.f32.mrf.mxu0
          %v7304 = vadd.f32 %v7263, %v7303
          %v7305 = vpop.f32.mrf.mxu0
          %v7306 = vpop.f32.mrf.mxu0
          %7307 = vdwg.mxu0
          %7308 = vmatprep.subr.bf16.mxu0 %v6732
          %7309 = vmatpush1.bf16.msra.mxu0 %v6731
          %7310 = vmatprep.subr.bf16.mxu0 %v6728
          %7311 = vmatpush1.bf16.msra.mxu0 %v6727
          %7312 = vmatprep.subr.bf16.mxu0 %v6724
          %7313 = vmatpush1.bf16.msra.mxu0 %v6723
          %7314 = vmatprep.subr.bf16.mxu0 %v6720
          %7315 = vmatpush1.bf16.msra.mxu0 %v6719
          %7316 = vmatprep.subr.bf16.mxu0 %v6716
          %7317 = vmatpush1.bf16.msra.mxu0 %v6715
          %7318 = vmatprep.subr.bf16.mxu0 %v6712
          %7319 = vmatpush1.bf16.msra.mxu0 %v6711
          %7320 = vmatprep.subr.bf16.mxu0 %v6708
          %7321 = vmatpush1.bf16.msra.mxu0 %v6707
          %7322 = vmatprep.subr.bf16.mxu0 %v6704
          %7323 = vmatpush1.bf16.msra.mxu0 %v6703
          %7324 = vmatprep.subr.bf16.mxu0 %v6764
          %7325 = vmatpush2.bf16.msra.mxu0 %v6763
          %7326 = vmatprep.subr.bf16.mxu0 %v6760
          %7327 = vmatpush2.bf16.msra.mxu0 %v6759
          %7328 = vmatprep.subr.bf16.mxu0 %v6756
          %7329 = vmatpush2.bf16.msra.mxu0 %v6755
          %7330 = vmatprep.subr.bf16.mxu0 %v6752
          %7331 = vmatpush2.bf16.msra.mxu0 %v6751
          %7332 = vmatprep.subr.bf16.mxu0 %v6748
          %7333 = vmatpush2.bf16.msra.mxu0 %v6747
          %7334 = vmatprep.subr.bf16.mxu0 %v6744
          %7335 = vmatpush2.bf16.msra.mxu0 %v6743
          %7336 = vmatprep.subr.bf16.mxu0 %v6740
          %7337 = vmatpush2.bf16.msra.mxu0 %v6739
          %7338 = vmatprep.subr.bf16.mxu0 %v6736
          %7339 = vmatpush2.bf16.msra.mxu0 %v6735
          %7340 = vmatprep.mubr.bf16.mxu0 %v5462
          %7341 = vmatmul.mubr.bf16.gmra.mxu0 %v5461
          %v7342 = vpop.f32.mrf.mxu0
          %v7343 = vadd.f32 %v7302, %v7342
          %v7344 = vpop.f32.mrf.mxu0
          %v7345 = vadd.f32 %v7304, %v7344
          %v7346 = vpop.f32.mrf.mxu0
          %v7347 = vpop.f32.mrf.mxu0
          %7348 = vdwg.mxu0
          %v7349 = vld [vmem:[%s15] sm:$0xf]
          %v7350 = vld [vmem:[%s16] sm:$0xf]
          %v7351 = vsel %vm1123, %v7179, 0.0
          %v7352 = vrot.slane %v7351, 4
          %v7353 = vadd.f32 %v7351, %v7352
          %v7354 = vrot.slane %v7353, 2
          %v7355 = vadd.f32 %v7353, %v7354
          %v7356 = vrot.slane %v7355, 1
          %v7357 = vadd.f32 %v7355, %v7356
          %v7358 = vsel %vm1123, %v7181, 0.0
          %v7359 = vrot.slane %v7358, 4
          %v7360 = vadd.f32 %v7358, %v7359
          %v7361 = vrot.slane %v7360, 2
          %v7362 = vadd.f32 %v7360, %v7361
          %v7363 = vrot.slane %v7362, 1
          %v7364 = vadd.f32 %v7362, %v7363
          %v7365 = vsel %vm1123, %v7343, 0.0
          %v7366 = vrot.slane %v7365, 4
          %v7367 = vadd.f32 %v7365, %v7366
          %v7368 = vrot.slane %v7367, 2
          %v7369 = vadd.f32 %v7367, %v7368
          %v7370 = vrot.slane %v7369, 1
          %v7371 = vadd.f32 %v7369, %v7370
          %v7372 = vsel %vm1123, %v7345, 0.0
          %v7373 = vrot.slane %v7372, 4
          %v7374 = vadd.f32 %v7372, %v7373
          %v7375 = vrot.slane %v7374, 2
          %v7376 = vadd.f32 %v7374, %v7375
          %v7377 = vrot.slane %v7376, 1
          %v7378 = vadd.f32 %v7376, %v7377
          %v7379 = vrcp.pop 4.0
          %v7380 = vmul.f32 %v7357, %v7379
          %v7381 = vmul.f32 %v7364, %v7379
          %v7382 = vmul.f32 %v7371, %v7379
          %v7383 = vmul.f32 %v7378, %v7379
          %v7384 = vmul.f32 %v7179, %v7179
          %v7385 = vmul.f32 %v7181, %v7181
          %v7386 = vmul.f32 %v7343, %v7343
          %v7387 = vmul.f32 %v7345, %v7345
          %v7388 = vsel %vm1123, %v7384, 0.0
          %v7389 = vrot.slane %v7388, 4
          %v7390 = vadd.f32 %v7388, %v7389
          %v7391 = vrot.slane %v7390, 2
          %v7392 = vadd.f32 %v7390, %v7391
          %v7393 = vrot.slane %v7392, 1
          %v7394 = vadd.f32 %v7392, %v7393
          %v7395 = vsel %vm1123, %v7385, 0.0
          %v7396 = vrot.slane %v7395, 4
          %v7397 = vadd.f32 %v7395, %v7396
          %v7398 = vrot.slane %v7397, 2
          %v7399 = vadd.f32 %v7397, %v7398
          %v7400 = vrot.slane %v7399, 1
          %v7401 = vadd.f32 %v7399, %v7400
          %v7402 = vsel %vm1123, %v7386, 0.0
          %v7403 = vrot.slane %v7402, 4
          %v7404 = vadd.f32 %v7402, %v7403
          %v7405 = vrot.slane %v7404, 2
          %v7406 = vadd.f32 %v7404, %v7405
          %v7407 = vrot.slane %v7406, 1
          %v7408 = vadd.f32 %v7406, %v7407
          %v7409 = vsel %vm1123, %v7387, 0.0
          %v7410 = vrot.slane %v7409, 4
          %v7411 = vadd.f32 %v7409, %v7410
          %v7412 = vrot.slane %v7411, 2
          %v7413 = vadd.f32 %v7411, %v7412
          %v7414 = vrot.slane %v7413, 1
          %v7415 = vadd.f32 %v7413, %v7414
          %v7416 = vmul.f32 %v7394, %v7379
          %v7417 = vmul.f32 %v7401, %v7379
          %v7418 = vmul.f32 %v7408, %v7379
          %v7419 = vmul.f32 %v7415, %v7379
          %v7420 = vmul.f32 %v7380, %v7380
          %v7421 = vmul.f32 %v7381, %v7381
          %v7422 = vmul.f32 %v7382, %v7382
          %v7423 = vmul.f32 %v7383, %v7383
          %v7424 = vsub.f32 %v7416, %v7420
          %v7425 = vsub.f32 %v7417, %v7421
          %v7426 = vsub.f32 %v7418, %v7422
          %v7427 = vsub.f32 %v7419, %v7423
          %v7428 = vmax.f32 %v7424, 0.0
          %v7429 = vmax.f32 %v7425, 0.0
          %v7430 = vmax.f32 %v7426, 0.0
          %v7431 = vmax.f32 %v7427, 0.0
          %v7432 = vadd.f32 %v7428, 1e-05
          %v7433 = vadd.f32 %v7429, 1e-05
          %v7434 = vadd.f32 %v7430, 1e-05
          %v7435 = vadd.f32 %v7431, 1e-05
          %v7436 = vrsqrt.pop %v7432
          %v7437 = vrsqrt.pop %v7433
          %v7438 = vrsqrt.pop %v7434
          %v7439 = vrsqrt.pop %v7435
          %v7444 = vcombine.low %v7436, %v7437
          %v7445 = vcombine.low %v7438, %v7439
          %v7447 = vunpack.c.l.s4 1966171168
          %v7448 = vunpack.c.0.s8 %v7447
          %v7449 = vlaneseq
          %v7450 = vshrl.u32 %v7449, 7
          %v7451 = vsub.s32 %v7448, %v7450
          %v7452 = vrot.slane %v7444, %v7451
          %v7454 = vunpack.c.l.s4 1966171168
          %v7455 = vunpack.c.0.s8 %v7454
          %v7456 = vlaneseq
          %v7457 = vshrl.u32 %v7456, 7
          %v7458 = vsub.s32 %v7455, %v7457
          %v7459 = vrot.slane %v7445, %v7458
          %v7460 = vcombine.low %v7452, %v7459
          %v7462 = vunpack.c.l.s4 1966171168
          %v7463 = vunpack.c.0.s8 %v7462
          %v7464 = vlaneseq
          %v7465 = vshrl.u32 %v7464, 7
          %v7466 = vsub.s32 %v7463, %v7465
          %v7467 = vrot.slane %v7460, %v7466
          %v7469 = vmul.f32 %v7349, %v7467
          %v7471 = vlaneseq
          %v7472 = vshrl.u32 %v7471, 7
          %v7473 = vsub.s32 0, %v7472
          %v7474 = vrot.slane %v7469, %v7473
          %v7475 = vlaneseq
          %v7476 = vshrl.u32 %v7475, 7
          %v7477 = vsub.s32 1, %v7476
          %v7478 = vrot.slane %v7469, %v7477
          %v7479 = vlaneseq
          %v7480 = vshrl.u32 %v7479, 7
          %v7481 = vsub.s32 2, %v7480
          %v7482 = vrot.slane %v7469, %v7481
          %v7483 = vlaneseq
          %v7484 = vshrl.u32 %v7483, 7
          %v7485 = vsub.s32 3, %v7484
          %v7486 = vrot.slane %v7469, %v7485
          %v7491 = vmul.f32 %v7179, %v7474
          %v7492 = vmul.f32 %v7181, %v7478
          %v7493 = vmul.f32 %v7343, %v7482
          %v7494 = vmul.f32 %v7345, %v7486
          %v7495 = vmul.f32 %v7380, %v7474
          %v7496 = vmul.f32 %v7381, %v7478
          %v7497 = vmul.f32 %v7382, %v7482
          %v7498 = vmul.f32 %v7383, %v7486
          %v7503 = vcombine.low %v7495, %v7496
          %v7504 = vcombine.low %v7497, %v7498
          %v7506 = vunpack.c.l.s4 1966171168
          %v7507 = vunpack.c.0.s8 %v7506
          %v7508 = vlaneseq
          %v7509 = vshrl.u32 %v7508, 7
          %v7510 = vsub.s32 %v7507, %v7509
          %v7511 = vrot.slane %v7503, %v7510
          %v7513 = vunpack.c.l.s4 1966171168
          %v7514 = vunpack.c.0.s8 %v7513
          %v7515 = vlaneseq
          %v7516 = vshrl.u32 %v7515, 7
          %v7517 = vsub.s32 %v7514, %v7516
          %v7518 = vrot.slane %v7504, %v7517
          %v7519 = vcombine.low %v7511, %v7518
          %v7521 = vunpack.c.l.s4 1966171168
          %v7522 = vunpack.c.0.s8 %v7521
          %v7523 = vlaneseq
          %v7524 = vshrl.u32 %v7523, 7
          %v7525 = vsub.s32 %v7522, %v7524
          %v7526 = vrot.slane %v7519, %v7525
          %v7528 = vsub.f32 %v7350, %v7526
          %v7530 = vlaneseq
          %v7531 = vshrl.u32 %v7530, 7
          %v7532 = vsub.s32 0, %v7531
          %v7533 = vrot.slane %v7528, %v7532
          %v7534 = vlaneseq
          %v7535 = vshrl.u32 %v7534, 7
          %v7536 = vsub.s32 1, %v7535
          %v7537 = vrot.slane %v7528, %v7536
          %v7538 = vlaneseq
          %v7539 = vshrl.u32 %v7538, 7
          %v7540 = vsub.s32 2, %v7539
          %v7541 = vrot.slane %v7528, %v7540
          %v7542 = vlaneseq
          %v7543 = vshrl.u32 %v7542, 7
          %v7544 = vsub.s32 3, %v7543
          %v7545 = vrot.slane %v7528, %v7544
          %v7550 = vadd.f32 %v7491, %v7533
          %v7551 = vadd.f32 %v7492, %v7537
          %v7552 = vadd.f32 %v7493, %v7541
          %v7553 = vadd.f32 %v7494, %v7545
          %v7554 = vmax.f32 %v7550, 0.0
          %v7555 = vmax.f32 %v7551, 0.0
          %v7556 = vmax.f32 %v7552, 0.0
          %v7557 = vmax.f32 %v7553, 0.0
          %v7558 = vpack.c.bf16 %v7554, %v7554
          %v7559 = vpack.c.bf16 %v7555, %v7555
          %v7560 = vpack.c.bf16 %v7556, %v7556
          %v7561 = vpack.c.bf16 %v7557, %v7557
          %v7562 = vld [vmem:[#allocation15] sm:$0xff]
          %v7563 = vld [vmem:[#allocation15 + $0x8] sm:$0xff]
          %v7564 = vld [vmem:[#allocation15 + $0x10] sm:$0xff]
          %v7565 = vld [vmem:[#allocation15 + $0x18] sm:$0xff]
          %v7566 = vld [vmem:[#allocation15 + $0x20] sm:$0xff]
          %v7567 = vld [vmem:[#allocation15 + $0x28] sm:$0xff]
          %v7568 = vld [vmem:[#allocation15 + $0x30] sm:$0xff]
          %v7569 = vld [vmem:[#allocation15 + $0x38] sm:$0xff]
          %v7570 = vld [vmem:[#allocation15 + $0x40] sm:$0xff]
          %v7571 = vld [vmem:[#allocation15 + $0x48] sm:$0xff]
          %v7572 = vld [vmem:[#allocation15 + $0x50] sm:$0xff]
          %v7573 = vld [vmem:[#allocation15 + $0x58] sm:$0xff]
          %v7574 = vld [vmem:[#allocation15 + $0x60] sm:$0xff]
          %v7575 = vld [vmem:[#allocation15 + $0x68] sm:$0xff]
          %v7576 = vld [vmem:[#allocation15 + $0x70] sm:$0xff]
          %v7577 = vld [vmem:[#allocation15 + $0x78] sm:$0xff]
          %v7578 = vld [vmem:[#allocation15 + $0x80] sm:$0xff]
          %v7579 = vld [vmem:[#allocation15 + $0x88] sm:$0xff]
          %v7580 = vld [vmem:[#allocation15 + $0x90] sm:$0xff]
          %v7581 = vld [vmem:[#allocation15 + $0x98] sm:$0xff]
          %v7582 = vld [vmem:[#allocation15 + $0xa0] sm:$0xff]
          %v7583 = vld [vmem:[#allocation15 + $0xa8] sm:$0xff]
          %v7584 = vld [vmem:[#allocation15 + $0xb0] sm:$0xff]
          %v7585 = vld [vmem:[#allocation15 + $0xb8] sm:$0xff]
          %v7586 = vld [vmem:[#allocation15 + $0xc0] sm:$0xff]
          %v7587 = vld [vmem:[#allocation15 + $0xc8] sm:$0xff]
          %v7588 = vld [vmem:[#allocation15 + $0xd0] sm:$0xff]
          %v7589 = vld [vmem:[#allocation15 + $0xd8] sm:$0xff]
          %v7590 = vld [vmem:[#allocation15 + $0xe0] sm:$0xff]
          %v7591 = vld [vmem:[#allocation15 + $0xe8] sm:$0xff]
          %v7592 = vld [vmem:[#allocation15 + $0xf0] sm:$0xff]
          %v7593 = vld [vmem:[#allocation15 + $0xf8] sm:$0xff]
          %v7594 = vld [vmem:[#allocation15 + $0x100] sm:$0xff]
          %v7595 = vld [vmem:[#allocation15 + $0x108] sm:$0xff]
          %v7596 = vld [vmem:[#allocation15 + $0x110] sm:$0xff]
          %v7597 = vld [vmem:[#allocation15 + $0x118] sm:$0xff]
          %v7598 = vld [vmem:[#allocation15 + $0x120] sm:$0xff]
          %v7599 = vld [vmem:[#allocation15 + $0x128] sm:$0xff]
          %v7600 = vld [vmem:[#allocation15 + $0x130] sm:$0xff]
          %v7601 = vld [vmem:[#allocation15 + $0x138] sm:$0xff]
          %v7602 = vld [vmem:[#allocation15 + $0x140] sm:$0xff]
          %v7603 = vld [vmem:[#allocation15 + $0x148] sm:$0xff]
          %v7604 = vld [vmem:[#allocation15 + $0x150] sm:$0xff]
          %v7605 = vld [vmem:[#allocation15 + $0x158] sm:$0xff]
          %v7606 = vld [vmem:[#allocation15 + $0x160] sm:$0xff]
          %v7607 = vld [vmem:[#allocation15 + $0x168] sm:$0xff]
          %v7608 = vld [vmem:[#allocation15 + $0x170] sm:$0xff]
          %v7609 = vld [vmem:[#allocation15 + $0x178] sm:$0xff]
          %v7610 = vld [vmem:[#allocation15 + $0x180] sm:$0xff]
          %v7611 = vld [vmem:[#allocation15 + $0x188] sm:$0xff]
          %v7612 = vld [vmem:[#allocation15 + $0x190] sm:$0xff]
          %v7613 = vld [vmem:[#allocation15 + $0x198] sm:$0xff]
          %v7614 = vld [vmem:[#allocation15 + $0x1a0] sm:$0xff]
          %v7615 = vld [vmem:[#allocation15 + $0x1a8] sm:$0xff]
          %v7616 = vld [vmem:[#allocation15 + $0x1b0] sm:$0xff]
          %v7617 = vld [vmem:[#allocation15 + $0x1b8] sm:$0xff]
          %v7618 = vld [vmem:[#allocation15 + $0x1c0] sm:$0xff]
          %v7619 = vld [vmem:[#allocation15 + $0x1c8] sm:$0xff]
          %v7620 = vld [vmem:[#allocation15 + $0x1d0] sm:$0xff]
          %v7621 = vld [vmem:[#allocation15 + $0x1d8] sm:$0xff]
          %v7622 = vld [vmem:[#allocation15 + $0x1e0] sm:$0xff]
          %v7623 = vld [vmem:[#allocation15 + $0x1e8] sm:$0xff]
          %v7624 = vld [vmem:[#allocation15 + $0x1f0] sm:$0xff]
          %v7625 = vld [vmem:[#allocation15 + $0x1f8] sm:$0xff]
          %v7626 = vld [vmem:[%s18] sm:$0x3]
          %v7628 = vlaneseq
          %v7629 = vshrl.u32 %v7628, 7
          %v7630 = vsub.s32 0, %v7629
          %v7631 = vrot.slane %v7626, %v7630
          %v7632 = vlaneseq
          %v7633 = vshrl.u32 %v7632, 7
          %v7634 = vsub.s32 1, %v7633
          %v7635 = vrot.slane %v7626, %v7634
          %v7702 = vunpack.c.l.b16 %v7562
          %v7703 = vunpack.c.h.b16 %v7562
          %v7704 = vunpack.c.l.b16 %v7563
          %v7705 = vunpack.c.h.b16 %v7563
          %v7706 = vunpack.c.l.b16 %v7564
          %v7707 = vunpack.c.h.b16 %v7564
          %v7708 = vunpack.c.l.b16 %v7565
          %v7709 = vunpack.c.h.b16 %v7565
          %v7710 = vunpack.c.l.b16 %v7566
          %v7711 = vunpack.c.h.b16 %v7566
          %v7712 = vunpack.c.l.b16 %v7567
          %v7713 = vunpack.c.h.b16 %v7567
          %v7714 = vunpack.c.l.b16 %v7568
          %v7715 = vunpack.c.h.b16 %v7568
          %v7716 = vunpack.c.l.b16 %v7569
          %v7717 = vunpack.c.h.b16 %v7569
          %v7718 = vunpack.c.l.b16 %v7570
          %v7719 = vunpack.c.h.b16 %v7570
          %v7720 = vunpack.c.l.b16 %v7571
          %v7721 = vunpack.c.h.b16 %v7571
          %v7722 = vunpack.c.l.b16 %v7572
          %v7723 = vunpack.c.h.b16 %v7572
          %v7724 = vunpack.c.l.b16 %v7573
          %v7725 = vunpack.c.h.b16 %v7573
          %v7726 = vunpack.c.l.b16 %v7574
          %v7727 = vunpack.c.h.b16 %v7574
          %v7728 = vunpack.c.l.b16 %v7575
          %v7729 = vunpack.c.h.b16 %v7575
          %v7730 = vunpack.c.l.b16 %v7576
          %v7731 = vunpack.c.h.b16 %v7576
          %v7732 = vunpack.c.l.b16 %v7577
          %v7733 = vunpack.c.h.b16 %v7577
          %v7734 = vunpack.c.l.b16 %v7578
          %v7735 = vunpack.c.h.b16 %v7578
          %v7736 = vunpack.c.l.b16 %v7579
          %v7737 = vunpack.c.h.b16 %v7579
          %v7738 = vunpack.c.l.b16 %v7580
          %v7739 = vunpack.c.h.b16 %v7580
          %v7740 = vunpack.c.l.b16 %v7581
          %v7741 = vunpack.c.h.b16 %v7581
          %v7742 = vunpack.c.l.b16 %v7582
          %v7743 = vunpack.c.h.b16 %v7582
          %v7744 = vunpack.c.l.b16 %v7583
          %v7745 = vunpack.c.h.b16 %v7583
          %v7746 = vunpack.c.l.b16 %v7584
          %v7747 = vunpack.c.h.b16 %v7584
          %v7748 = vunpack.c.l.b16 %v7585
          %v7749 = vunpack.c.h.b16 %v7585
          %v7750 = vunpack.c.l.b16 %v7586
          %v7751 = vunpack.c.h.b16 %v7586
          %v7752 = vunpack.c.l.b16 %v7587
          %v7753 = vunpack.c.h.b16 %v7587
          %v7754 = vunpack.c.l.b16 %v7588
          %v7755 = vunpack.c.h.b16 %v7588
          %v7756 = vunpack.c.l.b16 %v7589
          %v7757 = vunpack.c.h.b16 %v7589
          %v7758 = vunpack.c.l.b16 %v7590
          %v7759 = vunpack.c.h.b16 %v7590
          %v7760 = vunpack.c.l.b16 %v7591
          %v7761 = vunpack.c.h.b16 %v7591
          %v7762 = vunpack.c.l.b16 %v7592
          %v7763 = vunpack.c.h.b16 %v7592
          %v7764 = vunpack.c.l.b16 %v7593
          %v7765 = vunpack.c.h.b16 %v7593
          %v7766 = vunpack.c.l.b16 %v7594
          %v7767 = vunpack.c.h.b16 %v7594
          %v7768 = vunpack.c.l.b16 %v7595
          %v7769 = vunpack.c.h.b16 %v7595
          %v7770 = vunpack.c.l.b16 %v7596
          %v7771 = vunpack.c.h.b16 %v7596
          %v7772 = vunpack.c.l.b16 %v7597
          %v7773 = vunpack.c.h.b16 %v7597
          %v7774 = vunpack.c.l.b16 %v7598
          %v7775 = vunpack.c.h.b16 %v7598
          %v7776 = vunpack.c.l.b16 %v7599
          %v7777 = vunpack.c.h.b16 %v7599
          %v7778 = vunpack.c.l.b16 %v7600
          %v7779 = vunpack.c.h.b16 %v7600
          %v7780 = vunpack.c.l.b16 %v7601
          %v7781 = vunpack.c.h.b16 %v7601
          %v7782 = vunpack.c.l.b16 %v7602
          %v7783 = vunpack.c.h.b16 %v7602
          %v7784 = vunpack.c.l.b16 %v7603
          %v7785 = vunpack.c.h.b16 %v7603
          %v7786 = vunpack.c.l.b16 %v7604
          %v7787 = vunpack.c.h.b16 %v7604
          %v7788 = vunpack.c.l.b16 %v7605
          %v7789 = vunpack.c.h.b16 %v7605
          %v7790 = vunpack.c.l.b16 %v7606
          %v7791 = vunpack.c.h.b16 %v7606
          %v7792 = vunpack.c.l.b16 %v7607
          %v7793 = vunpack.c.h.b16 %v7607
          %v7794 = vunpack.c.l.b16 %v7608
          %v7795 = vunpack.c.h.b16 %v7608
          %v7796 = vunpack.c.l.b16 %v7609
          %v7797 = vunpack.c.h.b16 %v7609
          %v7798 = vunpack.c.l.b16 %v7610
          %v7799 = vunpack.c.h.b16 %v7610
          %v7800 = vunpack.c.l.b16 %v7611
          %v7801 = vunpack.c.h.b16 %v7611
          %v7802 = vunpack.c.l.b16 %v7612
          %v7803 = vunpack.c.h.b16 %v7612
          %v7804 = vunpack.c.l.b16 %v7613
          %v7805 = vunpack.c.h.b16 %v7613
          %v7806 = vunpack.c.l.b16 %v7614
          %v7807 = vunpack.c.h.b16 %v7614
          %v7808 = vunpack.c.l.b16 %v7615
          %v7809 = vunpack.c.h.b16 %v7615
          %v7810 = vunpack.c.l.b16 %v7616
          %v7811 = vunpack.c.h.b16 %v7616
          %v7812 = vunpack.c.l.b16 %v7617
          %v7813 = vunpack.c.h.b16 %v7617
          %v7814 = vunpack.c.l.b16 %v7618
          %v7815 = vunpack.c.h.b16 %v7618
          %v7816 = vunpack.c.l.b16 %v7619
          %v7817 = vunpack.c.h.b16 %v7619
          %v7818 = vunpack.c.l.b16 %v7620
          %v7819 = vunpack.c.h.b16 %v7620
          %v7820 = vunpack.c.l.b16 %v7621
          %v7821 = vunpack.c.h.b16 %v7621
          %v7822 = vunpack.c.l.b16 %v7622
          %v7823 = vunpack.c.h.b16 %v7622
          %v7824 = vunpack.c.l.b16 %v7623
          %v7825 = vunpack.c.h.b16 %v7623
          %v7826 = vunpack.c.l.b16 %v7624
          %v7827 = vunpack.c.h.b16 %v7624
          %v7828 = vunpack.c.l.b16 %v7625
          %v7829 = vunpack.c.h.b16 %v7625
          %v7830 = vpack.c.b16 %v7704, %v7702
          %v7831 = vpack.c.b16 %v7705, %v7703
          %v7832 = vpack.c.b16 %v7708, %v7706
          %v7833 = vpack.c.b16 %v7709, %v7707
          %v7834 = vpack.c.b16 %v7712, %v7710
          %v7835 = vpack.c.b16 %v7713, %v7711
          %v7836 = vpack.c.b16 %v7716, %v7714
          %v7837 = vpack.c.b16 %v7717, %v7715
          %v7838 = vpack.c.b16 %v7720, %v7718
          %v7839 = vpack.c.b16 %v7721, %v7719
          %v7840 = vpack.c.b16 %v7724, %v7722
          %v7841 = vpack.c.b16 %v7725, %v7723
          %v7842 = vpack.c.b16 %v7728, %v7726
          %v7843 = vpack.c.b16 %v7729, %v7727
          %v7844 = vpack.c.b16 %v7732, %v7730
          %v7845 = vpack.c.b16 %v7733, %v7731
          %v7846 = vpack.c.b16 %v7736, %v7734
          %v7847 = vpack.c.b16 %v7737, %v7735
          %v7848 = vpack.c.b16 %v7740, %v7738
          %v7849 = vpack.c.b16 %v7741, %v7739
          %v7850 = vpack.c.b16 %v7744, %v7742
          %v7851 = vpack.c.b16 %v7745, %v7743
          %v7852 = vpack.c.b16 %v7748, %v7746
          %v7853 = vpack.c.b16 %v7749, %v7747
          %v7854 = vpack.c.b16 %v7752, %v7750
          %v7855 = vpack.c.b16 %v7753, %v7751
          %v7856 = vpack.c.b16 %v7756, %v7754
          %v7857 = vpack.c.b16 %v7757, %v7755
          %v7858 = vpack.c.b16 %v7760, %v7758
          %v7859 = vpack.c.b16 %v7761, %v7759
          %v7860 = vpack.c.b16 %v7764, %v7762
          %v7861 = vpack.c.b16 %v7765, %v7763
          %v7862 = vpack.c.b16 %v7768, %v7766
          %v7863 = vpack.c.b16 %v7769, %v7767
          %v7864 = vpack.c.b16 %v7772, %v7770
          %v7865 = vpack.c.b16 %v7773, %v7771
          %v7866 = vpack.c.b16 %v7776, %v7774
          %v7867 = vpack.c.b16 %v7777, %v7775
          %v7868 = vpack.c.b16 %v7780, %v7778
          %v7869 = vpack.c.b16 %v7781, %v7779
          %v7870 = vpack.c.b16 %v7784, %v7782
          %v7871 = vpack.c.b16 %v7785, %v7783
          %v7872 = vpack.c.b16 %v7788, %v7786
          %v7873 = vpack.c.b16 %v7789, %v7787
          %v7874 = vpack.c.b16 %v7792, %v7790
          %v7875 = vpack.c.b16 %v7793, %v7791
          %v7876 = vpack.c.b16 %v7796, %v7794
          %v7877 = vpack.c.b16 %v7797, %v7795
          %v7878 = vpack.c.b16 %v7800, %v7798
          %v7879 = vpack.c.b16 %v7801, %v7799
          %v7880 = vpack.c.b16 %v7804, %v7802
          %v7881 = vpack.c.b16 %v7805, %v7803
          %v7882 = vpack.c.b16 %v7808, %v7806
          %v7883 = vpack.c.b16 %v7809, %v7807
          %v7884 = vpack.c.b16 %v7812, %v7810
          %v7885 = vpack.c.b16 %v7813, %v7811
          %v7886 = vpack.c.b16 %v7816, %v7814
          %v7887 = vpack.c.b16 %v7817, %v7815
          %v7888 = vpack.c.b16 %v7820, %v7818
          %v7889 = vpack.c.b16 %v7821, %v7819
          %v7890 = vpack.c.b16 %v7824, %v7822
          %v7891 = vpack.c.b16 %v7825, %v7823
          %v7892 = vpack.c.b16 %v7828, %v7826
          %v7893 = vpack.c.b16 %v7829, %v7827
          %7958 = vmatprep.subr.bf16.mxu0 %v7845
          %7959 = vmatpush1.bf16.msra.mxu0 %v7844
          %7960 = vmatprep.subr.bf16.mxu0 %v7843
          %7961 = vmatpush1.bf16.msra.mxu0 %v7842
          %7962 = vmatprep.subr.bf16.mxu0 %v7841
          %7963 = vmatpush1.bf16.msra.mxu0 %v7840
          %7964 = vmatprep.subr.bf16.mxu0 %v7839
          %7965 = vmatpush1.bf16.msra.mxu0 %v7838
          %7966 = vmatprep.subr.bf16.mxu0 %v7837
          %7967 = vmatpush1.bf16.msra.mxu0 %v7836
          %7968 = vmatprep.subr.bf16.mxu0 %v7835
          %7969 = vmatpush1.bf16.msra.mxu0 %v7834
          %7970 = vmatprep.subr.bf16.mxu0 %v7833
          %7971 = vmatpush1.bf16.msra.mxu0 %v7832
          %7972 = vmatprep.subr.bf16.mxu0 %v7831
          %7973 = vmatpush1.bf16.msra.mxu0 %v7830
          %7974 = vmatprep.subr.bf16.mxu0 %v7861
          %7975 = vmatpush2.bf16.msra.mxu0 %v7860
          %7976 = vmatprep.subr.bf16.mxu0 %v7859
          %7977 = vmatpush2.bf16.msra.mxu0 %v7858
          %7978 = vmatprep.subr.bf16.mxu0 %v7857
          %7979 = vmatpush2.bf16.msra.mxu0 %v7856
          %7980 = vmatprep.subr.bf16.mxu0 %v7855
          %7981 = vmatpush2.bf16.msra.mxu0 %v7854
          %7982 = vmatprep.subr.bf16.mxu0 %v7853
          %7983 = vmatpush2.bf16.msra.mxu0 %v7852
          %7984 = vmatprep.subr.bf16.mxu0 %v7851
          %7985 = vmatpush2.bf16.msra.mxu0 %v7850
          %7986 = vmatprep.subr.bf16.mxu0 %v7849
          %7987 = vmatpush2.bf16.msra.mxu0 %v7848
          %7988 = vmatprep.subr.bf16.mxu0 %v7847
          %7989 = vmatpush2.bf16.msra.mxu0 %v7846
          %7990 = vmatprep.mubr.bf16.mxu0 %v7559
          %7991 = vmatmul.mubr.bf16.gmra.mxu0 %v7558
          %v7992 = vpop.f32.mrf.mxu0
          %v7993 = vadd.f32 %v7631, %v7992
          %v7994 = vpop.f32.mrf.mxu0
          %v7995 = vadd.f32 %v7635, %v7994
          %v7996 = vpop.f32.mrf.mxu0
          %v7997 = vpop.f32.mrf.mxu0
          %7998 = vdwg.mxu0
          %7999 = vmatprep.subr.bf16.mxu0 %v7877
          %8000 = vmatpush1.bf16.msra.mxu0 %v7876
          %8001 = vmatprep.subr.bf16.mxu0 %v7875
          %8002 = vmatpush1.bf16.msra.mxu0 %v7874
          %8003 = vmatprep.subr.bf16.mxu0 %v7873
          %8004 = vmatpush1.bf16.msra.mxu0 %v7872
          %8005 = vmatprep.subr.bf16.mxu0 %v7871
          %8006 = vmatpush1.bf16.msra.mxu0 %v7870
          %8007 = vmatprep.subr.bf16.mxu0 %v7869
          %8008 = vmatpush1.bf16.msra.mxu0 %v7868
          %8009 = vmatprep.subr.bf16.mxu0 %v7867
          %8010 = vmatpush1.bf16.msra.mxu0 %v7866
          %8011 = vmatprep.subr.bf16.mxu0 %v7865
          %8012 = vmatpush1.bf16.msra.mxu0 %v7864
          %8013 = vmatprep.subr.bf16.mxu0 %v7863
          %8014 = vmatpush1.bf16.msra.mxu0 %v7862
          %8015 = vmatprep.subr.bf16.mxu0 %v7893
          %8016 = vmatpush2.bf16.msra.mxu0 %v7892
          %8017 = vmatprep.subr.bf16.mxu0 %v7891
          %8018 = vmatpush2.bf16.msra.mxu0 %v7890
          %8019 = vmatprep.subr.bf16.mxu0 %v7889
          %8020 = vmatpush2.bf16.msra.mxu0 %v7888
          %8021 = vmatprep.subr.bf16.mxu0 %v7887
          %8022 = vmatpush2.bf16.msra.mxu0 %v7886
          %8023 = vmatprep.subr.bf16.mxu0 %v7885
          %8024 = vmatpush2.bf16.msra.mxu0 %v7884
          %8025 = vmatprep.subr.bf16.mxu0 %v7883
          %8026 = vmatpush2.bf16.msra.mxu0 %v7882
          %8027 = vmatprep.subr.bf16.mxu0 %v7881
          %8028 = vmatpush2.bf16.msra.mxu0 %v7880
          %8029 = vmatprep.subr.bf16.mxu0 %v7879
          %8030 = vmatpush2.bf16.msra.mxu0 %v7878
          %8031 = vmatprep.mubr.bf16.mxu0 %v7561
          %8032 = vmatmul.mubr.bf16.gmra.mxu0 %v7560
          %v8033 = vpop.f32.mrf.mxu0
          %v8034 = vadd.f32 %v7993, %v8033
          %v8035 = vpop.f32.mrf.mxu0
          %v8036 = vadd.f32 %v7995, %v8035
          %v8037 = vpop.f32.mrf.mxu0
          %v8038 = vpop.f32.mrf.mxu0
          %8039 = vdwg.mxu0
          %v8040 = vld [vmem:[%s19] sm:$0x3]
          %v8041 = vld [vmem:[%s20] sm:$0x3]
          %v8042 = vsel %vm1123, %v8034, 0.0
          %v8043 = vrot.slane %v8042, 4
          %v8044 = vadd.f32 %v8042, %v8043
          %v8045 = vrot.slane %v8044, 2
          %v8046 = vadd.f32 %v8044, %v8045
          %v8047 = vrot.slane %v8046, 1
          %v8048 = vadd.f32 %v8046, %v8047
          %v8049 = vsel %vm1123, %v8036, 0.0
          %v8050 = vrot.slane %v8049, 4
          %v8051 = vadd.f32 %v8049, %v8050
          %v8052 = vrot.slane %v8051, 2
          %v8053 = vadd.f32 %v8051, %v8052
          %v8054 = vrot.slane %v8053, 1
          %v8055 = vadd.f32 %v8053, %v8054
          %v8056 = vmul.f32 %v8048, %v7379
          %v8057 = vmul.f32 %v8055, %v7379
          %v8058 = vmul.f32 %v8034, %v8034
          %v8059 = vmul.f32 %v8036, %v8036
          %v8060 = vsel %vm1123, %v8058, 0.0
          %v8061 = vrot.slane %v8060, 4
          %v8062 = vadd.f32 %v8060, %v8061
          %v8063 = vrot.slane %v8062, 2
          %v8064 = vadd.f32 %v8062, %v8063
          %v8065 = vrot.slane %v8064, 1
          %v8066 = vadd.f32 %v8064, %v8065
          %v8067 = vsel %vm1123, %v8059, 0.0
          %v8068 = vrot.slane %v8067, 4
          %v8069 = vadd.f32 %v8067, %v8068
          %v8070 = vrot.slane %v8069, 2
          %v8071 = vadd.f32 %v8069, %v8070
          %v8072 = vrot.slane %v8071, 1
          %v8073 = vadd.f32 %v8071, %v8072
          %v8074 = vmul.f32 %v8066, %v7379
          %v8075 = vmul.f32 %v8073, %v7379
          %v8076 = vmul.f32 %v8056, %v8056
          %v8077 = vmul.f32 %v8057, %v8057
          %v8078 = vsub.f32 %v8074, %v8076
          %v8079 = vsub.f32 %v8075, %v8077
          %v8080 = vmax.f32 %v8078, 0.0
          %v8081 = vmax.f32 %v8079, 0.0
          %v8082 = vadd.f32 %v8080, 1e-05
          %v8083 = vadd.f32 %v8081, 1e-05
          %v8084 = vrsqrt.pop %v8082
          %v8085 = vrsqrt.pop %v8083
          %v8088 = vcombine.low %v8084, %v8085
          %v8090 = vunpack.c.l.s4 1966171168
          %v8091 = vunpack.c.0.s8 %v8090
          %v8092 = vlaneseq
          %v8093 = vshrl.u32 %v8092, 7
          %v8094 = vsub.s32 %v8091, %v8093
          %v8095 = vrot.slane %v8088, %v8094
          %v8097 = vunpack.c.l.s4 1966171168
          %v8098 = vunpack.c.0.s8 %v8097
          %v8099 = vlaneseq
          %v8100 = vshrl.u32 %v8099, 7
          %v8101 = vsub.s32 %v8098, %v8100
          %v8102 = vrot.slane %v8095, %v8101
          %v8104 = vmul.f32 %v8040, %v8102
          %v8106 = vlaneseq
          %v8107 = vshrl.u32 %v8106, 7
          %v8108 = vsub.s32 0, %v8107
          %v8109 = vrot.slane %v8104, %v8108
          %v8110 = vlaneseq
          %v8111 = vshrl.u32 %v8110, 7
          %v8112 = vsub.s32 1, %v8111
          %v8113 = vrot.slane %v8104, %v8112
          %v8116 = vmul.f32 %v8034, %v8109
          %v8117 = vmul.f32 %v8036, %v8113
          %v8118 = vmul.f32 %v8056, %v8109
          %v8119 = vmul.f32 %v8057, %v8113
          %v8122 = vcombine.low %v8118, %v8119
          %v8124 = vunpack.c.l.s4 1966171168
          %v8125 = vunpack.c.0.s8 %v8124
          %v8126 = vlaneseq
          %v8127 = vshrl.u32 %v8126, 7
          %v8128 = vsub.s32 %v8125, %v8127
          %v8129 = vrot.slane %v8122, %v8128
          %v8131 = vunpack.c.l.s4 1966171168
          %v8132 = vunpack.c.0.s8 %v8131
          %v8133 = vlaneseq
          %v8134 = vshrl.u32 %v8133, 7
          %v8135 = vsub.s32 %v8132, %v8134
          %v8136 = vrot.slane %v8129, %v8135
          %v8138 = vsub.f32 %v8041, %v8136
          %v8140 = vlaneseq
          %v8141 = vshrl.u32 %v8140, 7
          %v8142 = vsub.s32 0, %v8141
          %v8143 = vrot.slane %v8138, %v8142
          %v8144 = vlaneseq
          %v8145 = vshrl.u32 %v8144, 7
          %v8146 = vsub.s32 1, %v8145
          %v8147 = vrot.slane %v8138, %v8146
          %v8150 = vadd.f32 %v8116, %v8143
          %v8151 = vadd.f32 %v8117, %v8147
          %v8152 = vmax.f32 %v8150, 0.0
          %v8153 = vmax.f32 %v8151, 0.0
          %v8154 = vpack.c.bf16 %v8152, %v8152
          %v8155 = vpack.c.bf16 %v8153, %v8153
          %v8156 = vld [vmem:[%s21] sm:$0xf]
          %v8157 = vld [vmem:[%s21 + $0x4] sm:$0xf]
          %v8158 = vld [vmem:[%s21 + $0x8] sm:$0xf]
          %v8159 = vld [vmem:[%s21 + $0xc] sm:$0xf]
          %v8160 = vld [vmem:[%s21 + $0x10] sm:$0xf]
          %v8161 = vld [vmem:[%s21 + $0x14] sm:$0xf]
          %v8162 = vld [vmem:[%s21 + $0x18] sm:$0xf]
          %v8163 = vld [vmem:[%s21 + $0x1c] sm:$0xf]
          %v8164 = vld [vmem:[%s21 + $0x20] sm:$0xf]
          %v8165 = vld [vmem:[%s21 + $0x24] sm:$0xf]
          %v8166 = vld [vmem:[%s21 + $0x28] sm:$0xf]
          %v8167 = vld [vmem:[%s21 + $0x2c] sm:$0xf]
          %v8168 = vld [vmem:[%s21 + $0x30] sm:$0xf]
          %v8169 = vld [vmem:[%s21 + $0x34] sm:$0xf]
          %v8170 = vld [vmem:[%s21 + $0x38] sm:$0xf]
          %v8171 = vld [vmem:[%s21 + $0x3c] sm:$0xf]
          %v8172 = vld [vmem:[%s21 + $0x40] sm:$0xf]
          %v8173 = vld [vmem:[%s21 + $0x44] sm:$0xf]
          %v8174 = vld [vmem:[%s21 + $0x48] sm:$0xf]
          %v8175 = vld [vmem:[%s21 + $0x4c] sm:$0xf]
          %v8176 = vld [vmem:[%s21 + $0x50] sm:$0xf]
          %v8177 = vld [vmem:[%s21 + $0x54] sm:$0xf]
          %v8178 = vld [vmem:[%s21 + $0x58] sm:$0xf]
          %v8179 = vld [vmem:[%s21 + $0x5c] sm:$0xf]
          %v8180 = vld [vmem:[%s21 + $0x60] sm:$0xf]
          %v8181 = vld [vmem:[%s21 + $0x64] sm:$0xf]
          %v8182 = vld [vmem:[%s21 + $0x68] sm:$0xf]
          %v8183 = vld [vmem:[%s21 + $0x6c] sm:$0xf]
          %v8184 = vld [vmem:[%s21 + $0x70] sm:$0xf]
          %v8185 = vld [vmem:[%s21 + $0x74] sm:$0xf]
          %v8186 = vld [vmem:[%s21 + $0x78] sm:$0xf]
          %v8187 = vld [vmem:[%s21 + $0x7c] sm:$0xf]
          %v8188 = vld [vmem:[%s22] sm:$0x1]
          %v8190 = vlaneseq
          %v8191 = vshrl.u32 %v8190, 7
          %v8192 = vsub.s32 0, %v8191
          %v8193 = vrot.slane %v8188, %v8192
          %v8227 = vunpack.c.l.b16 %v8156
          %v8228 = vunpack.c.l.b16 %v8157
          %v8229 = vunpack.c.l.b16 %v8158
          %v8230 = vunpack.c.l.b16 %v8159
          %v8231 = vunpack.c.l.b16 %v8160
          %v8232 = vunpack.c.l.b16 %v8161
          %v8233 = vunpack.c.l.b16 %v8162
          %v8234 = vunpack.c.l.b16 %v8163
          %v8235 = vunpack.c.l.b16 %v8164
          %v8236 = vunpack.c.l.b16 %v8165
          %v8237 = vunpack.c.l.b16 %v8166
          %v8238 = vunpack.c.l.b16 %v8167
          %v8239 = vunpack.c.l.b16 %v8168
          %v8240 = vunpack.c.l.b16 %v8169
          %v8241 = vunpack.c.l.b16 %v8170
          %v8242 = vunpack.c.l.b16 %v8171
          %v8243 = vunpack.c.l.b16 %v8172
          %v8244 = vunpack.c.l.b16 %v8173
          %v8245 = vunpack.c.l.b16 %v8174
          %v8246 = vunpack.c.l.b16 %v8175
          %v8247 = vunpack.c.l.b16 %v8176
          %v8248 = vunpack.c.l.b16 %v8177
          %v8249 = vunpack.c.l.b16 %v8178
          %v8250 = vunpack.c.l.b16 %v8179
          %v8251 = vunpack.c.l.b16 %v8180
          %v8252 = vunpack.c.l.b16 %v8181
          %v8253 = vunpack.c.l.b16 %v8182
          %v8254 = vunpack.c.l.b16 %v8183
          %v8255 = vunpack.c.l.b16 %v8184
          %v8256 = vunpack.c.l.b16 %v8185
          %v8257 = vunpack.c.l.b16 %v8186
          %v8258 = vunpack.c.l.b16 %v8187
          %v8259 = vpack.c.b16 %v8228, %v8227
          %v8260 = vpack.c.b16 %v8230, %v8229
          %v8261 = vpack.c.b16 %v8232, %v8231
          %v8262 = vpack.c.b16 %v8234, %v8233
          %v8263 = vpack.c.b16 %v8236, %v8235
          %v8264 = vpack.c.b16 %v8238, %v8237
          %v8265 = vpack.c.b16 %v8240, %v8239
          %v8266 = vpack.c.b16 %v8242, %v8241
          %v8267 = vpack.c.b16 %v8244, %v8243
          %v8268 = vpack.c.b16 %v8246, %v8245
          %v8269 = vpack.c.b16 %v8248, %v8247
          %v8270 = vpack.c.b16 %v8250, %v8249
          %v8271 = vpack.c.b16 %v8252, %v8251
          %v8272 = vpack.c.b16 %v8254, %v8253
          %v8273 = vpack.c.b16 %v8256, %v8255
          %v8274 = vpack.c.b16 %v8258, %v8257
          %8291 = vmatprep.subr.bf16.mxu0 0
          %8292 = vmatpush1.bf16.msra.mxu0 %v8266
          %8293 = vmatprep.subr.bf16.mxu0 0
          %8294 = vmatpush1.bf16.msra.mxu0 %v8265
          %8295 = vmatprep.subr.bf16.mxu0 0
          %8296 = vmatpush1.bf16.msra.mxu0 %v8264
          %8297 = vmatprep.subr.bf16.mxu0 0
          %8298 = vmatpush1.bf16.msra.mxu0 %v8263
          %8299 = vmatprep.subr.bf16.mxu0 0
          %8300 = vmatpush1.bf16.msra.mxu0 %v8262
          %8301 = vmatprep.subr.bf16.mxu0 0
          %8302 = vmatpush1.bf16.msra.mxu0 %v8261
          %8303 = vmatprep.subr.bf16.mxu0 0
          %8304 = vmatpush1.bf16.msra.mxu0 %v8260
          %8305 = vmatprep.subr.bf16.mxu0 0
          %8306 = vmatpush1.bf16.msra.mxu0 %v8259
          %8307 = vmatprep.subr.bf16.mxu0 0
          %8308 = vmatpush2.bf16.msra.mxu0 %v8274
          %8309 = vmatprep.subr.bf16.mxu0 0
          %8310 = vmatpush2.bf16.msra.mxu0 %v8273
          %8311 = vmatprep.subr.bf16.mxu0 0
          %8312 = vmatpush2.bf16.msra.mxu0 %v8272
          %8313 = vmatprep.subr.bf16.mxu0 0
          %8314 = vmatpush2.bf16.msra.mxu0 %v8271
          %8315 = vmatprep.subr.bf16.mxu0 0
          %8316 = vmatpush2.bf16.msra.mxu0 %v8270
          %8317 = vmatprep.subr.bf16.mxu0 0
          %8318 = vmatpush2.bf16.msra.mxu0 %v8269
          %8319 = vmatprep.subr.bf16.mxu0 0
          %8320 = vmatpush2.bf16.msra.mxu0 %v8268
          %8321 = vmatprep.subr.bf16.mxu0 0
          %8322 = vmatpush2.bf16.msra.mxu0 %v8267
          %8323 = vmatprep.mubr.bf16.mxu0 %v8155
          %8324 = vmatmul.mubr.bf16.gmra.mxu0 %v8154
          %v8325 = vpop.f32.mrf.mxu0
          %v8326 = vadd.f32 %v8193, %v8325
          %v8327 = vpop.f32.mrf.mxu0
          %v8328 = vpop.f32.mrf.mxu0
          %v8329 = vpop.f32.mrf.mxu0
          %8330 = vdwg.mxu0
          %8331 = vst [vmem:[#allocation16] sm:$0xf] %v8326
        $region185: #{tpu_custom_call.1} parent=148 // pred_fallthru
          _
        // Predicated region
        $region186: #{tpu_custom_call.1} parent=148 // pred_check
          %p8332 = pneg %p550
        $region187: #{tpu_custom_call.1} parent=148 // pred_check_branch
          %8334 = sbr.rel (%p8332) target = $region189
        $region188: #{tpu_custom_call.1} parent=148 // pred_region
          %s8336 = ssub.s32 64, 64
          %8337 = vsyncadd [#allocation12], %s8336
          %s8339 = sshll.u32 [#allocation16], 4
          %s8340 = int_to_ptr.vmem [resolvable:$true] %s8339
          %8342 = dma.vmem_to_hbm [thread:$0]  %s8340, 64, %s23, [#allocation12]
        $region189: #{tpu_custom_call.1} parent=148 // pred_fallthru
          _
        // Predicated region
        $region190: #{tpu_custom_call.1} parent=148 // pred_check
          %p8343 = pneg %p550
        $region191: #{tpu_custom_call.1} parent=148 // pred_check_branch
          %8345 = sbr.rel (%p8343) target = $region193
        $region192: #{tpu_custom_call.1} parent=148 // pred_region
          %8346 = dma.done [#allocation12], 64
        $region193: #{tpu_custom_call.1} parent=148 // pred_fallthru
          _
      $region149: #{tpu_custom_call.1} parent=5 // pred_fallthru
        _
      %p8347 = scmp.le.s32.totalorder 2, %s32
      // Predicated region
      $region194: #{tpu_custom_call.1} parent=5 // pred_check
        %p8348 = pneg %p8347
      $region195: #{tpu_custom_call.1} parent=5 // pred_check_branch
        %8350 = sbr.rel (%p8348) target = $region197
      $region196: #{tpu_custom_call.1} parent=5 // pred_region
        %s8351 = ssub.s32 %s32, 2
      $region197: #{tpu_custom_call.1} parent=5 // pred_fallthru
        _
    $region6: #{tpu_custom_call.1} parent=1 // loop_footer
      %s36 = sadd.s32 1, %s32
    $region7: #{tpu_custom_call.1} parent=1 // loop_footer_branch
      %31 = sbr.rel target = $region3
    $region8: #{tpu_custom_call.1} parent=1 // loop_exit
      _
    %8352 = vsyncpa [#allocation11], 1
    %s8353 = scalar_lea.sflag [#allocation11], 1
    %8354 = vsyncpa %s8353, 1
    %8355 = vsyncpa [#allocation14], 1
    %8356 = vsyncpa [#allocation12], 1
    %s8357 = scalar_lea.sflag [#allocation12], 1
    %8358 = vsyncpa %s8357, 1

</llo_original>
